<compile_context>
chip_gen: v7x
topology: tpu7x:2x2x1
jax: 0.10.0
libtpu: 0.0.40
codegen_flags: <defaults>
</compile_context>

<pallas_src>
import functools

import jax
import jax.numpy as jnp
from jax.experimental import pallas as pl
from jax.experimental.pallas import tpu as pltpu

EPS = 1e-5
LANE = 128
NCORES = 2          # leading "parallel" grid axis (megacore on v7x; serial elsewhere)


# --------------------------------------------------------------------------------------
# helpers
# --------------------------------------------------------------------------------------
def _round_up(v, m):
    return (v + m - 1) // m * m


def _vmem_limit_bytes():
    # ~96 MiB on v5e/v6e (128 MiB physical VMEM), ~48 MiB on v7x (64 MiB physical).
    try:
        cap = pltpu.get_tpu_info().vmem_capacity_bytes
    except Exception:                       # conservative default if the query fails
        cap = 64 * 1024 * 1024
    return min(int(cap * 3 // 4), 112 * 1024 * 1024)


_VMEM_LIMIT = _vmem_limit_bytes()


def _cparams(semantics):
    return pltpu.CompilerParams(dimension_semantics=semantics,
                                vmem_limit_bytes=_VMEM_LIMIT)


def _pick_row_tile(m):
    # Largest 8-aligned tile whose tile count is a multiple of NCORES (no padding);
    # otherwise a fixed tile + row padding (padded rows are zero / masked for stats).
    cands = (2048, 1024, 512, 256, 128, 64, 32, 16, 8)
    for t in cands:
        if m % t == 0 and (m // t) % NCORES == 0:
            return t
    for t in cands:
        if m >= NCORES * t:
            return t
    return 8


def _make_row_shift():
    """Returns f(y, off) with f(y, off)[r] == y[(r + off) % y.shape[0]] (axis 0).

    Prefers pltpu.roll (XLU slot, no VMEM copy).  The roll direction is verified at
    import time with a probe kernel; on any failure we fall back to the proven (but
    copy-heavy) concatenate-based shift.
    """
    n, c, s = 256, LANE, 17
    try:
        def _probe(o_ref):
            o_ref[...] = pltpu.roll(
                jax.lax.broadcasted_iota(jnp.float32, (n, c), 0), s, axis=0)

        got = pl.pallas_call(
            _probe, out_shape=jax.ShapeDtypeStruct((n, c), jnp.float32))()
        base = jnp.broadcast_to(jnp.arange(n, dtype=jnp.float32)[:, None], (n, c))
        if bool(jnp.array_equal(got, jnp.roll(base, s, axis=0))):
            return lambda y, off: pltpu.roll(y, (-off) % y.shape[0], axis=0)
        if bool(jnp.array_equal(got, jnp.roll(base, -s, axis=0))):
            return lambda y, off: pltpu.roll(y, off % y.shape[0], axis=0)
    except Exception:
        pass
    return lambda y, off: jnp.concatenate(
        [y[off % y.shape[0]:], y[:off % y.shape[0]]], axis=0)


_row_shift = _make_row_shift()


def _bn_fold(s, ss, gamma, beta, count):
    # training-mode BatchNorm (biased variance) folded into y * scale + shift (f32).
    mu = s / count
    var = jnp.maximum(ss / count - mu * mu, 0.0)
    # TODO(synk): switch to a two-pass / Welford scheme if E[y^2]-E[y]^2 cancellation
    #             becomes visible at very large N*H*W.
    scale = gamma * jax.lax.rsqrt(var + EPS)
    return scale, beta - mu * scale


# --------------------------------------------------------------------------------------
# pass 1: per-channel sum / sumsq of the layer_1 and shortcut pre-BN outputs
# --------------------------------------------------------------------------------------
def _stats1_kernel(x_ref, w1_ref, ws_ref, s_ref):
    @pl.when(pl.program_id(1) == 0)
    def _init():
        s_ref[...] = jnp.zeros_like(s_ref)

    x = x_ref[...]                                       # (tm, Cin) bf16; padded rows = 0
    y1 = jnp.dot(x, w1_ref[...], preferred_element_type=jnp.float32)
    ys = jnp.dot(x, ws_ref[...], preferred_element_type=jnp.float32)
    s_ref[...] += jnp.concatenate(
        [jnp.sum(y1, axis=0, keepdims=True),
         jnp.sum(y1 * y1, axis=0, keepdims=True),
         jnp.sum(ys, axis=0, keepdims=True),
         jnp.sum(ys * ys, axis=0, keepdims=True)], axis=0)[None]


# --------------------------------------------------------------------------------------
# pass 2: layer_1 apply + fused shortcut branch + in-VMEM 3x3 conv + BN2 stats
# --------------------------------------------------------------------------------------
def _mid_kernel(x_ref, w1_ref, sc1_ref, sh1_ref, ws_ref, scs_ref, shs_ref, w2_ref,
                y2_ref, res_ref, s_ref, *, H, W):
    @pl.when(pl.program_id(1) == 0)
    def _init():
        s_ref[...] = jnp.zeros_like(s_ref)

    F = H * W
    x = x_ref[...]                                       # (F, Cin) bf16

    # layer_1: 1x1 conv + BN + ReLU (kept f32 for the 3x3 taps below)
    y1 = jnp.dot(x, w1_ref[...], preferred_element_type=jnp.float32)
    y1 = jnp.maximum(y1 * sc1_ref[...] + sh1_ref[...], 0.0)

    # shortcut: 1x1 conv + BN + ReLU, written once (bf16) and re-used by pass 4
    rs = jnp.dot(x, ws_ref[...], preferred_element_type=jnp.float32)
    res_ref[...] = jnp.maximum(rs * scs_ref[...] + shs_ref[...], 0.0).astype(res_ref.dtype)

    # 3x3 "SAME" conv as 9 shifted, border-masked matmuls.  Row shifts go through the
    # XLU (pltpu.roll) rather than concatenate copies; the vertical-border condition is
    # a flat-row range check (no integer division needed).
    row = jax.lax.broadcasted_iota(jnp.int32, (F, 1), 0)
    col = row % W
    acc = jnp.zeros((F, y1.shape[1]), jnp.float32)
    for dy in (-1, 0, 1):
        row_ok = (row + dy * W >= 0) & (row + dy * W < F)
        for dx in (-1, 0, 1):
            valid = row_ok & (col + dx >= 0) & (col + dx < W)
            off = dy * W + dx
            shifted = y1 if off == 0 else _row_shift(y1, off)
            tap = jnp.where(valid, shifted, 0.0).astype(jnp.bfloat16)
            acc += jnp.dot(tap, w2_ref[(dy + 1) * 3 + (dx + 1)],
                           preferred_element_type=jnp.float32)

    y2_ref[...] = acc.astype(y2_ref.dtype)               # pre-BN conv3x3 output (bf16)
    s_ref[...] += jnp.concatenate(
        [jnp.sum(acc, axis=0, keepdims=True),
         jnp.sum(acc * acc, axis=0, keepdims=True)], axis=0)[None]


# --------------------------------------------------------------------------------------
# pass 3: per-channel sum / sumsq of the layer_3 pre-BN output (y3 recomputed, discarded)
# --------------------------------------------------------------------------------------
def _stats3_kernel(y2_ref, sc2_ref, sh2_ref, w3_ref, s_ref, *, tm, tiles_per_core, m_valid):
    @pl.when(pl.program_id(1) == 0)
    def _init():
        s_ref[...] = jnp.zeros_like(s_ref)

    tile = pl.program_id(0) * tiles_per_core + pl.program_id(1)
    rows = tile * tm + jax.lax.broadcasted_iota(jnp.int32, (tm, 1), 0)
    y2 = jnp.maximum(y2_ref[...].astype(jnp.float32) * sc2_ref[...] + sh2_ref[...], 0.0)
    y2 = jnp.where(rows < m_valid, y2, 0.0)              # mask rows that are M padding
    y3 = jnp.dot(y2.astype(jnp.bfloat16), w3_ref[...], preferred_element_type=jnp.float32)
    s_ref[...] += jnp.concatenate(
        [jnp.sum(y3, axis=0, keepdims=True),
         jnp.sum(y3 * y3, axis=0, keepdims=True)], axis=0)[None]


# --------------------------------------------------------------------------------------
# pass 4: apply BN2/BN3 + ReLU, layer_3 1x1 conv, add the precomputed shortcut branch
# --------------------------------------------------------------------------------------
def _final_kernel(y2_ref, res_ref, sc2_ref, sh2_ref, w3_ref, sc3_ref, sh3_ref, out_ref):
    y2 = jnp.maximum(y2_ref[...].astype(jnp.float32) * sc2_ref[...] + sh2_ref[...], 0.0)
    y3 = jnp.dot(y2.astype(jnp.bfloat16), w3_ref[...], preferred_element_type=jnp.float32)
    main = jnp.maximum(y3 * sc3_ref[...] + sh3_ref[...], 0.0)
    out_ref[...] = (main + res_ref[...].astype(jnp.float32)).astype(out_ref.dtype)


# --------------------------------------------------------------------------------------
# wrapper
# --------------------------------------------------------------------------------------
def resnet_bottleneck_block(x, p):
    """x: (N, Cin, H, W) float32 (NCHW, PyTorch layout). Returns (N, Cout, H, W)."""
    N, Cin, H, W = x.shape
    C = p["w1"].shape[1]
    F = H * W
    M = N * F
    f32, bf16 = jnp.float32, jnp.bfloat16

    if F % 8 != 0:
        # TODO(synk): pad F / H-halo-tile pass 2 for odd spatial sizes (e.g. 7x7 stage).
        raise NotImplementedError("H*W must be a multiple of 8")

    C_p = _round_up(C, LANE)
    tm = _pick_row_tile(M)
    m_pad = _round_up(M, NCORES * tm)
    tiles_per_core = m_pad // (NCORES * tm)

    # layout glue: NCHW -> (M, Cin) bf16 rows (Cin not padded: block dim == full dim)
    x_flat = jnp.transpose(x, (0, 2, 3, 1)).reshape(M, Cin).astype(bf16)
    if m_pad != M:
        x_flat = jnp.pad(x_flat, ((0, m_pad - M), (0, 0)))   # zero rows: stats-neutral

    w1p = jnp.pad(p["w1"], ((0, 0), (0, C_p - C))).astype(bf16)
    wsp = jnp.pad(p["ws"], ((0, 0), (0, C_p - C))).astype(bf16)
    w3p = jnp.pad(p["w3"], ((0, C_p - C), (0, C_p - C))).astype(bf16)
    w2p = jnp.pad(p["w2"], ((0, 0), (0, 0), (0, C_p - C), (0, C_p - C)))
    w2p = w2p.reshape(9, C_p, C_p).astype(bf16)

    padv = lambda a: jnp.pad(a.astype(f32), ((0, 0), (0, C_p - C)))
    g1, bt1 = padv(p["g1"]), padv(p["bt1"])
    g2, bt2 = padv(p["g2"]), padv(p["bt2"])
    g3, bt3 = padv(p["g3"]), padv(p["bt3"])
    gs, bts = padv(p["gs"]), padv(p["bts"])
    # NOTE: conv biases b1/b2/b3/bs are intentionally unused; training-mode BN cancels
    # constant per-channel shifts exactly.

    def const2(shape):                        # whole-array resident, 2-D grid
        return pl.BlockSpec(shape, lambda c, i: (0,) * len(shape))

    def const1(shape):                        # whole-array resident, 1-D grid
        return pl.BlockSpec(shape, lambda i: (0,) * len(shape))

    def rows2(cols):                          # row tile indexed by (core, inner step)
        return pl.BlockSpec((tm, cols), lambda c, i: (c * tiles_per_core + i, 0))

    def stats_spec(k):                        # per-core stats slab
        return pl.BlockSpec((1, k, C_p), lambda c, i: (c, 0, 0))

    # ---- pass 1: BN1 / BN_shortcut statistics -----------------------------------------
    stats1 = pl.pallas_call(
        _stats1_kernel,
        grid=(NCORES, tiles_per_core),
        in_specs=[rows2(Cin), const2((Cin, C_p)), const2((Cin, C_p))],
        out_specs=stats_spec(4),
        out_shape=jax.ShapeDtypeStruct((NCORES, 4, C_p), f32),
        compiler_params=_cparams(("parallel", "arbitrary")),
    )(x_flat, w1p, wsp)
    stats1 = jnp.sum(stats1, axis=0)                        # combine per-core partials
    sc1, sh1 = _bn_fold(stats1[0:1], stats1[1:2], g1, bt1, M)
    scs, shs = _bn_fold(stats1[2:3], stats1[3:4], gs, bts, M)

    # ---- pass 2: layer_1 apply + shortcut branch + 3x3 conv in VMEM + BN2 stats -------
    nc2 = NCORES if N % NCORES == 0 else 1
    imgs_per_core = N // nc2
    y2_raw, res, stats2 = pl.pallas_call(
        functools.partial(_mid_kernel, H=H, W=W),
        grid=(nc2, imgs_per_core),
        in_specs=[pl.BlockSpec((F, Cin), lambda c, i: (c * imgs_per_core + i, 0)),
                  const2((Cin, C_p)), const2((1, C_p)), const2((1, C_p)),
                  const2((Cin, C_p)), const2((1, C_p)), const2((1, C_p)),
                  const2((9, C_p, C_p))],
        out_specs=(pl.BlockSpec((F, C_p), lambda c, i: (c * imgs_per_core + i, 0)),
                   pl.BlockSpec((F, C_p), lambda c, i: (c * imgs_per_core + i, 0)),
                   pl.BlockSpec((1, 2, C_p), lambda c, i: (c, 0, 0))),
        out_shape=(jax.ShapeDtypeStruct((m_pad, C_p), bf16),
                   jax.ShapeDtypeStruct((m_pad, C_p), bf16),
                   jax.ShapeDtypeStruct((nc2, 2, C_p), f32)),
        compiler_params=_cparams(("parallel", "arbitrary")),
    )(x_flat, w1p, sc1, sh1, wsp, scs, shs, w2p)
    stats2 = jnp.sum(stats2, axis=0)
    sc2, sh2 = _bn_fold(stats2[0:1], stats2[1:2], g2, bt2, M)

    # ---- pass 3: BN3 statistics (y3 recomputed, never materialised) -------------------
    stats3 = pl.pallas_call(
        functools.partial(_stats3_kernel, tm=tm, tiles_per_core=tiles_per_core, m_valid=M),
        grid=(NCORES, tiles_per_core),
        in_specs=[rows2(C_p), const2((1, C_p)), const2((1, C_p)), const2((C_p, C_p))],
        out_specs=stats_spec(2),
        out_shape=jax.ShapeDtypeStruct((NCORES, 2, C_p), f32),
        compiler_params=_cparams(("parallel", "arbitrary")),
    )(y2_raw, sc2, sh2, w3p)
    stats3 = jnp.sum(stats3, axis=0)
    sc3, sh3 = _bn_fold(stats3[0:1], stats3[1:2], g3, bt3, M)

    # ---- pass 4: apply BN2/BN3 + ReLU, layer_3 conv, residual add ----------------------
    out_flat = pl.pallas_call(
        _final_kernel,
        grid=(m_pad // tm,),
        in_specs=[pl.BlockSpec((tm, C_p), lambda i: (i, 0)),
                  pl.BlockSpec((tm, C_p), lambda i: (i, 0)),
                  const1((1, C_p)), const1((1, C_p)), const1((C_p, C_p)),
                  const1((1, C_p)), const1((1, C_p))],
        out_specs=pl.BlockSpec((tm, C_p), lambda i: (i, 0)),
        out_shape=jax.ShapeDtypeStruct((m_pad, C_p), f32),
        compiler_params=_cparams(("parallel",)),
    )(y2_raw, res, sc2, sh2, w3p, sc3, sh3)

    out = out_flat[:M, :C].reshape(N, H, W, C)
    return jnp.transpose(out, (0, 3, 1, 2))


# --------------------------------------------------------------------------------------
# params / pure-JAX reference
# --------------------------------------------------------------------------------------
def init_params(key, in_channels, out_channels):
    C = out_channels
    ks = jax.random.split(key, 16)
    n = lambda k, s, sc: sc * jax.random.normal(k, s, jnp.float32)
    return dict(
        w1=n(ks[0], (in_channels, C), 0.3), b1=n(ks[1], (1, C), 0.1),
        g1=1.0 + n(ks[2], (1, C), 0.1),     bt1=n(ks[3], (1, C), 0.1),
        w2=n(ks[4], (3, 3, C, C), 0.2),     b2=n(ks[5], (1, C), 0.1),
        g2=1.0 + n(ks[6], (1, C), 0.1),     bt2=n(ks[7], (1, C), 0.1),
        w3=n(ks[8], (C, C), 0.3),           b3=n(ks[9], (1, C), 0.1),
        g3=1.0 + n(ks[10], (1, C), 0.1),    bt3=n(ks[11], (1, C), 0.1),
        ws=n(ks[12], (in_channels, C), 0.3), bs=n(ks[13], (1, C), 0.1),
        gs=1.0 + n(ks[14], (1, C), 0.1),     bts=n(ks[15], (1, C), 0.1),
    )


def reference(x, p):
    # Pure-JAX (f32) reference of the PyTorch forward (training-mode BatchNorm, with
    # conv biases; the biases cancel inside BN, validating the bias-free kernels).
    xh = jnp.transpose(x, (0, 2, 3, 1))

    def bn_relu(y, g, b):
        mu = y.mean(axis=(0, 1, 2), keepdims=True)
        var = jnp.mean((y - mu) ** 2, axis=(0, 1, 2), keepdims=True)
        yn = (y - mu) / jnp.sqrt(var + EPS)
        return jnp.maximum(yn * g.reshape(1, 1, 1, -1) + b.reshape(1, 1, 1, -1), 0.0)

    def conv1x1(z, w, b):
        return jnp.einsum("nhwc,co->nhwo", z, w) + b.reshape(1, 1, 1, -1)

    def conv3x3(z, w, b):
        return jax.lax.conv_general_dilated(
            z, w, (1, 1), "SAME",
            dimension_numbers=("NHWC", "HWIO", "NHWC")) + b.reshape(1, 1, 1, -1)

    y1 = bn_relu(conv1x1(xh, p["w1"], p["b1"]), p["g1"], p["bt1"])
    y2 = bn_relu(conv3x3(y1, p["w2"], p["b2"]), p["g2"], p["bt2"])
    y3 = bn_relu(conv1x1(y2, p["w3"], p["b3"]), p["g3"], p["bt3"])
    rs = bn_relu(conv1x1(xh, p["ws"], p["bs"]), p["gs"], p["bts"])
    return jnp.transpose(y3 + rs, (0, 3, 1, 2))


if __name__ == "__main__":
    key = jax.random.PRNGKey(0)
    kx, kp = jax.random.split(key)

    N, Cin, H, W = 2, 4, 16, 16
    Cout = 8

    x = jax.random.normal(kx, (N, Cin, H, W), jnp.float32)
    params = init_params(kp, Cin, Cout)

    out = jax.block_until_ready(jax.jit(resnet_bottleneck_block)(x, params))
    assert out.shape == (N, Cout, H, W), out.shape

    ref = reference(x, params)
    scale = float(jnp.max(jnp.abs(ref)))
    err = float(jnp.max(jnp.abs(out - ref)))
    # bf16 MXU operands / bf16 HBM intermediates -> tolerance scaled to output magnitude
    assert err <= 5e-2 * max(1.0, scale), f"max abs error {err} (ref scale {scale})"

    print("KERNEL_OK")
</pallas_src>

<mosaic_0001>
module attributes {stable_mosaic.version = 11 : i64} {
  func.func @_stats1_kernel(%arg0: i32, %arg1: i32, %arg2: memref<256x4xbf16, #tpu.memory_space<vmem>>, %arg3: memref<4x128xbf16, #tpu.memory_space<vmem>>, %arg4: memref<4x128xbf16, #tpu.memory_space<vmem>>, %arg5: memref<1x4x128xf32, #tpu.memory_space<vmem>>) attributes {dimension_semantics = [#tpu.dimension_semantics<parallel>, #tpu.dimension_semantics<arbitrary>], iteration_bounds = array<i64: 2, 1>, scalar_prefetch = 0 : i64, scratch_operands = 0 : i64, tpu.core_type = #tpu.core_type<tc>, window_params = [{transform_indices = @transform_0, window_bounds = array<i64: 256, 4>}, {pipeline_mode = #tpu.pipeline_mode<synchronous>, transform_indices = @transform_1, window_bounds = array<i64: 4, 128>}, {pipeline_mode = #tpu.pipeline_mode<synchronous>, transform_indices = @transform_2, window_bounds = array<i64: 4, 128>}, {transform_indices = @transform_3, window_bounds = array<i64: 1, 4, 128>}]} {
    %c0_i32 = arith.constant 0 : i32
    %0 = arith.cmpi eq, %arg1, %c0_i32 : i32
    %1 = arith.extui %0 : i1 to i32
    %c0_i32_0 = arith.constant 0 : i32
    %2 = arith.cmpi ne, %1, %c0_i32_0 : i32
    scf.if %2 {
      %cst_17 = arith.constant 0.000000e+00 : f32
      %23 = vector.broadcast %cst_17 : f32 to vector<1x4x128xf32>
      %c0_18 = arith.constant 0 : index
      %c0_19 = arith.constant 0 : index
      %c0_20 = arith.constant 0 : index
      %24 = vector.load %arg5[%c0_18, %c0_19, %c0_20] : memref<1x4x128xf32, #tpu.memory_space<vmem>>, vector<1x4x128xf32>
      tpu.vector_store %arg5[%c0_18, %c0_19, %c0_20], %23 {strides = array<i32>} : memref<1x4x128xf32, #tpu.memory_space<vmem>>, vector<1x4x128xf32>,
    } else {
    }
    %c0 = arith.constant 0 : index
    %c0_1 = arith.constant 0 : index
    %3 = vector.load %arg2[%c0, %c0_1] : memref<256x4xbf16, #tpu.memory_space<vmem>>, vector<256x4xbf16>
    %c0_2 = arith.constant 0 : index
    %c0_3 = arith.constant 0 : index
    %4 = vector.load %arg3[%c0_2, %c0_3] : memref<4x128xbf16, #tpu.memory_space<vmem>>, vector<4x128xbf16>
    %cst = arith.constant dense<0.000000e+00> : vector<256x128xf32>
    %5 = tpu.matmul %3, %4, %cst {dimension_numbers = #tpu.dot_dimension_numbers<[1], [0], [0], [1], [0, 0, 1, 1], [], []>} : vector<256x4xbf16>, vector<4x128xbf16>, vector<256x128xf32> -> vector<256x128xf32>
    %c0_4 = arith.constant 0 : index
    %c0_5 = arith.constant 0 : index
    %6 = vector.load %arg4[%c0_4, %c0_5] : memref<4x128xbf16, #tpu.memory_space<vmem>>, vector<4x128xbf16>
    %cst_6 = arith.constant dense<0.000000e+00> : vector<256x128xf32>
    %7 = tpu.matmul %3, %6, %cst_6 {dimension_numbers = #tpu.dot_dimension_numbers<[1], [0], [0], [1], [0, 0, 1, 1], [], []>} : vector<256x4xbf16>, vector<4x128xbf16>, vector<256x128xf32> -> vector<256x128xf32>
    %c0_7 = arith.constant 0 : index
    %c0_8 = arith.constant 0 : index
    %c0_9 = arith.constant 0 : index
    %8 = vector.load %arg5[%c0_7, %c0_8, %c0_9] : memref<1x4x128xf32, #tpu.memory_space<vmem>>, vector<1x4x128xf32>
    %cst_10 = arith.constant dense<0.000000e+00> : vector<128xf32>
    %9 = vector.multi_reduction <add>, %5, %cst_10 [0] : vector<256x128xf32> to vector<128xf32>
    %10 = vector.shape_cast %9 : vector<128xf32> to vector<1x128xf32>
    %11 = arith.mulf %5, %5 : vector<256x128xf32>
    %cst_11 = arith.constant dense<0.000000e+00> : vector<128xf32>
    %12 = vector.multi_reduction <add>, %11, %cst_11 [0] : vector<256x128xf32> to vector<128xf32>
    %13 = vector.shape_cast %12 : vector<128xf32> to vector<1x128xf32>
    %cst_12 = arith.constant dense<0.000000e+00> : vector<128xf32>
    %14 = vector.multi_reduction <add>, %7, %cst_12 [0] : vector<256x128xf32> to vector<128xf32>
    %15 = vector.shape_cast %14 : vector<128xf32> to vector<1x128xf32>
    %16 = arith.mulf %7, %7 : vector<256x128xf32>
    %cst_13 = arith.constant dense<0.000000e+00> : vector<128xf32>
    %17 = vector.multi_reduction <add>, %16, %cst_13 [0] : vector<256x128xf32> to vector<128xf32>
    %18 = vector.shape_cast %17 : vector<128xf32> to vector<1x128xf32>
    %19 = tpu.concatenate %10, %13, %15, %18 in 0 : vector<1x128xf32>, vector<1x128xf32>, vector<1x128xf32>, vector<1x128xf32> -> vector<4x128xf32>
    %20 = vector.shape_cast %19 : vector<4x128xf32> to vector<1x4x128xf32>
    %21 = arith.addf %8, %20 : vector<1x4x128xf32>
    %c0_14 = arith.constant 0 : index
    %c0_15 = arith.constant 0 : index
    %c0_16 = arith.constant 0 : index
    %22 = vector.load %arg5[%c0_14, %c0_15, %c0_16] : memref<1x4x128xf32, #tpu.memory_space<vmem>>, vector<1x4x128xf32>
    tpu.vector_store %arg5[%c0_14, %c0_15, %c0_16], %21 {strides = array<i32>} : memref<1x4x128xf32, #tpu.memory_space<vmem>>, vector<1x4x128xf32>,
    return
  }
  func.func @transform_0(%arg0: i32, %arg1: i32) -> (i32, i32) {
    %c1_i32 = arith.constant 1 : i32
    %0 = arith.muli %arg0, %c1_i32 : i32
    %1 = arith.addi %0, %arg1 : i32
    %c0_i32 = arith.constant 0 : i32
    %c0_i32_0 = arith.constant 0 : i32
    return %1, %c0_i32 : i32, i32
  }
  func.func @transform_1(%arg0: i32, %arg1: i32) -> (i32, i32) {
    %c0_i32 = arith.constant 0 : i32
    %c0_i32_0 = arith.constant 0 : i32
    %c0_i32_1 = arith.constant 0 : i32
    return %c0_i32, %c0_i32_0 : i32, i32
  }
  func.func @transform_2(%arg0: i32, %arg1: i32) -> (i32, i32) {
    %c0_i32 = arith.constant 0 : i32
    %c0_i32_0 = arith.constant 0 : i32
    %c0_i32_1 = arith.constant 0 : i32
    return %c0_i32, %c0_i32_0 : i32, i32
  }
  func.func @transform_3(%arg0: i32, %arg1: i32) -> (i32, i32, i32) {
    %c0_i32 = arith.constant 0 : i32
    %c0_i32_0 = arith.constant 0 : i32
    %c0_i32_1 = arith.constant 0 : i32
    return %arg0, %c0_i32, %c0_i32_0 : i32, i32, i32
  }
}

module attributes {stable_mosaic.version = 11 : i64} {
  func.func @_stats3_kernel(%arg0: i32, %arg1: i32, %arg2: memref<256x128xbf16, #tpu.memory_space<vmem>>, %arg3: memref<1x128xf32, #tpu.memory_space<vmem>>, %arg4: memref<1x128xf32, #tpu.memory_space<vmem>>, %arg5: memref<128x128xbf16, #tpu.memory_space<vmem>>, %arg6: memref<1x2x128xf32, #tpu.memory_space<vmem>>) attributes {dimension_semantics = [#tpu.dimension_semantics<parallel>, #tpu.dimension_semantics<arbitrary>], iteration_bounds = array<i64: 2, 1>, scalar_prefetch = 0 : i64, scratch_operands = 0 : i64, tpu.core_type = #tpu.core_type<tc>, window_params = [{transform_indices = @transform_0, window_bounds = array<i64: 256, 128>}, {pipeline_mode = #tpu.pipeline_mode<synchronous>, transform_indices = @transform_1, window_bounds = array<i64: 1, 128>}, {pipeline_mode = #tpu.pipeline_mode<synchronous>, transform_indices = @transform_2, window_bounds = array<i64: 1, 128>}, {pipeline_mode = #tpu.pipeline_mode<synchronous>, transform_indices = @transform_3, window_bounds = array<i64: 128, 128>}, {transform_indices = @transform_4, window_bounds = array<i64: 1, 2, 128>}]} {
    %c0_i32 = arith.constant 0 : i32
    %0 = arith.cmpi eq, %arg1, %c0_i32 : i32
    %1 = arith.extui %0 : i1 to i32
    %c0_i32_0 = arith.constant 0 : i32
    %2 = arith.cmpi ne, %1, %c0_i32_0 : i32
    scf.if %2 {
      %cst_18 = arith.constant 0.000000e+00 : f32
      %38 = vector.broadcast %cst_18 : f32 to vector<1x2x128xf32>
      %c0_19 = arith.constant 0 : index
      %c0_20 = arith.constant 0 : index
      %c0_21 = arith.constant 0 : index
      %39 = vector.load %arg6[%c0_19, %c0_20, %c0_21] : memref<1x2x128xf32, #tpu.memory_space<vmem>>, vector<1x2x128xf32>
      tpu.vector_store %arg6[%c0_19, %c0_20, %c0_21], %38 {strides = array<i32>} : memref<1x2x128xf32, #tpu.memory_space<vmem>>, vector<1x2x128xf32>,
    } else {
    }
    %c1_i32 = arith.constant 1 : i32
    %3 = arith.muli %arg0, %c1_i32 : i32
    %4 = arith.addi %3, %arg1 : i32
    %c256_i32 = arith.constant 256 : i32
    %5 = arith.muli %4, %c256_i32 : i32
    %6 = tpu.iota {dimensions = array<i32: 0>} : vector<256x1xi32>
    %7 = vector.broadcast %5 : i32 to vector<256x1xi32>
    %8 = arith.addi %7, %6 : vector<256x1xi32>
    %c0 = arith.constant 0 : index
    %c0_1 = arith.constant 0 : index
    %9 = vector.load %arg2[%c0, %c0_1] : memref<256x128xbf16, #tpu.memory_space<vmem>>, vector<256x128xbf16>
    %10 = arith.extf %9 : vector<256x128xbf16> to vector<256x128xf32>
    %c0_2 = arith.constant 0 : index
    %c0_3 = arith.constant 0 : index
    %11 = vector.load %arg3[%c0_2, %c0_3] : memref<1x128xf32, #tpu.memory_space<vmem>>, vector<1x128xf32>
    %12 = vector.broadcast %11 : vector<1x128xf32> to vector<256x128xf32>
    %13 = arith.mulf %10, %12 : vector<256x128xf32>
    %c0_4 = arith.constant 0 : index
    %c0_5 = arith.constant 0 : index
    %14 = vector.load %arg4[%c0_4, %c0_5] : memref<1x128xf32, #tpu.memory_space<vmem>>, vector<1x128xf32>
    %15 = vector.broadcast %14 : vector<1x128xf32> to vector<256x128xf32>
    %16 = arith.addf %13, %15 : vector<256x128xf32>
    %cst = arith.constant 0.000000e+00 : f32
    %17 = vector.broadcast %cst : f32 to vector<256x128xf32>
    %18 = arith.maximumf %16, %17 : vector<256x128xf32>
    %c512_i32 = arith.constant 512 : i32
    %19 = vector.broadcast %c512_i32 : i32 to vector<256x1xi32>
    %20 = arith.cmpi slt, %8, %19 : vector<256x1xi32>
    %cst_6 = arith.constant 0.000000e+00 : f32
    %21 = vector.shape_cast %20 : vector<256x1xi1> to vector<256x1xi1>
    %22 = vector.broadcast %21 : vector<256x1xi1> to vector<256x128xi1>
    %23 = vector.broadcast %cst_6 : f32 to vector<256x128xf32>
    %24 = arith.select %22, %18, %23 : vector<256x128xi1>, vector<256x128xf32>
    %25 = arith.truncf %24 : vector<256x128xf32> to vector<256x128xbf16>
    %c0_7 = arith.constant 0 : index
    %c0_8 = arith.constant 0 : index
    %26 = vector.load %arg5[%c0_7, %c0_8] : memref<128x128xbf16, #tpu.memory_space<vmem>>, vector<128x128xbf16>
    %cst_9 = arith.constant dense<0.000000e+00> : vector<256x128xf32>
    %27 = tpu.matmul %25, %26, %cst_9 {dimension_numbers = #tpu.dot_dimension_numbers<[1], [0], [0], [1], [0, 0, 1, 1], [], []>} : vector<256x128xbf16>, vector<128x128xbf16>, vector<256x128xf32> -> vector<256x128xf32>
    %c0_10 = arith.constant 0 : index
    %c0_11 = arith.constant 0 : index
    %c0_12 = arith.constant 0 : index
    %28 = vector.load %arg6[%c0_10, %c0_11, %c0_12] : memref<1x2x128xf32, #tpu.memory_space<vmem>>, vector<1x2x128xf32>
    %cst_13 = arith.constant dense<0.000000e+00> : vector<128xf32>
    %29 = vector.multi_reduction <add>, %27, %cst_13 [0] : vector<256x128xf32> to vector<128xf32>
    %30 = vector.shape_cast %29 : vector<128xf32> to vector<1x128xf32>
    %31 = arith.mulf %27, %27 : vector<256x128xf32>
    %cst_14 = arith.constant dense<0.000000e+00> : vector<128xf32>
    %32 = vector.multi_reduction <add>, %31, %cst_14 [0] : vector<256x128xf32> to vector<128xf32>
    %33 = vector.shape_cast %32 : vector<128xf32> to vector<1x128xf32>
    %34 = tpu.concatenate %30, %33 in 0 : vector<1x128xf32>, vector<1x128xf32> -> vector<2x128xf32>
    %35 = vector.shape_cast %34 : vector<2x128xf32> to vector<1x2x128xf32>
    %36 = arith.addf %28, %35 : vector<1x2x128xf32>
    %c0_15 = arith.constant 0 : index
    %c0_16 = arith.constant 0 : index
    %c0_17 = arith.constant 0 : index
    %37 = vector.load %arg6[%c0_15, %c0_16, %c0_17] : memref<1x2x128xf32, #tpu.memory_space<vmem>>, vector<1x2x128xf32>
    tpu.vector_store %arg6[%c0_15, %c0_16, %c0_17], %36 {strides = array<i32>} : memref<1x2x128xf32, #tpu.memory_space<vmem>>, vector<1x2x128xf32>,
    return
  }
  func.func @transform_0(%arg0: i32, %arg1: i32) -> (i32, i32) {
    %c1_i32 = arith.constant 1 : i32
    %0 = arith.muli %arg0, %c1_i32 : i32
    %1 = arith.addi %0, %arg1 : i32
    %c0_i32 = arith.constant 0 : i32
    %c0_i32_0 = arith.constant 0 : i32
    return %1, %c0_i32 : i32, i32
  }
  func.func @transform_1(%arg0: i32, %arg1: i32) -> (i32, i32) {
    %c0_i32 = arith.constant 0 : i32
    %c0_i32_0 = arith.constant 0 : i32
    %c0_i32_1 = arith.constant 0 : i32
    return %c0_i32, %c0_i32_0 : i32, i32
  }
  func.func @transform_2(%arg0: i32, %arg1: i32) -> (i32, i32) {
    %c0_i32 = arith.constant 0 : i32
    %c0_i32_0 = arith.constant 0 : i32
    %c0_i32_1 = arith.constant 0 : i32
    return %c0_i32, %c0_i32_0 : i32, i32
  }
  func.func @transform_3(%arg0: i32, %arg1: i32) -> (i32, i32) {
    %c0_i32 = arith.constant 0 : i32
    %c0_i32_0 = arith.constant 0 : i32
    %c0_i32_1 = arith.constant 0 : i32
    return %c0_i32, %c0_i32_0 : i32, i32
  }
  func.func @transform_4(%arg0: i32, %arg1: i32) -> (i32, i32, i32) {
    %c0_i32 = arith.constant 0 : i32
    %c0_i32_0 = arith.constant 0 : i32
    %c0_i32_1 = arith.constant 0 : i32
    return %arg0, %c0_i32, %c0_i32_0 : i32, i32, i32
  }
}

module attributes {stable_mosaic.version = 11 : i64} {
  func.func @_mid_kernel(%arg0: i32, %arg1: i32, %arg2: memref<256x4xbf16, #tpu.memory_space<vmem>>, %arg3: memref<4x128xbf16, #tpu.memory_space<vmem>>, %arg4: memref<1x128xf32, #tpu.memory_space<vmem>>, %arg5: memref<1x128xf32, #tpu.memory_space<vmem>>, %arg6: memref<4x128xbf16, #tpu.memory_space<vmem>>, %arg7: memref<1x128xf32, #tpu.memory_space<vmem>>, %arg8: memref<1x128xf32, #tpu.memory_space<vmem>>, %arg9: memref<9x128x128xbf16, #tpu.memory_space<vmem>>, %arg10: memref<256x128xbf16, #tpu.memory_space<vmem>>, %arg11: memref<256x128xbf16, #tpu.memory_space<vmem>>, %arg12: memref<1x2x128xf32, #tpu.memory_space<vmem>>) attributes {dimension_semantics = [#tpu.dimension_semantics<parallel>, #tpu.dimension_semantics<arbitrary>], iteration_bounds = array<i64: 2, 1>, scalar_prefetch = 0 : i64, scratch_operands = 0 : i64, tpu.core_type = #tpu.core_type<tc>, window_params = [{transform_indices = @transform_0, window_bounds = array<i64: 256, 4>}, {pipeline_mode = #tpu.pipeline_mode<synchronous>, transform_indices = @transform_1, window_bounds = array<i64: 4, 128>}, {pipeline_mode = #tpu.pipeline_mode<synchronous>, transform_indices = @transform_2, window_bounds = array<i64: 1, 128>}, {pipeline_mode = #tpu.pipeline_mode<synchronous>, transform_indices = @transform_3, window_bounds = array<i64: 1, 128>}, {pipeline_mode = #tpu.pipeline_mode<synchronous>, transform_indices = @transform_4, window_bounds = array<i64: 4, 128>}, {pipeline_mode = #tpu.pipeline_mode<synchronous>, transform_indices = @transform_5, window_bounds = array<i64: 1, 128>}, {pipeline_mode = #tpu.pipeline_mode<synchronous>, transform_indices = @transform_6, window_bounds = array<i64: 1, 128>}, {pipeline_mode = #tpu.pipeline_mode<synchronous>, transform_indices = @transform_7, window_bounds = array<i64: 9, 128, 128>}, {transform_indices = @transform_8, window_bounds = array<i64: 256, 128>}, {transform_indices = @transform_9, window_bounds = array<i64: 256, 128>}, {transform_indices = @transform_10, window_bounds = array<i64: 1, 2, 128>}]} {
    %c0_i32 = arith.constant 0 : i32
    %0 = arith.cmpi eq, %arg1, %c0_i32 : i32
    %1 = arith.extui %0 : i1 to i32
    %c0_i32_0 = arith.constant 0 : i32
    %2 = arith.cmpi ne, %1, %c0_i32_0 : i32
    scf.if %2 {
      %cst_116 = arith.constant 0.000000e+00 : f32
      %278 = vector.broadcast %cst_116 : f32 to vector<1x2x128xf32>
      %c0_117 = arith.constant 0 : index
      %c0_118 = arith.constant 0 : index
      %c0_119 = arith.constant 0 : index
      %279 = vector.load %arg12[%c0_117, %c0_118, %c0_119] : memref<1x2x128xf32, #tpu.memory_space<vmem>>, vector<1x2x128xf32>
      tpu.vector_store %arg12[%c0_117, %c0_118, %c0_119], %278 {strides = array<i32>} : memref<1x2x128xf32, #tpu.memory_space<vmem>>, vector<1x2x128xf32>,
    } else {
    }
    %c0 = arith.constant 0 : index
    %c0_1 = arith.constant 0 : index
    %3 = vector.load %arg2[%c0, %c0_1] : memref<256x4xbf16, #tpu.memory_space<vmem>>, vector<256x4xbf16>
    %c0_2 = arith.constant 0 : index
    %c0_3 = arith.constant 0 : index
    %4 = vector.load %arg3[%c0_2, %c0_3] : memref<4x128xbf16, #tpu.memory_space<vmem>>, vector<4x128xbf16>
    %cst = arith.constant dense<0.000000e+00> : vector<256x128xf32>
    %5 = tpu.matmul %3, %4, %cst {dimension_numbers = #tpu.dot_dimension_numbers<[1], [0], [0], [1], [0, 0, 1, 1], [], []>} : vector<256x4xbf16>, vector<4x128xbf16>, vector<256x128xf32> -> vector<256x128xf32>
    %c0_4 = arith.constant 0 : index
    %c0_5 = arith.constant 0 : index
    %6 = vector.load %arg4[%c0_4, %c0_5] : memref<1x128xf32, #tpu.memory_space<vmem>>, vector<1x128xf32>
    %7 = vector.broadcast %6 : vector<1x128xf32> to vector<256x128xf32>
    %8 = arith.mulf %5, %7 : vector<256x128xf32>
    %c0_6 = arith.constant 0 : index
    %c0_7 = arith.constant 0 : index
    %9 = vector.load %arg5[%c0_6, %c0_7] : memref<1x128xf32, #tpu.memory_space<vmem>>, vector<1x128xf32>
    %10 = vector.broadcast %9 : vector<1x128xf32> to vector<256x128xf32>
    %11 = arith.addf %8, %10 : vector<256x128xf32>
    %cst_8 = arith.constant 0.000000e+00 : f32
    %12 = vector.broadcast %cst_8 : f32 to vector<256x128xf32>
    %13 = arith.maximumf %11, %12 : vector<256x128xf32>
    %c0_9 = arith.constant 0 : index
    %c0_10 = arith.constant 0 : index
    %14 = vector.load %arg6[%c0_9, %c0_10] : memref<4x128xbf16, #tpu.memory_space<vmem>>, vector<4x128xbf16>
    %cst_11 = arith.constant dense<0.000000e+00> : vector<256x128xf32>
    %15 = tpu.matmul %3, %14, %cst_11 {dimension_numbers = #tpu.dot_dimension_numbers<[1], [0], [0], [1], [0, 0, 1, 1], [], []>} : vector<256x4xbf16>, vector<4x128xbf16>, vector<256x128xf32> -> vector<256x128xf32>
    %c0_12 = arith.constant 0 : index
    %c0_13 = arith.constant 0 : index
    %16 = vector.load %arg7[%c0_12, %c0_13] : memref<1x128xf32, #tpu.memory_space<vmem>>, vector<1x128xf32>
    %17 = vector.broadcast %16 : vector<1x128xf32> to vector<256x128xf32>
    %18 = arith.mulf %15, %17 : vector<256x128xf32>
    %c0_14 = arith.constant 0 : index
    %c0_15 = arith.constant 0 : index
    %19 = vector.load %arg8[%c0_14, %c0_15] : memref<1x128xf32, #tpu.memory_space<vmem>>, vector<1x128xf32>
    %20 = vector.broadcast %19 : vector<1x128xf32> to vector<256x128xf32>
    %21 = arith.addf %18, %20 : vector<256x128xf32>
    %cst_16 = arith.constant 0.000000e+00 : f32
    %22 = vector.broadcast %cst_16 : f32 to vector<256x128xf32>
    %23 = arith.maximumf %21, %22 : vector<256x128xf32>
    %24 = arith.truncf %23 : vector<256x128xf32> to vector<256x128xbf16>
    %c0_17 = arith.constant 0 : index
    %c0_18 = arith.constant 0 : index
    %25 = vector.load %arg11[%c0_17, %c0_18] : memref<256x128xbf16, #tpu.memory_space<vmem>>, vector<256x128xbf16>
    tpu.vector_store %arg11[%c0_17, %c0_18], %24 {strides = array<i32>} : memref<256x128xbf16, #tpu.memory_space<vmem>>, vector<256x128xbf16>,
    %26 = tpu.iota {dimensions = array<i32: 0>} : vector<256x1xi32>
    %c16_i32 = arith.constant 16 : i32
    %c0_i32_19 = arith.constant 0 : i32
    %27 = arith.cmpi eq, %c16_i32, %c0_i32_19 : i32
    %c1_i32 = arith.constant 1 : i32
    %28 = arith.select %27, %c1_i32, %c16_i32 : i32
    %29 = vector.broadcast %28 : i32 to vector<256x1xi32>
    %30 = arith.remsi %26, %29 : vector<256x1xi32>
    %c0_i32_20 = arith.constant 0 : i32
    %31 = vector.broadcast %c0_i32_20 : i32 to vector<256x1xi32>
    %32 = arith.cmpi ne, %30, %31 : vector<256x1xi32>
    %c0_i32_21 = arith.constant 0 : i32
    %33 = vector.broadcast %c0_i32_21 : i32 to vector<256x1xi32>
    %34 = arith.cmpi slt, %30, %33 : vector<256x1xi32>
    %c0_i32_22 = arith.constant 0 : i32
    %35 = arith.cmpi slt, %28, %c0_i32_22 : i32
    %36 = vector.broadcast %35 : i1 to vector<256x1xi1>
    %37 = vector.broadcast %36 : vector<256x1xi1> to vector<256x1xi1>
    %38 = arith.xori %34, %37 : vector<256x1xi1>
    %39 = arith.andi %38, %32 : vector<256x1xi1>
    %40 = vector.broadcast %28 : i32 to vector<256x1xi32>
    %41 = arith.addi %30, %40 : vector<256x1xi32>
    %42 = arith.select %39, %41, %30 : vector<256x1xi1>, vector<256x1xi32>
    %cst_23 = arith.constant 0.000000e+00 : f32
    %43 = vector.broadcast %cst_23 : f32 to vector<256x128xf32>
    %c-16_i32 = arith.constant -16 : i32
    %44 = vector.broadcast %c-16_i32 : i32 to vector<256x1xi32>
    %45 = arith.addi %26, %44 : vector<256x1xi32>
    %c0_i32_24 = arith.constant 0 : i32
    %46 = vector.broadcast %c0_i32_24 : i32 to vector<256x1xi32>
    %47 = arith.cmpi sge, %45, %46 : vector<256x1xi32>
    %c-16_i32_25 = arith.constant -16 : i32
    %48 = vector.broadcast %c-16_i32_25 : i32 to vector<256x1xi32>
    %49 = arith.addi %26, %48 : vector<256x1xi32>
    %c256_i32 = arith.constant 256 : i32
    %50 = vector.broadcast %c256_i32 : i32 to vector<256x1xi32>
    %51 = arith.cmpi slt, %49, %50 : vector<256x1xi32>
    %52 = arith.andi %47, %51 : vector<256x1xi1>
    %c-1_i32 = arith.constant -1 : i32
    %53 = vector.broadcast %c-1_i32 : i32 to vector<256x1xi32>
    %54 = arith.addi %42, %53 : vector<256x1xi32>
    %c0_i32_26 = arith.constant 0 : i32
    %55 = vector.broadcast %c0_i32_26 : i32 to vector<256x1xi32>
    %56 = arith.cmpi sge, %54, %55 : vector<256x1xi32>
    %57 = arith.andi %52, %56 : vector<256x1xi1>
    %c-1_i32_27 = arith.constant -1 : i32
    %58 = vector.broadcast %c-1_i32_27 : i32 to vector<256x1xi32>
    %59 = arith.addi %42, %58 : vector<256x1xi32>
    %c16_i32_28 = arith.constant 16 : i32
    %60 = vector.broadcast %c16_i32_28 : i32 to vector<256x1xi32>
    %61 = arith.cmpi slt, %59, %60 : vector<256x1xi32>
    %62 = arith.andi %57, %61 : vector<256x1xi1>
    %63 = vector.extract_strided_slice %13 {offsets = [239, 0], sizes = [17, 128], strides = [1, 1]} : vector<256x128xf32> to vector<17x128xf32>
    %64 = vector.extract_strided_slice %13 {offsets = [0, 0], sizes = [239, 128], strides = [1, 1]} : vector<256x128xf32> to vector<239x128xf32>
    %65 = tpu.concatenate %63, %64 in 0 : vector<17x128xf32>, vector<239x128xf32> -> vector<256x128xf32>
    %cst_29 = arith.constant 0.000000e+00 : f32
    %66 = vector.shape_cast %62 : vector<256x1xi1> to vector<256x1xi1>
    %67 = vector.broadcast %66 : vector<256x1xi1> to vector<256x128xi1>
    %68 = vector.broadcast %cst_29 : f32 to vector<256x128xf32>
    %69 = arith.select %67, %65, %68 : vector<256x128xi1>, vector<256x128xf32>
    %70 = arith.truncf %69 : vector<256x128xf32> to vector<256x128xbf16>
    %c0_30 = arith.constant 0 : index
    %c0_31 = arith.constant 0 : index
    %c0_32 = arith.constant 0 : index
    %71 = vector.load %arg9[%c0_30, %c0_31, %c0_32] : memref<9x128x128xbf16, #tpu.memory_space<vmem>>, vector<1x128x128xbf16>
    %72 = vector.shape_cast %71 : vector<1x128x128xbf16> to vector<128x128xbf16>
    %cst_33 = arith.constant dense<0.000000e+00> : vector<256x128xf32>
    %73 = tpu.matmul %70, %72, %cst_33 {dimension_numbers = #tpu.dot_dimension_numbers<[1], [0], [0], [1], [0, 0, 1, 1], [], []>} : vector<256x128xbf16>, vector<128x128xbf16>, vector<256x128xf32> -> vector<256x128xf32>
    %74 = arith.addf %43, %73 : vector<256x128xf32>
    %c0_i32_34 = arith.constant 0 : i32
    %75 = vector.broadcast %c0_i32_34 : i32 to vector<256x1xi32>
    %76 = arith.addi %42, %75 : vector<256x1xi32>
    %c0_i32_35 = arith.constant 0 : i32
    %77 = vector.broadcast %c0_i32_35 : i32 to vector<256x1xi32>
    %78 = arith.cmpi sge, %76, %77 : vector<256x1xi32>
    %79 = arith.andi %52, %78 : vector<256x1xi1>
    %c0_i32_36 = arith.constant 0 : i32
    %80 = vector.broadcast %c0_i32_36 : i32 to vector<256x1xi32>
    %81 = arith.addi %42, %80 : vector<256x1xi32>
    %c16_i32_37 = arith.constant 16 : i32
    %82 = vector.broadcast %c16_i32_37 : i32 to vector<256x1xi32>
    %83 = arith.cmpi slt, %81, %82 : vector<256x1xi32>
    %84 = arith.andi %79, %83 : vector<256x1xi1>
    %85 = vector.extract_strided_slice %13 {offsets = [240, 0], sizes = [16, 128], strides = [1, 1]} : vector<256x128xf32> to vector<16x128xf32>
    %86 = vector.extract_strided_slice %13 {offsets = [0, 0], sizes = [240, 128], strides = [1, 1]} : vector<256x128xf32> to vector<240x128xf32>
    %87 = tpu.concatenate %85, %86 in 0 : vector<16x128xf32>, vector<240x128xf32> -> vector<256x128xf32>
    %cst_38 = arith.constant 0.000000e+00 : f32
    %88 = vector.shape_cast %84 : vector<256x1xi1> to vector<256x1xi1>
    %89 = vector.broadcast %88 : vector<256x1xi1> to vector<256x128xi1>
    %90 = vector.broadcast %cst_38 : f32 to vector<256x128xf32>
    %91 = arith.select %89, %87, %90 : vector<256x128xi1>, vector<256x128xf32>
    %92 = arith.truncf %91 : vector<256x128xf32> to vector<256x128xbf16>
    %c1 = arith.constant 1 : index
    %c0_39 = arith.constant 0 : index
    %c0_40 = arith.constant 0 : index
    %93 = vector.load %arg9[%c1, %c0_39, %c0_40] : memref<9x128x128xbf16, #tpu.memory_space<vmem>>, vector<1x128x128xbf16>
    %94 = vector.shape_cast %93 : vector<1x128x128xbf16> to vector<128x128xbf16>
    %cst_41 = arith.constant dense<0.000000e+00> : vector<256x128xf32>
    %95 = tpu.matmul %92, %94, %cst_41 {dimension_numbers = #tpu.dot_dimension_numbers<[1], [0], [0], [1], [0, 0, 1, 1], [], []>} : vector<256x128xbf16>, vector<128x128xbf16>, vector<256x128xf32> -> vector<256x128xf32>
    %96 = arith.addf %74, %95 : vector<256x128xf32>
    %c1_i32_42 = arith.constant 1 : i32
    %97 = vector.broadcast %c1_i32_42 : i32 to vector<256x1xi32>
    %98 = arith.addi %42, %97 : vector<256x1xi32>
    %c0_i32_43 = arith.constant 0 : i32
    %99 = vector.broadcast %c0_i32_43 : i32 to vector<256x1xi32>
    %100 = arith.cmpi sge, %98, %99 : vector<256x1xi32>
    %101 = arith.andi %52, %100 : vector<256x1xi1>
    %c1_i32_44 = arith.constant 1 : i32
    %102 = vector.broadcast %c1_i32_44 : i32 to vector<256x1xi32>
    %103 = arith.addi %42, %102 : vector<256x1xi32>
    %c16_i32_45 = arith.constant 16 : i32
    %104 = vector.broadcast %c16_i32_45 : i32 to vector<256x1xi32>
    %105 = arith.cmpi slt, %103, %104 : vector<256x1xi32>
    %106 = arith.andi %101, %105 : vector<256x1xi1>
    %107 = vector.extract_strided_slice %13 {offsets = [241, 0], sizes = [15, 128], strides = [1, 1]} : vector<256x128xf32> to vector<15x128xf32>
    %108 = vector.extract_strided_slice %13 {offsets = [0, 0], sizes = [241, 128], strides = [1, 1]} : vector<256x128xf32> to vector<241x128xf32>
    %109 = tpu.concatenate %107, %108 in 0 : vector<15x128xf32>, vector<241x128xf32> -> vector<256x128xf32>
    %cst_46 = arith.constant 0.000000e+00 : f32
    %110 = vector.shape_cast %106 : vector<256x1xi1> to vector<256x1xi1>
    %111 = vector.broadcast %110 : vector<256x1xi1> to vector<256x128xi1>
    %112 = vector.broadcast %cst_46 : f32 to vector<256x128xf32>
    %113 = arith.select %111, %109, %112 : vector<256x128xi1>, vector<256x128xf32>
    %114 = arith.truncf %113 : vector<256x128xf32> to vector<256x128xbf16>
    %c2 = arith.constant 2 : index
    %c0_47 = arith.constant 0 : index
    %c0_48 = arith.constant 0 : index
    %115 = vector.load %arg9[%c2, %c0_47, %c0_48] : memref<9x128x128xbf16, #tpu.memory_space<vmem>>, vector<1x128x128xbf16>
    %116 = vector.shape_cast %115 : vector<1x128x128xbf16> to vector<128x128xbf16>
    %cst_49 = arith.constant dense<0.000000e+00> : vector<256x128xf32>
    %117 = tpu.matmul %114, %116, %cst_49 {dimension_numbers = #tpu.dot_dimension_numbers<[1], [0], [0], [1], [0, 0, 1, 1], [], []>} : vector<256x128xbf16>, vector<128x128xbf16>, vector<256x128xf32> -> vector<256x128xf32>
    %118 = arith.addf %96, %117 : vector<256x128xf32>
    %c0_i32_50 = arith.constant 0 : i32
    %119 = vector.broadcast %c0_i32_50 : i32 to vector<256x1xi32>
    %120 = arith.addi %26, %119 : vector<256x1xi32>
    %c0_i32_51 = arith.constant 0 : i32
    %121 = vector.broadcast %c0_i32_51 : i32 to vector<256x1xi32>
    %122 = arith.cmpi sge, %120, %121 : vector<256x1xi32>
    %c0_i32_52 = arith.constant 0 : i32
    %123 = vector.broadcast %c0_i32_52 : i32 to vector<256x1xi32>
    %124 = arith.addi %26, %123 : vector<256x1xi32>
    %c256_i32_53 = arith.constant 256 : i32
    %125 = vector.broadcast %c256_i32_53 : i32 to vector<256x1xi32>
    %126 = arith.cmpi slt, %124, %125 : vector<256x1xi32>
    %127 = arith.andi %122, %126 : vector<256x1xi1>
    %c-1_i32_54 = arith.constant -1 : i32
    %128 = vector.broadcast %c-1_i32_54 : i32 to vector<256x1xi32>
    %129 = arith.addi %42, %128 : vector<256x1xi32>
    %c0_i32_55 = arith.constant 0 : i32
    %130 = vector.broadcast %c0_i32_55 : i32 to vector<256x1xi32>
    %131 = arith.cmpi sge, %129, %130 : vector<256x1xi32>
    %132 = arith.andi %127, %131 : vector<256x1xi1>
    %c-1_i32_56 = arith.constant -1 : i32
    %133 = vector.broadcast %c-1_i32_56 : i32 to vector<256x1xi32>
    %134 = arith.addi %42, %133 : vector<256x1xi32>
    %c16_i32_57 = arith.constant 16 : i32
    %135 = vector.broadcast %c16_i32_57 : i32 to vector<256x1xi32>
    %136 = arith.cmpi slt, %134, %135 : vector<256x1xi32>
    %137 = arith.andi %132, %136 : vector<256x1xi1>
    %138 = vector.extract_strided_slice %13 {offsets = [255, 0], sizes = [1, 128], strides = [1, 1]} : vector<256x128xf32> to vector<1x128xf32>
    %139 = vector.extract_strided_slice %13 {offsets = [0, 0], sizes = [255, 128], strides = [1, 1]} : vector<256x128xf32> to vector<255x128xf32>
    %140 = tpu.concatenate %138, %139 in 0 : vector<1x128xf32>, vector<255x128xf32> -> vector<256x128xf32>
    %cst_58 = arith.constant 0.000000e+00 : f32
    %141 = vector.shape_cast %137 : vector<256x1xi1> to vector<256x1xi1>
    %142 = vector.broadcast %141 : vector<256x1xi1> to vector<256x128xi1>
    %143 = vector.broadcast %cst_58 : f32 to vector<256x128xf32>
    %144 = arith.select %142, %140, %143 : vector<256x128xi1>, vector<256x128xf32>
    %145 = arith.truncf %144 : vector<256x128xf32> to vector<256x128xbf16>
    %c3 = arith.constant 3 : index
    %c0_59 = arith.constant 0 : index
    %c0_60 = arith.constant 0 : index
    %146 = vector.load %arg9[%c3, %c0_59, %c0_60] : memref<9x128x128xbf16, #tpu.memory_space<vmem>>, vector<1x128x128xbf16>
    %147 = vector.shape_cast %146 : vector<1x128x128xbf16> to vector<128x128xbf16>
    %cst_61 = arith.constant dense<0.000000e+00> : vector<256x128xf32>
    %148 = tpu.matmul %145, %147, %cst_61 {dimension_numbers = #tpu.dot_dimension_numbers<[1], [0], [0], [1], [0, 0, 1, 1], [], []>} : vector<256x128xbf16>, vector<128x128xbf16>, vector<256x128xf32> -> vector<256x128xf32>
    %149 = arith.addf %118, %148 : vector<256x128xf32>
    %c0_i32_62 = arith.constant 0 : i32
    %150 = vector.broadcast %c0_i32_62 : i32 to vector<256x1xi32>
    %151 = arith.addi %42, %150 : vector<256x1xi32>
    %c0_i32_63 = arith.constant 0 : i32
    %152 = vector.broadcast %c0_i32_63 : i32 to vector<256x1xi32>
    %153 = arith.cmpi sge, %151, %152 : vector<256x1xi32>
    %154 = arith.andi %127, %153 : vector<256x1xi1>
    %c0_i32_64 = arith.constant 0 : i32
    %155 = vector.broadcast %c0_i32_64 : i32 to vector<256x1xi32>
    %156 = arith.addi %42, %155 : vector<256x1xi32>
    %c16_i32_65 = arith.constant 16 : i32
    %157 = vector.broadcast %c16_i32_65 : i32 to vector<256x1xi32>
    %158 = arith.cmpi slt, %156, %157 : vector<256x1xi32>
    %159 = arith.andi %154, %158 : vector<256x1xi1>
    %cst_66 = arith.constant 0.000000e+00 : f32
    %160 = vector.shape_cast %159 : vector<256x1xi1> to vector<256x1xi1>
    %161 = vector.broadcast %160 : vector<256x1xi1> to vector<256x128xi1>
    %162 = vector.broadcast %cst_66 : f32 to vector<256x128xf32>
    %163 = arith.select %161, %13, %162 : vector<256x128xi1>, vector<256x128xf32>
    %164 = arith.truncf %163 : vector<256x128xf32> to vector<256x128xbf16>
    %c4 = arith.constant 4 : index
    %c0_67 = arith.constant 0 : index
    %c0_68 = arith.constant 0 : index
    %165 = vector.load %arg9[%c4, %c0_67, %c0_68] : memref<9x128x128xbf16, #tpu.memory_space<vmem>>, vector<1x128x128xbf16>
    %166 = vector.shape_cast %165 : vector<1x128x128xbf16> to vector<128x128xbf16>
    %cst_69 = arith.constant dense<0.000000e+00> : vector<256x128xf32>
    %167 = tpu.matmul %164, %166, %cst_69 {dimension_numbers = #tpu.dot_dimension_numbers<[1], [0], [0], [1], [0, 0, 1, 1], [], []>} : vector<256x128xbf16>, vector<128x128xbf16>, vector<256x128xf32> -> vector<256x128xf32>
    %168 = arith.addf %149, %167 : vector<256x128xf32>
    %c1_i32_70 = arith.constant 1 : i32
    %169 = vector.broadcast %c1_i32_70 : i32 to vector<256x1xi32>
    %170 = arith.addi %42, %169 : vector<256x1xi32>
    %c0_i32_71 = arith.constant 0 : i32
    %171 = vector.broadcast %c0_i32_71 : i32 to vector<256x1xi32>
    %172 = arith.cmpi sge, %170, %171 : vector<256x1xi32>
    %173 = arith.andi %127, %172 : vector<256x1xi1>
    %c1_i32_72 = arith.constant 1 : i32
    %174 = vector.broadcast %c1_i32_72 : i32 to vector<256x1xi32>
    %175 = arith.addi %42, %174 : vector<256x1xi32>
    %c16_i32_73 = arith.constant 16 : i32
    %176 = vector.broadcast %c16_i32_73 : i32 to vector<256x1xi32>
    %177 = arith.cmpi slt, %175, %176 : vector<256x1xi32>
    %178 = arith.andi %173, %177 : vector<256x1xi1>
    %179 = vector.extract_strided_slice %13 {offsets = [1, 0], sizes = [255, 128], strides = [1, 1]} : vector<256x128xf32> to vector<255x128xf32>
    %180 = vector.extract_strided_slice %13 {offsets = [0, 0], sizes = [1, 128], strides = [1, 1]} : vector<256x128xf32> to vector<1x128xf32>
    %181 = tpu.concatenate %179, %180 in 0 : vector<255x128xf32>, vector<1x128xf32> -> vector<256x128xf32>
    %cst_74 = arith.constant 0.000000e+00 : f32
    %182 = vector.shape_cast %178 : vector<256x1xi1> to vector<256x1xi1>
    %183 = vector.broadcast %182 : vector<256x1xi1> to vector<256x128xi1>
    %184 = vector.broadcast %cst_74 : f32 to vector<256x128xf32>
    %185 = arith.select %183, %181, %184 : vector<256x128xi1>, vector<256x128xf32>
    %186 = arith.truncf %185 : vector<256x128xf32> to vector<256x128xbf16>
    %c5 = arith.constant 5 : index
    %c0_75 = arith.constant 0 : index
    %c0_76 = arith.constant 0 : index
    %187 = vector.load %arg9[%c5, %c0_75, %c0_76] : memref<9x128x128xbf16, #tpu.memory_space<vmem>>, vector<1x128x128xbf16>
    %188 = vector.shape_cast %187 : vector<1x128x128xbf16> to vector<128x128xbf16>
    %cst_77 = arith.constant dense<0.000000e+00> : vector<256x128xf32>
    %189 = tpu.matmul %186, %188, %cst_77 {dimension_numbers = #tpu.dot_dimension_numbers<[1], [0], [0], [1], [0, 0, 1, 1], [], []>} : vector<256x128xbf16>, vector<128x128xbf16>, vector<256x128xf32> -> vector<256x128xf32>
    %190 = arith.addf %168, %189 : vector<256x128xf32>
    %c16_i32_78 = arith.constant 16 : i32
    %191 = vector.broadcast %c16_i32_78 : i32 to vector<256x1xi32>
    %192 = arith.addi %26, %191 : vector<256x1xi32>
    %c0_i32_79 = arith.constant 0 : i32
    %193 = vector.broadcast %c0_i32_79 : i32 to vector<256x1xi32>
    %194 = arith.cmpi sge, %192, %193 : vector<256x1xi32>
    %c16_i32_80 = arith.constant 16 : i32
    %195 = vector.broadcast %c16_i32_80 : i32 to vector<256x1xi32>
    %196 = arith.addi %26, %195 : vector<256x1xi32>
    %c256_i32_81 = arith.constant 256 : i32
    %197 = vector.broadcast %c256_i32_81 : i32 to vector<256x1xi32>
    %198 = arith.cmpi slt, %196, %197 : vector<256x1xi32>
    %199 = arith.andi %194, %198 : vector<256x1xi1>
    %c-1_i32_82 = arith.constant -1 : i32
    %200 = vector.broadcast %c-1_i32_82 : i32 to vector<256x1xi32>
    %201 = arith.addi %42, %200 : vector<256x1xi32>
    %c0_i32_83 = arith.constant 0 : i32
    %202 = vector.broadcast %c0_i32_83 : i32 to vector<256x1xi32>
    %203 = arith.cmpi sge, %201, %202 : vector<256x1xi32>
    %204 = arith.andi %199, %203 : vector<256x1xi1>
    %c-1_i32_84 = arith.constant -1 : i32
    %205 = vector.broadcast %c-1_i32_84 : i32 to vector<256x1xi32>
    %206 = arith.addi %42, %205 : vector<256x1xi32>
    %c16_i32_85 = arith.constant 16 : i32
    %207 = vector.broadcast %c16_i32_85 : i32 to vector<256x1xi32>
    %208 = arith.cmpi slt, %206, %207 : vector<256x1xi32>
    %209 = arith.andi %204, %208 : vector<256x1xi1>
    %210 = vector.extract_strided_slice %13 {offsets = [15, 0], sizes = [241, 128], strides = [1, 1]} : vector<256x128xf32> to vector<241x128xf32>
    %211 = vector.extract_strided_slice %13 {offsets = [0, 0], sizes = [15, 128], strides = [1, 1]} : vector<256x128xf32> to vector<15x128xf32>
    %212 = tpu.concatenate %210, %211 in 0 : vector<241x128xf32>, vector<15x128xf32> -> vector<256x128xf32>
    %cst_86 = arith.constant 0.000000e+00 : f32
    %213 = vector.shape_cast %209 : vector<256x1xi1> to vector<256x1xi1>
    %214 = vector.broadcast %213 : vector<256x1xi1> to vector<256x128xi1>
    %215 = vector.broadcast %cst_86 : f32 to vector<256x128xf32>
    %216 = arith.select %214, %212, %215 : vector<256x128xi1>, vector<256x128xf32>
    %217 = arith.truncf %216 : vector<256x128xf32> to vector<256x128xbf16>
    %c6 = arith.constant 6 : index
    %c0_87 = arith.constant 0 : index
    %c0_88 = arith.constant 0 : index
    %218 = vector.load %arg9[%c6, %c0_87, %c0_88] : memref<9x128x128xbf16, #tpu.memory_space<vmem>>, vector<1x128x128xbf16>
    %219 = vector.shape_cast %218 : vector<1x128x128xbf16> to vector<128x128xbf16>
    %cst_89 = arith.constant dense<0.000000e+00> : vector<256x128xf32>
    %220 = tpu.matmul %217, %219, %cst_89 {dimension_numbers = #tpu.dot_dimension_numbers<[1], [0], [0], [1], [0, 0, 1, 1], [], []>} : vector<256x128xbf16>, vector<128x128xbf16>, vector<256x128xf32> -> vector<256x128xf32>
    %221 = arith.addf %190, %220 : vector<256x128xf32>
    %c0_i32_90 = arith.constant 0 : i32
    %222 = vector.broadcast %c0_i32_90 : i32 to vector<256x1xi32>
    %223 = arith.addi %42, %222 : vector<256x1xi32>
    %c0_i32_91 = arith.constant 0 : i32
    %224 = vector.broadcast %c0_i32_91 : i32 to vector<256x1xi32>
    %225 = arith.cmpi sge, %223, %224 : vector<256x1xi32>
    %226 = arith.andi %199, %225 : vector<256x1xi1>
    %c0_i32_92 = arith.constant 0 : i32
    %227 = vector.broadcast %c0_i32_92 : i32 to vector<256x1xi32>
    %228 = arith.addi %42, %227 : vector<256x1xi32>
    %c16_i32_93 = arith.constant 16 : i32
    %229 = vector.broadcast %c16_i32_93 : i32 to vector<256x1xi32>
    %230 = arith.cmpi slt, %228, %229 : vector<256x1xi32>
    %231 = arith.andi %226, %230 : vector<256x1xi1>
    %232 = vector.extract_strided_slice %13 {offsets = [16, 0], sizes = [240, 128], strides = [1, 1]} : vector<256x128xf32> to vector<240x128xf32>
    %233 = vector.extract_strided_slice %13 {offsets = [0, 0], sizes = [16, 128], strides = [1, 1]} : vector<256x128xf32> to vector<16x128xf32>
    %234 = tpu.concatenate %232, %233 in 0 : vector<240x128xf32>, vector<16x128xf32> -> vector<256x128xf32>
    %cst_94 = arith.constant 0.000000e+00 : f32
    %235 = vector.shape_cast %231 : vector<256x1xi1> to vector<256x1xi1>
    %236 = vector.broadcast %235 : vector<256x1xi1> to vector<256x128xi1>
    %237 = vector.broadcast %cst_94 : f32 to vector<256x128xf32>
    %238 = arith.select %236, %234, %237 : vector<256x128xi1>, vector<256x128xf32>
    %239 = arith.truncf %238 : vector<256x128xf32> to vector<256x128xbf16>
    %c7 = arith.constant 7 : index
    %c0_95 = arith.constant 0 : index
    %c0_96 = arith.constant 0 : index
    %240 = vector.load %arg9[%c7, %c0_95, %c0_96] : memref<9x128x128xbf16, #tpu.memory_space<vmem>>, vector<1x128x128xbf16>
    %241 = vector.shape_cast %240 : vector<1x128x128xbf16> to vector<128x128xbf16>
    %cst_97 = arith.constant dense<0.000000e+00> : vector<256x128xf32>
    %242 = tpu.matmul %239, %241, %cst_97 {dimension_numbers = #tpu.dot_dimension_numbers<[1], [0], [0], [1], [0, 0, 1, 1], [], []>} : vector<256x128xbf16>, vector<128x128xbf16>, vector<256x128xf32> -> vector<256x128xf32>
    %243 = arith.addf %221, %242 : vector<256x128xf32>
    %c1_i32_98 = arith.constant 1 : i32
    %244 = vector.broadcast %c1_i32_98 : i32 to vector<256x1xi32>
    %245 = arith.addi %42, %244 : vector<256x1xi32>
    %c0_i32_99 = arith.constant 0 : i32
    %246 = vector.broadcast %c0_i32_99 : i32 to vector<256x1xi32>
    %247 = arith.cmpi sge, %245, %246 : vector<256x1xi32>
    %248 = arith.andi %199, %247 : vector<256x1xi1>
    %c1_i32_100 = arith.constant 1 : i32
    %249 = vector.broadcast %c1_i32_100 : i32 to vector<256x1xi32>
    %250 = arith.addi %42, %249 : vector<256x1xi32>
    %c16_i32_101 = arith.constant 16 : i32
    %251 = vector.broadcast %c16_i32_101 : i32 to vector<256x1xi32>
    %252 = arith.cmpi slt, %250, %251 : vector<256x1xi32>
    %253 = arith.andi %248, %252 : vector<256x1xi1>
    %254 = vector.extract_strided_slice %13 {offsets = [17, 0], sizes = [239, 128], strides = [1, 1]} : vector<256x128xf32> to vector<239x128xf32>
    %255 = vector.extract_strided_slice %13 {offsets = [0, 0], sizes = [17, 128], strides = [1, 1]} : vector<256x128xf32> to vector<17x128xf32>
    %256 = tpu.concatenate %254, %255 in 0 : vector<239x128xf32>, vector<17x128xf32> -> vector<256x128xf32>
    %cst_102 = arith.constant 0.000000e+00 : f32
    %257 = vector.shape_cast %253 : vector<256x1xi1> to vector<256x1xi1>
    %258 = vector.broadcast %257 : vector<256x1xi1> to vector<256x128xi1>
    %259 = vector.broadcast %cst_102 : f32 to vector<256x128xf32>
    %260 = arith.select %258, %256, %259 : vector<256x128xi1>, vector<256x128xf32>
    %261 = arith.truncf %260 : vector<256x128xf32> to vector<256x128xbf16>
    %c8 = arith.constant 8 : index
    %c0_103 = arith.constant 0 : index
    %c0_104 = arith.constant 0 : index
    %262 = vector.load %arg9[%c8, %c0_103, %c0_104] : memref<9x128x128xbf16, #tpu.memory_space<vmem>>, vector<1x128x128xbf16>
    %263 = vector.shape_cast %262 : vector<1x128x128xbf16> to vector<128x128xbf16>
    %cst_105 = arith.constant dense<0.000000e+00> : vector<256x128xf32>
    %264 = tpu.matmul %261, %263, %cst_105 {dimension_numbers = #tpu.dot_dimension_numbers<[1], [0], [0], [1], [0, 0, 1, 1], [], []>} : vector<256x128xbf16>, vector<128x128xbf16>, vector<256x128xf32> -> vector<256x128xf32>
    %265 = arith.addf %243, %264 : vector<256x128xf32>
    %266 = arith.truncf %265 : vector<256x128xf32> to vector<256x128xbf16>
    %c0_106 = arith.constant 0 : index
    %c0_107 = arith.constant 0 : index
    %267 = vector.load %arg10[%c0_106, %c0_107] : memref<256x128xbf16, #tpu.memory_space<vmem>>, vector<256x128xbf16>
    tpu.vector_store %arg10[%c0_106, %c0_107], %266 {strides = array<i32>} : memref<256x128xbf16, #tpu.memory_space<vmem>>, vector<256x128xbf16>,
    %c0_108 = arith.constant 0 : index
    %c0_109 = arith.constant 0 : index
    %c0_110 = arith.constant 0 : index
    %268 = vector.load %arg12[%c0_108, %c0_109, %c0_110] : memref<1x2x128xf32, #tpu.memory_space<vmem>>, vector<1x2x128xf32>
    %cst_111 = arith.constant dense<0.000000e+00> : vector<128xf32>
    %269 = vector.multi_reduction <add>, %265, %cst_111 [0] : vector<256x128xf32> to vector<128xf32>
    %270 = vector.shape_cast %269 : vector<128xf32> to vector<1x128xf32>
    %271 = arith.mulf %265, %265 : vector<256x128xf32>
    %cst_112 = arith.constant dense<0.000000e+00> : vector<128xf32>
    %272 = vector.multi_reduction <add>, %271, %cst_112 [0] : vector<256x128xf32> to vector<128xf32>
    %273 = vector.shape_cast %272 : vector<128xf32> to vector<1x128xf32>
    %274 = tpu.concatenate %270, %273 in 0 : vector<1x128xf32>, vector<1x128xf32> -> vector<2x128xf32>
    %275 = vector.shape_cast %274 : vector<2x128xf32> to vector<1x2x128xf32>
    %276 = arith.addf %268, %275 : vector<1x2x128xf32>
    %c0_113 = arith.constant 0 : index
    %c0_114 = arith.constant 0 : index
    %c0_115 = arith.constant 0 : index
    %277 = vector.load %arg12[%c0_113, %c0_114, %c0_115] : memref<1x2x128xf32, #tpu.memory_space<vmem>>, vector<1x2x128xf32>
    tpu.vector_store %arg12[%c0_113, %c0_114, %c0_115], %276 {strides = array<i32>} : memref<1x2x128xf32, #tpu.memory_space<vmem>>, vector<1x2x128xf32>,
    return
  }
  func.func @transform_0(%arg0: i32, %arg1: i32) -> (i32, i32) {
    %c1_i32 = arith.constant 1 : i32
    %0 = arith.muli %arg0, %c1_i32 : i32
    %1 = arith.addi %0, %arg1 : i32
    %c0_i32 = arith.constant 0 : i32
    %c0_i32_0 = arith.constant 0 : i32
    return %1, %c0_i32 : i32, i32
  }
  func.func @transform_1(%arg0: i32, %arg1: i32) -> (i32, i32) {
    %c0_i32 = arith.constant 0 : i32
    %c0_i32_0 = arith.constant 0 : i32
    %c0_i32_1 = arith.constant 0 : i32
    return %c0_i32, %c0_i32_0 : i32, i32
  }
  func.func @transform_2(%arg0: i32, %arg1: i32) -> (i32, i32) {
    %c0_i32 = arith.constant 0 : i32
    %c0_i32_0 = arith.constant 0 : i32
    %c0_i32_1 = arith.constant 0 : i32
    return %c0_i32, %c0_i32_0 : i32, i32
  }
  func.func @transform_3(%arg0: i32, %arg1: i32) -> (i32, i32) {
    %c0_i32 = arith.constant 0 : i32
    %c0_i32_0 = arith.constant 0 : i32
    %c0_i32_1 = arith.constant 0 : i32
    return %c0_i32, %c0_i32_0 : i32, i32
  }
  func.func @transform_4(%arg0: i32, %arg1: i32) -> (i32, i32) {
    %c0_i32 = arith.constant 0 : i32
    %c0_i32_0 = arith.constant 0 : i32
    %c0_i32_1 = arith.constant 0 : i32
    return %c0_i32, %c0_i32_0 : i32, i32
  }
  func.func @transform_5(%arg0: i32, %arg1: i32) -> (i32, i32) {
    %c0_i32 = arith.constant 0 : i32
    %c0_i32_0 = arith.constant 0 : i32
    %c0_i32_1 = arith.constant 0 : i32
    return %c0_i32, %c0_i32_0 : i32, i32
  }
  func.func @transform_6(%arg0: i32, %arg1: i32) -> (i32, i32) {
    %c0_i32 = arith.constant 0 : i32
    %c0_i32_0 = arith.constant 0 : i32
    %c0_i32_1 = arith.constant 0 : i32
    return %c0_i32, %c0_i32_0 : i32, i32
  }
  func.func @transform_7(%arg0: i32, %arg1: i32) -> (i32, i32, i32) {
    %c0_i32 = arith.constant 0 : i32
    %c0_i32_0 = arith.constant 0 : i32
    %c0_i32_1 = arith.constant 0 : i32
    %c0_i32_2 = arith.constant 0 : i32
    return %c0_i32, %c0_i32_0, %c0_i32_1 : i32, i32, i32
  }
  func.func @transform_8(%arg0: i32, %arg1: i32) -> (i32, i32) {
    %c1_i32 = arith.constant 1 : i32
    %0 = arith.muli %arg0, %c1_i32 : i32
    %1 = arith.addi %0, %arg1 : i32
    %c0_i32 = arith.constant 0 : i32
    %c0_i32_0 = arith.constant 0 : i32
    return %1, %c0_i32 : i32, i32
  }
  func.func @transform_9(%arg0: i32, %arg1: i32) -> (i32, i32) {
    %c1_i32 = arith.constant 1 : i32
    %0 = arith.muli %arg0, %c1_i32 : i32
    %1 = arith.addi %0, %arg1 : i32
    %c0_i32 = arith.constant 0 : i32
    %c0_i32_0 = arith.constant 0 : i32
    return %1, %c0_i32 : i32, i32
  }
  func.func @transform_10(%arg0: i32, %arg1: i32) -> (i32, i32, i32) {
    %c0_i32 = arith.constant 0 : i32
    %c0_i32_0 = arith.constant 0 : i32
    %c0_i32_1 = arith.constant 0 : i32
    return %arg0, %c0_i32, %c0_i32_0 : i32, i32, i32
  }
}

module attributes {stable_mosaic.version = 11 : i64} {
  func.func @_final_kernel(%arg0: i32, %arg1: memref<256x128xbf16, #tpu.memory_space<vmem>>, %arg2: memref<256x128xbf16, #tpu.memory_space<vmem>>, %arg3: memref<1x128xf32, #tpu.memory_space<vmem>>, %arg4: memref<1x128xf32, #tpu.memory_space<vmem>>, %arg5: memref<128x128xbf16, #tpu.memory_space<vmem>>, %arg6: memref<1x128xf32, #tpu.memory_space<vmem>>, %arg7: memref<1x128xf32, #tpu.memory_space<vmem>>, %arg8: memref<256x128xf32, #tpu.memory_space<vmem>>) attributes {dimension_semantics = [#tpu.dimension_semantics<parallel>], iteration_bounds = array<i64: 2>, scalar_prefetch = 0 : i64, scratch_operands = 0 : i64, tpu.core_type = #tpu.core_type<tc>, window_params = [{transform_indices = @transform_0, window_bounds = array<i64: 256, 128>}, {transform_indices = @transform_1, window_bounds = array<i64: 256, 128>}, {pipeline_mode = #tpu.pipeline_mode<synchronous>, transform_indices = @transform_2, window_bounds = array<i64: 1, 128>}, {pipeline_mode = #tpu.pipeline_mode<synchronous>, transform_indices = @transform_3, window_bounds = array<i64: 1, 128>}, {pipeline_mode = #tpu.pipeline_mode<synchronous>, transform_indices = @transform_4, window_bounds = array<i64: 128, 128>}, {pipeline_mode = #tpu.pipeline_mode<synchronous>, transform_indices = @transform_5, window_bounds = array<i64: 1, 128>}, {pipeline_mode = #tpu.pipeline_mode<synchronous>, transform_indices = @transform_6, window_bounds = array<i64: 1, 128>}, {transform_indices = @transform_7, window_bounds = array<i64: 256, 128>}]} {
    %c0 = arith.constant 0 : index
    %c0_0 = arith.constant 0 : index
    %0 = vector.load %arg1[%c0, %c0_0] : memref<256x128xbf16, #tpu.memory_space<vmem>>, vector<256x128xbf16>
    %1 = arith.extf %0 : vector<256x128xbf16> to vector<256x128xf32>
    %c0_1 = arith.constant 0 : index
    %c0_2 = arith.constant 0 : index
    %2 = vector.load %arg3[%c0_1, %c0_2] : memref<1x128xf32, #tpu.memory_space<vmem>>, vector<1x128xf32>
    %3 = vector.broadcast %2 : vector<1x128xf32> to vector<256x128xf32>
    %4 = arith.mulf %1, %3 : vector<256x128xf32>
    %c0_3 = arith.constant 0 : index
    %c0_4 = arith.constant 0 : index
    %5 = vector.load %arg4[%c0_3, %c0_4] : memref<1x128xf32, #tpu.memory_space<vmem>>, vector<1x128xf32>
    %6 = vector.broadcast %5 : vector<1x128xf32> to vector<256x128xf32>
    %7 = arith.addf %4, %6 : vector<256x128xf32>
    %cst = arith.constant 0.000000e+00 : f32
    %8 = vector.broadcast %cst : f32 to vector<256x128xf32>
    %9 = arith.maximumf %7, %8 : vector<256x128xf32>
    %10 = arith.truncf %9 : vector<256x128xf32> to vector<256x128xbf16>
    %c0_5 = arith.constant 0 : index
    %c0_6 = arith.constant 0 : index
    %11 = vector.load %arg5[%c0_5, %c0_6] : memref<128x128xbf16, #tpu.memory_space<vmem>>, vector<128x128xbf16>
    %cst_7 = arith.constant dense<0.000000e+00> : vector<256x128xf32>
    %12 = tpu.matmul %10, %11, %cst_7 {dimension_numbers = #tpu.dot_dimension_numbers<[1], [0], [0], [1], [0, 0, 1, 1], [], []>} : vector<256x128xbf16>, vector<128x128xbf16>, vector<256x128xf32> -> vector<256x128xf32>
    %c0_8 = arith.constant 0 : index
    %c0_9 = arith.constant 0 : index
    %13 = vector.load %arg6[%c0_8, %c0_9] : memref<1x128xf32, #tpu.memory_space<vmem>>, vector<1x128xf32>
    %14 = vector.broadcast %13 : vector<1x128xf32> to vector<256x128xf32>
    %15 = arith.mulf %12, %14 : vector<256x128xf32>
    %c0_10 = arith.constant 0 : index
    %c0_11 = arith.constant 0 : index
    %16 = vector.load %arg7[%c0_10, %c0_11] : memref<1x128xf32, #tpu.memory_space<vmem>>, vector<1x128xf32>
    %17 = vector.broadcast %16 : vector<1x128xf32> to vector<256x128xf32>
    %18 = arith.addf %15, %17 : vector<256x128xf32>
    %cst_12 = arith.constant 0.000000e+00 : f32
    %19 = vector.broadcast %cst_12 : f32 to vector<256x128xf32>
    %20 = arith.maximumf %18, %19 : vector<256x128xf32>
    %c0_13 = arith.constant 0 : index
    %c0_14 = arith.constant 0 : index
    %21 = vector.load %arg2[%c0_13, %c0_14] : memref<256x128xbf16, #tpu.memory_space<vmem>>, vector<256x128xbf16>
    %22 = arith.extf %21 : vector<256x128xbf16> to vector<256x128xf32>
    %23 = arith.addf %20, %22 : vector<256x128xf32>
    %c0_15 = arith.constant 0 : index
    %c0_16 = arith.constant 0 : index
    %24 = vector.load %arg8[%c0_15, %c0_16] : memref<256x128xf32, #tpu.memory_space<vmem>>, vector<256x128xf32>
    tpu.vector_store %arg8[%c0_15, %c0_16], %23 {strides = array<i32>} : memref<256x128xf32, #tpu.memory_space<vmem>>, vector<256x128xf32>,
    return
  }
  func.func @transform_0(%arg0: i32) -> (i32, i32) {
    %c0_i32 = arith.constant 0 : i32
    %c0_i32_0 = arith.constant 0 : i32
    return %arg0, %c0_i32 : i32, i32
  }
  func.func @transform_1(%arg0: i32) -> (i32, i32) {
    %c0_i32 = arith.constant 0 : i32
    %c0_i32_0 = arith.constant 0 : i32
    return %arg0, %c0_i32 : i32, i32
  }
  func.func @transform_2(%arg0: i32) -> (i32, i32) {
    %c0_i32 = arith.constant 0 : i32
    %c0_i32_0 = arith.constant 0 : i32
    %c0_i32_1 = arith.constant 0 : i32
    return %c0_i32, %c0_i32_0 : i32, i32
  }
  func.func @transform_3(%arg0: i32) -> (i32, i32) {
    %c0_i32 = arith.constant 0 : i32
    %c0_i32_0 = arith.constant 0 : i32
    %c0_i32_1 = arith.constant 0 : i32
    return %c0_i32, %c0_i32_0 : i32, i32
  }
  func.func @transform_4(%arg0: i32) -> (i32, i32) {
    %c0_i32 = arith.constant 0 : i32
    %c0_i32_0 = arith.constant 0 : i32
    %c0_i32_1 = arith.constant 0 : i32
    return %c0_i32, %c0_i32_0 : i32, i32
  }
  func.func @transform_5(%arg0: i32) -> (i32, i32) {
    %c0_i32 = arith.constant 0 : i32
    %c0_i32_0 = arith.constant 0 : i32
    %c0_i32_1 = arith.constant 0 : i32
    return %c0_i32, %c0_i32_0 : i32, i32
  }
  func.func @transform_6(%arg0: i32) -> (i32, i32) {
    %c0_i32 = arith.constant 0 : i32
    %c0_i32_0 = arith.constant 0 : i32
    %c0_i32_1 = arith.constant 0 : i32
    return %c0_i32, %c0_i32_0 : i32, i32
  }
  func.func @transform_7(%arg0: i32) -> (i32, i32) {
    %c0_i32 = arith.constant 0 : i32
    %c0_i32_0 = arith.constant 0 : i32
    return %arg0, %c0_i32 : i32, i32
  }
}

</mosaic_0001>

<llo_original>
// kernel: resnet_bottleneck_block.4
$region0: #{resnet_bottleneck_block.4}
  #allocation0 [shape = 'u32[]', space=smem, size = 0x4, offset = 0x4, fixed_abs, tag = 'smem constant byte address 0x4 - core index']
  #allocation1 [shape = 'u32[144,128]{1,0:T(1,128)}', space=vmem, size = 0x12000, scoped, tag = 'internal scratch']
  %s0 = inlined_call_operand.vmem [shape: bf16[512,4], index: 0, kind: input, shape index: {}]
  %s1 = inlined_call_operand.vmem [shape: bf16[4,128], index: 1, kind: input, shape index: {}]
  %s2 = inlined_call_operand.vmem [shape: bf16[4,128], index: 2, kind: input, shape index: {}]
  %s3 = inlined_call_operand.vmem [shape: f32[2,4,128], index: 3, kind: output, shape index: {}]
  %s4 = sld [smem:[#allocation0]]
  $region49: #{resnet_bottleneck_block.4} parent=0
    _
  %s6 = ssub.s32 1, %s4
  %s7 = scalar_select 0, %s6, %s4
  loop: start=0, step=1, limit=4
  $region2: #{resnet_bottleneck_block.4} parent=0 // loop_pre_header
    _
  $region3: #{resnet_bottleneck_block.4} parent=0 // loop_header
    %s9 = sphi 0, %s13
    %p10 = scmp.ge.s32.totalorder %s9, 4
    %s16 = sphi 0, %s28
    %s17 = sphi 0, %s24
    %s18 = sphi 0, %s16
    %s19 = sphi 0, %s17
    %s20 = sphi 0, %s18
    %s21 = sphi 0, %s19
    %s33 = sphi 0, %s35
    %s36 = sphi 0, %s33
    %s37 = sphi 0, %s36
    %s53 = sphi 0, %s37
    %s57 = sphi 0, %s57
    %s59 = sphi 0, %s57
    %s60 = sphi 0, %s59
    %s74 = sphi 0, %s60
    %s78 = sphi 0, %s78
    %s80 = sphi 0, %s78
    %s81 = sphi 0, %s80
    %s95 = sphi 0, %s81
    %s101 = sphi 0, %s103
    %s104 = sphi 0, %s101
    %s105 = sphi 0, %s104
    %s121 = sphi 0, %s105
  $region4: #{resnet_bottleneck_block.4} parent=0 // loop_header_branch
    %12 = sbr.rel (%p10) target = $region8
  $region5: #{resnet_bottleneck_block.4} parent=0 // loop_body
    %s14 = ssub.s32 %s9, 1
    %s15 = ssub.s32 %s9, 2
    %s22 = sadd.s32 1, %s17
    %p23 = scmp.ge.s32.totalorder %s22, 1
    %s24 = scalar_select %p23, 0, %s22
    %s25 = sadd.s32 1, %s16
    %s26 = scalar_select %p23, %s25, %s16
    %p27 = scmp.ge.s32.totalorder %s26, 2
    %s28 = scalar_select %p27, 0, %s26
    %s29 = sadd.s32 %s16, %s17
    %s30 = sadd.s32 %s28, %s24
    %s31 = ssub.s32 %s29, %s30
    %p32 = scmp.eq.s32.totalorder %s31, 0
    %s34 = sadd.s32 %s33, 1
    %s35 = scalar_select %p32, %s33, %s34
    %p38 = pneg %p32
    %p39 = scmp.eq.s32.totalorder %s9, 1
    %p40 = por %p38, %p39
    %p41 = scmp.ne.s32.totalorder %s33, %s36
    %p42 = scmp.eq.s32.totalorder %s9, 0
    %p43 = por %p41, %p42
    %p44 = scmp.ne.s32.totalorder %s33, %s36
    %p45 = scmp.eq.s32.totalorder %s14, 1
    %p46 = por %p44, %p45
    %p47 = scmp.ne.s32.totalorder %s36, %s37
    %p48 = scmp.eq.s32.totalorder %s14, 0
    %p49 = por %p47, %p48
    %p50 = scmp.ne.s32.totalorder %s36, %s37
    %p51 = scmp.eq.s32.totalorder %s15, 1
    %p52 = por %p50, %p51
    %p54 = scmp.ne.s32.totalorder %s37, %s53
    %p55 = scmp.eq.s32.totalorder %s15, 0
    %p56 = por %p54, %p55
    %s58 = sadd.s32 %s57, 1
    %p61 = scmp.eq.s32.totalorder %s9, 1
    %p62 = scmp.ne.s32.totalorder %s57, %s59
    %p63 = scmp.eq.s32.totalorder %s9, 0
    %p64 = por %p62, %p63
    %p65 = scmp.ne.s32.totalorder %s57, %s59
    %p66 = scmp.eq.s32.totalorder %s14, 1
    %p67 = por %p65, %p66
    %p68 = scmp.ne.s32.totalorder %s59, %s60
    %p69 = scmp.eq.s32.totalorder %s14, 0
    %p70 = por %p68, %p69
    %p71 = scmp.ne.s32.totalorder %s59, %s60
    %p72 = scmp.eq.s32.totalorder %s15, 1
    %p73 = por %p71, %p72
    %p75 = scmp.ne.s32.totalorder %s60, %s74
    %p76 = scmp.eq.s32.totalorder %s15, 0
    %p77 = por %p75, %p76
    %s79 = sadd.s32 %s78, 1
    %p82 = scmp.eq.s32.totalorder %s9, 1
    %p83 = scmp.ne.s32.totalorder %s78, %s80
    %p84 = scmp.eq.s32.totalorder %s9, 0
    %p85 = por %p83, %p84
    %p86 = scmp.ne.s32.totalorder %s78, %s80
    %p87 = scmp.eq.s32.totalorder %s14, 1
    %p88 = por %p86, %p87
    %p89 = scmp.ne.s32.totalorder %s80, %s81
    %p90 = scmp.eq.s32.totalorder %s14, 0
    %p91 = por %p89, %p90
    %p92 = scmp.ne.s32.totalorder %s80, %s81
    %p93 = scmp.eq.s32.totalorder %s15, 1
    %p94 = por %p92, %p93
    %p96 = scmp.ne.s32.totalorder %s81, %s95
    %p97 = scmp.eq.s32.totalorder %s15, 0
    %p98 = por %p96, %p97
    %s99 = ssub.s32 %s16, %s28
    %p100 = scmp.eq.s32.totalorder %s99, 0
    %s102 = sadd.s32 %s101, 1
    %s103 = scalar_select %p100, %s101, %s102
    %p106 = pneg %p100
    %p107 = scmp.eq.s32.totalorder %s9, 1
    %p108 = por %p106, %p107
    %p109 = scmp.ne.s32.totalorder %s101, %s104
    %p110 = scmp.eq.s32.totalorder %s9, 0
    %p111 = por %p109, %p110
    %p112 = scmp.ne.s32.totalorder %s101, %s104
    %p113 = scmp.eq.s32.totalorder %s14, 1
    %p114 = por %p112, %p113
    %p115 = scmp.ne.s32.totalorder %s104, %s105
    %p116 = scmp.eq.s32.totalorder %s14, 0
    %p117 = por %p115, %p116
    %p118 = scmp.ne.s32.totalorder %s104, %s105
    %p119 = scmp.eq.s32.totalorder %s15, 1
    %p120 = por %p118, %p119
    %p122 = scmp.ne.s32.totalorder %s105, %s121
    %p123 = scmp.eq.s32.totalorder %s15, 0
    %p124 = por %p122, %p123
    %p125 = scmp.le.s32.totalorder 1, %s9
    %p126 = scmp.lt.s32.totalorder %s9, 3
    %p127 = pnand %p125, %p126
    %p128 = pneg %p127
    // Predicated region
    $region9: #{resnet_bottleneck_block.4} parent=5 // pred_check
      _
    $region10: #{resnet_bottleneck_block.4} parent=5 // pred_check_branch
      %130 = sbr.rel (%p127) target = $region12
    $region11: #{resnet_bottleneck_block.4} parent=5 // pred_region
      %s131 = ssub.s32 %s9, 1
      // Predicated region
      $region13: #{resnet_bottleneck_block.4} parent=11 // pred_check
        %p132 = pneg %p70
      $region14: #{resnet_bottleneck_block.4} parent=11 // pred_check_branch
        %134 = sbr.rel (%p132) target = $region16
      $region15: #{resnet_bottleneck_block.4} parent=11 // pred_region
        _
      $region16: #{resnet_bottleneck_block.4} parent=11 // pred_fallthru
        _
      // Predicated region
      $region17: #{resnet_bottleneck_block.4} parent=11 // pred_check
        %p135 = pneg %p91
      $region18: #{resnet_bottleneck_block.4} parent=11 // pred_check_branch
        %137 = sbr.rel (%p135) target = $region20
      $region19: #{resnet_bottleneck_block.4} parent=11 // pred_region
        _
      $region20: #{resnet_bottleneck_block.4} parent=11 // pred_fallthru
        _
    $region12: #{resnet_bottleneck_block.4} parent=5 // pred_fallthru
      _
    %p138 = scmp.lt.s32.totalorder %s9, 2
    // Predicated region
    $region21: #{resnet_bottleneck_block.4} parent=5 // pred_check
      %p139 = pneg %p138
    $region22: #{resnet_bottleneck_block.4} parent=5 // pred_check_branch
      %141 = sbr.rel (%p139) target = $region24
    $region23: #{resnet_bottleneck_block.4} parent=5 // pred_region
      // Predicated region
      $region25: #{resnet_bottleneck_block.4} parent=23 // pred_check
        %p142 = pneg %p43
      $region26: #{resnet_bottleneck_block.4} parent=23 // pred_check_branch
        %144 = sbr.rel (%p142) target = $region28
      $region27: #{resnet_bottleneck_block.4} parent=23 // pred_region
        %s145 = sadd.s32 %s16, %s17
        %s146 = smul.u32 32, %s145
        %p147 = scmp.lt.s32.totalorder %s146, 63
        %s148 = scalar_select %p147, %s146, 63
        %s149 = smul.addr %s148, 4
        %s150 = scalar_lea.vmem %s0, %s149
        %s151 = sadd.s32 %s16, %s17
        %s152 = smul.u32 32, %s151
      $region28: #{resnet_bottleneck_block.4} parent=23 // pred_fallthru
        _
    $region24: #{resnet_bottleneck_block.4} parent=5 // pred_fallthru
      _
    %p153 = scmp.le.s32.totalorder 1, %s9
    %p154 = scmp.lt.s32.totalorder %s9, 3
    %p155 = pnand %p153, %p154
    %p156 = pneg %p155
    // Predicated region
    $region29: #{resnet_bottleneck_block.4} parent=5 // pred_check
      _
    $region30: #{resnet_bottleneck_block.4} parent=5 // pred_check_branch
      %158 = sbr.rel (%p155) target = $region32
    $region31: #{resnet_bottleneck_block.4} parent=5 // pred_region
      %s159 = ssub.s32 %s9, 1
      %s160 = sadd.s32 %s18, %s19
      %s161 = smul.u32 32, %s160
      %p162 = scmp.lt.s32.totalorder %s161, 63
      %s163 = scalar_select %p162, %s161, 63
      %s164 = smul.addr %s163, 4
      %s165 = scalar_lea.vmem %s0, %s164
      %p166 = pneg %p49
      %p167 = pneg %p46
      %p168 = pneg %p70
      %p169 = pneg %p67
      %p170 = pneg %p91
      %p171 = pneg %p88
      %p172 = pneg %p117
      %p173 = pneg %p114
      %p174 = scmp.lt.s32.totalorder %s18, 1
      %s175 = scalar_select %p174, %s18, 1
      %s176 = smul.addr %s175, 4
      %s177 = scalar_lea.vmem %s3, %s176
      %s178 = sadd.s32 %s18, %s19
      %s179 = smul.u32 32, %s178
      %p180 = scmp.lt.s32.totalorder %s179, 63
      %s181 = scalar_select %p180, %s179, 63
      %s182 = smul.addr %s181, 4
      %s183 = scalar_lea.vmem %s0, %s182
      %s184 = sadd.s32 %s18, %s19
      %s185 = smul.u32 32, %s184
      %p186 = scmp.lt.s32.totalorder %s18, 1
      %s187 = scalar_select %p186, %s18, 1
      %s188 = smul.addr %s187, 4
      %s189 = scalar_lea.vmem %s3, %s188
      %p191 = scmp.eq.s32.totalorder %s19, 0
      // Predicated region
      $region33: #{resnet_bottleneck_block.4} parent=31 // pred_check
        %p192 = pneg %p191
      $region34: #{resnet_bottleneck_block.4} parent=31 // pred_check_branch
        %194 = sbr.rel (%p192) target = $region36
      $region35: #{resnet_bottleneck_block.4} parent=31 // pred_region
        %195 = vst [vmem:[%s189] sm:$0xf] 0.0
      $region36: #{resnet_bottleneck_block.4} parent=31 // pred_fallthru
        _
      %v196 = vld [vmem:[%s183] sm:$0xf]
      %v197 = vld [vmem:[%s183 + $0x4] sm:$0xf]
      %v198 = vld [vmem:[%s183 + $0x8] sm:$0xf]
      %v199 = vld [vmem:[%s183 + $0xc] sm:$0xf]
      %v200 = vld [vmem:[%s183 + $0x10] sm:$0xf]
      %v201 = vld [vmem:[%s183 + $0x14] sm:$0xf]
      %v202 = vld [vmem:[%s183 + $0x18] sm:$0xf]
      %v203 = vld [vmem:[%s183 + $0x1c] sm:$0xf]
      %v204 = vld [vmem:[%s183 + $0x20] sm:$0xf]
      %v205 = vld [vmem:[%s183 + $0x24] sm:$0xf]
      %v206 = vld [vmem:[%s183 + $0x28] sm:$0xf]
      %v207 = vld [vmem:[%s183 + $0x2c] sm:$0xf]
      %v208 = vld [vmem:[%s183 + $0x30] sm:$0xf]
      %v209 = vld [vmem:[%s183 + $0x34] sm:$0xf]
      %v210 = vld [vmem:[%s183 + $0x38] sm:$0xf]
      %v211 = vld [vmem:[%s183 + $0x3c] sm:$0xf]
      %v212 = vld [vmem:[%s183 + $0x40] sm:$0xf]
      %v213 = vld [vmem:[%s183 + $0x44] sm:$0xf]
      %v214 = vld [vmem:[%s183 + $0x48] sm:$0xf]
      %v215 = vld [vmem:[%s183 + $0x4c] sm:$0xf]
      %v216 = vld [vmem:[%s183 + $0x50] sm:$0xf]
      %v217 = vld [vmem:[%s183 + $0x54] sm:$0xf]
      %v218 = vld [vmem:[%s183 + $0x58] sm:$0xf]
      %v219 = vld [vmem:[%s183 + $0x5c] sm:$0xf]
      %v220 = vld [vmem:[%s183 + $0x60] sm:$0xf]
      %v221 = vld [vmem:[%s183 + $0x64] sm:$0xf]
      %v222 = vld [vmem:[%s183 + $0x68] sm:$0xf]
      %v223 = vld [vmem:[%s183 + $0x6c] sm:$0xf]
      %v224 = vld [vmem:[%s183 + $0x70] sm:$0xf]
      %v225 = vld [vmem:[%s183 + $0x74] sm:$0xf]
      %v226 = vld [vmem:[%s183 + $0x78] sm:$0xf]
      %v227 = vld [vmem:[%s183 + $0x7c] sm:$0xf]
      %v228 = vld [vmem:[%s1] sm:$0x3]
      %v261 = vunpack.c.l.b16 %v196
      %v262 = vunpack.c.l.b16 %v197
      %v263 = vunpack.c.l.b16 %v198
      %v264 = vunpack.c.l.b16 %v199
      %v265 = vunpack.c.l.b16 %v200
      %v266 = vunpack.c.l.b16 %v201
      %v267 = vunpack.c.l.b16 %v202
      %v268 = vunpack.c.l.b16 %v203
      %v269 = vunpack.c.l.b16 %v204
      %v270 = vunpack.c.l.b16 %v205
      %v271 = vunpack.c.l.b16 %v206
      %v272 = vunpack.c.l.b16 %v207
      %v273 = vunpack.c.l.b16 %v208
      %v274 = vunpack.c.l.b16 %v209
      %v275 = vunpack.c.l.b16 %v210
      %v276 = vunpack.c.l.b16 %v211
      %v277 = vunpack.c.l.b16 %v212
      %v278 = vunpack.c.l.b16 %v213
      %v279 = vunpack.c.l.b16 %v214
      %v280 = vunpack.c.l.b16 %v215
      %v281 = vunpack.c.l.b16 %v216
      %v282 = vunpack.c.l.b16 %v217
      %v283 = vunpack.c.l.b16 %v218
      %v284 = vunpack.c.l.b16 %v219
      %v285 = vunpack.c.l.b16 %v220
      %v286 = vunpack.c.l.b16 %v221
      %v287 = vunpack.c.l.b16 %v222
      %v288 = vunpack.c.l.b16 %v223
      %v289 = vunpack.c.l.b16 %v224
      %v290 = vunpack.c.l.b16 %v225
      %v291 = vunpack.c.l.b16 %v226
      %v292 = vunpack.c.l.b16 %v227
      %v293 = vpack.c.b16 %v262, %v261
      %v294 = vpack.c.b16 %v264, %v263
      %v295 = vpack.c.b16 %v266, %v265
      %v296 = vpack.c.b16 %v268, %v267
      %v297 = vpack.c.b16 %v270, %v269
      %v298 = vpack.c.b16 %v272, %v271
      %v299 = vpack.c.b16 %v274, %v273
      %v300 = vpack.c.b16 %v276, %v275
      %v301 = vpack.c.b16 %v278, %v277
      %v302 = vpack.c.b16 %v280, %v279
      %v303 = vpack.c.b16 %v282, %v281
      %v304 = vpack.c.b16 %v284, %v283
      %v305 = vpack.c.b16 %v286, %v285
      %v306 = vpack.c.b16 %v288, %v287
      %v307 = vpack.c.b16 %v290, %v289
      %v308 = vpack.c.b16 %v292, %v291
      %vm309 = vcmask 31744
      %v311 = vsel %vm309, %v293, 0
      %v314 = vsel %vm309, %v294, 0
      %v317 = vsel %vm309, %v295, 0
      %v320 = vsel %vm309, %v296, 0
      %v323 = vsel %vm309, %v297, 0
      %v326 = vsel %vm309, %v298, 0
      %v329 = vsel %vm309, %v299, 0
      %v332 = vsel %vm309, %v300, 0
      %v335 = vsel %vm309, %v301, 0
      %v338 = vsel %vm309, %v302, 0
      %v341 = vsel %vm309, %v303, 0
      %v344 = vsel %vm309, %v304, 0
      %v347 = vsel %vm309, %v305, 0
      %v350 = vsel %vm309, %v306, 0
      %v353 = vsel %vm309, %v307, 0
      %v356 = vsel %vm309, %v308, 0
      %vm358 = vcmask 1041408
      %v360 = vsel %vm358, %v228, 0
      %362 = vmatprep.subr.bf16.mxu0 0
      %363 = vmatpush1.bf16.msra.mxu0 %v360
      %364 = vmatprep.subr.bf16.mxu0 0
      %365 = vmatpush1.bf16.msra.mxu0 0
      %366 = vmatprep.subr.bf16.mxu0 0
      %367 = vmatpush1.bf16.msra.mxu0 0
      %368 = vmatprep.subr.bf16.mxu0 0
      %369 = vmatpush1.bf16.msra.mxu0 0
      %370 = vmatprep.subr.bf16.mxu0 0
      %371 = vmatpush1.bf16.msra.mxu0 0
      %372 = vmatprep.subr.bf16.mxu0 0
      %373 = vmatpush1.bf16.msra.mxu0 0
      %374 = vmatprep.subr.bf16.mxu0 0
      %375 = vmatpush1.bf16.msra.mxu0 0
      %376 = vmatprep.subr.bf16.mxu0 0
      %377 = vmatpush1.bf16.msra.mxu0 0
      %378 = vmatprep.subr.bf16.mxu0 0
      %379 = vmatpush1.bf16.msra.mxu0 0
      %380 = vmatprep.subr.bf16.mxu0 0
      %381 = vmatpush1.bf16.msra.mxu0 0
      %382 = vmatprep.subr.bf16.mxu0 0
      %383 = vmatpush1.bf16.msra.mxu0 0
      %384 = vmatprep.subr.bf16.mxu0 0
      %385 = vmatpush1.bf16.msra.mxu0 0
      %386 = vmatprep.subr.bf16.mxu0 0
      %387 = vmatpush1.bf16.msra.mxu0 0
      %388 = vmatprep.subr.bf16.mxu0 0
      %389 = vmatpush1.bf16.msra.mxu0 0
      %390 = vmatprep.subr.bf16.mxu0 0
      %391 = vmatpush1.bf16.msra.mxu0 0
      %392 = vmatprep.subr.bf16.mxu0 0
      %393 = vmatpush1.bf16.msra.mxu0 0
      %394 = vmatprep.mubr.bf16.mxu0 0
      %395 = vmatmul.mubr.bf16.gmra.mrb[0].mxu0 %v311
      %v396 = vpop.f32.mrb[0].mxu0
      %v397 = vadd.f32 0.0, %v396
      %v398 = vpop.f32.mrb[0].mxu0
      %v399 = vpop.f32.mrb[0].mxu0
      %v400 = vadd.f32 0.0, %v399
      %v401 = vpop.f32.mrb[0].mxu0
      %402 = vmatprep.mubr.bf16.mxu0 0
      %403 = vmatmul.mubr.bf16.gmra.mrb[0].mxu0 %v314
      %v404 = vpop.f32.mrb[0].mxu0
      %v405 = vadd.f32 0.0, %v404
      %v406 = vpop.f32.mrb[0].mxu0
      %v407 = vpop.f32.mrb[0].mxu0
      %v408 = vadd.f32 0.0, %v407
      %v409 = vpop.f32.mrb[0].mxu0
      %410 = vmatprep.mubr.bf16.mxu0 0
      %411 = vmatmul.mubr.bf16.gmra.mrb[0].mxu0 %v317
      %v412 = vpop.f32.mrb[0].mxu0
      %v413 = vadd.f32 0.0, %v412
      %v414 = vpop.f32.mrb[0].mxu0
      %v415 = vpop.f32.mrb[0].mxu0
      %v416 = vadd.f32 0.0, %v415
      %v417 = vpop.f32.mrb[0].mxu0
      %418 = vmatprep.mubr.bf16.mxu0 0
      %419 = vmatmul.mubr.bf16.gmra.mrb[0].mxu0 %v320
      %v420 = vpop.f32.mrb[0].mxu0
      %v421 = vadd.f32 0.0, %v420
      %v422 = vpop.f32.mrb[0].mxu0
      %v423 = vpop.f32.mrb[0].mxu0
      %v424 = vadd.f32 0.0, %v423
      %v425 = vpop.f32.mrb[0].mxu0
      %426 = vmatprep.mubr.bf16.mxu0 0
      %427 = vmatmul.mubr.bf16.gmra.mrb[0].mxu0 %v323
      %v428 = vpop.f32.mrb[0].mxu0
      %v429 = vadd.f32 0.0, %v428
      %v430 = vpop.f32.mrb[0].mxu0
      %v431 = vpop.f32.mrb[0].mxu0
      %v432 = vadd.f32 0.0, %v431
      %v433 = vpop.f32.mrb[0].mxu0
      %434 = vmatprep.mubr.bf16.mxu0 0
      %435 = vmatmul.mubr.bf16.gmra.mrb[0].mxu0 %v326
      %v436 = vpop.f32.mrb[0].mxu0
      %v437 = vadd.f32 0.0, %v436
      %v438 = vpop.f32.mrb[0].mxu0
      %v439 = vpop.f32.mrb[0].mxu0
      %v440 = vadd.f32 0.0, %v439
      %v441 = vpop.f32.mrb[0].mxu0
      %442 = vmatprep.mubr.bf16.mxu0 0
      %443 = vmatmul.mubr.bf16.gmra.mrb[0].mxu0 %v329
      %v444 = vpop.f32.mrb[0].mxu0
      %v445 = vadd.f32 0.0, %v444
      %v446 = vpop.f32.mrb[0].mxu0
      %v447 = vpop.f32.mrb[0].mxu0
      %v448 = vadd.f32 0.0, %v447
      %v449 = vpop.f32.mrb[0].mxu0
      %450 = vmatprep.mubr.bf16.mxu0 0
      %451 = vmatmul.mubr.bf16.gmra.mrb[0].mxu0 %v332
      %v452 = vpop.f32.mrb[0].mxu0
      %v453 = vadd.f32 0.0, %v452
      %v454 = vpop.f32.mrb[0].mxu0
      %v455 = vpop.f32.mrb[0].mxu0
      %v456 = vadd.f32 0.0, %v455
      %v457 = vpop.f32.mrb[0].mxu0
      %458 = vmatprep.mubr.bf16.mxu0 0
      %459 = vmatmul.mubr.bf16.gmra.mrb[0].mxu0 %v335
      %v460 = vpop.f32.mrb[0].mxu0
      %v461 = vadd.f32 0.0, %v460
      %v462 = vpop.f32.mrb[0].mxu0
      %v463 = vpop.f32.mrb[0].mxu0
      %v464 = vadd.f32 0.0, %v463
      %v465 = vpop.f32.mrb[0].mxu0
      %466 = vmatprep.mubr.bf16.mxu0 0
      %467 = vmatmul.mubr.bf16.gmra.mrb[0].mxu0 %v338
      %v468 = vpop.f32.mrb[0].mxu0
      %v469 = vadd.f32 0.0, %v468
      %v470 = vpop.f32.mrb[0].mxu0
      %v471 = vpop.f32.mrb[0].mxu0
      %v472 = vadd.f32 0.0, %v471
      %v473 = vpop.f32.mrb[0].mxu0
      %474 = vmatprep.mubr.bf16.mxu0 0
      %475 = vmatmul.mubr.bf16.gmra.mrb[0].mxu0 %v341
      %v476 = vpop.f32.mrb[0].mxu0
      %v477 = vadd.f32 0.0, %v476
      %v478 = vpop.f32.mrb[0].mxu0
      %v479 = vpop.f32.mrb[0].mxu0
      %v480 = vadd.f32 0.0, %v479
      %v481 = vpop.f32.mrb[0].mxu0
      %482 = vmatprep.mubr.bf16.mxu0 0
      %483 = vmatmul.mubr.bf16.gmra.mrb[0].mxu0 %v344
      %v484 = vpop.f32.mrb[0].mxu0
      %v485 = vadd.f32 0.0, %v484
      %v486 = vpop.f32.mrb[0].mxu0
      %v487 = vpop.f32.mrb[0].mxu0
      %v488 = vadd.f32 0.0, %v487
      %v489 = vpop.f32.mrb[0].mxu0
      %490 = vmatprep.mubr.bf16.mxu0 0
      %491 = vmatmul.mubr.bf16.gmra.mrb[0].mxu0 %v347
      %v492 = vpop.f32.mrb[0].mxu0
      %v493 = vadd.f32 0.0, %v492
      %v494 = vpop.f32.mrb[0].mxu0
      %v495 = vpop.f32.mrb[0].mxu0
      %v496 = vadd.f32 0.0, %v495
      %v497 = vpop.f32.mrb[0].mxu0
      %498 = vmatprep.mubr.bf16.mxu0 0
      %499 = vmatmul.mubr.bf16.gmra.mrb[0].mxu0 %v350
      %v500 = vpop.f32.mrb[0].mxu0
      %v501 = vadd.f32 0.0, %v500
      %v502 = vpop.f32.mrb[0].mxu0
      %v503 = vpop.f32.mrb[0].mxu0
      %v504 = vadd.f32 0.0, %v503
      %v505 = vpop.f32.mrb[0].mxu0
      %506 = vmatprep.mubr.bf16.mxu0 0
      %507 = vmatmul.mubr.bf16.gmra.mrb[0].mxu0 %v353
      %v508 = vpop.f32.mrb[0].mxu0
      %v509 = vadd.f32 0.0, %v508
      %v510 = vpop.f32.mrb[0].mxu0
      %v511 = vpop.f32.mrb[0].mxu0
      %v512 = vadd.f32 0.0, %v511
      %v513 = vpop.f32.mrb[0].mxu0
      %514 = vmatprep.mubr.bf16.mxu0 0
      %515 = vmatmul.mubr.bf16.gmra.mrb[0].mxu0 %v356
      %v516 = vpop.f32.mrb[0].mxu0
      %v517 = vadd.f32 0.0, %v516
      %v518 = vpop.f32.mrb[0].mxu0
      %v519 = vpop.f32.mrb[0].mxu0
      %v520 = vadd.f32 0.0, %v519
      %v521 = vpop.f32.mrb[0].mxu0
      %522 = vdwg.mxu0
      %v523 = vld [vmem:[%s2] sm:$0x3]
      %v525 = vsel %vm358, %v523, 0
      %527 = vmatprep.subr.bf16.mxu0 0
      %528 = vmatpush1.bf16.msra.mxu0 %v525
      %529 = vmatprep.subr.bf16.mxu0 0
      %530 = vmatpush1.bf16.msra.mxu0 0
      %531 = vmatprep.subr.bf16.mxu0 0
      %532 = vmatpush1.bf16.msra.mxu0 0
      %533 = vmatprep.subr.bf16.mxu0 0
      %534 = vmatpush1.bf16.msra.mxu0 0
      %535 = vmatprep.subr.bf16.mxu0 0
      %536 = vmatpush1.bf16.msra.mxu0 0
      %537 = vmatprep.subr.bf16.mxu0 0
      %538 = vmatpush1.bf16.msra.mxu0 0
      %539 = vmatprep.subr.bf16.mxu0 0
      %540 = vmatpush1.bf16.msra.mxu0 0
      %541 = vmatprep.subr.bf16.mxu0 0
      %542 = vmatpush1.bf16.msra.mxu0 0
      %543 = vmatprep.subr.bf16.mxu0 0
      %544 = vmatpush1.bf16.msra.mxu0 0
      %545 = vmatprep.subr.bf16.mxu0 0
      %546 = vmatpush1.bf16.msra.mxu0 0
      %547 = vmatprep.subr.bf16.mxu0 0
      %548 = vmatpush1.bf16.msra.mxu0 0
      %549 = vmatprep.subr.bf16.mxu0 0
      %550 = vmatpush1.bf16.msra.mxu0 0
      %551 = vmatprep.subr.bf16.mxu0 0
      %552 = vmatpush1.bf16.msra.mxu0 0
      %553 = vmatprep.subr.bf16.mxu0 0
      %554 = vmatpush1.bf16.msra.mxu0 0
      %555 = vmatprep.subr.bf16.mxu0 0
      %556 = vmatpush1.bf16.msra.mxu0 0
      %557 = vmatprep.subr.bf16.mxu0 0
      %558 = vmatpush1.bf16.msra.mxu0 0
      %559 = vmatprep.mubr.bf16.mxu0 0
      %560 = vmatmul.mubr.bf16.gmra.mrb[0].mxu0 %v311
      %v561 = vpop.f32.mrb[0].mxu0
      %v562 = vadd.f32 0.0, %v561
      %v563 = vpop.f32.mrb[0].mxu0
      %v564 = vpop.f32.mrb[0].mxu0
      %v565 = vadd.f32 0.0, %v564
      %v566 = vpop.f32.mrb[0].mxu0
      %567 = vmatprep.mubr.bf16.mxu0 0
      %568 = vmatmul.mubr.bf16.gmra.mrb[0].mxu0 %v314
      %v569 = vpop.f32.mrb[0].mxu0
      %v570 = vadd.f32 0.0, %v569
      %v571 = vpop.f32.mrb[0].mxu0
      %v572 = vpop.f32.mrb[0].mxu0
      %v573 = vadd.f32 0.0, %v572
      %v574 = vpop.f32.mrb[0].mxu0
      %575 = vmatprep.mubr.bf16.mxu0 0
      %576 = vmatmul.mubr.bf16.gmra.mrb[0].mxu0 %v317
      %v577 = vpop.f32.mrb[0].mxu0
      %v578 = vadd.f32 0.0, %v577
      %v579 = vpop.f32.mrb[0].mxu0
      %v580 = vpop.f32.mrb[0].mxu0
      %v581 = vadd.f32 0.0, %v580
      %v582 = vpop.f32.mrb[0].mxu0
      %583 = vmatprep.mubr.bf16.mxu0 0
      %584 = vmatmul.mubr.bf16.gmra.mrb[0].mxu0 %v320
      %v585 = vpop.f32.mrb[0].mxu0
      %v586 = vadd.f32 0.0, %v585
      %v587 = vpop.f32.mrb[0].mxu0
      %v588 = vpop.f32.mrb[0].mxu0
      %v589 = vadd.f32 0.0, %v588
      %v590 = vpop.f32.mrb[0].mxu0
      %591 = vmatprep.mubr.bf16.mxu0 0
      %592 = vmatmul.mubr.bf16.gmra.mrb[0].mxu0 %v323
      %v593 = vpop.f32.mrb[0].mxu0
      %v594 = vadd.f32 0.0, %v593
      %v595 = vpop.f32.mrb[0].mxu0
      %v596 = vpop.f32.mrb[0].mxu0
      %v597 = vadd.f32 0.0, %v596
      %v598 = vpop.f32.mrb[0].mxu0
      %599 = vmatprep.mubr.bf16.mxu0 0
      %600 = vmatmul.mubr.bf16.gmra.mrb[0].mxu0 %v326
      %v601 = vpop.f32.mrb[0].mxu0
      %v602 = vadd.f32 0.0, %v601
      %v603 = vpop.f32.mrb[0].mxu0
      %v604 = vpop.f32.mrb[0].mxu0
      %v605 = vadd.f32 0.0, %v604
      %v606 = vpop.f32.mrb[0].mxu0
      %607 = vmatprep.mubr.bf16.mxu0 0
      %608 = vmatmul.mubr.bf16.gmra.mrb[0].mxu0 %v329
      %v609 = vpop.f32.mrb[0].mxu0
      %v610 = vadd.f32 0.0, %v609
      %v611 = vpop.f32.mrb[0].mxu0
      %v612 = vpop.f32.mrb[0].mxu0
      %v613 = vadd.f32 0.0, %v612
      %v614 = vpop.f32.mrb[0].mxu0
      %615 = vmatprep.mubr.bf16.mxu0 0
      %616 = vmatmul.mubr.bf16.gmra.mrb[0].mxu0 %v332
      %v617 = vpop.f32.mrb[0].mxu0
      %v618 = vadd.f32 0.0, %v617
      %v619 = vpop.f32.mrb[0].mxu0
      %v620 = vpop.f32.mrb[0].mxu0
      %v621 = vadd.f32 0.0, %v620
      %v622 = vpop.f32.mrb[0].mxu0
      %623 = vmatprep.mubr.bf16.mxu0 0
      %624 = vmatmul.mubr.bf16.gmra.mrb[0].mxu0 %v335
      %v625 = vpop.f32.mrb[0].mxu0
      %v626 = vadd.f32 0.0, %v625
      %v627 = vpop.f32.mrb[0].mxu0
      %v628 = vpop.f32.mrb[0].mxu0
      %v629 = vadd.f32 0.0, %v628
      %v630 = vpop.f32.mrb[0].mxu0
      %631 = vmatprep.mubr.bf16.mxu0 0
      %632 = vmatmul.mubr.bf16.gmra.mrb[0].mxu0 %v338
      %v633 = vpop.f32.mrb[0].mxu0
      %v634 = vadd.f32 0.0, %v633
      %v635 = vpop.f32.mrb[0].mxu0
      %v636 = vpop.f32.mrb[0].mxu0
      %v637 = vadd.f32 0.0, %v636
      %v638 = vpop.f32.mrb[0].mxu0
      %639 = vmatprep.mubr.bf16.mxu0 0
      %640 = vmatmul.mubr.bf16.gmra.mrb[0].mxu0 %v341
      %v641 = vpop.f32.mrb[0].mxu0
      %v642 = vadd.f32 0.0, %v641
      %v643 = vpop.f32.mrb[0].mxu0
      %v644 = vpop.f32.mrb[0].mxu0
      %v645 = vadd.f32 0.0, %v644
      %v646 = vpop.f32.mrb[0].mxu0
      %647 = vmatprep.mubr.bf16.mxu0 0
      %648 = vmatmul.mubr.bf16.gmra.mrb[0].mxu0 %v344
      %v649 = vpop.f32.mrb[0].mxu0
      %v650 = vadd.f32 0.0, %v649
      %v651 = vpop.f32.mrb[0].mxu0
      %v652 = vpop.f32.mrb[0].mxu0
      %v653 = vadd.f32 0.0, %v652
      %v654 = vpop.f32.mrb[0].mxu0
      %655 = vmatprep.mubr.bf16.mxu0 0
      %656 = vmatmul.mubr.bf16.gmra.mrb[0].mxu0 %v347
      %v657 = vpop.f32.mrb[0].mxu0
      %v658 = vadd.f32 0.0, %v657
      %v659 = vpop.f32.mrb[0].mxu0
      %v660 = vpop.f32.mrb[0].mxu0
      %v661 = vadd.f32 0.0, %v660
      %v662 = vpop.f32.mrb[0].mxu0
      %663 = vmatprep.mubr.bf16.mxu0 0
      %664 = vmatmul.mubr.bf16.gmra.mrb[0].mxu0 %v350
      %v665 = vpop.f32.mrb[0].mxu0
      %v666 = vadd.f32 0.0, %v665
      %v667 = vpop.f32.mrb[0].mxu0
      %v668 = vpop.f32.mrb[0].mxu0
      %v669 = vadd.f32 0.0, %v668
      %v670 = vpop.f32.mrb[0].mxu0
      %671 = vmatprep.mubr.bf16.mxu0 0
      %672 = vmatmul.mubr.bf16.gmra.mrb[0].mxu0 %v353
      %v673 = vpop.f32.mrb[0].mxu0
      %v674 = vadd.f32 0.0, %v673
      %v675 = vpop.f32.mrb[0].mxu0
      %v676 = vpop.f32.mrb[0].mxu0
      %v677 = vadd.f32 0.0, %v676
      %v678 = vpop.f32.mrb[0].mxu0
      %679 = vmatprep.mubr.bf16.mxu0 0
      %680 = vmatmul.mubr.bf16.gmra.mrb[0].mxu0 %v356
      %v681 = vpop.f32.mrb[0].mxu0
      %v682 = vadd.f32 0.0, %v681
      %v683 = vpop.f32.mrb[0].mxu0
      %v684 = vpop.f32.mrb[0].mxu0
      %v685 = vadd.f32 0.0, %v684
      %v686 = vpop.f32.mrb[0].mxu0
      %687 = vdwg.mxu0
      %v688 = vld [vmem:[%s189] sm:$0xf]
      %v689 = vadd.f32 %v397, %v400
      %v690 = vadd.f32 %v689, %v405
      %v691 = vadd.f32 %v690, %v408
      %v692 = vadd.f32 %v691, %v413
      %v693 = vadd.f32 %v692, %v416
      %v694 = vadd.f32 %v693, %v421
      %v695 = vadd.f32 %v694, %v424
      %v696 = vadd.f32 %v695, %v429
      %v697 = vadd.f32 %v696, %v432
      %v698 = vadd.f32 %v697, %v437
      %v699 = vadd.f32 %v698, %v440
      %v700 = vadd.f32 %v699, %v445
      %v701 = vadd.f32 %v700, %v448
      %v702 = vadd.f32 %v701, %v453
      %v703 = vadd.f32 %v702, %v456
      %v704 = vadd.f32 %v703, %v461
      %v705 = vadd.f32 %v704, %v464
      %v706 = vadd.f32 %v705, %v469
      %v707 = vadd.f32 %v706, %v472
      %v708 = vadd.f32 %v707, %v477
      %v709 = vadd.f32 %v708, %v480
      %v710 = vadd.f32 %v709, %v485
      %v711 = vadd.f32 %v710, %v488
      %v712 = vadd.f32 %v711, %v493
      %v713 = vadd.f32 %v712, %v496
      %v714 = vadd.f32 %v713, %v501
      %v715 = vadd.f32 %v714, %v504
      %v716 = vadd.f32 %v715, %v509
      %v717 = vadd.f32 %v716, %v512
      %v718 = vadd.f32 %v717, %v517
      %v719 = vadd.f32 %v718, %v520
      %v720 = vrot.slane %v719, 4
      %v721 = vadd.f32 %v719, %v720
      %v722 = vrot.slane %v721, 2
      %v723 = vadd.f32 %v721, %v722
      %v724 = vrot.slane %v723, 1
      %v725 = vadd.f32 %v723, %v724
      %v726 = vmul.f32 %v397, %v397
      %v727 = vmul.f32 %v400, %v400
      %v728 = vmul.f32 %v405, %v405
      %v729 = vmul.f32 %v408, %v408
      %v730 = vmul.f32 %v413, %v413
      %v731 = vmul.f32 %v416, %v416
      %v732 = vmul.f32 %v421, %v421
      %v733 = vmul.f32 %v424, %v424
      %v734 = vmul.f32 %v429, %v429
      %v735 = vmul.f32 %v432, %v432
      %v736 = vmul.f32 %v437, %v437
      %v737 = vmul.f32 %v440, %v440
      %v738 = vmul.f32 %v445, %v445
      %v739 = vmul.f32 %v448, %v448
      %v740 = vmul.f32 %v453, %v453
      %v741 = vmul.f32 %v456, %v456
      %v742 = vmul.f32 %v461, %v461
      %v743 = vmul.f32 %v464, %v464
      %v744 = vmul.f32 %v469, %v469
      %v745 = vmul.f32 %v472, %v472
      %v746 = vmul.f32 %v477, %v477
      %v747 = vmul.f32 %v480, %v480
      %v748 = vmul.f32 %v485, %v485
      %v749 = vmul.f32 %v488, %v488
      %v750 = vmul.f32 %v493, %v493
      %v751 = vmul.f32 %v496, %v496
      %v752 = vmul.f32 %v501, %v501
      %v753 = vmul.f32 %v504, %v504
      %v754 = vmul.f32 %v509, %v509
      %v755 = vmul.f32 %v512, %v512
      %v756 = vmul.f32 %v517, %v517
      %v757 = vmul.f32 %v520, %v520
      %v758 = vadd.f32 %v726, %v727
      %v759 = vadd.f32 %v758, %v728
      %v760 = vadd.f32 %v759, %v729
      %v761 = vadd.f32 %v760, %v730
      %v762 = vadd.f32 %v761, %v731
      %v763 = vadd.f32 %v762, %v732
      %v764 = vadd.f32 %v763, %v733
      %v765 = vadd.f32 %v764, %v734
      %v766 = vadd.f32 %v765, %v735
      %v767 = vadd.f32 %v766, %v736
      %v768 = vadd.f32 %v767, %v737
      %v769 = vadd.f32 %v768, %v738
      %v770 = vadd.f32 %v769, %v739
      %v771 = vadd.f32 %v770, %v740
      %v772 = vadd.f32 %v771, %v741
      %v773 = vadd.f32 %v772, %v742
      %v774 = vadd.f32 %v773, %v743
      %v775 = vadd.f32 %v774, %v744
      %v776 = vadd.f32 %v775, %v745
      %v777 = vadd.f32 %v776, %v746
      %v778 = vadd.f32 %v777, %v747
      %v779 = vadd.f32 %v778, %v748
      %v780 = vadd.f32 %v779, %v749
      %v781 = vadd.f32 %v780, %v750
      %v782 = vadd.f32 %v781, %v751
      %v783 = vadd.f32 %v782, %v752
      %v784 = vadd.f32 %v783, %v753
      %v785 = vadd.f32 %v784, %v754
      %v786 = vadd.f32 %v785, %v755
      %v787 = vadd.f32 %v786, %v756
      %v788 = vadd.f32 %v787, %v757
      %v789 = vrot.slane %v788, 4
      %v790 = vadd.f32 %v788, %v789
      %v791 = vrot.slane %v790, 2
      %v792 = vadd.f32 %v790, %v791
      %v793 = vrot.slane %v792, 1
      %v794 = vadd.f32 %v792, %v793
      %v795 = vadd.f32 %v562, %v565
      %v796 = vadd.f32 %v795, %v570
      %v797 = vadd.f32 %v796, %v573
      %v798 = vadd.f32 %v797, %v578
      %v799 = vadd.f32 %v798, %v581
      %v800 = vadd.f32 %v799, %v586
      %v801 = vadd.f32 %v800, %v589
      %v802 = vadd.f32 %v801, %v594
      %v803 = vadd.f32 %v802, %v597
      %v804 = vadd.f32 %v803, %v602
      %v805 = vadd.f32 %v804, %v605
      %v806 = vadd.f32 %v805, %v610
      %v807 = vadd.f32 %v806, %v613
      %v808 = vadd.f32 %v807, %v618
      %v809 = vadd.f32 %v808, %v621
      %v810 = vadd.f32 %v809, %v626
      %v811 = vadd.f32 %v810, %v629
      %v812 = vadd.f32 %v811, %v634
      %v813 = vadd.f32 %v812, %v637
      %v814 = vadd.f32 %v813, %v642
      %v815 = vadd.f32 %v814, %v645
      %v816 = vadd.f32 %v815, %v650
      %v817 = vadd.f32 %v816, %v653
      %v818 = vadd.f32 %v817, %v658
      %v819 = vadd.f32 %v818, %v661
      %v820 = vadd.f32 %v819, %v666
      %v821 = vadd.f32 %v820, %v669
      %v822 = vadd.f32 %v821, %v674
      %v823 = vadd.f32 %v822, %v677
      %v824 = vadd.f32 %v823, %v682
      %v825 = vadd.f32 %v824, %v685
      %v826 = vrot.slane %v825, 4
      %v827 = vadd.f32 %v825, %v826
      %v828 = vrot.slane %v827, 2
      %v829 = vadd.f32 %v827, %v828
      %v830 = vrot.slane %v829, 1
      %v831 = vadd.f32 %v829, %v830
      %v832 = vmul.f32 %v562, %v562
      %v833 = vmul.f32 %v565, %v565
      %v834 = vmul.f32 %v570, %v570
      %v835 = vmul.f32 %v573, %v573
      %v836 = vmul.f32 %v578, %v578
      %v837 = vmul.f32 %v581, %v581
      %v838 = vmul.f32 %v586, %v586
      %v839 = vmul.f32 %v589, %v589
      %v840 = vmul.f32 %v594, %v594
      %v841 = vmul.f32 %v597, %v597
      %v842 = vmul.f32 %v602, %v602
      %v843 = vmul.f32 %v605, %v605
      %v844 = vmul.f32 %v610, %v610
      %v845 = vmul.f32 %v613, %v613
      %v846 = vmul.f32 %v618, %v618
      %v847 = vmul.f32 %v621, %v621
      %v848 = vmul.f32 %v626, %v626
      %v849 = vmul.f32 %v629, %v629
      %v850 = vmul.f32 %v634, %v634
      %v851 = vmul.f32 %v637, %v637
      %v852 = vmul.f32 %v642, %v642
      %v853 = vmul.f32 %v645, %v645
      %v854 = vmul.f32 %v650, %v650
      %v855 = vmul.f32 %v653, %v653
      %v856 = vmul.f32 %v658, %v658
      %v857 = vmul.f32 %v661, %v661
      %v858 = vmul.f32 %v666, %v666
      %v859 = vmul.f32 %v669, %v669
      %v860 = vmul.f32 %v674, %v674
      %v861 = vmul.f32 %v677, %v677
      %v862 = vmul.f32 %v682, %v682
      %v863 = vmul.f32 %v685, %v685
      %v864 = vadd.f32 %v832, %v833
      %v865 = vadd.f32 %v864, %v834
      %v866 = vadd.f32 %v865, %v835
      %v867 = vadd.f32 %v866, %v836
      %v868 = vadd.f32 %v867, %v837
      %v869 = vadd.f32 %v868, %v838
      %v870 = vadd.f32 %v869, %v839
      %v871 = vadd.f32 %v870, %v840
      %v872 = vadd.f32 %v871, %v841
      %v873 = vadd.f32 %v872, %v842
      %v874 = vadd.f32 %v873, %v843
      %v875 = vadd.f32 %v874, %v844
      %v876 = vadd.f32 %v875, %v845
      %v877 = vadd.f32 %v876, %v846
      %v878 = vadd.f32 %v877, %v847
      %v879 = vadd.f32 %v878, %v848
      %v880 = vadd.f32 %v879, %v849
      %v881 = vadd.f32 %v880, %v850
      %v882 = vadd.f32 %v881, %v851
      %v883 = vadd.f32 %v882, %v852
      %v884 = vadd.f32 %v883, %v853
      %v885 = vadd.f32 %v884, %v854
      %v886 = vadd.f32 %v885, %v855
      %v887 = vadd.f32 %v886, %v856
      %v888 = vadd.f32 %v887, %v857
      %v889 = vadd.f32 %v888, %v858
      %v890 = vadd.f32 %v889, %v859
      %v891 = vadd.f32 %v890, %v860
      %v892 = vadd.f32 %v891, %v861
      %v893 = vadd.f32 %v892, %v862
      %v894 = vadd.f32 %v893, %v863
      %v895 = vrot.slane %v894, 4
      %v896 = vadd.f32 %v894, %v895
      %v897 = vrot.slane %v896, 2
      %v898 = vadd.f32 %v896, %v897
      %v899 = vrot.slane %v898, 1
      %v900 = vadd.f32 %v898, %v899
      %vm901 = vcmask 1040384
      %v902 = vsel %vm901, %v725, %v794
      %v903 = vsel %vm358, %v902, %v831
      %vm904 = vcmask 1042432
      %v905 = vsel %vm904, %v903, %v900
      %v906 = vadd.f32 %v688, %v905
      %907 = vst [vmem:[%s189] sm:$0xf] %v906
      %p908 = scmp.lt.s32.totalorder %s18, 1
      %s909 = scalar_select %p908, %s18, 1
      %s910 = smul.addr %s909, 4
      %s911 = scalar_lea.vmem %s3, %s910
      // Predicated region
      $region37: #{resnet_bottleneck_block.4} parent=31 // pred_check
        %p912 = pneg %p114
      $region38: #{resnet_bottleneck_block.4} parent=31 // pred_check_branch
        %914 = sbr.rel (%p912) target = $region40
      $region39: #{resnet_bottleneck_block.4} parent=31 // pred_region
        _
      $region40: #{resnet_bottleneck_block.4} parent=31 // pred_fallthru
        _
    $region32: #{resnet_bottleneck_block.4} parent=5 // pred_fallthru
      _
    %p915 = scmp.le.s32.totalorder 2, %s9
    // Predicated region
    $region41: #{resnet_bottleneck_block.4} parent=5 // pred_check
      %p916 = pneg %p915
    $region42: #{resnet_bottleneck_block.4} parent=5 // pred_check_branch
      %918 = sbr.rel (%p916) target = $region44
    $region43: #{resnet_bottleneck_block.4} parent=5 // pred_region
      %s919 = ssub.s32 %s9, 2
      // Predicated region
      $region45: #{resnet_bottleneck_block.4} parent=43 // pred_check
        %p920 = pneg %p120
      $region46: #{resnet_bottleneck_block.4} parent=43 // pred_check_branch
        %922 = sbr.rel (%p920) target = $region48
      $region47: #{resnet_bottleneck_block.4} parent=43 // pred_region
        %p923 = scmp.lt.s32.totalorder %s20, 1
        %s924 = scalar_select %p923, %s20, 1
        %s925 = smul.addr %s924, 4
        %s926 = scalar_lea.vmem %s3, %s925
      $region48: #{resnet_bottleneck_block.4} parent=43 // pred_fallthru
        _
    $region44: #{resnet_bottleneck_block.4} parent=5 // pred_fallthru
      _
  $region6: #{resnet_bottleneck_block.4} parent=0 // loop_footer
    %s13 = sadd.s32 1, %s9
  $region7: #{resnet_bottleneck_block.4} parent=0 // loop_footer_branch
    %8 = sbr.rel target = $region3
  $region8: #{resnet_bottleneck_block.4} parent=0 // loop_exit
    _

// kernel: resnet_bottleneck_block.7
$region0: #{resnet_bottleneck_block.7}
  #allocation0 [shape = 'u32[]', space=smem, size = 0x4, offset = 0x4, fixed_abs, tag = 'smem constant byte address 0x4 - core index']
  #allocation1 [shape = 'u32[144,128]{1,0:T(1,128)}', space=vmem, size = 0x12000, scoped, tag = 'internal scratch']
  %s0 = inlined_call_operand.vmem [shape: bf16[512,128], index: 0, kind: input, shape index: {}]
  %s1 = inlined_call_operand.vmem [shape: bf16[512,128], index: 1, kind: input, shape index: {}]
  %s2 = inlined_call_operand.vmem [shape: f32[1,128], index: 2, kind: input, shape index: {}]
  %s3 = inlined_call_operand.vmem [shape: f32[1,128], index: 3, kind: input, shape index: {}]
  %s4 = inlined_call_operand.vmem [shape: bf16[128,128], index: 4, kind: input, shape index: {}]
  %s5 = inlined_call_operand.vmem [shape: f32[1,128], index: 5, kind: input, shape index: {}]
  %s6 = inlined_call_operand.vmem [shape: f32[1,128], index: 6, kind: input, shape index: {}]
  %s7 = inlined_call_operand.vmem [shape: f32[512,128], index: 7, kind: output, shape index: {}]
  %s8 = sld [smem:[#allocation0]]
  $region61: #{resnet_bottleneck_block.7} parent=0
    _
  %s10 = ssub.s32 1, %s8
  %s11 = scalar_select 0, %s10, %s8
  loop: start=0, step=1, limit=4
  $region2: #{resnet_bottleneck_block.7} parent=0 // loop_pre_header
    _
  $region3: #{resnet_bottleneck_block.7} parent=0 // loop_header
    %s13 = sphi 0, %s17
    %p14 = scmp.ge.s32.totalorder %s13, 4
    %s23 = sphi 0, %s25
    %s26 = sphi 0, %s23
    %s27 = sphi 0, %s26
    %s43 = sphi 0, %s27
    %s49 = sphi 0, %s51
    %s52 = sphi 0, %s49
    %s53 = sphi 0, %s52
    %s69 = sphi 0, %s53
    %s73 = sphi 0, %s73
    %s75 = sphi 0, %s73
    %s76 = sphi 0, %s75
    %s90 = sphi 0, %s76
    %s94 = sphi 0, %s94
    %s96 = sphi 0, %s94
    %s97 = sphi 0, %s96
    %s111 = sphi 0, %s97
    %s115 = sphi 0, %s115
    %s117 = sphi 0, %s115
    %s118 = sphi 0, %s117
    %s132 = sphi 0, %s118
    %s136 = sphi 0, %s136
    %s138 = sphi 0, %s136
    %s139 = sphi 0, %s138
    %s153 = sphi 0, %s139
    %s157 = sphi 0, %s157
    %s159 = sphi 0, %s157
    %s160 = sphi 0, %s159
    %s174 = sphi 0, %s160
    %s180 = sphi 0, %s182
    %s183 = sphi 0, %s180
    %s184 = sphi 0, %s183
    %s200 = sphi 0, %s184
  $region4: #{resnet_bottleneck_block.7} parent=0 // loop_header_branch
    %16 = sbr.rel (%p14) target = $region8
  $region5: #{resnet_bottleneck_block.7} parent=0 // loop_body
    %s18 = ssub.s32 %s13, 1
    %s19 = ssub.s32 %s13, 2
    %s20 = sadd.s32 %s13, 1
    %s21 = ssub.s32 %s13, %s20
    %p22 = scmp.eq.s32.totalorder %s21, 0
    %s24 = sadd.s32 %s23, 1
    %s25 = scalar_select %p22, %s23, %s24
    %p28 = pneg %p22
    %p29 = scmp.eq.s32.totalorder %s13, 1
    %p30 = por %p28, %p29
    %p31 = scmp.ne.s32.totalorder %s23, %s26
    %p32 = scmp.eq.s32.totalorder %s13, 0
    %p33 = por %p31, %p32
    %p34 = scmp.ne.s32.totalorder %s23, %s26
    %p35 = scmp.eq.s32.totalorder %s18, 1
    %p36 = por %p34, %p35
    %p37 = scmp.ne.s32.totalorder %s26, %s27
    %p38 = scmp.eq.s32.totalorder %s18, 0
    %p39 = por %p37, %p38
    %p40 = scmp.ne.s32.totalorder %s26, %s27
    %p41 = scmp.eq.s32.totalorder %s19, 1
    %p42 = por %p40, %p41
    %p44 = scmp.ne.s32.totalorder %s27, %s43
    %p45 = scmp.eq.s32.totalorder %s19, 0
    %p46 = por %p44, %p45
    %s47 = ssub.s32 %s13, %s20
    %p48 = scmp.eq.s32.totalorder %s47, 0
    %s50 = sadd.s32 %s49, 1
    %s51 = scalar_select %p48, %s49, %s50
    %p54 = pneg %p48
    %p55 = scmp.eq.s32.totalorder %s13, 1
    %p56 = por %p54, %p55
    %p57 = scmp.ne.s32.totalorder %s49, %s52
    %p58 = scmp.eq.s32.totalorder %s13, 0
    %p59 = por %p57, %p58
    %p60 = scmp.ne.s32.totalorder %s49, %s52
    %p61 = scmp.eq.s32.totalorder %s18, 1
    %p62 = por %p60, %p61
    %p63 = scmp.ne.s32.totalorder %s52, %s53
    %p64 = scmp.eq.s32.totalorder %s18, 0
    %p65 = por %p63, %p64
    %p66 = scmp.ne.s32.totalorder %s52, %s53
    %p67 = scmp.eq.s32.totalorder %s19, 1
    %p68 = por %p66, %p67
    %p70 = scmp.ne.s32.totalorder %s53, %s69
    %p71 = scmp.eq.s32.totalorder %s19, 0
    %p72 = por %p70, %p71
    %s74 = sadd.s32 %s73, 1
    %p77 = scmp.eq.s32.totalorder %s13, 1
    %p78 = scmp.ne.s32.totalorder %s73, %s75
    %p79 = scmp.eq.s32.totalorder %s13, 0
    %p80 = por %p78, %p79
    %p81 = scmp.ne.s32.totalorder %s73, %s75
    %p82 = scmp.eq.s32.totalorder %s18, 1
    %p83 = por %p81, %p82
    %p84 = scmp.ne.s32.totalorder %s75, %s76
    %p85 = scmp.eq.s32.totalorder %s18, 0
    %p86 = por %p84, %p85
    %p87 = scmp.ne.s32.totalorder %s75, %s76
    %p88 = scmp.eq.s32.totalorder %s19, 1
    %p89 = por %p87, %p88
    %p91 = scmp.ne.s32.totalorder %s76, %s90
    %p92 = scmp.eq.s32.totalorder %s19, 0
    %p93 = por %p91, %p92
    %s95 = sadd.s32 %s94, 1
    %p98 = scmp.eq.s32.totalorder %s13, 1
    %p99 = scmp.ne.s32.totalorder %s94, %s96
    %p100 = scmp.eq.s32.totalorder %s13, 0
    %p101 = por %p99, %p100
    %p102 = scmp.ne.s32.totalorder %s94, %s96
    %p103 = scmp.eq.s32.totalorder %s18, 1
    %p104 = por %p102, %p103
    %p105 = scmp.ne.s32.totalorder %s96, %s97
    %p106 = scmp.eq.s32.totalorder %s18, 0
    %p107 = por %p105, %p106
    %p108 = scmp.ne.s32.totalorder %s96, %s97
    %p109 = scmp.eq.s32.totalorder %s19, 1
    %p110 = por %p108, %p109
    %p112 = scmp.ne.s32.totalorder %s97, %s111
    %p113 = scmp.eq.s32.totalorder %s19, 0
    %p114 = por %p112, %p113
    %s116 = sadd.s32 %s115, 1
    %p119 = scmp.eq.s32.totalorder %s13, 1
    %p120 = scmp.ne.s32.totalorder %s115, %s117
    %p121 = scmp.eq.s32.totalorder %s13, 0
    %p122 = por %p120, %p121
    %p123 = scmp.ne.s32.totalorder %s115, %s117
    %p124 = scmp.eq.s32.totalorder %s18, 1
    %p125 = por %p123, %p124
    %p126 = scmp.ne.s32.totalorder %s117, %s118
    %p127 = scmp.eq.s32.totalorder %s18, 0
    %p128 = por %p126, %p127
    %p129 = scmp.ne.s32.totalorder %s117, %s118
    %p130 = scmp.eq.s32.totalorder %s19, 1
    %p131 = por %p129, %p130
    %p133 = scmp.ne.s32.totalorder %s118, %s132
    %p134 = scmp.eq.s32.totalorder %s19, 0
    %p135 = por %p133, %p134
    %s137 = sadd.s32 %s136, 1
    %p140 = scmp.eq.s32.totalorder %s13, 1
    %p141 = scmp.ne.s32.totalorder %s136, %s138
    %p142 = scmp.eq.s32.totalorder %s13, 0
    %p143 = por %p141, %p142
    %p144 = scmp.ne.s32.totalorder %s136, %s138
    %p145 = scmp.eq.s32.totalorder %s18, 1
    %p146 = por %p144, %p145
    %p147 = scmp.ne.s32.totalorder %s138, %s139
    %p148 = scmp.eq.s32.totalorder %s18, 0
    %p149 = por %p147, %p148
    %p150 = scmp.ne.s32.totalorder %s138, %s139
    %p151 = scmp.eq.s32.totalorder %s19, 1
    %p152 = por %p150, %p151
    %p154 = scmp.ne.s32.totalorder %s139, %s153
    %p155 = scmp.eq.s32.totalorder %s19, 0
    %p156 = por %p154, %p155
    %s158 = sadd.s32 %s157, 1
    %p161 = scmp.eq.s32.totalorder %s13, 1
    %p162 = scmp.ne.s32.totalorder %s157, %s159
    %p163 = scmp.eq.s32.totalorder %s13, 0
    %p164 = por %p162, %p163
    %p165 = scmp.ne.s32.totalorder %s157, %s159
    %p166 = scmp.eq.s32.totalorder %s18, 1
    %p167 = por %p165, %p166
    %p168 = scmp.ne.s32.totalorder %s159, %s160
    %p169 = scmp.eq.s32.totalorder %s18, 0
    %p170 = por %p168, %p169
    %p171 = scmp.ne.s32.totalorder %s159, %s160
    %p172 = scmp.eq.s32.totalorder %s19, 1
    %p173 = por %p171, %p172
    %p175 = scmp.ne.s32.totalorder %s160, %s174
    %p176 = scmp.eq.s32.totalorder %s19, 0
    %p177 = por %p175, %p176
    %s178 = ssub.s32 %s13, %s20
    %p179 = scmp.eq.s32.totalorder %s178, 0
    %s181 = sadd.s32 %s180, 1
    %s182 = scalar_select %p179, %s180, %s181
    %p185 = pneg %p179
    %p186 = scmp.eq.s32.totalorder %s13, 1
    %p187 = por %p185, %p186
    %p188 = scmp.ne.s32.totalorder %s180, %s183
    %p189 = scmp.eq.s32.totalorder %s13, 0
    %p190 = por %p188, %p189
    %p191 = scmp.ne.s32.totalorder %s180, %s183
    %p192 = scmp.eq.s32.totalorder %s18, 1
    %p193 = por %p191, %p192
    %p194 = scmp.ne.s32.totalorder %s183, %s184
    %p195 = scmp.eq.s32.totalorder %s18, 0
    %p196 = por %p194, %p195
    %p197 = scmp.ne.s32.totalorder %s183, %s184
    %p198 = scmp.eq.s32.totalorder %s19, 1
    %p199 = por %p197, %p198
    %p201 = scmp.ne.s32.totalorder %s184, %s200
    %p202 = scmp.eq.s32.totalorder %s19, 0
    %p203 = por %p201, %p202
    %p204 = scmp.le.s32.totalorder 1, %s13
    %p205 = scmp.lt.s32.totalorder %s13, 3
    %p206 = pnand %p204, %p205
    %p207 = pneg %p206
    // Predicated region
    $region9: #{resnet_bottleneck_block.7} parent=5 // pred_check
      _
    $region10: #{resnet_bottleneck_block.7} parent=5 // pred_check_branch
      %209 = sbr.rel (%p206) target = $region12
    $region11: #{resnet_bottleneck_block.7} parent=5 // pred_region
      %s210 = ssub.s32 %s13, 1
      // Predicated region
      $region13: #{resnet_bottleneck_block.7} parent=11 // pred_check
        %p211 = pneg %p86
      $region14: #{resnet_bottleneck_block.7} parent=11 // pred_check_branch
        %213 = sbr.rel (%p211) target = $region16
      $region15: #{resnet_bottleneck_block.7} parent=11 // pred_region
        _
      $region16: #{resnet_bottleneck_block.7} parent=11 // pred_fallthru
        _
      // Predicated region
      $region17: #{resnet_bottleneck_block.7} parent=11 // pred_check
        %p214 = pneg %p107
      $region18: #{resnet_bottleneck_block.7} parent=11 // pred_check_branch
        %216 = sbr.rel (%p214) target = $region20
      $region19: #{resnet_bottleneck_block.7} parent=11 // pred_region
        _
      $region20: #{resnet_bottleneck_block.7} parent=11 // pred_fallthru
        _
      // Predicated region
      $region21: #{resnet_bottleneck_block.7} parent=11 // pred_check
        %p217 = pneg %p128
      $region22: #{resnet_bottleneck_block.7} parent=11 // pred_check_branch
        %219 = sbr.rel (%p217) target = $region24
      $region23: #{resnet_bottleneck_block.7} parent=11 // pred_region
        _
      $region24: #{resnet_bottleneck_block.7} parent=11 // pred_fallthru
        _
      // Predicated region
      $region25: #{resnet_bottleneck_block.7} parent=11 // pred_check
        %p220 = pneg %p149
      $region26: #{resnet_bottleneck_block.7} parent=11 // pred_check_branch
        %222 = sbr.rel (%p220) target = $region28
      $region27: #{resnet_bottleneck_block.7} parent=11 // pred_region
        _
      $region28: #{resnet_bottleneck_block.7} parent=11 // pred_fallthru
        _
      // Predicated region
      $region29: #{resnet_bottleneck_block.7} parent=11 // pred_check
        %p223 = pneg %p170
      $region30: #{resnet_bottleneck_block.7} parent=11 // pred_check_branch
        %225 = sbr.rel (%p223) target = $region32
      $region31: #{resnet_bottleneck_block.7} parent=11 // pred_region
        _
      $region32: #{resnet_bottleneck_block.7} parent=11 // pred_fallthru
        _
    $region12: #{resnet_bottleneck_block.7} parent=5 // pred_fallthru
      _
    %p226 = scmp.lt.s32.totalorder %s13, 2
    // Predicated region
    $region33: #{resnet_bottleneck_block.7} parent=5 // pred_check
      %p227 = pneg %p226
    $region34: #{resnet_bottleneck_block.7} parent=5 // pred_check_branch
      %229 = sbr.rel (%p227) target = $region36
    $region35: #{resnet_bottleneck_block.7} parent=5 // pred_region
      // Predicated region
      $region37: #{resnet_bottleneck_block.7} parent=35 // pred_check
        %p230 = pneg %p33
      $region38: #{resnet_bottleneck_block.7} parent=35 // pred_check_branch
        %232 = sbr.rel (%p230) target = $region40
      $region39: #{resnet_bottleneck_block.7} parent=35 // pred_region
        %s233 = smul.u32 32, %s13
        %p234 = scmp.lt.s32.totalorder %s233, 63
        %s235 = scalar_select %p234, %s233, 63
        %s236 = smul.addr %s235, 4
        %s237 = scalar_lea.vmem %s0, %s236
        %s238 = smul.u32 32, %s13
      $region40: #{resnet_bottleneck_block.7} parent=35 // pred_fallthru
        _
      // Predicated region
      $region41: #{resnet_bottleneck_block.7} parent=35 // pred_check
        %p239 = pneg %p59
      $region42: #{resnet_bottleneck_block.7} parent=35 // pred_check_branch
        %241 = sbr.rel (%p239) target = $region44
      $region43: #{resnet_bottleneck_block.7} parent=35 // pred_region
        %s242 = smul.u32 32, %s13
        %p243 = scmp.lt.s32.totalorder %s242, 63
        %s244 = scalar_select %p243, %s242, 63
        %s245 = smul.addr %s244, 4
        %s246 = scalar_lea.vmem %s1, %s245
        %s247 = smul.u32 32, %s13
      $region44: #{resnet_bottleneck_block.7} parent=35 // pred_fallthru
        _
    $region36: #{resnet_bottleneck_block.7} parent=5 // pred_fallthru
      _
    %p248 = scmp.le.s32.totalorder 1, %s13
    %p249 = scmp.lt.s32.totalorder %s13, 3
    %p250 = pnand %p248, %p249
    %p251 = pneg %p250
    // Predicated region
    $region45: #{resnet_bottleneck_block.7} parent=5 // pred_check
      _
    $region46: #{resnet_bottleneck_block.7} parent=5 // pred_check_branch
      %253 = sbr.rel (%p250) target = $region48
    $region47: #{resnet_bottleneck_block.7} parent=5 // pred_region
      %s254 = ssub.s32 %s13, 1
      %s255 = smul.u32 32, %s18
      %p256 = scmp.lt.s32.totalorder %s255, 63
      %s257 = scalar_select %p256, %s255, 63
      %s258 = smul.addr %s257, 4
      %s259 = scalar_lea.vmem %s0, %s258
      %p260 = pneg %p39
      %p261 = pneg %p36
      %s262 = smul.u32 32, %s18
      %p263 = scmp.lt.s32.totalorder %s262, 63
      %s264 = scalar_select %p263, %s262, 63
      %s265 = smul.addr %s264, 4
      %s266 = scalar_lea.vmem %s1, %s265
      %p267 = pneg %p65
      %p268 = pneg %p62
      %p269 = pneg %p86
      %p270 = pneg %p83
      %p271 = pneg %p107
      %p272 = pneg %p104
      %p273 = pneg %p128
      %p274 = pneg %p125
      %p275 = pneg %p149
      %p276 = pneg %p146
      %p277 = pneg %p170
      %p278 = pneg %p167
      %p279 = pneg %p196
      %p280 = pneg %p193
      %s281 = smul.u32 32, %s18
      %p282 = scmp.lt.s32.totalorder %s281, 63
      %s283 = scalar_select %p282, %s281, 63
      %s284 = smul.addr %s283, 8
      %s285 = scalar_lea.vmem %s7, %s284
      %s286 = smul.u32 32, %s18
      %p287 = scmp.lt.s32.totalorder %s286, 63
      %s288 = scalar_select %p287, %s286, 63
      %s289 = smul.addr %s288, 4
      %s290 = scalar_lea.vmem %s0, %s289
      %s291 = smul.u32 32, %s18
      %s292 = smul.u32 32, %s18
      %p293 = scmp.lt.s32.totalorder %s292, 63
      %s294 = scalar_select %p293, %s292, 63
      %s295 = smul.addr %s294, 4
      %s296 = scalar_lea.vmem %s1, %s295
      %s297 = smul.u32 32, %s18
      %s298 = smul.u32 32, %s18
      %p299 = scmp.lt.s32.totalorder %s298, 63
      %s300 = scalar_select %p299, %s298, 63
      %s301 = smul.addr %s300, 8
      %s302 = scalar_lea.vmem %s7, %s301
      %s303 = smul.u32 32, %s18
      %v305 = vld [vmem:[%s290] sm:$0xf]
      %v306 = vld [vmem:[%s290 + $0x4] sm:$0xf]
      %v307 = vld [vmem:[%s290 + $0x8] sm:$0xf]
      %v308 = vld [vmem:[%s290 + $0xc] sm:$0xf]
      %v309 = vld [vmem:[%s290 + $0x10] sm:$0xf]
      %v310 = vld [vmem:[%s290 + $0x14] sm:$0xf]
      %v311 = vld [vmem:[%s290 + $0x18] sm:$0xf]
      %v312 = vld [vmem:[%s290 + $0x1c] sm:$0xf]
      %v313 = vld [vmem:[%s290 + $0x20] sm:$0xf]
      %v314 = vld [vmem:[%s290 + $0x24] sm:$0xf]
      %v315 = vld [vmem:[%s290 + $0x28] sm:$0xf]
      %v316 = vld [vmem:[%s290 + $0x2c] sm:$0xf]
      %v317 = vld [vmem:[%s290 + $0x30] sm:$0xf]
      %v318 = vld [vmem:[%s290 + $0x34] sm:$0xf]
      %v319 = vld [vmem:[%s290 + $0x38] sm:$0xf]
      %v320 = vld [vmem:[%s290 + $0x3c] sm:$0xf]
      %v321 = vld [vmem:[%s290 + $0x40] sm:$0xf]
      %v322 = vld [vmem:[%s290 + $0x44] sm:$0xf]
      %v323 = vld [vmem:[%s290 + $0x48] sm:$0xf]
      %v324 = vld [vmem:[%s290 + $0x4c] sm:$0xf]
      %v325 = vld [vmem:[%s290 + $0x50] sm:$0xf]
      %v326 = vld [vmem:[%s290 + $0x54] sm:$0xf]
      %v327 = vld [vmem:[%s290 + $0x58] sm:$0xf]
      %v328 = vld [vmem:[%s290 + $0x5c] sm:$0xf]
      %v329 = vld [vmem:[%s290 + $0x60] sm:$0xf]
      %v330 = vld [vmem:[%s290 + $0x64] sm:$0xf]
      %v331 = vld [vmem:[%s290 + $0x68] sm:$0xf]
      %v332 = vld [vmem:[%s290 + $0x6c] sm:$0xf]
      %v333 = vld [vmem:[%s290 + $0x70] sm:$0xf]
      %v334 = vld [vmem:[%s290 + $0x74] sm:$0xf]
      %v335 = vld [vmem:[%s290 + $0x78] sm:$0xf]
      %v336 = vld [vmem:[%s290 + $0x7c] sm:$0xf]
      %v337 = vunpack.c.l.bf16 %v305
      %v338 = vunpack.c.l.bf16 %v306
      %v339 = vunpack.c.l.bf16 %v307
      %v340 = vunpack.c.l.bf16 %v308
      %v341 = vunpack.c.l.bf16 %v309
      %v342 = vunpack.c.l.bf16 %v310
      %v343 = vunpack.c.l.bf16 %v311
      %v344 = vunpack.c.l.bf16 %v312
      %v345 = vunpack.c.l.bf16 %v313
      %v346 = vunpack.c.l.bf16 %v314
      %v347 = vunpack.c.l.bf16 %v315
      %v348 = vunpack.c.l.bf16 %v316
      %v349 = vunpack.c.l.bf16 %v317
      %v350 = vunpack.c.l.bf16 %v318
      %v351 = vunpack.c.l.bf16 %v319
      %v352 = vunpack.c.l.bf16 %v320
      %v353 = vunpack.c.l.bf16 %v321
      %v354 = vunpack.c.l.bf16 %v322
      %v355 = vunpack.c.l.bf16 %v323
      %v356 = vunpack.c.l.bf16 %v324
      %v357 = vunpack.c.l.bf16 %v325
      %v358 = vunpack.c.l.bf16 %v326
      %v359 = vunpack.c.l.bf16 %v327
      %v360 = vunpack.c.l.bf16 %v328
      %v361 = vunpack.c.l.bf16 %v329
      %v362 = vunpack.c.l.bf16 %v330
      %v363 = vunpack.c.l.bf16 %v331
      %v364 = vunpack.c.l.bf16 %v332
      %v365 = vunpack.c.l.bf16 %v333
      %v366 = vunpack.c.l.bf16 %v334
      %v367 = vunpack.c.l.bf16 %v335
      %v368 = vunpack.c.l.bf16 %v336
      %v369 = vld [vmem:[%s2] sm:$0x1]
      %v371 = vlaneseq
      %v372 = vshrl.u32 %v371, 7
      %v373 = vsub.s32 0, %v372
      %v374 = vrot.slane %v369, %v373
      %v376 = vmul.f32 %v337, %v374
      %v377 = vmul.f32 %v338, %v374
      %v378 = vmul.f32 %v339, %v374
      %v379 = vmul.f32 %v340, %v374
      %v380 = vmul.f32 %v341, %v374
      %v381 = vmul.f32 %v342, %v374
      %v382 = vmul.f32 %v343, %v374
      %v383 = vmul.f32 %v344, %v374
      %v384 = vmul.f32 %v345, %v374
      %v385 = vmul.f32 %v346, %v374
      %v386 = vmul.f32 %v347, %v374
      %v387 = vmul.f32 %v348, %v374
      %v388 = vmul.f32 %v349, %v374
      %v389 = vmul.f32 %v350, %v374
      %v390 = vmul.f32 %v351, %v374
      %v391 = vmul.f32 %v352, %v374
      %v392 = vmul.f32 %v353, %v374
      %v393 = vmul.f32 %v354, %v374
      %v394 = vmul.f32 %v355, %v374
      %v395 = vmul.f32 %v356, %v374
      %v396 = vmul.f32 %v357, %v374
      %v397 = vmul.f32 %v358, %v374
      %v398 = vmul.f32 %v359, %v374
      %v399 = vmul.f32 %v360, %v374
      %v400 = vmul.f32 %v361, %v374
      %v401 = vmul.f32 %v362, %v374
      %v402 = vmul.f32 %v363, %v374
      %v403 = vmul.f32 %v364, %v374
      %v404 = vmul.f32 %v365, %v374
      %v405 = vmul.f32 %v366, %v374
      %v406 = vmul.f32 %v367, %v374
      %v407 = vmul.f32 %v368, %v374
      %v408 = vld [vmem:[%s3] sm:$0x1]
      %v410 = vlaneseq
      %v411 = vshrl.u32 %v410, 7
      %v412 = vsub.s32 0, %v411
      %v413 = vrot.slane %v408, %v412
      %v415 = vadd.f32 %v376, %v413
      %v416 = vadd.f32 %v377, %v413
      %v417 = vadd.f32 %v378, %v413
      %v418 = vadd.f32 %v379, %v413
      %v419 = vadd.f32 %v380, %v413
      %v420 = vadd.f32 %v381, %v413
      %v421 = vadd.f32 %v382, %v413
      %v422 = vadd.f32 %v383, %v413
      %v423 = vadd.f32 %v384, %v413
      %v424 = vadd.f32 %v385, %v413
      %v425 = vadd.f32 %v386, %v413
      %v426 = vadd.f32 %v387, %v413
      %v427 = vadd.f32 %v388, %v413
      %v428 = vadd.f32 %v389, %v413
      %v429 = vadd.f32 %v390, %v413
      %v430 = vadd.f32 %v391, %v413
      %v431 = vadd.f32 %v392, %v413
      %v432 = vadd.f32 %v393, %v413
      %v433 = vadd.f32 %v394, %v413
      %v434 = vadd.f32 %v395, %v413
      %v435 = vadd.f32 %v396, %v413
      %v436 = vadd.f32 %v397, %v413
      %v437 = vadd.f32 %v398, %v413
      %v438 = vadd.f32 %v399, %v413
      %v439 = vadd.f32 %v400, %v413
      %v440 = vadd.f32 %v401, %v413
      %v441 = vadd.f32 %v402, %v413
      %v442 = vadd.f32 %v403, %v413
      %v443 = vadd.f32 %v404, %v413
      %v444 = vadd.f32 %v405, %v413
      %v445 = vadd.f32 %v406, %v413
      %v446 = vadd.f32 %v407, %v413
      %v447 = vmax.f32 %v415, 0.0
      %v448 = vmax.f32 %v416, 0.0
      %v449 = vmax.f32 %v417, 0.0
      %v450 = vmax.f32 %v418, 0.0
      %v451 = vmax.f32 %v419, 0.0
      %v452 = vmax.f32 %v420, 0.0
      %v453 = vmax.f32 %v421, 0.0
      %v454 = vmax.f32 %v422, 0.0
      %v455 = vmax.f32 %v423, 0.0
      %v456 = vmax.f32 %v424, 0.0
      %v457 = vmax.f32 %v425, 0.0
      %v458 = vmax.f32 %v426, 0.0
      %v459 = vmax.f32 %v427, 0.0
      %v460 = vmax.f32 %v428, 0.0
      %v461 = vmax.f32 %v429, 0.0
      %v462 = vmax.f32 %v430, 0.0
      %v463 = vmax.f32 %v431, 0.0
      %v464 = vmax.f32 %v432, 0.0
      %v465 = vmax.f32 %v433, 0.0
      %v466 = vmax.f32 %v434, 0.0
      %v467 = vmax.f32 %v435, 0.0
      %v468 = vmax.f32 %v436, 0.0
      %v469 = vmax.f32 %v437, 0.0
      %v470 = vmax.f32 %v438, 0.0
      %v471 = vmax.f32 %v439, 0.0
      %v472 = vmax.f32 %v440, 0.0
      %v473 = vmax.f32 %v441, 0.0
      %v474 = vmax.f32 %v442, 0.0
      %v475 = vmax.f32 %v443, 0.0
      %v476 = vmax.f32 %v444, 0.0
      %v477 = vmax.f32 %v445, 0.0
      %v478 = vmax.f32 %v446, 0.0
      %v479 = vpack.c.bf16 %v448, %v447
      %v480 = vpack.c.bf16 %v450, %v449
      %v481 = vpack.c.bf16 %v452, %v451
      %v482 = vpack.c.bf16 %v454, %v453
      %v483 = vpack.c.bf16 %v456, %v455
      %v484 = vpack.c.bf16 %v458, %v457
      %v485 = vpack.c.bf16 %v460, %v459
      %v486 = vpack.c.bf16 %v462, %v461
      %v487 = vpack.c.bf16 %v464, %v463
      %v488 = vpack.c.bf16 %v466, %v465
      %v489 = vpack.c.bf16 %v468, %v467
      %v490 = vpack.c.bf16 %v470, %v469
      %v491 = vpack.c.bf16 %v472, %v471
      %v492 = vpack.c.bf16 %v474, %v473
      %v493 = vpack.c.bf16 %v476, %v475
      %v494 = vpack.c.bf16 %v478, %v477
      %v495 = vld [vmem:[%s4] sm:$0xf]
      %v496 = vld [vmem:[%s4 + $0x4] sm:$0xf]
      %v497 = vld [vmem:[%s4 + $0x8] sm:$0xf]
      %v498 = vld [vmem:[%s4 + $0xc] sm:$0xf]
      %v499 = vld [vmem:[%s4 + $0x10] sm:$0xf]
      %v500 = vld [vmem:[%s4 + $0x14] sm:$0xf]
      %v501 = vld [vmem:[%s4 + $0x18] sm:$0xf]
      %v502 = vld [vmem:[%s4 + $0x1c] sm:$0xf]
      %v503 = vld [vmem:[%s4 + $0x20] sm:$0xf]
      %v504 = vld [vmem:[%s4 + $0x24] sm:$0xf]
      %v505 = vld [vmem:[%s4 + $0x28] sm:$0xf]
      %v506 = vld [vmem:[%s4 + $0x2c] sm:$0xf]
      %v507 = vld [vmem:[%s4 + $0x30] sm:$0xf]
      %v508 = vld [vmem:[%s4 + $0x34] sm:$0xf]
      %v509 = vld [vmem:[%s4 + $0x38] sm:$0xf]
      %v510 = vld [vmem:[%s4 + $0x3c] sm:$0xf]
      %v527 = vunpack.c.l.b16 %v495
      %v528 = vunpack.c.l.b16 %v496
      %v529 = vunpack.c.l.b16 %v497
      %v530 = vunpack.c.l.b16 %v498
      %v531 = vunpack.c.l.b16 %v499
      %v532 = vunpack.c.l.b16 %v500
      %v533 = vunpack.c.l.b16 %v501
      %v534 = vunpack.c.l.b16 %v502
      %v535 = vunpack.c.l.b16 %v503
      %v536 = vunpack.c.l.b16 %v504
      %v537 = vunpack.c.l.b16 %v505
      %v538 = vunpack.c.l.b16 %v506
      %v539 = vunpack.c.l.b16 %v507
      %v540 = vunpack.c.l.b16 %v508
      %v541 = vunpack.c.l.b16 %v509
      %v542 = vunpack.c.l.b16 %v510
      %v543 = vpack.c.b16 %v528, %v527
      %v544 = vpack.c.b16 %v530, %v529
      %v545 = vpack.c.b16 %v532, %v531
      %v546 = vpack.c.b16 %v534, %v533
      %v547 = vpack.c.b16 %v536, %v535
      %v548 = vpack.c.b16 %v538, %v537
      %v549 = vpack.c.b16 %v540, %v539
      %v550 = vpack.c.b16 %v542, %v541
      %559 = vmatprep.subr.bf16.mxu0 0
      %560 = vmatpush1.bf16.msra.mxu0 %v543
      %561 = vmatprep.subr.bf16.mxu0 0
      %562 = vmatpush1.bf16.msra.mxu0 %v544
      %563 = vmatprep.subr.bf16.mxu0 0
      %564 = vmatpush1.bf16.msra.mxu0 %v545
      %565 = vmatprep.subr.bf16.mxu0 0
      %566 = vmatpush1.bf16.msra.mxu0 %v546
      %567 = vmatprep.subr.bf16.mxu0 0
      %568 = vmatpush1.bf16.msra.mxu0 %v547
      %569 = vmatprep.subr.bf16.mxu0 0
      %570 = vmatpush1.bf16.msra.mxu0 %v548
      %571 = vmatprep.subr.bf16.mxu0 0
      %572 = vmatpush1.bf16.msra.mxu0 %v549
      %573 = vmatprep.subr.bf16.mxu0 0
      %574 = vmatpush1.bf16.msra.mxu0 %v550
      %575 = vmatprep.subr.bf16.mxu0 0
      %576 = vmatpush1.bf16.msra.mxu0 0
      %577 = vmatprep.subr.bf16.mxu0 0
      %578 = vmatpush1.bf16.msra.mxu0 0
      %579 = vmatprep.subr.bf16.mxu0 0
      %580 = vmatpush1.bf16.msra.mxu0 0
      %581 = vmatprep.subr.bf16.mxu0 0
      %582 = vmatpush1.bf16.msra.mxu0 0
      %583 = vmatprep.subr.bf16.mxu0 0
      %584 = vmatpush1.bf16.msra.mxu0 0
      %585 = vmatprep.subr.bf16.mxu0 0
      %586 = vmatpush1.bf16.msra.mxu0 0
      %587 = vmatprep.subr.bf16.mxu0 0
      %588 = vmatpush1.bf16.msra.mxu0 0
      %589 = vmatprep.subr.bf16.mxu0 0
      %590 = vmatpush1.bf16.msra.mxu0 0
      %591 = vmatprep.mubr.bf16.mxu0 0
      %592 = vmatmul.mubr.bf16.gmra.mrb[0].mxu0 %v479
      %v593 = vpop.f32.mrb[0].mxu0
      %v594 = vadd.f32 0.0, %v593
      %v595 = vpop.f32.mrb[0].mxu0
      %v596 = vpop.f32.mrb[0].mxu0
      %v597 = vadd.f32 0.0, %v596
      %v598 = vpop.f32.mrb[0].mxu0
      %599 = vmatprep.mubr.bf16.mxu0 0
      %600 = vmatmul.mubr.bf16.gmra.mrb[0].mxu0 %v480
      %v601 = vpop.f32.mrb[0].mxu0
      %v602 = vadd.f32 0.0, %v601
      %v603 = vpop.f32.mrb[0].mxu0
      %v604 = vpop.f32.mrb[0].mxu0
      %v605 = vadd.f32 0.0, %v604
      %v606 = vpop.f32.mrb[0].mxu0
      %607 = vmatprep.mubr.bf16.mxu0 0
      %608 = vmatmul.mubr.bf16.gmra.mrb[0].mxu0 %v481
      %v609 = vpop.f32.mrb[0].mxu0
      %v610 = vadd.f32 0.0, %v609
      %v611 = vpop.f32.mrb[0].mxu0
      %v612 = vpop.f32.mrb[0].mxu0
      %v613 = vadd.f32 0.0, %v612
      %v614 = vpop.f32.mrb[0].mxu0
      %615 = vmatprep.mubr.bf16.mxu0 0
      %616 = vmatmul.mubr.bf16.gmra.mrb[0].mxu0 %v482
      %v617 = vpop.f32.mrb[0].mxu0
      %v618 = vadd.f32 0.0, %v617
      %v619 = vpop.f32.mrb[0].mxu0
      %v620 = vpop.f32.mrb[0].mxu0
      %v621 = vadd.f32 0.0, %v620
      %v622 = vpop.f32.mrb[0].mxu0
      %623 = vmatprep.mubr.bf16.mxu0 0
      %624 = vmatmul.mubr.bf16.gmra.mrb[0].mxu0 %v483
      %v625 = vpop.f32.mrb[0].mxu0
      %v626 = vadd.f32 0.0, %v625
      %v627 = vpop.f32.mrb[0].mxu0
      %v628 = vpop.f32.mrb[0].mxu0
      %v629 = vadd.f32 0.0, %v628
      %v630 = vpop.f32.mrb[0].mxu0
      %631 = vmatprep.mubr.bf16.mxu0 0
      %632 = vmatmul.mubr.bf16.gmra.mrb[0].mxu0 %v484
      %v633 = vpop.f32.mrb[0].mxu0
      %v634 = vadd.f32 0.0, %v633
      %v635 = vpop.f32.mrb[0].mxu0
      %v636 = vpop.f32.mrb[0].mxu0
      %v637 = vadd.f32 0.0, %v636
      %v638 = vpop.f32.mrb[0].mxu0
      %639 = vmatprep.mubr.bf16.mxu0 0
      %640 = vmatmul.mubr.bf16.gmra.mrb[0].mxu0 %v485
      %v641 = vpop.f32.mrb[0].mxu0
      %v642 = vadd.f32 0.0, %v641
      %v643 = vpop.f32.mrb[0].mxu0
      %v644 = vpop.f32.mrb[0].mxu0
      %v645 = vadd.f32 0.0, %v644
      %v646 = vpop.f32.mrb[0].mxu0
      %647 = vmatprep.mubr.bf16.mxu0 0
      %648 = vmatmul.mubr.bf16.gmra.mrb[0].mxu0 %v486
      %v649 = vpop.f32.mrb[0].mxu0
      %v650 = vadd.f32 0.0, %v649
      %v651 = vpop.f32.mrb[0].mxu0
      %v652 = vpop.f32.mrb[0].mxu0
      %v653 = vadd.f32 0.0, %v652
      %v654 = vpop.f32.mrb[0].mxu0
      %655 = vmatprep.mubr.bf16.mxu0 0
      %656 = vmatmul.mubr.bf16.gmra.mrb[0].mxu0 %v487
      %v657 = vpop.f32.mrb[0].mxu0
      %v658 = vadd.f32 0.0, %v657
      %v659 = vpop.f32.mrb[0].mxu0
      %v660 = vpop.f32.mrb[0].mxu0
      %v661 = vadd.f32 0.0, %v660
      %v662 = vpop.f32.mrb[0].mxu0
      %663 = vmatprep.mubr.bf16.mxu0 0
      %664 = vmatmul.mubr.bf16.gmra.mrb[0].mxu0 %v488
      %v665 = vpop.f32.mrb[0].mxu0
      %v666 = vadd.f32 0.0, %v665
      %v667 = vpop.f32.mrb[0].mxu0
      %v668 = vpop.f32.mrb[0].mxu0
      %v669 = vadd.f32 0.0, %v668
      %v670 = vpop.f32.mrb[0].mxu0
      %671 = vmatprep.mubr.bf16.mxu0 0
      %672 = vmatmul.mubr.bf16.gmra.mrb[0].mxu0 %v489
      %v673 = vpop.f32.mrb[0].mxu0
      %v674 = vadd.f32 0.0, %v673
      %v675 = vpop.f32.mrb[0].mxu0
      %v676 = vpop.f32.mrb[0].mxu0
      %v677 = vadd.f32 0.0, %v676
      %v678 = vpop.f32.mrb[0].mxu0
      %679 = vmatprep.mubr.bf16.mxu0 0
      %680 = vmatmul.mubr.bf16.gmra.mrb[0].mxu0 %v490
      %v681 = vpop.f32.mrb[0].mxu0
      %v682 = vadd.f32 0.0, %v681
      %v683 = vpop.f32.mrb[0].mxu0
      %v684 = vpop.f32.mrb[0].mxu0
      %v685 = vadd.f32 0.0, %v684
      %v686 = vpop.f32.mrb[0].mxu0
      %687 = vmatprep.mubr.bf16.mxu0 0
      %688 = vmatmul.mubr.bf16.gmra.mrb[0].mxu0 %v491
      %v689 = vpop.f32.mrb[0].mxu0
      %v690 = vadd.f32 0.0, %v689
      %v691 = vpop.f32.mrb[0].mxu0
      %v692 = vpop.f32.mrb[0].mxu0
      %v693 = vadd.f32 0.0, %v692
      %v694 = vpop.f32.mrb[0].mxu0
      %695 = vmatprep.mubr.bf16.mxu0 0
      %696 = vmatmul.mubr.bf16.gmra.mrb[0].mxu0 %v492
      %v697 = vpop.f32.mrb[0].mxu0
      %v698 = vadd.f32 0.0, %v697
      %v699 = vpop.f32.mrb[0].mxu0
      %v700 = vpop.f32.mrb[0].mxu0
      %v701 = vadd.f32 0.0, %v700
      %v702 = vpop.f32.mrb[0].mxu0
      %703 = vmatprep.mubr.bf16.mxu0 0
      %704 = vmatmul.mubr.bf16.gmra.mrb[0].mxu0 %v493
      %v705 = vpop.f32.mrb[0].mxu0
      %v706 = vadd.f32 0.0, %v705
      %v707 = vpop.f32.mrb[0].mxu0
      %v708 = vpop.f32.mrb[0].mxu0
      %v709 = vadd.f32 0.0, %v708
      %v710 = vpop.f32.mrb[0].mxu0
      %711 = vmatprep.mubr.bf16.mxu0 0
      %712 = vmatmul.mubr.bf16.gmra.mrb[0].mxu0 %v494
      %v713 = vpop.f32.mrb[0].mxu0
      %v714 = vadd.f32 0.0, %v713
      %v715 = vpop.f32.mrb[0].mxu0
      %v716 = vpop.f32.mrb[0].mxu0
      %v717 = vadd.f32 0.0, %v716
      %v718 = vpop.f32.mrb[0].mxu0
      %719 = vdwg.mxu0
      %v720 = vld [vmem:[%s5] sm:$0x1]
      %v722 = vlaneseq
      %v723 = vshrl.u32 %v722, 7
      %v724 = vsub.s32 0, %v723
      %v725 = vrot.slane %v720, %v724
      %v727 = vmul.f32 %v594, %v725
      %v728 = vmul.f32 %v597, %v725
      %v729 = vmul.f32 %v602, %v725
      %v730 = vmul.f32 %v605, %v725
      %v731 = vmul.f32 %v610, %v725
      %v732 = vmul.f32 %v613, %v725
      %v733 = vmul.f32 %v618, %v725
      %v734 = vmul.f32 %v621, %v725
      %v735 = vmul.f32 %v626, %v725
      %v736 = vmul.f32 %v629, %v725
      %v737 = vmul.f32 %v634, %v725
      %v738 = vmul.f32 %v637, %v725
      %v739 = vmul.f32 %v642, %v725
      %v740 = vmul.f32 %v645, %v725
      %v741 = vmul.f32 %v650, %v725
      %v742 = vmul.f32 %v653, %v725
      %v743 = vmul.f32 %v658, %v725
      %v744 = vmul.f32 %v661, %v725
      %v745 = vmul.f32 %v666, %v725
      %v746 = vmul.f32 %v669, %v725
      %v747 = vmul.f32 %v674, %v725
      %v748 = vmul.f32 %v677, %v725
      %v749 = vmul.f32 %v682, %v725
      %v750 = vmul.f32 %v685, %v725
      %v751 = vmul.f32 %v690, %v725
      %v752 = vmul.f32 %v693, %v725
      %v753 = vmul.f32 %v698, %v725
      %v754 = vmul.f32 %v701, %v725
      %v755 = vmul.f32 %v706, %v725
      %v756 = vmul.f32 %v709, %v725
      %v757 = vmul.f32 %v714, %v725
      %v758 = vmul.f32 %v717, %v725
      %v759 = vld [vmem:[%s6] sm:$0x1]
      %v761 = vlaneseq
      %v762 = vshrl.u32 %v761, 7
      %v763 = vsub.s32 0, %v762
      %v764 = vrot.slane %v759, %v763
      %v766 = vadd.f32 %v727, %v764
      %v767 = vadd.f32 %v728, %v764
      %v768 = vadd.f32 %v729, %v764
      %v769 = vadd.f32 %v730, %v764
      %v770 = vadd.f32 %v731, %v764
      %v771 = vadd.f32 %v732, %v764
      %v772 = vadd.f32 %v733, %v764
      %v773 = vadd.f32 %v734, %v764
      %v774 = vadd.f32 %v735, %v764
      %v775 = vadd.f32 %v736, %v764
      %v776 = vadd.f32 %v737, %v764
      %v777 = vadd.f32 %v738, %v764
      %v778 = vadd.f32 %v739, %v764
      %v779 = vadd.f32 %v740, %v764
      %v780 = vadd.f32 %v741, %v764
      %v781 = vadd.f32 %v742, %v764
      %v782 = vadd.f32 %v743, %v764
      %v783 = vadd.f32 %v744, %v764
      %v784 = vadd.f32 %v745, %v764
      %v785 = vadd.f32 %v746, %v764
      %v786 = vadd.f32 %v747, %v764
      %v787 = vadd.f32 %v748, %v764
      %v788 = vadd.f32 %v749, %v764
      %v789 = vadd.f32 %v750, %v764
      %v790 = vadd.f32 %v751, %v764
      %v791 = vadd.f32 %v752, %v764
      %v792 = vadd.f32 %v753, %v764
      %v793 = vadd.f32 %v754, %v764
      %v794 = vadd.f32 %v755, %v764
      %v795 = vadd.f32 %v756, %v764
      %v796 = vadd.f32 %v757, %v764
      %v797 = vadd.f32 %v758, %v764
      %v798 = vmax.f32 %v766, 0.0
      %v799 = vmax.f32 %v767, 0.0
      %v800 = vmax.f32 %v768, 0.0
      %v801 = vmax.f32 %v769, 0.0
      %v802 = vmax.f32 %v770, 0.0
      %v803 = vmax.f32 %v771, 0.0
      %v804 = vmax.f32 %v772, 0.0
      %v805 = vmax.f32 %v773, 0.0
      %v806 = vmax.f32 %v774, 0.0
      %v807 = vmax.f32 %v775, 0.0
      %v808 = vmax.f32 %v776, 0.0
      %v809 = vmax.f32 %v777, 0.0
      %v810 = vmax.f32 %v778, 0.0
      %v811 = vmax.f32 %v779, 0.0
      %v812 = vmax.f32 %v780, 0.0
      %v813 = vmax.f32 %v781, 0.0
      %v814 = vmax.f32 %v782, 0.0
      %v815 = vmax.f32 %v783, 0.0
      %v816 = vmax.f32 %v784, 0.0
      %v817 = vmax.f32 %v785, 0.0
      %v818 = vmax.f32 %v786, 0.0
      %v819 = vmax.f32 %v787, 0.0
      %v820 = vmax.f32 %v788, 0.0
      %v821 = vmax.f32 %v789, 0.0
      %v822 = vmax.f32 %v790, 0.0
      %v823 = vmax.f32 %v791, 0.0
      %v824 = vmax.f32 %v792, 0.0
      %v825 = vmax.f32 %v793, 0.0
      %v826 = vmax.f32 %v794, 0.0
      %v827 = vmax.f32 %v795, 0.0
      %v828 = vmax.f32 %v796, 0.0
      %v829 = vmax.f32 %v797, 0.0
      %v830 = vld [vmem:[%s296] sm:$0xf]
      %v831 = vld [vmem:[%s296 + $0x4] sm:$0xf]
      %v832 = vld [vmem:[%s296 + $0x8] sm:$0xf]
      %v833 = vld [vmem:[%s296 + $0xc] sm:$0xf]
      %v834 = vld [vmem:[%s296 + $0x10] sm:$0xf]
      %v835 = vld [vmem:[%s296 + $0x14] sm:$0xf]
      %v836 = vld [vmem:[%s296 + $0x18] sm:$0xf]
      %v837 = vld [vmem:[%s296 + $0x1c] sm:$0xf]
      %v838 = vld [vmem:[%s296 + $0x20] sm:$0xf]
      %v839 = vld [vmem:[%s296 + $0x24] sm:$0xf]
      %v840 = vld [vmem:[%s296 + $0x28] sm:$0xf]
      %v841 = vld [vmem:[%s296 + $0x2c] sm:$0xf]
      %v842 = vld [vmem:[%s296 + $0x30] sm:$0xf]
      %v843 = vld [vmem:[%s296 + $0x34] sm:$0xf]
      %v844 = vld [vmem:[%s296 + $0x38] sm:$0xf]
      %v845 = vld [vmem:[%s296 + $0x3c] sm:$0xf]
      %v846 = vld [vmem:[%s296 + $0x40] sm:$0xf]
      %v847 = vld [vmem:[%s296 + $0x44] sm:$0xf]
      %v848 = vld [vmem:[%s296 + $0x48] sm:$0xf]
      %v849 = vld [vmem:[%s296 + $0x4c] sm:$0xf]
      %v850 = vld [vmem:[%s296 + $0x50] sm:$0xf]
      %v851 = vld [vmem:[%s296 + $0x54] sm:$0xf]
      %v852 = vld [vmem:[%s296 + $0x58] sm:$0xf]
      %v853 = vld [vmem:[%s296 + $0x5c] sm:$0xf]
      %v854 = vld [vmem:[%s296 + $0x60] sm:$0xf]
      %v855 = vld [vmem:[%s296 + $0x64] sm:$0xf]
      %v856 = vld [vmem:[%s296 + $0x68] sm:$0xf]
      %v857 = vld [vmem:[%s296 + $0x6c] sm:$0xf]
      %v858 = vld [vmem:[%s296 + $0x70] sm:$0xf]
      %v859 = vld [vmem:[%s296 + $0x74] sm:$0xf]
      %v860 = vld [vmem:[%s296 + $0x78] sm:$0xf]
      %v861 = vld [vmem:[%s296 + $0x7c] sm:$0xf]
      %v862 = vunpack.c.l.bf16 %v830
      %v863 = vunpack.c.l.bf16 %v831
      %v864 = vunpack.c.l.bf16 %v832
      %v865 = vunpack.c.l.bf16 %v833
      %v866 = vunpack.c.l.bf16 %v834
      %v867 = vunpack.c.l.bf16 %v835
      %v868 = vunpack.c.l.bf16 %v836
      %v869 = vunpack.c.l.bf16 %v837
      %v870 = vunpack.c.l.bf16 %v838
      %v871 = vunpack.c.l.bf16 %v839
      %v872 = vunpack.c.l.bf16 %v840
      %v873 = vunpack.c.l.bf16 %v841
      %v874 = vunpack.c.l.bf16 %v842
      %v875 = vunpack.c.l.bf16 %v843
      %v876 = vunpack.c.l.bf16 %v844
      %v877 = vunpack.c.l.bf16 %v845
      %v878 = vunpack.c.l.bf16 %v846
      %v879 = vunpack.c.l.bf16 %v847
      %v880 = vunpack.c.l.bf16 %v848
      %v881 = vunpack.c.l.bf16 %v849
      %v882 = vunpack.c.l.bf16 %v850
      %v883 = vunpack.c.l.bf16 %v851
      %v884 = vunpack.c.l.bf16 %v852
      %v885 = vunpack.c.l.bf16 %v853
      %v886 = vunpack.c.l.bf16 %v854
      %v887 = vunpack.c.l.bf16 %v855
      %v888 = vunpack.c.l.bf16 %v856
      %v889 = vunpack.c.l.bf16 %v857
      %v890 = vunpack.c.l.bf16 %v858
      %v891 = vunpack.c.l.bf16 %v859
      %v892 = vunpack.c.l.bf16 %v860
      %v893 = vunpack.c.l.bf16 %v861
      %v894 = vadd.f32 %v798, %v862
      %v895 = vadd.f32 %v799, %v863
      %v896 = vadd.f32 %v800, %v864
      %v897 = vadd.f32 %v801, %v865
      %v898 = vadd.f32 %v802, %v866
      %v899 = vadd.f32 %v803, %v867
      %v900 = vadd.f32 %v804, %v868
      %v901 = vadd.f32 %v805, %v869
      %v902 = vadd.f32 %v806, %v870
      %v903 = vadd.f32 %v807, %v871
      %v904 = vadd.f32 %v808, %v872
      %v905 = vadd.f32 %v809, %v873
      %v906 = vadd.f32 %v810, %v874
      %v907 = vadd.f32 %v811, %v875
      %v908 = vadd.f32 %v812, %v876
      %v909 = vadd.f32 %v813, %v877
      %v910 = vadd.f32 %v814, %v878
      %v911 = vadd.f32 %v815, %v879
      %v912 = vadd.f32 %v816, %v880
      %v913 = vadd.f32 %v817, %v881
      %v914 = vadd.f32 %v818, %v882
      %v915 = vadd.f32 %v819, %v883
      %v916 = vadd.f32 %v820, %v884
      %v917 = vadd.f32 %v821, %v885
      %v918 = vadd.f32 %v822, %v886
      %v919 = vadd.f32 %v823, %v887
      %v920 = vadd.f32 %v824, %v888
      %v921 = vadd.f32 %v825, %v889
      %v922 = vadd.f32 %v826, %v890
      %v923 = vadd.f32 %v827, %v891
      %v924 = vadd.f32 %v828, %v892
      %v925 = vadd.f32 %v829, %v893
      %926 = vst [vmem:[%s302] sm:$0xff] %v894
      %927 = vst [vmem:[%s302 + $0x8] sm:$0xff] %v895
      %928 = vst [vmem:[%s302 + $0x10] sm:$0xff] %v896
      %929 = vst [vmem:[%s302 + $0x18] sm:$0xff] %v897
      %930 = vst [vmem:[%s302 + $0x20] sm:$0xff] %v898
      %931 = vst [vmem:[%s302 + $0x28] sm:$0xff] %v899
      %932 = vst [vmem:[%s302 + $0x30] sm:$0xff] %v900
      %933 = vst [vmem:[%s302 + $0x38] sm:$0xff] %v901
      %934 = vst [vmem:[%s302 + $0x40] sm:$0xff] %v902
      %935 = vst [vmem:[%s302 + $0x48] sm:$0xff] %v903
      %936 = vst [vmem:[%s302 + $0x50] sm:$0xff] %v904
      %937 = vst [vmem:[%s302 + $0x58] sm:$0xff] %v905
      %938 = vst [vmem:[%s302 + $0x60] sm:$0xff] %v906
      %939 = vst [vmem:[%s302 + $0x68] sm:$0xff] %v907
      %940 = vst [vmem:[%s302 + $0x70] sm:$0xff] %v908
      %941 = vst [vmem:[%s302 + $0x78] sm:$0xff] %v909
      %942 = vst [vmem:[%s302 + $0x80] sm:$0xff] %v910
      %943 = vst [vmem:[%s302 + $0x88] sm:$0xff] %v911
      %944 = vst [vmem:[%s302 + $0x90] sm:$0xff] %v912
      %945 = vst [vmem:[%s302 + $0x98] sm:$0xff] %v913
      %946 = vst [vmem:[%s302 + $0xa0] sm:$0xff] %v914
      %947 = vst [vmem:[%s302 + $0xa8] sm:$0xff] %v915
      %948 = vst [vmem:[%s302 + $0xb0] sm:$0xff] %v916
      %949 = vst [vmem:[%s302 + $0xb8] sm:$0xff] %v917
      %950 = vst [vmem:[%s302 + $0xc0] sm:$0xff] %v918
      %951 = vst [vmem:[%s302 + $0xc8] sm:$0xff] %v919
      %952 = vst [vmem:[%s302 + $0xd0] sm:$0xff] %v920
      %953 = vst [vmem:[%s302 + $0xd8] sm:$0xff] %v921
      %954 = vst [vmem:[%s302 + $0xe0] sm:$0xff] %v922
      %955 = vst [vmem:[%s302 + $0xe8] sm:$0xff] %v923
      %956 = vst [vmem:[%s302 + $0xf0] sm:$0xff] %v924
      %957 = vst [vmem:[%s302 + $0xf8] sm:$0xff] %v925
      %s958 = smul.u32 32, %s18
      %p959 = scmp.lt.s32.totalorder %s958, 63
      %s960 = scalar_select %p959, %s958, 63
      %s961 = smul.addr %s960, 8
      %s962 = scalar_lea.vmem %s7, %s961
      // Predicated region
      $region49: #{resnet_bottleneck_block.7} parent=47 // pred_check
        %p963 = pneg %p193
      $region50: #{resnet_bottleneck_block.7} parent=47 // pred_check_branch
        %965 = sbr.rel (%p963) target = $region52
      $region51: #{resnet_bottleneck_block.7} parent=47 // pred_region
        %s966 = smul.u32 32, %s18
      $region52: #{resnet_bottleneck_block.7} parent=47 // pred_fallthru
        _
    $region48: #{resnet_bottleneck_block.7} parent=5 // pred_fallthru
      _
    %p967 = scmp.le.s32.totalorder 2, %s13
    // Predicated region
    $region53: #{resnet_bottleneck_block.7} parent=5 // pred_check
      %p968 = pneg %p967
    $region54: #{resnet_bottleneck_block.7} parent=5 // pred_check_branch
      %970 = sbr.rel (%p968) target = $region56
    $region55: #{resnet_bottleneck_block.7} parent=5 // pred_region
      %s971 = ssub.s32 %s13, 2
      // Predicated region
      $region57: #{resnet_bottleneck_block.7} parent=55 // pred_check
        %p972 = pneg %p199
      $region58: #{resnet_bottleneck_block.7} parent=55 // pred_check_branch
        %974 = sbr.rel (%p972) target = $region60
      $region59: #{resnet_bottleneck_block.7} parent=55 // pred_region
        %s975 = smul.u32 32, %s19
        %p976 = scmp.lt.s32.totalorder %s975, 63
        %s977 = scalar_select %p976, %s975, 63
        %s978 = smul.addr %s977, 8
        %s979 = scalar_lea.vmem %s7, %s978
      $region60: #{resnet_bottleneck_block.7} parent=55 // pred_fallthru
        _
    $region56: #{resnet_bottleneck_block.7} parent=5 // pred_fallthru
      _
  $region6: #{resnet_bottleneck_block.7} parent=0 // loop_footer
    %s17 = sadd.s32 1, %s13
  $region7: #{resnet_bottleneck_block.7} parent=0 // loop_footer_branch
    %12 = sbr.rel target = $region3
  $region8: #{resnet_bottleneck_block.7} parent=0 // loop_exit
    _

// kernel: resnet_bottleneck_block.6
$region0: #{resnet_bottleneck_block.6}
  #allocation0 [shape = 'u32[]', space=smem, size = 0x4, offset = 0x4, fixed_abs, tag = 'smem constant byte address 0x4 - core index']
  #allocation1 [shape = 'u32[144,128]{1,0:T(1,128)}', space=vmem, size = 0x12000, scoped, tag = 'internal scratch']
  %s0 = inlined_call_operand.vmem [shape: bf16[512,128], index: 0, kind: input, shape index: {}]
  %s1 = inlined_call_operand.vmem [shape: f32[1,128], index: 1, kind: input, shape index: {}]
  %s2 = inlined_call_operand.vmem [shape: f32[1,128], index: 2, kind: input, shape index: {}]
  %s3 = inlined_call_operand.vmem [shape: bf16[128,128], index: 3, kind: input, shape index: {}]
  %s4 = inlined_call_operand.vmem [shape: f32[2,2,128], index: 4, kind: output, shape index: {}]
  %s5 = sld [smem:[#allocation0]]
  $region53: #{resnet_bottleneck_block.6} parent=0
    _
  %s7 = ssub.s32 1, %s5
  %s8 = scalar_select 0, %s7, %s5
  loop: start=0, step=1, limit=4
  $region2: #{resnet_bottleneck_block.6} parent=0 // loop_pre_header
    _
  $region3: #{resnet_bottleneck_block.6} parent=0 // loop_header
    %s10 = sphi 0, %s14
    %p11 = scmp.ge.s32.totalorder %s10, 4
    %s17 = sphi 0, %s29
    %s18 = sphi 0, %s25
    %s19 = sphi 0, %s17
    %s20 = sphi 0, %s18
    %s21 = sphi 0, %s19
    %s22 = sphi 0, %s20
    %s34 = sphi 0, %s36
    %s37 = sphi 0, %s34
    %s38 = sphi 0, %s37
    %s54 = sphi 0, %s38
    %s58 = sphi 0, %s58
    %s60 = sphi 0, %s58
    %s61 = sphi 0, %s60
    %s75 = sphi 0, %s61
    %s79 = sphi 0, %s79
    %s81 = sphi 0, %s79
    %s82 = sphi 0, %s81
    %s96 = sphi 0, %s82
    %s100 = sphi 0, %s100
    %s102 = sphi 0, %s100
    %s103 = sphi 0, %s102
    %s117 = sphi 0, %s103
    %s123 = sphi 0, %s125
    %s126 = sphi 0, %s123
    %s127 = sphi 0, %s126
    %s143 = sphi 0, %s127
  $region4: #{resnet_bottleneck_block.6} parent=0 // loop_header_branch
    %13 = sbr.rel (%p11) target = $region8
  $region5: #{resnet_bottleneck_block.6} parent=0 // loop_body
    %s15 = ssub.s32 %s10, 1
    %s16 = ssub.s32 %s10, 2
    %s23 = sadd.s32 1, %s18
    %p24 = scmp.ge.s32.totalorder %s23, 1
    %s25 = scalar_select %p24, 0, %s23
    %s26 = sadd.s32 1, %s17
    %s27 = scalar_select %p24, %s26, %s17
    %p28 = scmp.ge.s32.totalorder %s27, 2
    %s29 = scalar_select %p28, 0, %s27
    %s30 = sadd.s32 %s17, %s18
    %s31 = sadd.s32 %s29, %s25
    %s32 = ssub.s32 %s30, %s31
    %p33 = scmp.eq.s32.totalorder %s32, 0
    %s35 = sadd.s32 %s34, 1
    %s36 = scalar_select %p33, %s34, %s35
    %p39 = pneg %p33
    %p40 = scmp.eq.s32.totalorder %s10, 1
    %p41 = por %p39, %p40
    %p42 = scmp.ne.s32.totalorder %s34, %s37
    %p43 = scmp.eq.s32.totalorder %s10, 0
    %p44 = por %p42, %p43
    %p45 = scmp.ne.s32.totalorder %s34, %s37
    %p46 = scmp.eq.s32.totalorder %s15, 1
    %p47 = por %p45, %p46
    %p48 = scmp.ne.s32.totalorder %s37, %s38
    %p49 = scmp.eq.s32.totalorder %s15, 0
    %p50 = por %p48, %p49
    %p51 = scmp.ne.s32.totalorder %s37, %s38
    %p52 = scmp.eq.s32.totalorder %s16, 1
    %p53 = por %p51, %p52
    %p55 = scmp.ne.s32.totalorder %s38, %s54
    %p56 = scmp.eq.s32.totalorder %s16, 0
    %p57 = por %p55, %p56
    %s59 = sadd.s32 %s58, 1
    %p62 = scmp.eq.s32.totalorder %s10, 1
    %p63 = scmp.ne.s32.totalorder %s58, %s60
    %p64 = scmp.eq.s32.totalorder %s10, 0
    %p65 = por %p63, %p64
    %p66 = scmp.ne.s32.totalorder %s58, %s60
    %p67 = scmp.eq.s32.totalorder %s15, 1
    %p68 = por %p66, %p67
    %p69 = scmp.ne.s32.totalorder %s60, %s61
    %p70 = scmp.eq.s32.totalorder %s15, 0
    %p71 = por %p69, %p70
    %p72 = scmp.ne.s32.totalorder %s60, %s61
    %p73 = scmp.eq.s32.totalorder %s16, 1
    %p74 = por %p72, %p73
    %p76 = scmp.ne.s32.totalorder %s61, %s75
    %p77 = scmp.eq.s32.totalorder %s16, 0
    %p78 = por %p76, %p77
    %s80 = sadd.s32 %s79, 1
    %p83 = scmp.eq.s32.totalorder %s10, 1
    %p84 = scmp.ne.s32.totalorder %s79, %s81
    %p85 = scmp.eq.s32.totalorder %s10, 0
    %p86 = por %p84, %p85
    %p87 = scmp.ne.s32.totalorder %s79, %s81
    %p88 = scmp.eq.s32.totalorder %s15, 1
    %p89 = por %p87, %p88
    %p90 = scmp.ne.s32.totalorder %s81, %s82
    %p91 = scmp.eq.s32.totalorder %s15, 0
    %p92 = por %p90, %p91
    %p93 = scmp.ne.s32.totalorder %s81, %s82
    %p94 = scmp.eq.s32.totalorder %s16, 1
    %p95 = por %p93, %p94
    %p97 = scmp.ne.s32.totalorder %s82, %s96
    %p98 = scmp.eq.s32.totalorder %s16, 0
    %p99 = por %p97, %p98
    %s101 = sadd.s32 %s100, 1
    %p104 = scmp.eq.s32.totalorder %s10, 1
    %p105 = scmp.ne.s32.totalorder %s100, %s102
    %p106 = scmp.eq.s32.totalorder %s10, 0
    %p107 = por %p105, %p106
    %p108 = scmp.ne.s32.totalorder %s100, %s102
    %p109 = scmp.eq.s32.totalorder %s15, 1
    %p110 = por %p108, %p109
    %p111 = scmp.ne.s32.totalorder %s102, %s103
    %p112 = scmp.eq.s32.totalorder %s15, 0
    %p113 = por %p111, %p112
    %p114 = scmp.ne.s32.totalorder %s102, %s103
    %p115 = scmp.eq.s32.totalorder %s16, 1
    %p116 = por %p114, %p115
    %p118 = scmp.ne.s32.totalorder %s103, %s117
    %p119 = scmp.eq.s32.totalorder %s16, 0
    %p120 = por %p118, %p119
    %s121 = ssub.s32 %s17, %s29
    %p122 = scmp.eq.s32.totalorder %s121, 0
    %s124 = sadd.s32 %s123, 1
    %s125 = scalar_select %p122, %s123, %s124
    %p128 = pneg %p122
    %p129 = scmp.eq.s32.totalorder %s10, 1
    %p130 = por %p128, %p129
    %p131 = scmp.ne.s32.totalorder %s123, %s126
    %p132 = scmp.eq.s32.totalorder %s10, 0
    %p133 = por %p131, %p132
    %p134 = scmp.ne.s32.totalorder %s123, %s126
    %p135 = scmp.eq.s32.totalorder %s15, 1
    %p136 = por %p134, %p135
    %p137 = scmp.ne.s32.totalorder %s126, %s127
    %p138 = scmp.eq.s32.totalorder %s15, 0
    %p139 = por %p137, %p138
    %p140 = scmp.ne.s32.totalorder %s126, %s127
    %p141 = scmp.eq.s32.totalorder %s16, 1
    %p142 = por %p140, %p141
    %p144 = scmp.ne.s32.totalorder %s127, %s143
    %p145 = scmp.eq.s32.totalorder %s16, 0
    %p146 = por %p144, %p145
    %p147 = scmp.le.s32.totalorder 1, %s10
    %p148 = scmp.lt.s32.totalorder %s10, 3
    %p149 = pnand %p147, %p148
    %p150 = pneg %p149
    // Predicated region
    $region9: #{resnet_bottleneck_block.6} parent=5 // pred_check
      _
    $region10: #{resnet_bottleneck_block.6} parent=5 // pred_check_branch
      %152 = sbr.rel (%p149) target = $region12
    $region11: #{resnet_bottleneck_block.6} parent=5 // pred_region
      %s153 = ssub.s32 %s10, 1
      // Predicated region
      $region13: #{resnet_bottleneck_block.6} parent=11 // pred_check
        %p154 = pneg %p71
      $region14: #{resnet_bottleneck_block.6} parent=11 // pred_check_branch
        %156 = sbr.rel (%p154) target = $region16
      $region15: #{resnet_bottleneck_block.6} parent=11 // pred_region
        _
      $region16: #{resnet_bottleneck_block.6} parent=11 // pred_fallthru
        _
      // Predicated region
      $region17: #{resnet_bottleneck_block.6} parent=11 // pred_check
        %p157 = pneg %p92
      $region18: #{resnet_bottleneck_block.6} parent=11 // pred_check_branch
        %159 = sbr.rel (%p157) target = $region20
      $region19: #{resnet_bottleneck_block.6} parent=11 // pred_region
        _
      $region20: #{resnet_bottleneck_block.6} parent=11 // pred_fallthru
        _
      // Predicated region
      $region21: #{resnet_bottleneck_block.6} parent=11 // pred_check
        %p160 = pneg %p113
      $region22: #{resnet_bottleneck_block.6} parent=11 // pred_check_branch
        %162 = sbr.rel (%p160) target = $region24
      $region23: #{resnet_bottleneck_block.6} parent=11 // pred_region
        _
      $region24: #{resnet_bottleneck_block.6} parent=11 // pred_fallthru
        _
    $region12: #{resnet_bottleneck_block.6} parent=5 // pred_fallthru
      _
    %p163 = scmp.lt.s32.totalorder %s10, 2
    // Predicated region
    $region25: #{resnet_bottleneck_block.6} parent=5 // pred_check
      %p164 = pneg %p163
    $region26: #{resnet_bottleneck_block.6} parent=5 // pred_check_branch
      %166 = sbr.rel (%p164) target = $region28
    $region27: #{resnet_bottleneck_block.6} parent=5 // pred_region
      // Predicated region
      $region29: #{resnet_bottleneck_block.6} parent=27 // pred_check
        %p167 = pneg %p44
      $region30: #{resnet_bottleneck_block.6} parent=27 // pred_check_branch
        %169 = sbr.rel (%p167) target = $region32
      $region31: #{resnet_bottleneck_block.6} parent=27 // pred_region
        %s170 = sadd.s32 %s17, %s18
        %s171 = smul.u32 32, %s170
        %p172 = scmp.lt.s32.totalorder %s171, 63
        %s173 = scalar_select %p172, %s171, 63
        %s174 = smul.addr %s173, 4
        %s175 = scalar_lea.vmem %s0, %s174
        %s176 = sadd.s32 %s17, %s18
        %s177 = smul.u32 32, %s176
      $region32: #{resnet_bottleneck_block.6} parent=27 // pred_fallthru
        _
    $region28: #{resnet_bottleneck_block.6} parent=5 // pred_fallthru
      _
    %p178 = scmp.le.s32.totalorder 1, %s10
    %p179 = scmp.lt.s32.totalorder %s10, 3
    %p180 = pnand %p178, %p179
    %p181 = pneg %p180
    // Predicated region
    $region33: #{resnet_bottleneck_block.6} parent=5 // pred_check
      _
    $region34: #{resnet_bottleneck_block.6} parent=5 // pred_check_branch
      %183 = sbr.rel (%p180) target = $region36
    $region35: #{resnet_bottleneck_block.6} parent=5 // pred_region
      %s184 = ssub.s32 %s10, 1
      %s185 = sadd.s32 %s19, %s20
      %s186 = smul.u32 32, %s185
      %p187 = scmp.lt.s32.totalorder %s186, 63
      %s188 = scalar_select %p187, %s186, 63
      %s189 = smul.addr %s188, 4
      %s190 = scalar_lea.vmem %s0, %s189
      %p191 = pneg %p50
      %p192 = pneg %p47
      %p193 = pneg %p71
      %p194 = pneg %p68
      %p195 = pneg %p92
      %p196 = pneg %p89
      %p197 = pneg %p113
      %p198 = pneg %p110
      %p199 = pneg %p139
      %p200 = pneg %p136
      %p201 = scmp.lt.s32.totalorder %s19, 1
      %s202 = scalar_select %p201, %s19, 1
      %s203 = smul.addr %s202, 2
      %s204 = scalar_lea.vmem %s4, %s203
      %s205 = sadd.s32 %s19, %s20
      %s206 = smul.u32 32, %s205
      %p207 = scmp.lt.s32.totalorder %s206, 63
      %s208 = scalar_select %p207, %s206, 63
      %s209 = smul.addr %s208, 4
      %s210 = scalar_lea.vmem %s0, %s209
      %s211 = sadd.s32 %s19, %s20
      %s212 = smul.u32 32, %s211
      %p213 = scmp.lt.s32.totalorder %s19, 1
      %s214 = scalar_select %p213, %s19, 1
      %s215 = smul.addr %s214, 2
      %s216 = scalar_lea.vmem %s4, %s215
      %p218 = scmp.eq.s32.totalorder %s20, 0
      // Predicated region
      $region37: #{resnet_bottleneck_block.6} parent=35 // pred_check
        %p219 = pneg %p218
      $region38: #{resnet_bottleneck_block.6} parent=35 // pred_check_branch
        %221 = sbr.rel (%p219) target = $region40
      $region39: #{resnet_bottleneck_block.6} parent=35 // pred_region
        %222 = vst [vmem:[%s216] sm:$0x3] 0.0
      $region40: #{resnet_bottleneck_block.6} parent=35 // pred_fallthru
        _
      %s223 = sadd.s32 %s19, %s20
      %s224 = smul.u32 %s223, 256
      %v225 = vlaneseq
      %v226 = vshrl.u32 %v225, 7
      %v227 = vadd.s32 %v226, 8
      %v228 = vadd.s32 %v226, 16
      %v229 = vadd.s32 %v226, 24
      %v230 = vadd.s32 %v226, 32
      %v231 = vadd.s32 %v226, 40
      %v232 = vadd.s32 %v226, 48
      %v233 = vadd.s32 %v226, 56
      %v234 = vadd.s32 %v226, 64
      %v235 = vadd.s32 %v226, 72
      %v236 = vadd.s32 %v226, 80
      %v237 = vadd.s32 %v226, 88
      %v238 = vadd.s32 %v226, 96
      %v239 = vadd.s32 %v226, 104
      %v240 = vadd.s32 %v226, 112
      %v241 = vadd.s32 %v226, 120
      %v242 = vadd.s32 %v226, 128
      %v243 = vadd.s32 %v226, 136
      %v244 = vadd.s32 %v226, 144
      %v245 = vadd.s32 %v226, 152
      %v246 = vadd.s32 %v226, 160
      %v247 = vadd.s32 %v226, 168
      %v248 = vadd.s32 %v226, 176
      %v249 = vadd.s32 %v226, 184
      %v250 = vadd.s32 %v226, 192
      %v251 = vadd.s32 %v226, 200
      %v252 = vadd.s32 %v226, 208
      %v253 = vadd.s32 %v226, 216
      %v254 = vadd.s32 %v226, 224
      %v255 = vadd.s32 %v226, 232
      %v256 = vadd.s32 %v226, 240
      %v257 = vadd.s32 %v226, 248
      %v258 = vstv %s224
      %v259 = vadd.s32 %v258, %v226
      %v260 = vadd.s32 %v258, %v227
      %v261 = vadd.s32 %v258, %v228
      %v262 = vadd.s32 %v258, %v229
      %v263 = vadd.s32 %v258, %v230
      %v264 = vadd.s32 %v258, %v231
      %v265 = vadd.s32 %v258, %v232
      %v266 = vadd.s32 %v258, %v233
      %v267 = vadd.s32 %v258, %v234
      %v268 = vadd.s32 %v258, %v235
      %v269 = vadd.s32 %v258, %v236
      %v270 = vadd.s32 %v258, %v237
      %v271 = vadd.s32 %v258, %v238
      %v272 = vadd.s32 %v258, %v239
      %v273 = vadd.s32 %v258, %v240
      %v274 = vadd.s32 %v258, %v241
      %v275 = vadd.s32 %v258, %v242
      %v276 = vadd.s32 %v258, %v243
      %v277 = vadd.s32 %v258, %v244
      %v278 = vadd.s32 %v258, %v245
      %v279 = vadd.s32 %v258, %v246
      %v280 = vadd.s32 %v258, %v247
      %v281 = vadd.s32 %v258, %v248
      %v282 = vadd.s32 %v258, %v249
      %v283 = vadd.s32 %v258, %v250
      %v284 = vadd.s32 %v258, %v251
      %v285 = vadd.s32 %v258, %v252
      %v286 = vadd.s32 %v258, %v253
      %v287 = vadd.s32 %v258, %v254
      %v288 = vadd.s32 %v258, %v255
      %v289 = vadd.s32 %v258, %v256
      %v290 = vadd.s32 %v258, %v257
      %v291 = vld [vmem:[%s210] sm:$0xf]
      %v292 = vld [vmem:[%s210 + $0x4] sm:$0xf]
      %v293 = vld [vmem:[%s210 + $0x8] sm:$0xf]
      %v294 = vld [vmem:[%s210 + $0xc] sm:$0xf]
      %v295 = vld [vmem:[%s210 + $0x10] sm:$0xf]
      %v296 = vld [vmem:[%s210 + $0x14] sm:$0xf]
      %v297 = vld [vmem:[%s210 + $0x18] sm:$0xf]
      %v298 = vld [vmem:[%s210 + $0x1c] sm:$0xf]
      %v299 = vld [vmem:[%s210 + $0x20] sm:$0xf]
      %v300 = vld [vmem:[%s210 + $0x24] sm:$0xf]
      %v301 = vld [vmem:[%s210 + $0x28] sm:$0xf]
      %v302 = vld [vmem:[%s210 + $0x2c] sm:$0xf]
      %v303 = vld [vmem:[%s210 + $0x30] sm:$0xf]
      %v304 = vld [vmem:[%s210 + $0x34] sm:$0xf]
      %v305 = vld [vmem:[%s210 + $0x38] sm:$0xf]
      %v306 = vld [vmem:[%s210 + $0x3c] sm:$0xf]
      %v307 = vld [vmem:[%s210 + $0x40] sm:$0xf]
      %v308 = vld [vmem:[%s210 + $0x44] sm:$0xf]
      %v309 = vld [vmem:[%s210 + $0x48] sm:$0xf]
      %v310 = vld [vmem:[%s210 + $0x4c] sm:$0xf]
      %v311 = vld [vmem:[%s210 + $0x50] sm:$0xf]
      %v312 = vld [vmem:[%s210 + $0x54] sm:$0xf]
      %v313 = vld [vmem:[%s210 + $0x58] sm:$0xf]
      %v314 = vld [vmem:[%s210 + $0x5c] sm:$0xf]
      %v315 = vld [vmem:[%s210 + $0x60] sm:$0xf]
      %v316 = vld [vmem:[%s210 + $0x64] sm:$0xf]
      %v317 = vld [vmem:[%s210 + $0x68] sm:$0xf]
      %v318 = vld [vmem:[%s210 + $0x6c] sm:$0xf]
      %v319 = vld [vmem:[%s210 + $0x70] sm:$0xf]
      %v320 = vld [vmem:[%s210 + $0x74] sm:$0xf]
      %v321 = vld [vmem:[%s210 + $0x78] sm:$0xf]
      %v322 = vld [vmem:[%s210 + $0x7c] sm:$0xf]
      %v323 = vunpack.c.l.bf16 %v291
      %v324 = vunpack.c.l.bf16 %v292
      %v325 = vunpack.c.l.bf16 %v293
      %v326 = vunpack.c.l.bf16 %v294
      %v327 = vunpack.c.l.bf16 %v295
      %v328 = vunpack.c.l.bf16 %v296
      %v329 = vunpack.c.l.bf16 %v297
      %v330 = vunpack.c.l.bf16 %v298
      %v331 = vunpack.c.l.bf16 %v299
      %v332 = vunpack.c.l.bf16 %v300
      %v333 = vunpack.c.l.bf16 %v301
      %v334 = vunpack.c.l.bf16 %v302
      %v335 = vunpack.c.l.bf16 %v303
      %v336 = vunpack.c.l.bf16 %v304
      %v337 = vunpack.c.l.bf16 %v305
      %v338 = vunpack.c.l.bf16 %v306
      %v339 = vunpack.c.l.bf16 %v307
      %v340 = vunpack.c.l.bf16 %v308
      %v341 = vunpack.c.l.bf16 %v309
      %v342 = vunpack.c.l.bf16 %v310
      %v343 = vunpack.c.l.bf16 %v311
      %v344 = vunpack.c.l.bf16 %v312
      %v345 = vunpack.c.l.bf16 %v313
      %v346 = vunpack.c.l.bf16 %v314
      %v347 = vunpack.c.l.bf16 %v315
      %v348 = vunpack.c.l.bf16 %v316
      %v349 = vunpack.c.l.bf16 %v317
      %v350 = vunpack.c.l.bf16 %v318
      %v351 = vunpack.c.l.bf16 %v319
      %v352 = vunpack.c.l.bf16 %v320
      %v353 = vunpack.c.l.bf16 %v321
      %v354 = vunpack.c.l.bf16 %v322
      %v355 = vld [vmem:[%s1] sm:$0x1]
      %v357 = vlaneseq
      %v358 = vshrl.u32 %v357, 7
      %v359 = vsub.s32 0, %v358
      %v360 = vrot.slane %v355, %v359
      %v362 = vmul.f32 %v323, %v360
      %v363 = vmul.f32 %v324, %v360
      %v364 = vmul.f32 %v325, %v360
      %v365 = vmul.f32 %v326, %v360
      %v366 = vmul.f32 %v327, %v360
      %v367 = vmul.f32 %v328, %v360
      %v368 = vmul.f32 %v329, %v360
      %v369 = vmul.f32 %v330, %v360
      %v370 = vmul.f32 %v331, %v360
      %v371 = vmul.f32 %v332, %v360
      %v372 = vmul.f32 %v333, %v360
      %v373 = vmul.f32 %v334, %v360
      %v374 = vmul.f32 %v335, %v360
      %v375 = vmul.f32 %v336, %v360
      %v376 = vmul.f32 %v337, %v360
      %v377 = vmul.f32 %v338, %v360
      %v378 = vmul.f32 %v339, %v360
      %v379 = vmul.f32 %v340, %v360
      %v380 = vmul.f32 %v341, %v360
      %v381 = vmul.f32 %v342, %v360
      %v382 = vmul.f32 %v343, %v360
      %v383 = vmul.f32 %v344, %v360
      %v384 = vmul.f32 %v345, %v360
      %v385 = vmul.f32 %v346, %v360
      %v386 = vmul.f32 %v347, %v360
      %v387 = vmul.f32 %v348, %v360
      %v388 = vmul.f32 %v349, %v360
      %v389 = vmul.f32 %v350, %v360
      %v390 = vmul.f32 %v351, %v360
      %v391 = vmul.f32 %v352, %v360
      %v392 = vmul.f32 %v353, %v360
      %v393 = vmul.f32 %v354, %v360
      %v394 = vld [vmem:[%s2] sm:$0x1]
      %v396 = vlaneseq
      %v397 = vshrl.u32 %v396, 7
      %v398 = vsub.s32 0, %v397
      %v399 = vrot.slane %v394, %v398
      %v401 = vadd.f32 %v362, %v399
      %v402 = vadd.f32 %v363, %v399
      %v403 = vadd.f32 %v364, %v399
      %v404 = vadd.f32 %v365, %v399
      %v405 = vadd.f32 %v366, %v399
      %v406 = vadd.f32 %v367, %v399
      %v407 = vadd.f32 %v368, %v399
      %v408 = vadd.f32 %v369, %v399
      %v409 = vadd.f32 %v370, %v399
      %v410 = vadd.f32 %v371, %v399
      %v411 = vadd.f32 %v372, %v399
      %v412 = vadd.f32 %v373, %v399
      %v413 = vadd.f32 %v374, %v399
      %v414 = vadd.f32 %v375, %v399
      %v415 = vadd.f32 %v376, %v399
      %v416 = vadd.f32 %v377, %v399
      %v417 = vadd.f32 %v378, %v399
      %v418 = vadd.f32 %v379, %v399
      %v419 = vadd.f32 %v380, %v399
      %v420 = vadd.f32 %v381, %v399
      %v421 = vadd.f32 %v382, %v399
      %v422 = vadd.f32 %v383, %v399
      %v423 = vadd.f32 %v384, %v399
      %v424 = vadd.f32 %v385, %v399
      %v425 = vadd.f32 %v386, %v399
      %v426 = vadd.f32 %v387, %v399
      %v427 = vadd.f32 %v388, %v399
      %v428 = vadd.f32 %v389, %v399
      %v429 = vadd.f32 %v390, %v399
      %v430 = vadd.f32 %v391, %v399
      %v431 = vadd.f32 %v392, %v399
      %v432 = vadd.f32 %v393, %v399
      %v433 = vmax.f32 %v401, 0.0
      %v434 = vmax.f32 %v402, 0.0
      %v435 = vmax.f32 %v403, 0.0
      %v436 = vmax.f32 %v404, 0.0
      %v437 = vmax.f32 %v405, 0.0
      %v438 = vmax.f32 %v406, 0.0
      %v439 = vmax.f32 %v407, 0.0
      %v440 = vmax.f32 %v408, 0.0
      %v441 = vmax.f32 %v409, 0.0
      %v442 = vmax.f32 %v410, 0.0
      %v443 = vmax.f32 %v411, 0.0
      %v444 = vmax.f32 %v412, 0.0
      %v445 = vmax.f32 %v413, 0.0
      %v446 = vmax.f32 %v414, 0.0
      %v447 = vmax.f32 %v415, 0.0
      %v448 = vmax.f32 %v416, 0.0
      %v449 = vmax.f32 %v417, 0.0
      %v450 = vmax.f32 %v418, 0.0
      %v451 = vmax.f32 %v419, 0.0
      %v452 = vmax.f32 %v420, 0.0
      %v453 = vmax.f32 %v421, 0.0
      %v454 = vmax.f32 %v422, 0.0
      %v455 = vmax.f32 %v423, 0.0
      %v456 = vmax.f32 %v424, 0.0
      %v457 = vmax.f32 %v425, 0.0
      %v458 = vmax.f32 %v426, 0.0
      %v459 = vmax.f32 %v427, 0.0
      %v460 = vmax.f32 %v428, 0.0
      %v461 = vmax.f32 %v429, 0.0
      %v462 = vmax.f32 %v430, 0.0
      %v463 = vmax.f32 %v431, 0.0
      %v464 = vmax.f32 %v432, 0.0
      %vm465 = vcmp.lt.s32.totalorder %v259, 512
      %vm466 = vcmp.lt.s32.totalorder %v260, 512
      %vm467 = vcmp.lt.s32.totalorder %v261, 512
      %vm468 = vcmp.lt.s32.totalorder %v262, 512
      %vm469 = vcmp.lt.s32.totalorder %v263, 512
      %vm470 = vcmp.lt.s32.totalorder %v264, 512
      %vm471 = vcmp.lt.s32.totalorder %v265, 512
      %vm472 = vcmp.lt.s32.totalorder %v266, 512
      %vm473 = vcmp.lt.s32.totalorder %v267, 512
      %vm474 = vcmp.lt.s32.totalorder %v268, 512
      %vm475 = vcmp.lt.s32.totalorder %v269, 512
      %vm476 = vcmp.lt.s32.totalorder %v270, 512
      %vm477 = vcmp.lt.s32.totalorder %v271, 512
      %vm478 = vcmp.lt.s32.totalorder %v272, 512
      %vm479 = vcmp.lt.s32.totalorder %v273, 512
      %vm480 = vcmp.lt.s32.totalorder %v274, 512
      %vm481 = vcmp.lt.s32.totalorder %v275, 512
      %vm482 = vcmp.lt.s32.totalorder %v276, 512
      %vm483 = vcmp.lt.s32.totalorder %v277, 512
      %vm484 = vcmp.lt.s32.totalorder %v278, 512
      %vm485 = vcmp.lt.s32.totalorder %v279, 512
      %vm486 = vcmp.lt.s32.totalorder %v280, 512
      %vm487 = vcmp.lt.s32.totalorder %v281, 512
      %vm488 = vcmp.lt.s32.totalorder %v282, 512
      %vm489 = vcmp.lt.s32.totalorder %v283, 512
      %vm490 = vcmp.lt.s32.totalorder %v284, 512
      %vm491 = vcmp.lt.s32.totalorder %v285, 512
      %vm492 = vcmp.lt.s32.totalorder %v286, 512
      %vm493 = vcmp.lt.s32.totalorder %v287, 512
      %vm494 = vcmp.lt.s32.totalorder %v288, 512
      %vm495 = vcmp.lt.s32.totalorder %v289, 512
      %vm496 = vcmp.lt.s32.totalorder %v290, 512
      %v497 = vsel %vm465, 1, 0
      %v498 = vsel %vm466, 1, 0
      %v499 = vsel %vm467, 1, 0
      %v500 = vsel %vm468, 1, 0
      %v501 = vsel %vm469, 1, 0
      %v502 = vsel %vm470, 1, 0
      %v503 = vsel %vm471, 1, 0
      %v504 = vsel %vm472, 1, 0
      %v505 = vsel %vm473, 1, 0
      %v506 = vsel %vm474, 1, 0
      %v507 = vsel %vm475, 1, 0
      %v508 = vsel %vm476, 1, 0
      %v509 = vsel %vm477, 1, 0
      %v510 = vsel %vm478, 1, 0
      %v511 = vsel %vm479, 1, 0
      %v512 = vsel %vm480, 1, 0
      %v513 = vsel %vm481, 1, 0
      %v514 = vsel %vm482, 1, 0
      %v515 = vsel %vm483, 1, 0
      %v516 = vsel %vm484, 1, 0
      %v517 = vsel %vm485, 1, 0
      %v518 = vsel %vm486, 1, 0
      %v519 = vsel %vm487, 1, 0
      %v520 = vsel %vm488, 1, 0
      %v521 = vsel %vm489, 1, 0
      %v522 = vsel %vm490, 1, 0
      %v523 = vsel %vm491, 1, 0
      %v524 = vsel %vm492, 1, 0
      %v525 = vsel %vm493, 1, 0
      %v526 = vsel %vm494, 1, 0
      %v527 = vsel %vm495, 1, 0
      %v528 = vsel %vm496, 1, 0
      %vm529 = vcmp.eq.s32.totalorder %v497, 1
      %vm530 = vcmp.eq.s32.totalorder %v498, 1
      %vm531 = vcmp.eq.s32.totalorder %v499, 1
      %vm532 = vcmp.eq.s32.totalorder %v500, 1
      %vm533 = vcmp.eq.s32.totalorder %v501, 1
      %vm534 = vcmp.eq.s32.totalorder %v502, 1
      %vm535 = vcmp.eq.s32.totalorder %v503, 1
      %vm536 = vcmp.eq.s32.totalorder %v504, 1
      %vm537 = vcmp.eq.s32.totalorder %v505, 1
      %vm538 = vcmp.eq.s32.totalorder %v506, 1
      %vm539 = vcmp.eq.s32.totalorder %v507, 1
      %vm540 = vcmp.eq.s32.totalorder %v508, 1
      %vm541 = vcmp.eq.s32.totalorder %v509, 1
      %vm542 = vcmp.eq.s32.totalorder %v510, 1
      %vm543 = vcmp.eq.s32.totalorder %v511, 1
      %vm544 = vcmp.eq.s32.totalorder %v512, 1
      %vm545 = vcmp.eq.s32.totalorder %v513, 1
      %vm546 = vcmp.eq.s32.totalorder %v514, 1
      %vm547 = vcmp.eq.s32.totalorder %v515, 1
      %vm548 = vcmp.eq.s32.totalorder %v516, 1
      %vm549 = vcmp.eq.s32.totalorder %v517, 1
      %vm550 = vcmp.eq.s32.totalorder %v518, 1
      %vm551 = vcmp.eq.s32.totalorder %v519, 1
      %vm552 = vcmp.eq.s32.totalorder %v520, 1
      %vm553 = vcmp.eq.s32.totalorder %v521, 1
      %vm554 = vcmp.eq.s32.totalorder %v522, 1
      %vm555 = vcmp.eq.s32.totalorder %v523, 1
      %vm556 = vcmp.eq.s32.totalorder %v524, 1
      %vm557 = vcmp.eq.s32.totalorder %v525, 1
      %vm558 = vcmp.eq.s32.totalorder %v526, 1
      %vm559 = vcmp.eq.s32.totalorder %v527, 1
      %vm560 = vcmp.eq.s32.totalorder %v528, 1
      %v561 = vsel %vm529, %v433, 0.0
      %v562 = vsel %vm530, %v434, 0.0
      %v563 = vsel %vm531, %v435, 0.0
      %v564 = vsel %vm532, %v436, 0.0
      %v565 = vsel %vm533, %v437, 0.0
      %v566 = vsel %vm534, %v438, 0.0
      %v567 = vsel %vm535, %v439, 0.0
      %v568 = vsel %vm536, %v440, 0.0
      %v569 = vsel %vm537, %v441, 0.0
      %v570 = vsel %vm538, %v442, 0.0
      %v571 = vsel %vm539, %v443, 0.0
      %v572 = vsel %vm540, %v444, 0.0
      %v573 = vsel %vm541, %v445, 0.0
      %v574 = vsel %vm542, %v446, 0.0
      %v575 = vsel %vm543, %v447, 0.0
      %v576 = vsel %vm544, %v448, 0.0
      %v577 = vsel %vm545, %v449, 0.0
      %v578 = vsel %vm546, %v450, 0.0
      %v579 = vsel %vm547, %v451, 0.0
      %v580 = vsel %vm548, %v452, 0.0
      %v581 = vsel %vm549, %v453, 0.0
      %v582 = vsel %vm550, %v454, 0.0
      %v583 = vsel %vm551, %v455, 0.0
      %v584 = vsel %vm552, %v456, 0.0
      %v585 = vsel %vm553, %v457, 0.0
      %v586 = vsel %vm554, %v458, 0.0
      %v587 = vsel %vm555, %v459, 0.0
      %v588 = vsel %vm556, %v460, 0.0
      %v589 = vsel %vm557, %v461, 0.0
      %v590 = vsel %vm558, %v462, 0.0
      %v591 = vsel %vm559, %v463, 0.0
      %v592 = vsel %vm560, %v464, 0.0
      %v593 = vpack.c.bf16 %v562, %v561
      %v594 = vpack.c.bf16 %v564, %v563
      %v595 = vpack.c.bf16 %v566, %v565
      %v596 = vpack.c.bf16 %v568, %v567
      %v597 = vpack.c.bf16 %v570, %v569
      %v598 = vpack.c.bf16 %v572, %v571
      %v599 = vpack.c.bf16 %v574, %v573
      %v600 = vpack.c.bf16 %v576, %v575
      %v601 = vpack.c.bf16 %v578, %v577
      %v602 = vpack.c.bf16 %v580, %v579
      %v603 = vpack.c.bf16 %v582, %v581
      %v604 = vpack.c.bf16 %v584, %v583
      %v605 = vpack.c.bf16 %v586, %v585
      %v606 = vpack.c.bf16 %v588, %v587
      %v607 = vpack.c.bf16 %v590, %v589
      %v608 = vpack.c.bf16 %v592, %v591
      %v609 = vld [vmem:[%s3] sm:$0xf]
      %v610 = vld [vmem:[%s3 + $0x4] sm:$0xf]
      %v611 = vld [vmem:[%s3 + $0x8] sm:$0xf]
      %v612 = vld [vmem:[%s3 + $0xc] sm:$0xf]
      %v613 = vld [vmem:[%s3 + $0x10] sm:$0xf]
      %v614 = vld [vmem:[%s3 + $0x14] sm:$0xf]
      %v615 = vld [vmem:[%s3 + $0x18] sm:$0xf]
      %v616 = vld [vmem:[%s3 + $0x1c] sm:$0xf]
      %v617 = vld [vmem:[%s3 + $0x20] sm:$0xf]
      %v618 = vld [vmem:[%s3 + $0x24] sm:$0xf]
      %v619 = vld [vmem:[%s3 + $0x28] sm:$0xf]
      %v620 = vld [vmem:[%s3 + $0x2c] sm:$0xf]
      %v621 = vld [vmem:[%s3 + $0x30] sm:$0xf]
      %v622 = vld [vmem:[%s3 + $0x34] sm:$0xf]
      %v623 = vld [vmem:[%s3 + $0x38] sm:$0xf]
      %v624 = vld [vmem:[%s3 + $0x3c] sm:$0xf]
      %v641 = vunpack.c.l.b16 %v609
      %v642 = vunpack.c.l.b16 %v610
      %v643 = vunpack.c.l.b16 %v611
      %v644 = vunpack.c.l.b16 %v612
      %v645 = vunpack.c.l.b16 %v613
      %v646 = vunpack.c.l.b16 %v614
      %v647 = vunpack.c.l.b16 %v615
      %v648 = vunpack.c.l.b16 %v616
      %v649 = vunpack.c.l.b16 %v617
      %v650 = vunpack.c.l.b16 %v618
      %v651 = vunpack.c.l.b16 %v619
      %v652 = vunpack.c.l.b16 %v620
      %v653 = vunpack.c.l.b16 %v621
      %v654 = vunpack.c.l.b16 %v622
      %v655 = vunpack.c.l.b16 %v623
      %v656 = vunpack.c.l.b16 %v624
      %v657 = vpack.c.b16 %v642, %v641
      %v658 = vpack.c.b16 %v644, %v643
      %v659 = vpack.c.b16 %v646, %v645
      %v660 = vpack.c.b16 %v648, %v647
      %v661 = vpack.c.b16 %v650, %v649
      %v662 = vpack.c.b16 %v652, %v651
      %v663 = vpack.c.b16 %v654, %v653
      %v664 = vpack.c.b16 %v656, %v655
      %673 = vmatprep.subr.bf16.mxu0 0
      %674 = vmatpush1.bf16.msra.mxu0 %v657
      %675 = vmatprep.subr.bf16.mxu0 0
      %676 = vmatpush1.bf16.msra.mxu0 %v658
      %677 = vmatprep.subr.bf16.mxu0 0
      %678 = vmatpush1.bf16.msra.mxu0 %v659
      %679 = vmatprep.subr.bf16.mxu0 0
      %680 = vmatpush1.bf16.msra.mxu0 %v660
      %681 = vmatprep.subr.bf16.mxu0 0
      %682 = vmatpush1.bf16.msra.mxu0 %v661
      %683 = vmatprep.subr.bf16.mxu0 0
      %684 = vmatpush1.bf16.msra.mxu0 %v662
      %685 = vmatprep.subr.bf16.mxu0 0
      %686 = vmatpush1.bf16.msra.mxu0 %v663
      %687 = vmatprep.subr.bf16.mxu0 0
      %688 = vmatpush1.bf16.msra.mxu0 %v664
      %689 = vmatprep.subr.bf16.mxu0 0
      %690 = vmatpush1.bf16.msra.mxu0 0
      %691 = vmatprep.subr.bf16.mxu0 0
      %692 = vmatpush1.bf16.msra.mxu0 0
      %693 = vmatprep.subr.bf16.mxu0 0
      %694 = vmatpush1.bf16.msra.mxu0 0
      %695 = vmatprep.subr.bf16.mxu0 0
      %696 = vmatpush1.bf16.msra.mxu0 0
      %697 = vmatprep.subr.bf16.mxu0 0
      %698 = vmatpush1.bf16.msra.mxu0 0
      %699 = vmatprep.subr.bf16.mxu0 0
      %700 = vmatpush1.bf16.msra.mxu0 0
      %701 = vmatprep.subr.bf16.mxu0 0
      %702 = vmatpush1.bf16.msra.mxu0 0
      %703 = vmatprep.subr.bf16.mxu0 0
      %704 = vmatpush1.bf16.msra.mxu0 0
      %705 = vmatprep.mubr.bf16.mxu0 0
      %706 = vmatmul.mubr.bf16.gmra.mrb[0].mxu0 %v593
      %v707 = vpop.f32.mrb[0].mxu0
      %v708 = vadd.f32 0.0, %v707
      %v709 = vpop.f32.mrb[0].mxu0
      %v710 = vpop.f32.mrb[0].mxu0
      %v711 = vadd.f32 0.0, %v710
      %v712 = vpop.f32.mrb[0].mxu0
      %713 = vmatprep.mubr.bf16.mxu0 0
      %714 = vmatmul.mubr.bf16.gmra.mrb[0].mxu0 %v594
      %v715 = vpop.f32.mrb[0].mxu0
      %v716 = vadd.f32 0.0, %v715
      %v717 = vpop.f32.mrb[0].mxu0
      %v718 = vpop.f32.mrb[0].mxu0
      %v719 = vadd.f32 0.0, %v718
      %v720 = vpop.f32.mrb[0].mxu0
      %721 = vmatprep.mubr.bf16.mxu0 0
      %722 = vmatmul.mubr.bf16.gmra.mrb[0].mxu0 %v595
      %v723 = vpop.f32.mrb[0].mxu0
      %v724 = vadd.f32 0.0, %v723
      %v725 = vpop.f32.mrb[0].mxu0
      %v726 = vpop.f32.mrb[0].mxu0
      %v727 = vadd.f32 0.0, %v726
      %v728 = vpop.f32.mrb[0].mxu0
      %729 = vmatprep.mubr.bf16.mxu0 0
      %730 = vmatmul.mubr.bf16.gmra.mrb[0].mxu0 %v596
      %v731 = vpop.f32.mrb[0].mxu0
      %v732 = vadd.f32 0.0, %v731
      %v733 = vpop.f32.mrb[0].mxu0
      %v734 = vpop.f32.mrb[0].mxu0
      %v735 = vadd.f32 0.0, %v734
      %v736 = vpop.f32.mrb[0].mxu0
      %737 = vmatprep.mubr.bf16.mxu0 0
      %738 = vmatmul.mubr.bf16.gmra.mrb[0].mxu0 %v597
      %v739 = vpop.f32.mrb[0].mxu0
      %v740 = vadd.f32 0.0, %v739
      %v741 = vpop.f32.mrb[0].mxu0
      %v742 = vpop.f32.mrb[0].mxu0
      %v743 = vadd.f32 0.0, %v742
      %v744 = vpop.f32.mrb[0].mxu0
      %745 = vmatprep.mubr.bf16.mxu0 0
      %746 = vmatmul.mubr.bf16.gmra.mrb[0].mxu0 %v598
      %v747 = vpop.f32.mrb[0].mxu0
      %v748 = vadd.f32 0.0, %v747
      %v749 = vpop.f32.mrb[0].mxu0
      %v750 = vpop.f32.mrb[0].mxu0
      %v751 = vadd.f32 0.0, %v750
      %v752 = vpop.f32.mrb[0].mxu0
      %753 = vmatprep.mubr.bf16.mxu0 0
      %754 = vmatmul.mubr.bf16.gmra.mrb[0].mxu0 %v599
      %v755 = vpop.f32.mrb[0].mxu0
      %v756 = vadd.f32 0.0, %v755
      %v757 = vpop.f32.mrb[0].mxu0
      %v758 = vpop.f32.mrb[0].mxu0
      %v759 = vadd.f32 0.0, %v758
      %v760 = vpop.f32.mrb[0].mxu0
      %761 = vmatprep.mubr.bf16.mxu0 0
      %762 = vmatmul.mubr.bf16.gmra.mrb[0].mxu0 %v600
      %v763 = vpop.f32.mrb[0].mxu0
      %v764 = vadd.f32 0.0, %v763
      %v765 = vpop.f32.mrb[0].mxu0
      %v766 = vpop.f32.mrb[0].mxu0
      %v767 = vadd.f32 0.0, %v766
      %v768 = vpop.f32.mrb[0].mxu0
      %769 = vmatprep.mubr.bf16.mxu0 0
      %770 = vmatmul.mubr.bf16.gmra.mrb[0].mxu0 %v601
      %v771 = vpop.f32.mrb[0].mxu0
      %v772 = vadd.f32 0.0, %v771
      %v773 = vpop.f32.mrb[0].mxu0
      %v774 = vpop.f32.mrb[0].mxu0
      %v775 = vadd.f32 0.0, %v774
      %v776 = vpop.f32.mrb[0].mxu0
      %777 = vmatprep.mubr.bf16.mxu0 0
      %778 = vmatmul.mubr.bf16.gmra.mrb[0].mxu0 %v602
      %v779 = vpop.f32.mrb[0].mxu0
      %v780 = vadd.f32 0.0, %v779
      %v781 = vpop.f32.mrb[0].mxu0
      %v782 = vpop.f32.mrb[0].mxu0
      %v783 = vadd.f32 0.0, %v782
      %v784 = vpop.f32.mrb[0].mxu0
      %785 = vmatprep.mubr.bf16.mxu0 0
      %786 = vmatmul.mubr.bf16.gmra.mrb[0].mxu0 %v603
      %v787 = vpop.f32.mrb[0].mxu0
      %v788 = vadd.f32 0.0, %v787
      %v789 = vpop.f32.mrb[0].mxu0
      %v790 = vpop.f32.mrb[0].mxu0
      %v791 = vadd.f32 0.0, %v790
      %v792 = vpop.f32.mrb[0].mxu0
      %793 = vmatprep.mubr.bf16.mxu0 0
      %794 = vmatmul.mubr.bf16.gmra.mrb[0].mxu0 %v604
      %v795 = vpop.f32.mrb[0].mxu0
      %v796 = vadd.f32 0.0, %v795
      %v797 = vpop.f32.mrb[0].mxu0
      %v798 = vpop.f32.mrb[0].mxu0
      %v799 = vadd.f32 0.0, %v798
      %v800 = vpop.f32.mrb[0].mxu0
      %801 = vmatprep.mubr.bf16.mxu0 0
      %802 = vmatmul.mubr.bf16.gmra.mrb[0].mxu0 %v605
      %v803 = vpop.f32.mrb[0].mxu0
      %v804 = vadd.f32 0.0, %v803
      %v805 = vpop.f32.mrb[0].mxu0
      %v806 = vpop.f32.mrb[0].mxu0
      %v807 = vadd.f32 0.0, %v806
      %v808 = vpop.f32.mrb[0].mxu0
      %809 = vmatprep.mubr.bf16.mxu0 0
      %810 = vmatmul.mubr.bf16.gmra.mrb[0].mxu0 %v606
      %v811 = vpop.f32.mrb[0].mxu0
      %v812 = vadd.f32 0.0, %v811
      %v813 = vpop.f32.mrb[0].mxu0
      %v814 = vpop.f32.mrb[0].mxu0
      %v815 = vadd.f32 0.0, %v814
      %v816 = vpop.f32.mrb[0].mxu0
      %817 = vmatprep.mubr.bf16.mxu0 0
      %818 = vmatmul.mubr.bf16.gmra.mrb[0].mxu0 %v607
      %v819 = vpop.f32.mrb[0].mxu0
      %v820 = vadd.f32 0.0, %v819
      %v821 = vpop.f32.mrb[0].mxu0
      %v822 = vpop.f32.mrb[0].mxu0
      %v823 = vadd.f32 0.0, %v822
      %v824 = vpop.f32.mrb[0].mxu0
      %825 = vmatprep.mubr.bf16.mxu0 0
      %826 = vmatmul.mubr.bf16.gmra.mrb[0].mxu0 %v608
      %v827 = vpop.f32.mrb[0].mxu0
      %v828 = vadd.f32 0.0, %v827
      %v829 = vpop.f32.mrb[0].mxu0
      %v830 = vpop.f32.mrb[0].mxu0
      %v831 = vadd.f32 0.0, %v830
      %v832 = vpop.f32.mrb[0].mxu0
      %833 = vdwg.mxu0
      %v834 = vld [vmem:[%s216] sm:$0x3]
      %v835 = vadd.f32 %v708, %v711
      %v836 = vadd.f32 %v835, %v716
      %v837 = vadd.f32 %v836, %v719
      %v838 = vadd.f32 %v837, %v724
      %v839 = vadd.f32 %v838, %v727
      %v840 = vadd.f32 %v839, %v732
      %v841 = vadd.f32 %v840, %v735
      %v842 = vadd.f32 %v841, %v740
      %v843 = vadd.f32 %v842, %v743
      %v844 = vadd.f32 %v843, %v748
      %v845 = vadd.f32 %v844, %v751
      %v846 = vadd.f32 %v845, %v756
      %v847 = vadd.f32 %v846, %v759
      %v848 = vadd.f32 %v847, %v764
      %v849 = vadd.f32 %v848, %v767
      %v850 = vadd.f32 %v849, %v772
      %v851 = vadd.f32 %v850, %v775
      %v852 = vadd.f32 %v851, %v780
      %v853 = vadd.f32 %v852, %v783
      %v854 = vadd.f32 %v853, %v788
      %v855 = vadd.f32 %v854, %v791
      %v856 = vadd.f32 %v855, %v796
      %v857 = vadd.f32 %v856, %v799
      %v858 = vadd.f32 %v857, %v804
      %v859 = vadd.f32 %v858, %v807
      %v860 = vadd.f32 %v859, %v812
      %v861 = vadd.f32 %v860, %v815
      %v862 = vadd.f32 %v861, %v820
      %v863 = vadd.f32 %v862, %v823
      %v864 = vadd.f32 %v863, %v828
      %v865 = vadd.f32 %v864, %v831
      %v866 = vrot.slane %v865, 4
      %v867 = vadd.f32 %v865, %v866
      %v868 = vrot.slane %v867, 2
      %v869 = vadd.f32 %v867, %v868
      %v870 = vrot.slane %v869, 1
      %v871 = vadd.f32 %v869, %v870
      %v872 = vmul.f32 %v708, %v708
      %v873 = vmul.f32 %v711, %v711
      %v874 = vmul.f32 %v716, %v716
      %v875 = vmul.f32 %v719, %v719
      %v876 = vmul.f32 %v724, %v724
      %v877 = vmul.f32 %v727, %v727
      %v878 = vmul.f32 %v732, %v732
      %v879 = vmul.f32 %v735, %v735
      %v880 = vmul.f32 %v740, %v740
      %v881 = vmul.f32 %v743, %v743
      %v882 = vmul.f32 %v748, %v748
      %v883 = vmul.f32 %v751, %v751
      %v884 = vmul.f32 %v756, %v756
      %v885 = vmul.f32 %v759, %v759
      %v886 = vmul.f32 %v764, %v764
      %v887 = vmul.f32 %v767, %v767
      %v888 = vmul.f32 %v772, %v772
      %v889 = vmul.f32 %v775, %v775
      %v890 = vmul.f32 %v780, %v780
      %v891 = vmul.f32 %v783, %v783
      %v892 = vmul.f32 %v788, %v788
      %v893 = vmul.f32 %v791, %v791
      %v894 = vmul.f32 %v796, %v796
      %v895 = vmul.f32 %v799, %v799
      %v896 = vmul.f32 %v804, %v804
      %v897 = vmul.f32 %v807, %v807
      %v898 = vmul.f32 %v812, %v812
      %v899 = vmul.f32 %v815, %v815
      %v900 = vmul.f32 %v820, %v820
      %v901 = vmul.f32 %v823, %v823
      %v902 = vmul.f32 %v828, %v828
      %v903 = vmul.f32 %v831, %v831
      %v904 = vadd.f32 %v872, %v873
      %v905 = vadd.f32 %v904, %v874
      %v906 = vadd.f32 %v905, %v875
      %v907 = vadd.f32 %v906, %v876
      %v908 = vadd.f32 %v907, %v877
      %v909 = vadd.f32 %v908, %v878
      %v910 = vadd.f32 %v909, %v879
      %v911 = vadd.f32 %v910, %v880
      %v912 = vadd.f32 %v911, %v881
      %v913 = vadd.f32 %v912, %v882
      %v914 = vadd.f32 %v913, %v883
      %v915 = vadd.f32 %v914, %v884
      %v916 = vadd.f32 %v915, %v885
      %v917 = vadd.f32 %v916, %v886
      %v918 = vadd.f32 %v917, %v887
      %v919 = vadd.f32 %v918, %v888
      %v920 = vadd.f32 %v919, %v889
      %v921 = vadd.f32 %v920, %v890
      %v922 = vadd.f32 %v921, %v891
      %v923 = vadd.f32 %v922, %v892
      %v924 = vadd.f32 %v923, %v893
      %v925 = vadd.f32 %v924, %v894
      %v926 = vadd.f32 %v925, %v895
      %v927 = vadd.f32 %v926, %v896
      %v928 = vadd.f32 %v927, %v897
      %v929 = vadd.f32 %v928, %v898
      %v930 = vadd.f32 %v929, %v899
      %v931 = vadd.f32 %v930, %v900
      %v932 = vadd.f32 %v931, %v901
      %v933 = vadd.f32 %v932, %v902
      %v934 = vadd.f32 %v933, %v903
      %v935 = vrot.slane %v934, 4
      %v936 = vadd.f32 %v934, %v935
      %v937 = vrot.slane %v936, 2
      %v938 = vadd.f32 %v936, %v937
      %v939 = vrot.slane %v938, 1
      %v940 = vadd.f32 %v938, %v939
      %vm941 = vcmask 1040384
      %v942 = vsel %vm941, %v871, %v940
      %v943 = vadd.f32 %v834, %v942
      %944 = vst [vmem:[%s216] sm:$0x3] %v943
      %p945 = scmp.lt.s32.totalorder %s19, 1
      %s946 = scalar_select %p945, %s19, 1
      %s947 = smul.addr %s946, 2
      %s948 = scalar_lea.vmem %s4, %s947
      // Predicated region
      $region41: #{resnet_bottleneck_block.6} parent=35 // pred_check
        %p949 = pneg %p136
      $region42: #{resnet_bottleneck_block.6} parent=35 // pred_check_branch
        %951 = sbr.rel (%p949) target = $region44
      $region43: #{resnet_bottleneck_block.6} parent=35 // pred_region
        _
      $region44: #{resnet_bottleneck_block.6} parent=35 // pred_fallthru
        _
    $region36: #{resnet_bottleneck_block.6} parent=5 // pred_fallthru
      _
    %p952 = scmp.le.s32.totalorder 2, %s10
    // Predicated region
    $region45: #{resnet_bottleneck_block.6} parent=5 // pred_check
      %p953 = pneg %p952
    $region46: #{resnet_bottleneck_block.6} parent=5 // pred_check_branch
      %955 = sbr.rel (%p953) target = $region48
    $region47: #{resnet_bottleneck_block.6} parent=5 // pred_region
      %s956 = ssub.s32 %s10, 2
      // Predicated region
      $region49: #{resnet_bottleneck_block.6} parent=47 // pred_check
        %p957 = pneg %p142
      $region50: #{resnet_bottleneck_block.6} parent=47 // pred_check_branch
        %959 = sbr.rel (%p957) target = $region52
      $region51: #{resnet_bottleneck_block.6} parent=47 // pred_region
        %p960 = scmp.lt.s32.totalorder %s21, 1
        %s961 = scalar_select %p960, %s21, 1
        %s962 = smul.addr %s961, 2
        %s963 = scalar_lea.vmem %s4, %s962
      $region52: #{resnet_bottleneck_block.6} parent=47 // pred_fallthru
        _
    $region48: #{resnet_bottleneck_block.6} parent=5 // pred_fallthru
      _
  $region6: #{resnet_bottleneck_block.6} parent=0 // loop_footer
    %s14 = sadd.s32 1, %s10
  $region7: #{resnet_bottleneck_block.6} parent=0 // loop_footer_branch
    %9 = sbr.rel target = $region3
  $region8: #{resnet_bottleneck_block.6} parent=0 // loop_exit
    _

// kernel: resnet_bottleneck_block.5
$region0: #{resnet_bottleneck_block.5}
  #allocation0 [shape = 'u32[]', space=smem, size = 0x4, offset = 0x4, fixed_abs, tag = 'smem constant byte address 0x4 - core index']
  #allocation1 [shape = 'u32[144,128]{1,0:T(1,128)}', space=vmem, size = 0x12000, scoped, tag = 'internal scratch']
  %s0 = inlined_call_operand.vmem [shape: bf16[512,4], index: 0, kind: input, shape index: {}]
  %s1 = inlined_call_operand.vmem [shape: bf16[4,128], index: 1, kind: input, shape index: {}]
  %s2 = inlined_call_operand.vmem [shape: f32[1,128], index: 2, kind: input, shape index: {}]
  %s3 = inlined_call_operand.vmem [shape: f32[1,128], index: 3, kind: input, shape index: {}]
  %s4 = inlined_call_operand.vmem [shape: bf16[4,128], index: 4, kind: input, shape index: {}]
  %s5 = inlined_call_operand.vmem [shape: f32[1,128], index: 5, kind: input, shape index: {}]
  %s6 = inlined_call_operand.vmem [shape: f32[1,128], index: 6, kind: input, shape index: {}]
  %s7 = inlined_call_operand.vmem [shape: bf16[9,128,128], index: 7, kind: input, shape index: {}]
  %s8 = inlined_call_operand.vmem [shape: bf16[512,128], index: 8, kind: output, shape index: {0}]
  %s9 = inlined_call_operand.vmem [shape: bf16[512,128], index: 9, kind: output, shape index: {1}]
  %s10 = inlined_call_operand.vmem [shape: f32[2,2,128], index: 10, kind: output, shape index: {2}]
  %11 = xla_tuple %s8, %s9, %s10
  %s12 = sld [smem:[#allocation0]]
  $region85: #{resnet_bottleneck_block.5} parent=0
    _
  %s14 = ssub.s32 1, %s12
  %s15 = scalar_select 0, %s14, %s12
  loop: start=0, step=1, limit=4
  $region2: #{resnet_bottleneck_block.5} parent=0 // loop_pre_header
    _
  $region3: #{resnet_bottleneck_block.5} parent=0 // loop_header
    %s17 = sphi 0, %s21
    %p18 = scmp.ge.s32.totalorder %s17, 4
    %s24 = sphi 0, %s36
    %s25 = sphi 0, %s32
    %s26 = sphi 0, %s24
    %s27 = sphi 0, %s25
    %s28 = sphi 0, %s26
    %s29 = sphi 0, %s27
    %s41 = sphi 0, %s43
    %s44 = sphi 0, %s41
    %s45 = sphi 0, %s44
    %s61 = sphi 0, %s45
    %s65 = sphi 0, %s65
    %s67 = sphi 0, %s65
    %s68 = sphi 0, %s67
    %s82 = sphi 0, %s68
    %s86 = sphi 0, %s86
    %s88 = sphi 0, %s86
    %s89 = sphi 0, %s88
    %s103 = sphi 0, %s89
    %s107 = sphi 0, %s107
    %s109 = sphi 0, %s107
    %s110 = sphi 0, %s109
    %s124 = sphi 0, %s110
    %s128 = sphi 0, %s128
    %s130 = sphi 0, %s128
    %s131 = sphi 0, %s130
    %s145 = sphi 0, %s131
    %s149 = sphi 0, %s149
    %s151 = sphi 0, %s149
    %s152 = sphi 0, %s151
    %s166 = sphi 0, %s152
    %s170 = sphi 0, %s170
    %s172 = sphi 0, %s170
    %s173 = sphi 0, %s172
    %s187 = sphi 0, %s173
    %s191 = sphi 0, %s191
    %s193 = sphi 0, %s191
    %s194 = sphi 0, %s193
    %s208 = sphi 0, %s194
    %s216 = sphi 0, %s218
    %s219 = sphi 0, %s216
    %s220 = sphi 0, %s219
    %s236 = sphi 0, %s220
    %s244 = sphi 0, %s246
    %s247 = sphi 0, %s244
    %s248 = sphi 0, %s247
    %s264 = sphi 0, %s248
    %s270 = sphi 0, %s272
    %s273 = sphi 0, %s270
    %s274 = sphi 0, %s273
    %s290 = sphi 0, %s274
  $region4: #{resnet_bottleneck_block.5} parent=0 // loop_header_branch
    %20 = sbr.rel (%p18) target = $region8
  $region5: #{resnet_bottleneck_block.5} parent=0 // loop_body
    %s22 = ssub.s32 %s17, 1
    %s23 = ssub.s32 %s17, 2
    %s30 = sadd.s32 1, %s25
    %p31 = scmp.ge.s32.totalorder %s30, 1
    %s32 = scalar_select %p31, 0, %s30
    %s33 = sadd.s32 1, %s24
    %s34 = scalar_select %p31, %s33, %s24
    %p35 = scmp.ge.s32.totalorder %s34, 2
    %s36 = scalar_select %p35, 0, %s34
    %s37 = sadd.s32 %s24, %s25
    %s38 = sadd.s32 %s36, %s32
    %s39 = ssub.s32 %s37, %s38
    %p40 = scmp.eq.s32.totalorder %s39, 0
    %s42 = sadd.s32 %s41, 1
    %s43 = scalar_select %p40, %s41, %s42
    %p46 = pneg %p40
    %p47 = scmp.eq.s32.totalorder %s17, 1
    %p48 = por %p46, %p47
    %p49 = scmp.ne.s32.totalorder %s41, %s44
    %p50 = scmp.eq.s32.totalorder %s17, 0
    %p51 = por %p49, %p50
    %p52 = scmp.ne.s32.totalorder %s41, %s44
    %p53 = scmp.eq.s32.totalorder %s22, 1
    %p54 = por %p52, %p53
    %p55 = scmp.ne.s32.totalorder %s44, %s45
    %p56 = scmp.eq.s32.totalorder %s22, 0
    %p57 = por %p55, %p56
    %p58 = scmp.ne.s32.totalorder %s44, %s45
    %p59 = scmp.eq.s32.totalorder %s23, 1
    %p60 = por %p58, %p59
    %p62 = scmp.ne.s32.totalorder %s45, %s61
    %p63 = scmp.eq.s32.totalorder %s23, 0
    %p64 = por %p62, %p63
    %s66 = sadd.s32 %s65, 1
    %p69 = scmp.eq.s32.totalorder %s17, 1
    %p70 = scmp.ne.s32.totalorder %s65, %s67
    %p71 = scmp.eq.s32.totalorder %s17, 0
    %p72 = por %p70, %p71
    %p73 = scmp.ne.s32.totalorder %s65, %s67
    %p74 = scmp.eq.s32.totalorder %s22, 1
    %p75 = por %p73, %p74
    %p76 = scmp.ne.s32.totalorder %s67, %s68
    %p77 = scmp.eq.s32.totalorder %s22, 0
    %p78 = por %p76, %p77
    %p79 = scmp.ne.s32.totalorder %s67, %s68
    %p80 = scmp.eq.s32.totalorder %s23, 1
    %p81 = por %p79, %p80
    %p83 = scmp.ne.s32.totalorder %s68, %s82
    %p84 = scmp.eq.s32.totalorder %s23, 0
    %p85 = por %p83, %p84
    %s87 = sadd.s32 %s86, 1
    %p90 = scmp.eq.s32.totalorder %s17, 1
    %p91 = scmp.ne.s32.totalorder %s86, %s88
    %p92 = scmp.eq.s32.totalorder %s17, 0
    %p93 = por %p91, %p92
    %p94 = scmp.ne.s32.totalorder %s86, %s88
    %p95 = scmp.eq.s32.totalorder %s22, 1
    %p96 = por %p94, %p95
    %p97 = scmp.ne.s32.totalorder %s88, %s89
    %p98 = scmp.eq.s32.totalorder %s22, 0
    %p99 = por %p97, %p98
    %p100 = scmp.ne.s32.totalorder %s88, %s89
    %p101 = scmp.eq.s32.totalorder %s23, 1
    %p102 = por %p100, %p101
    %p104 = scmp.ne.s32.totalorder %s89, %s103
    %p105 = scmp.eq.s32.totalorder %s23, 0
    %p106 = por %p104, %p105
    %s108 = sadd.s32 %s107, 1
    %p111 = scmp.eq.s32.totalorder %s17, 1
    %p112 = scmp.ne.s32.totalorder %s107, %s109
    %p113 = scmp.eq.s32.totalorder %s17, 0
    %p114 = por %p112, %p113
    %p115 = scmp.ne.s32.totalorder %s107, %s109
    %p116 = scmp.eq.s32.totalorder %s22, 1
    %p117 = por %p115, %p116
    %p118 = scmp.ne.s32.totalorder %s109, %s110
    %p119 = scmp.eq.s32.totalorder %s22, 0
    %p120 = por %p118, %p119
    %p121 = scmp.ne.s32.totalorder %s109, %s110
    %p122 = scmp.eq.s32.totalorder %s23, 1
    %p123 = por %p121, %p122
    %p125 = scmp.ne.s32.totalorder %s110, %s124
    %p126 = scmp.eq.s32.totalorder %s23, 0
    %p127 = por %p125, %p126
    %s129 = sadd.s32 %s128, 1
    %p132 = scmp.eq.s32.totalorder %s17, 1
    %p133 = scmp.ne.s32.totalorder %s128, %s130
    %p134 = scmp.eq.s32.totalorder %s17, 0
    %p135 = por %p133, %p134
    %p136 = scmp.ne.s32.totalorder %s128, %s130
    %p137 = scmp.eq.s32.totalorder %s22, 1
    %p138 = por %p136, %p137
    %p139 = scmp.ne.s32.totalorder %s130, %s131
    %p140 = scmp.eq.s32.totalorder %s22, 0
    %p141 = por %p139, %p140
    %p142 = scmp.ne.s32.totalorder %s130, %s131
    %p143 = scmp.eq.s32.totalorder %s23, 1
    %p144 = por %p142, %p143
    %p146 = scmp.ne.s32.totalorder %s131, %s145
    %p147 = scmp.eq.s32.totalorder %s23, 0
    %p148 = por %p146, %p147
    %s150 = sadd.s32 %s149, 1
    %p153 = scmp.eq.s32.totalorder %s17, 1
    %p154 = scmp.ne.s32.totalorder %s149, %s151
    %p155 = scmp.eq.s32.totalorder %s17, 0
    %p156 = por %p154, %p155
    %p157 = scmp.ne.s32.totalorder %s149, %s151
    %p158 = scmp.eq.s32.totalorder %s22, 1
    %p159 = por %p157, %p158
    %p160 = scmp.ne.s32.totalorder %s151, %s152
    %p161 = scmp.eq.s32.totalorder %s22, 0
    %p162 = por %p160, %p161
    %p163 = scmp.ne.s32.totalorder %s151, %s152
    %p164 = scmp.eq.s32.totalorder %s23, 1
    %p165 = por %p163, %p164
    %p167 = scmp.ne.s32.totalorder %s152, %s166
    %p168 = scmp.eq.s32.totalorder %s23, 0
    %p169 = por %p167, %p168
    %s171 = sadd.s32 %s170, 1
    %p174 = scmp.eq.s32.totalorder %s17, 1
    %p175 = scmp.ne.s32.totalorder %s170, %s172
    %p176 = scmp.eq.s32.totalorder %s17, 0
    %p177 = por %p175, %p176
    %p178 = scmp.ne.s32.totalorder %s170, %s172
    %p179 = scmp.eq.s32.totalorder %s22, 1
    %p180 = por %p178, %p179
    %p181 = scmp.ne.s32.totalorder %s172, %s173
    %p182 = scmp.eq.s32.totalorder %s22, 0
    %p183 = por %p181, %p182
    %p184 = scmp.ne.s32.totalorder %s172, %s173
    %p185 = scmp.eq.s32.totalorder %s23, 1
    %p186 = por %p184, %p185
    %p188 = scmp.ne.s32.totalorder %s173, %s187
    %p189 = scmp.eq.s32.totalorder %s23, 0
    %p190 = por %p188, %p189
    %s192 = sadd.s32 %s191, 1
    %p195 = scmp.eq.s32.totalorder %s17, 1
    %p196 = scmp.ne.s32.totalorder %s191, %s193
    %p197 = scmp.eq.s32.totalorder %s17, 0
    %p198 = por %p196, %p197
    %p199 = scmp.ne.s32.totalorder %s191, %s193
    %p200 = scmp.eq.s32.totalorder %s22, 1
    %p201 = por %p199, %p200
    %p202 = scmp.ne.s32.totalorder %s193, %s194
    %p203 = scmp.eq.s32.totalorder %s22, 0
    %p204 = por %p202, %p203
    %p205 = scmp.ne.s32.totalorder %s193, %s194
    %p206 = scmp.eq.s32.totalorder %s23, 1
    %p207 = por %p205, %p206
    %p209 = scmp.ne.s32.totalorder %s194, %s208
    %p210 = scmp.eq.s32.totalorder %s23, 0
    %p211 = por %p209, %p210
    %s212 = sadd.s32 %s24, %s25
    %s213 = sadd.s32 %s36, %s32
    %s214 = ssub.s32 %s212, %s213
    %p215 = scmp.eq.s32.totalorder %s214, 0
    %s217 = sadd.s32 %s216, 1
    %s218 = scalar_select %p215, %s216, %s217
    %p221 = pneg %p215
    %p222 = scmp.eq.s32.totalorder %s17, 1
    %p223 = por %p221, %p222
    %p224 = scmp.ne.s32.totalorder %s216, %s219
    %p225 = scmp.eq.s32.totalorder %s17, 0
    %p226 = por %p224, %p225
    %p227 = scmp.ne.s32.totalorder %s216, %s219
    %p228 = scmp.eq.s32.totalorder %s22, 1
    %p229 = por %p227, %p228
    %p230 = scmp.ne.s32.totalorder %s219, %s220
    %p231 = scmp.eq.s32.totalorder %s22, 0
    %p232 = por %p230, %p231
    %p233 = scmp.ne.s32.totalorder %s219, %s220
    %p234 = scmp.eq.s32.totalorder %s23, 1
    %p235 = por %p233, %p234
    %p237 = scmp.ne.s32.totalorder %s220, %s236
    %p238 = scmp.eq.s32.totalorder %s23, 0
    %p239 = por %p237, %p238
    %s240 = sadd.s32 %s24, %s25
    %s241 = sadd.s32 %s36, %s32
    %s242 = ssub.s32 %s240, %s241
    %p243 = scmp.eq.s32.totalorder %s242, 0
    %s245 = sadd.s32 %s244, 1
    %s246 = scalar_select %p243, %s244, %s245
    %p249 = pneg %p243
    %p250 = scmp.eq.s32.totalorder %s17, 1
    %p251 = por %p249, %p250
    %p252 = scmp.ne.s32.totalorder %s244, %s247
    %p253 = scmp.eq.s32.totalorder %s17, 0
    %p254 = por %p252, %p253
    %p255 = scmp.ne.s32.totalorder %s244, %s247
    %p256 = scmp.eq.s32.totalorder %s22, 1
    %p257 = por %p255, %p256
    %p258 = scmp.ne.s32.totalorder %s247, %s248
    %p259 = scmp.eq.s32.totalorder %s22, 0
    %p260 = por %p258, %p259
    %p261 = scmp.ne.s32.totalorder %s247, %s248
    %p262 = scmp.eq.s32.totalorder %s23, 1
    %p263 = por %p261, %p262
    %p265 = scmp.ne.s32.totalorder %s248, %s264
    %p266 = scmp.eq.s32.totalorder %s23, 0
    %p267 = por %p265, %p266
    %s268 = ssub.s32 %s24, %s36
    %p269 = scmp.eq.s32.totalorder %s268, 0
    %s271 = sadd.s32 %s270, 1
    %s272 = scalar_select %p269, %s270, %s271
    %p275 = pneg %p269
    %p276 = scmp.eq.s32.totalorder %s17, 1
    %p277 = por %p275, %p276
    %p278 = scmp.ne.s32.totalorder %s270, %s273
    %p279 = scmp.eq.s32.totalorder %s17, 0
    %p280 = por %p278, %p279
    %p281 = scmp.ne.s32.totalorder %s270, %s273
    %p282 = scmp.eq.s32.totalorder %s22, 1
    %p283 = por %p281, %p282
    %p284 = scmp.ne.s32.totalorder %s273, %s274
    %p285 = scmp.eq.s32.totalorder %s22, 0
    %p286 = por %p284, %p285
    %p287 = scmp.ne.s32.totalorder %s273, %s274
    %p288 = scmp.eq.s32.totalorder %s23, 1
    %p289 = por %p287, %p288
    %p291 = scmp.ne.s32.totalorder %s274, %s290
    %p292 = scmp.eq.s32.totalorder %s23, 0
    %p293 = por %p291, %p292
    %p294 = scmp.le.s32.totalorder 1, %s17
    %p295 = scmp.lt.s32.totalorder %s17, 3
    %p296 = pnand %p294, %p295
    %p297 = pneg %p296
    // Predicated region
    $region9: #{resnet_bottleneck_block.5} parent=5 // pred_check
      _
    $region10: #{resnet_bottleneck_block.5} parent=5 // pred_check_branch
      %299 = sbr.rel (%p296) target = $region12
    $region11: #{resnet_bottleneck_block.5} parent=5 // pred_region
      %s300 = ssub.s32 %s17, 1
      // Predicated region
      $region13: #{resnet_bottleneck_block.5} parent=11 // pred_check
        %p301 = pneg %p78
      $region14: #{resnet_bottleneck_block.5} parent=11 // pred_check_branch
        %303 = sbr.rel (%p301) target = $region16
      $region15: #{resnet_bottleneck_block.5} parent=11 // pred_region
        _
      $region16: #{resnet_bottleneck_block.5} parent=11 // pred_fallthru
        _
      // Predicated region
      $region17: #{resnet_bottleneck_block.5} parent=11 // pred_check
        %p304 = pneg %p99
      $region18: #{resnet_bottleneck_block.5} parent=11 // pred_check_branch
        %306 = sbr.rel (%p304) target = $region20
      $region19: #{resnet_bottleneck_block.5} parent=11 // pred_region
        _
      $region20: #{resnet_bottleneck_block.5} parent=11 // pred_fallthru
        _
      // Predicated region
      $region21: #{resnet_bottleneck_block.5} parent=11 // pred_check
        %p307 = pneg %p120
      $region22: #{resnet_bottleneck_block.5} parent=11 // pred_check_branch
        %309 = sbr.rel (%p307) target = $region24
      $region23: #{resnet_bottleneck_block.5} parent=11 // pred_region
        _
      $region24: #{resnet_bottleneck_block.5} parent=11 // pred_fallthru
        _
      // Predicated region
      $region25: #{resnet_bottleneck_block.5} parent=11 // pred_check
        %p310 = pneg %p141
      $region26: #{resnet_bottleneck_block.5} parent=11 // pred_check_branch
        %312 = sbr.rel (%p310) target = $region28
      $region27: #{resnet_bottleneck_block.5} parent=11 // pred_region
        _
      $region28: #{resnet_bottleneck_block.5} parent=11 // pred_fallthru
        _
      // Predicated region
      $region29: #{resnet_bottleneck_block.5} parent=11 // pred_check
        %p313 = pneg %p162
      $region30: #{resnet_bottleneck_block.5} parent=11 // pred_check_branch
        %315 = sbr.rel (%p313) target = $region32
      $region31: #{resnet_bottleneck_block.5} parent=11 // pred_region
        _
      $region32: #{resnet_bottleneck_block.5} parent=11 // pred_fallthru
        _
      // Predicated region
      $region33: #{resnet_bottleneck_block.5} parent=11 // pred_check
        %p316 = pneg %p183
      $region34: #{resnet_bottleneck_block.5} parent=11 // pred_check_branch
        %318 = sbr.rel (%p316) target = $region36
      $region35: #{resnet_bottleneck_block.5} parent=11 // pred_region
        _
      $region36: #{resnet_bottleneck_block.5} parent=11 // pred_fallthru
        _
      // Predicated region
      $region37: #{resnet_bottleneck_block.5} parent=11 // pred_check
        %p319 = pneg %p204
      $region38: #{resnet_bottleneck_block.5} parent=11 // pred_check_branch
        %321 = sbr.rel (%p319) target = $region40
      $region39: #{resnet_bottleneck_block.5} parent=11 // pred_region
        _
      $region40: #{resnet_bottleneck_block.5} parent=11 // pred_fallthru
        _
    $region12: #{resnet_bottleneck_block.5} parent=5 // pred_fallthru
      _
    %p322 = scmp.lt.s32.totalorder %s17, 2
    // Predicated region
    $region41: #{resnet_bottleneck_block.5} parent=5 // pred_check
      %p323 = pneg %p322
    $region42: #{resnet_bottleneck_block.5} parent=5 // pred_check_branch
      %325 = sbr.rel (%p323) target = $region44
    $region43: #{resnet_bottleneck_block.5} parent=5 // pred_region
      // Predicated region
      $region45: #{resnet_bottleneck_block.5} parent=43 // pred_check
        %p326 = pneg %p51
      $region46: #{resnet_bottleneck_block.5} parent=43 // pred_check_branch
        %328 = sbr.rel (%p326) target = $region48
      $region47: #{resnet_bottleneck_block.5} parent=43 // pred_region
        %s329 = sadd.s32 %s24, %s25
        %s330 = smul.u32 32, %s329
        %p331 = scmp.lt.s32.totalorder %s330, 63
        %s332 = scalar_select %p331, %s330, 63
        %s333 = smul.addr %s332, 4
        %s334 = scalar_lea.vmem %s0, %s333
        %s335 = sadd.s32 %s24, %s25
        %s336 = smul.u32 32, %s335
      $region48: #{resnet_bottleneck_block.5} parent=43 // pred_fallthru
        _
    $region44: #{resnet_bottleneck_block.5} parent=5 // pred_fallthru
      _
    %p337 = scmp.le.s32.totalorder 1, %s17
    %p338 = scmp.lt.s32.totalorder %s17, 3
    %p339 = pnand %p337, %p338
    %p340 = pneg %p339
    // Predicated region
    $region49: #{resnet_bottleneck_block.5} parent=5 // pred_check
      _
    $region50: #{resnet_bottleneck_block.5} parent=5 // pred_check_branch
      %342 = sbr.rel (%p339) target = $region52
    $region51: #{resnet_bottleneck_block.5} parent=5 // pred_region
      %s343 = ssub.s32 %s17, 1
      %s344 = sadd.s32 %s26, %s27
      %s345 = smul.u32 32, %s344
      %p346 = scmp.lt.s32.totalorder %s345, 63
      %s347 = scalar_select %p346, %s345, 63
      %s348 = smul.addr %s347, 4
      %s349 = scalar_lea.vmem %s0, %s348
      %p350 = pneg %p57
      %p351 = pneg %p54
      %p352 = pneg %p78
      %p353 = pneg %p75
      %p354 = pneg %p99
      %p355 = pneg %p96
      %p356 = pneg %p120
      %p357 = pneg %p117
      %p358 = pneg %p141
      %p359 = pneg %p138
      %p360 = pneg %p162
      %p361 = pneg %p159
      %p362 = pneg %p183
      %p363 = pneg %p180
      %p364 = pneg %p204
      %p365 = pneg %p201
      %p366 = pneg %p232
      %p367 = pneg %p229
      %s368 = sadd.s32 %s26, %s27
      %s369 = smul.u32 32, %s368
      %p370 = scmp.lt.s32.totalorder %s369, 63
      %s371 = scalar_select %p370, %s369, 63
      %s372 = smul.addr %s371, 4
      %s373 = scalar_lea.vmem %s8, %s372
      %p374 = pneg %p260
      %p375 = pneg %p257
      %s376 = sadd.s32 %s26, %s27
      %s377 = smul.u32 32, %s376
      %p378 = scmp.lt.s32.totalorder %s377, 63
      %s379 = scalar_select %p378, %s377, 63
      %s380 = smul.addr %s379, 4
      %s381 = scalar_lea.vmem %s9, %s380
      %p382 = pneg %p286
      %p383 = pneg %p283
      %p384 = scmp.lt.s32.totalorder %s26, 1
      %s385 = scalar_select %p384, %s26, 1
      %s386 = smul.addr %s385, 2
      %s387 = scalar_lea.vmem %s10, %s386
      %s388 = sadd.s32 %s26, %s27
      %s389 = smul.u32 32, %s388
      %p390 = scmp.lt.s32.totalorder %s389, 63
      %s391 = scalar_select %p390, %s389, 63
      %s392 = smul.addr %s391, 4
      %s393 = scalar_lea.vmem %s0, %s392
      %s394 = sadd.s32 %s26, %s27
      %s395 = smul.u32 32, %s394
      %s396 = sadd.s32 %s26, %s27
      %s397 = smul.u32 32, %s396
      %p398 = scmp.lt.s32.totalorder %s397, 63
      %s399 = scalar_select %p398, %s397, 63
      %s400 = smul.addr %s399, 4
      %s401 = scalar_lea.vmem %s8, %s400
      %s402 = sadd.s32 %s26, %s27
      %s403 = smul.u32 32, %s402
      %s404 = sadd.s32 %s26, %s27
      %s405 = smul.u32 32, %s404
      %p406 = scmp.lt.s32.totalorder %s405, 63
      %s407 = scalar_select %p406, %s405, 63
      %s408 = smul.addr %s407, 4
      %s409 = scalar_lea.vmem %s9, %s408
      %s410 = sadd.s32 %s26, %s27
      %s411 = smul.u32 32, %s410
      %p412 = scmp.lt.s32.totalorder %s26, 1
      %s413 = scalar_select %p412, %s26, 1
      %s414 = smul.addr %s413, 2
      %s415 = scalar_lea.vmem %s10, %s414
      %p417 = scmp.eq.s32.totalorder %s27, 0
      // Predicated region
      $region53: #{resnet_bottleneck_block.5} parent=51 // pred_check
        %p418 = pneg %p417
      $region54: #{resnet_bottleneck_block.5} parent=51 // pred_check_branch
        %420 = sbr.rel (%p418) target = $region56
      $region55: #{resnet_bottleneck_block.5} parent=51 // pred_region
        %421 = vst [vmem:[%s415] sm:$0x3] 0.0
      $region56: #{resnet_bottleneck_block.5} parent=51 // pred_fallthru
        _
      %v422 = vld [vmem:[%s393] sm:$0xf]
      %v423 = vld [vmem:[%s393 + $0x4] sm:$0xf]
      %v424 = vld [vmem:[%s393 + $0x8] sm:$0xf]
      %v425 = vld [vmem:[%s393 + $0xc] sm:$0xf]
      %v426 = vld [vmem:[%s393 + $0x10] sm:$0xf]
      %v427 = vld [vmem:[%s393 + $0x14] sm:$0xf]
      %v428 = vld [vmem:[%s393 + $0x18] sm:$0xf]
      %v429 = vld [vmem:[%s393 + $0x1c] sm:$0xf]
      %v430 = vld [vmem:[%s393 + $0x20] sm:$0xf]
      %v431 = vld [vmem:[%s393 + $0x24] sm:$0xf]
      %v432 = vld [vmem:[%s393 + $0x28] sm:$0xf]
      %v433 = vld [vmem:[%s393 + $0x2c] sm:$0xf]
      %v434 = vld [vmem:[%s393 + $0x30] sm:$0xf]
      %v435 = vld [vmem:[%s393 + $0x34] sm:$0xf]
      %v436 = vld [vmem:[%s393 + $0x38] sm:$0xf]
      %v437 = vld [vmem:[%s393 + $0x3c] sm:$0xf]
      %v438 = vld [vmem:[%s393 + $0x40] sm:$0xf]
      %v439 = vld [vmem:[%s393 + $0x44] sm:$0xf]
      %v440 = vld [vmem:[%s393 + $0x48] sm:$0xf]
      %v441 = vld [vmem:[%s393 + $0x4c] sm:$0xf]
      %v442 = vld [vmem:[%s393 + $0x50] sm:$0xf]
      %v443 = vld [vmem:[%s393 + $0x54] sm:$0xf]
      %v444 = vld [vmem:[%s393 + $0x58] sm:$0xf]
      %v445 = vld [vmem:[%s393 + $0x5c] sm:$0xf]
      %v446 = vld [vmem:[%s393 + $0x60] sm:$0xf]
      %v447 = vld [vmem:[%s393 + $0x64] sm:$0xf]
      %v448 = vld [vmem:[%s393 + $0x68] sm:$0xf]
      %v449 = vld [vmem:[%s393 + $0x6c] sm:$0xf]
      %v450 = vld [vmem:[%s393 + $0x70] sm:$0xf]
      %v451 = vld [vmem:[%s393 + $0x74] sm:$0xf]
      %v452 = vld [vmem:[%s393 + $0x78] sm:$0xf]
      %v453 = vld [vmem:[%s393 + $0x7c] sm:$0xf]
      %v454 = vld [vmem:[%s1] sm:$0x3]
      %v487 = vunpack.c.l.b16 %v422
      %v488 = vunpack.c.l.b16 %v423
      %v489 = vunpack.c.l.b16 %v424
      %v490 = vunpack.c.l.b16 %v425
      %v491 = vunpack.c.l.b16 %v426
      %v492 = vunpack.c.l.b16 %v427
      %v493 = vunpack.c.l.b16 %v428
      %v494 = vunpack.c.l.b16 %v429
      %v495 = vunpack.c.l.b16 %v430
      %v496 = vunpack.c.l.b16 %v431
      %v497 = vunpack.c.l.b16 %v432
      %v498 = vunpack.c.l.b16 %v433
      %v499 = vunpack.c.l.b16 %v434
      %v500 = vunpack.c.l.b16 %v435
      %v501 = vunpack.c.l.b16 %v436
      %v502 = vunpack.c.l.b16 %v437
      %v503 = vunpack.c.l.b16 %v438
      %v504 = vunpack.c.l.b16 %v439
      %v505 = vunpack.c.l.b16 %v440
      %v506 = vunpack.c.l.b16 %v441
      %v507 = vunpack.c.l.b16 %v442
      %v508 = vunpack.c.l.b16 %v443
      %v509 = vunpack.c.l.b16 %v444
      %v510 = vunpack.c.l.b16 %v445
      %v511 = vunpack.c.l.b16 %v446
      %v512 = vunpack.c.l.b16 %v447
      %v513 = vunpack.c.l.b16 %v448
      %v514 = vunpack.c.l.b16 %v449
      %v515 = vunpack.c.l.b16 %v450
      %v516 = vunpack.c.l.b16 %v451
      %v517 = vunpack.c.l.b16 %v452
      %v518 = vunpack.c.l.b16 %v453
      %v519 = vpack.c.b16 %v488, %v487
      %v520 = vpack.c.b16 %v490, %v489
      %v521 = vpack.c.b16 %v492, %v491
      %v522 = vpack.c.b16 %v494, %v493
      %v523 = vpack.c.b16 %v496, %v495
      %v524 = vpack.c.b16 %v498, %v497
      %v525 = vpack.c.b16 %v500, %v499
      %v526 = vpack.c.b16 %v502, %v501
      %v527 = vpack.c.b16 %v504, %v503
      %v528 = vpack.c.b16 %v506, %v505
      %v529 = vpack.c.b16 %v508, %v507
      %v530 = vpack.c.b16 %v510, %v509
      %v531 = vpack.c.b16 %v512, %v511
      %v532 = vpack.c.b16 %v514, %v513
      %v533 = vpack.c.b16 %v516, %v515
      %v534 = vpack.c.b16 %v518, %v517
      %vm535 = vcmask 31744
      %v537 = vsel %vm535, %v519, 0
      %v540 = vsel %vm535, %v520, 0
      %v543 = vsel %vm535, %v521, 0
      %v546 = vsel %vm535, %v522, 0
      %v549 = vsel %vm535, %v523, 0
      %v552 = vsel %vm535, %v524, 0
      %v555 = vsel %vm535, %v525, 0
      %v558 = vsel %vm535, %v526, 0
      %v561 = vsel %vm535, %v527, 0
      %v564 = vsel %vm535, %v528, 0
      %v567 = vsel %vm535, %v529, 0
      %v570 = vsel %vm535, %v530, 0
      %v573 = vsel %vm535, %v531, 0
      %v576 = vsel %vm535, %v532, 0
      %v579 = vsel %vm535, %v533, 0
      %v582 = vsel %vm535, %v534, 0
      %vm584 = vcmask 1041408
      %v586 = vsel %vm584, %v454, 0
      %588 = vmatprep.subr.bf16.mxu0 0
      %589 = vmatpush1.bf16.msra.mxu0 %v586
      %590 = vmatprep.subr.bf16.mxu0 0
      %591 = vmatpush1.bf16.msra.mxu0 0
      %592 = vmatprep.subr.bf16.mxu0 0
      %593 = vmatpush1.bf16.msra.mxu0 0
      %594 = vmatprep.subr.bf16.mxu0 0
      %595 = vmatpush1.bf16.msra.mxu0 0
      %596 = vmatprep.subr.bf16.mxu0 0
      %597 = vmatpush1.bf16.msra.mxu0 0
      %598 = vmatprep.subr.bf16.mxu0 0
      %599 = vmatpush1.bf16.msra.mxu0 0
      %600 = vmatprep.subr.bf16.mxu0 0
      %601 = vmatpush1.bf16.msra.mxu0 0
      %602 = vmatprep.subr.bf16.mxu0 0
      %603 = vmatpush1.bf16.msra.mxu0 0
      %604 = vmatprep.subr.bf16.mxu0 0
      %605 = vmatpush1.bf16.msra.mxu0 0
      %606 = vmatprep.subr.bf16.mxu0 0
      %607 = vmatpush1.bf16.msra.mxu0 0
      %608 = vmatprep.subr.bf16.mxu0 0
      %609 = vmatpush1.bf16.msra.mxu0 0
      %610 = vmatprep.subr.bf16.mxu0 0
      %611 = vmatpush1.bf16.msra.mxu0 0
      %612 = vmatprep.subr.bf16.mxu0 0
      %613 = vmatpush1.bf16.msra.mxu0 0
      %614 = vmatprep.subr.bf16.mxu0 0
      %615 = vmatpush1.bf16.msra.mxu0 0
      %616 = vmatprep.subr.bf16.mxu0 0
      %617 = vmatpush1.bf16.msra.mxu0 0
      %618 = vmatprep.subr.bf16.mxu0 0
      %619 = vmatpush1.bf16.msra.mxu0 0
      %620 = vmatprep.mubr.bf16.mxu0 0
      %621 = vmatmul.mubr.bf16.gmra.mrb[0].mxu0 %v537
      %v622 = vpop.f32.mrb[0].mxu0
      %v623 = vadd.f32 0.0, %v622
      %v624 = vpop.f32.mrb[0].mxu0
      %v625 = vpop.f32.mrb[0].mxu0
      %v626 = vadd.f32 0.0, %v625
      %v627 = vpop.f32.mrb[0].mxu0
      %628 = vmatprep.mubr.bf16.mxu0 0
      %629 = vmatmul.mubr.bf16.gmra.mrb[0].mxu0 %v540
      %v630 = vpop.f32.mrb[0].mxu0
      %v631 = vadd.f32 0.0, %v630
      %v632 = vpop.f32.mrb[0].mxu0
      %v633 = vpop.f32.mrb[0].mxu0
      %v634 = vadd.f32 0.0, %v633
      %v635 = vpop.f32.mrb[0].mxu0
      %636 = vmatprep.mubr.bf16.mxu0 0
      %637 = vmatmul.mubr.bf16.gmra.mrb[0].mxu0 %v543
      %v638 = vpop.f32.mrb[0].mxu0
      %v639 = vadd.f32 0.0, %v638
      %v640 = vpop.f32.mrb[0].mxu0
      %v641 = vpop.f32.mrb[0].mxu0
      %v642 = vadd.f32 0.0, %v641
      %v643 = vpop.f32.mrb[0].mxu0
      %644 = vmatprep.mubr.bf16.mxu0 0
      %645 = vmatmul.mubr.bf16.gmra.mrb[0].mxu0 %v546
      %v646 = vpop.f32.mrb[0].mxu0
      %v647 = vadd.f32 0.0, %v646
      %v648 = vpop.f32.mrb[0].mxu0
      %v649 = vpop.f32.mrb[0].mxu0
      %v650 = vadd.f32 0.0, %v649
      %v651 = vpop.f32.mrb[0].mxu0
      %652 = vmatprep.mubr.bf16.mxu0 0
      %653 = vmatmul.mubr.bf16.gmra.mrb[0].mxu0 %v549
      %v654 = vpop.f32.mrb[0].mxu0
      %v655 = vadd.f32 0.0, %v654
      %v656 = vpop.f32.mrb[0].mxu0
      %v657 = vpop.f32.mrb[0].mxu0
      %v658 = vadd.f32 0.0, %v657
      %v659 = vpop.f32.mrb[0].mxu0
      %660 = vmatprep.mubr.bf16.mxu0 0
      %661 = vmatmul.mubr.bf16.gmra.mrb[0].mxu0 %v552
      %v662 = vpop.f32.mrb[0].mxu0
      %v663 = vadd.f32 0.0, %v662
      %v664 = vpop.f32.mrb[0].mxu0
      %v665 = vpop.f32.mrb[0].mxu0
      %v666 = vadd.f32 0.0, %v665
      %v667 = vpop.f32.mrb[0].mxu0
      %668 = vmatprep.mubr.bf16.mxu0 0
      %669 = vmatmul.mubr.bf16.gmra.mrb[0].mxu0 %v555
      %v670 = vpop.f32.mrb[0].mxu0
      %v671 = vadd.f32 0.0, %v670
      %v672 = vpop.f32.mrb[0].mxu0
      %v673 = vpop.f32.mrb[0].mxu0
      %v674 = vadd.f32 0.0, %v673
      %v675 = vpop.f32.mrb[0].mxu0
      %676 = vmatprep.mubr.bf16.mxu0 0
      %677 = vmatmul.mubr.bf16.gmra.mrb[0].mxu0 %v558
      %v678 = vpop.f32.mrb[0].mxu0
      %v679 = vadd.f32 0.0, %v678
      %v680 = vpop.f32.mrb[0].mxu0
      %v681 = vpop.f32.mrb[0].mxu0
      %v682 = vadd.f32 0.0, %v681
      %v683 = vpop.f32.mrb[0].mxu0
      %684 = vmatprep.mubr.bf16.mxu0 0
      %685 = vmatmul.mubr.bf16.gmra.mrb[0].mxu0 %v561
      %v686 = vpop.f32.mrb[0].mxu0
      %v687 = vadd.f32 0.0, %v686
      %v688 = vpop.f32.mrb[0].mxu0
      %v689 = vpop.f32.mrb[0].mxu0
      %v690 = vadd.f32 0.0, %v689
      %v691 = vpop.f32.mrb[0].mxu0
      %692 = vmatprep.mubr.bf16.mxu0 0
      %693 = vmatmul.mubr.bf16.gmra.mrb[0].mxu0 %v564
      %v694 = vpop.f32.mrb[0].mxu0
      %v695 = vadd.f32 0.0, %v694
      %v696 = vpop.f32.mrb[0].mxu0
      %v697 = vpop.f32.mrb[0].mxu0
      %v698 = vadd.f32 0.0, %v697
      %v699 = vpop.f32.mrb[0].mxu0
      %700 = vmatprep.mubr.bf16.mxu0 0
      %701 = vmatmul.mubr.bf16.gmra.mrb[0].mxu0 %v567
      %v702 = vpop.f32.mrb[0].mxu0
      %v703 = vadd.f32 0.0, %v702
      %v704 = vpop.f32.mrb[0].mxu0
      %v705 = vpop.f32.mrb[0].mxu0
      %v706 = vadd.f32 0.0, %v705
      %v707 = vpop.f32.mrb[0].mxu0
      %708 = vmatprep.mubr.bf16.mxu0 0
      %709 = vmatmul.mubr.bf16.gmra.mrb[0].mxu0 %v570
      %v710 = vpop.f32.mrb[0].mxu0
      %v711 = vadd.f32 0.0, %v710
      %v712 = vpop.f32.mrb[0].mxu0
      %v713 = vpop.f32.mrb[0].mxu0
      %v714 = vadd.f32 0.0, %v713
      %v715 = vpop.f32.mrb[0].mxu0
      %716 = vmatprep.mubr.bf16.mxu0 0
      %717 = vmatmul.mubr.bf16.gmra.mrb[0].mxu0 %v573
      %v718 = vpop.f32.mrb[0].mxu0
      %v719 = vadd.f32 0.0, %v718
      %v720 = vpop.f32.mrb[0].mxu0
      %v721 = vpop.f32.mrb[0].mxu0
      %v722 = vadd.f32 0.0, %v721
      %v723 = vpop.f32.mrb[0].mxu0
      %724 = vmatprep.mubr.bf16.mxu0 0
      %725 = vmatmul.mubr.bf16.gmra.mrb[0].mxu0 %v576
      %v726 = vpop.f32.mrb[0].mxu0
      %v727 = vadd.f32 0.0, %v726
      %v728 = vpop.f32.mrb[0].mxu0
      %v729 = vpop.f32.mrb[0].mxu0
      %v730 = vadd.f32 0.0, %v729
      %v731 = vpop.f32.mrb[0].mxu0
      %732 = vmatprep.mubr.bf16.mxu0 0
      %733 = vmatmul.mubr.bf16.gmra.mrb[0].mxu0 %v579
      %v734 = vpop.f32.mrb[0].mxu0
      %v735 = vadd.f32 0.0, %v734
      %v736 = vpop.f32.mrb[0].mxu0
      %v737 = vpop.f32.mrb[0].mxu0
      %v738 = vadd.f32 0.0, %v737
      %v739 = vpop.f32.mrb[0].mxu0
      %740 = vmatprep.mubr.bf16.mxu0 0
      %741 = vmatmul.mubr.bf16.gmra.mrb[0].mxu0 %v582
      %v742 = vpop.f32.mrb[0].mxu0
      %v743 = vadd.f32 0.0, %v742
      %v744 = vpop.f32.mrb[0].mxu0
      %v745 = vpop.f32.mrb[0].mxu0
      %v746 = vadd.f32 0.0, %v745
      %v747 = vpop.f32.mrb[0].mxu0
      %748 = vdwg.mxu0
      %v749 = vld [vmem:[%s2] sm:$0x1]
      %v751 = vlaneseq
      %v752 = vshrl.u32 %v751, 7
      %v753 = vsub.s32 0, %v752
      %v754 = vrot.slane %v749, %v753
      %v756 = vmul.f32 %v623, %v754
      %v757 = vmul.f32 %v626, %v754
      %v758 = vmul.f32 %v631, %v754
      %v759 = vmul.f32 %v634, %v754
      %v760 = vmul.f32 %v639, %v754
      %v761 = vmul.f32 %v642, %v754
      %v762 = vmul.f32 %v647, %v754
      %v763 = vmul.f32 %v650, %v754
      %v764 = vmul.f32 %v655, %v754
      %v765 = vmul.f32 %v658, %v754
      %v766 = vmul.f32 %v663, %v754
      %v767 = vmul.f32 %v666, %v754
      %v768 = vmul.f32 %v671, %v754
      %v769 = vmul.f32 %v674, %v754
      %v770 = vmul.f32 %v679, %v754
      %v771 = vmul.f32 %v682, %v754
      %v772 = vmul.f32 %v687, %v754
      %v773 = vmul.f32 %v690, %v754
      %v774 = vmul.f32 %v695, %v754
      %v775 = vmul.f32 %v698, %v754
      %v776 = vmul.f32 %v703, %v754
      %v777 = vmul.f32 %v706, %v754
      %v778 = vmul.f32 %v711, %v754
      %v779 = vmul.f32 %v714, %v754
      %v780 = vmul.f32 %v719, %v754
      %v781 = vmul.f32 %v722, %v754
      %v782 = vmul.f32 %v727, %v754
      %v783 = vmul.f32 %v730, %v754
      %v784 = vmul.f32 %v735, %v754
      %v785 = vmul.f32 %v738, %v754
      %v786 = vmul.f32 %v743, %v754
      %v787 = vmul.f32 %v746, %v754
      %v788 = vld [vmem:[%s3] sm:$0x1]
      %v790 = vlaneseq
      %v791 = vshrl.u32 %v790, 7
      %v792 = vsub.s32 0, %v791
      %v793 = vrot.slane %v788, %v792
      %v795 = vadd.f32 %v756, %v793
      %v796 = vadd.f32 %v757, %v793
      %v797 = vadd.f32 %v758, %v793
      %v798 = vadd.f32 %v759, %v793
      %v799 = vadd.f32 %v760, %v793
      %v800 = vadd.f32 %v761, %v793
      %v801 = vadd.f32 %v762, %v793
      %v802 = vadd.f32 %v763, %v793
      %v803 = vadd.f32 %v764, %v793
      %v804 = vadd.f32 %v765, %v793
      %v805 = vadd.f32 %v766, %v793
      %v806 = vadd.f32 %v767, %v793
      %v807 = vadd.f32 %v768, %v793
      %v808 = vadd.f32 %v769, %v793
      %v809 = vadd.f32 %v770, %v793
      %v810 = vadd.f32 %v771, %v793
      %v811 = vadd.f32 %v772, %v793
      %v812 = vadd.f32 %v773, %v793
      %v813 = vadd.f32 %v774, %v793
      %v814 = vadd.f32 %v775, %v793
      %v815 = vadd.f32 %v776, %v793
      %v816 = vadd.f32 %v777, %v793
      %v817 = vadd.f32 %v778, %v793
      %v818 = vadd.f32 %v779, %v793
      %v819 = vadd.f32 %v780, %v793
      %v820 = vadd.f32 %v781, %v793
      %v821 = vadd.f32 %v782, %v793
      %v822 = vadd.f32 %v783, %v793
      %v823 = vadd.f32 %v784, %v793
      %v824 = vadd.f32 %v785, %v793
      %v825 = vadd.f32 %v786, %v793
      %v826 = vadd.f32 %v787, %v793
      %v827 = vmax.f32 %v795, 0.0
      %v828 = vmax.f32 %v796, 0.0
      %v829 = vmax.f32 %v797, 0.0
      %v830 = vmax.f32 %v798, 0.0
      %v831 = vmax.f32 %v799, 0.0
      %v832 = vmax.f32 %v800, 0.0
      %v833 = vmax.f32 %v801, 0.0
      %v834 = vmax.f32 %v802, 0.0
      %v835 = vmax.f32 %v803, 0.0
      %v836 = vmax.f32 %v804, 0.0
      %v837 = vmax.f32 %v805, 0.0
      %v838 = vmax.f32 %v806, 0.0
      %v839 = vmax.f32 %v807, 0.0
      %v840 = vmax.f32 %v808, 0.0
      %v841 = vmax.f32 %v809, 0.0
      %v842 = vmax.f32 %v810, 0.0
      %v843 = vmax.f32 %v811, 0.0
      %v844 = vmax.f32 %v812, 0.0
      %v845 = vmax.f32 %v813, 0.0
      %v846 = vmax.f32 %v814, 0.0
      %v847 = vmax.f32 %v815, 0.0
      %v848 = vmax.f32 %v816, 0.0
      %v849 = vmax.f32 %v817, 0.0
      %v850 = vmax.f32 %v818, 0.0
      %v851 = vmax.f32 %v819, 0.0
      %v852 = vmax.f32 %v820, 0.0
      %v853 = vmax.f32 %v821, 0.0
      %v854 = vmax.f32 %v822, 0.0
      %v855 = vmax.f32 %v823, 0.0
      %v856 = vmax.f32 %v824, 0.0
      %v857 = vmax.f32 %v825, 0.0
      %v858 = vmax.f32 %v826, 0.0
      %v859 = vld [vmem:[%s4] sm:$0x3]
      %v861 = vsel %vm584, %v859, 0
      %863 = vmatprep.subr.bf16.mxu0 0
      %864 = vmatpush1.bf16.msra.mxu0 %v861
      %865 = vmatprep.subr.bf16.mxu0 0
      %866 = vmatpush1.bf16.msra.mxu0 0
      %867 = vmatprep.subr.bf16.mxu0 0
      %868 = vmatpush1.bf16.msra.mxu0 0
      %869 = vmatprep.subr.bf16.mxu0 0
      %870 = vmatpush1.bf16.msra.mxu0 0
      %871 = vmatprep.subr.bf16.mxu0 0
      %872 = vmatpush1.bf16.msra.mxu0 0
      %873 = vmatprep.subr.bf16.mxu0 0
      %874 = vmatpush1.bf16.msra.mxu0 0
      %875 = vmatprep.subr.bf16.mxu0 0
      %876 = vmatpush1.bf16.msra.mxu0 0
      %877 = vmatprep.subr.bf16.mxu0 0
      %878 = vmatpush1.bf16.msra.mxu0 0
      %879 = vmatprep.subr.bf16.mxu0 0
      %880 = vmatpush1.bf16.msra.mxu0 0
      %881 = vmatprep.subr.bf16.mxu0 0
      %882 = vmatpush1.bf16.msra.mxu0 0
      %883 = vmatprep.subr.bf16.mxu0 0
      %884 = vmatpush1.bf16.msra.mxu0 0
      %885 = vmatprep.subr.bf16.mxu0 0
      %886 = vmatpush1.bf16.msra.mxu0 0
      %887 = vmatprep.subr.bf16.mxu0 0
      %888 = vmatpush1.bf16.msra.mxu0 0
      %889 = vmatprep.subr.bf16.mxu0 0
      %890 = vmatpush1.bf16.msra.mxu0 0
      %891 = vmatprep.subr.bf16.mxu0 0
      %892 = vmatpush1.bf16.msra.mxu0 0
      %893 = vmatprep.subr.bf16.mxu0 0
      %894 = vmatpush1.bf16.msra.mxu0 0
      %895 = vmatprep.mubr.bf16.mxu0 0
      %896 = vmatmul.mubr.bf16.gmra.mrb[0].mxu0 %v537
      %v897 = vpop.f32.mrb[0].mxu0
      %v898 = vadd.f32 0.0, %v897
      %v899 = vpop.f32.mrb[0].mxu0
      %v900 = vpop.f32.mrb[0].mxu0
      %v901 = vadd.f32 0.0, %v900
      %v902 = vpop.f32.mrb[0].mxu0
      %903 = vmatprep.mubr.bf16.mxu0 0
      %904 = vmatmul.mubr.bf16.gmra.mrb[0].mxu0 %v540
      %v905 = vpop.f32.mrb[0].mxu0
      %v906 = vadd.f32 0.0, %v905
      %v907 = vpop.f32.mrb[0].mxu0
      %v908 = vpop.f32.mrb[0].mxu0
      %v909 = vadd.f32 0.0, %v908
      %v910 = vpop.f32.mrb[0].mxu0
      %911 = vmatprep.mubr.bf16.mxu0 0
      %912 = vmatmul.mubr.bf16.gmra.mrb[0].mxu0 %v543
      %v913 = vpop.f32.mrb[0].mxu0
      %v914 = vadd.f32 0.0, %v913
      %v915 = vpop.f32.mrb[0].mxu0
      %v916 = vpop.f32.mrb[0].mxu0
      %v917 = vadd.f32 0.0, %v916
      %v918 = vpop.f32.mrb[0].mxu0
      %919 = vmatprep.mubr.bf16.mxu0 0
      %920 = vmatmul.mubr.bf16.gmra.mrb[0].mxu0 %v546
      %v921 = vpop.f32.mrb[0].mxu0
      %v922 = vadd.f32 0.0, %v921
      %v923 = vpop.f32.mrb[0].mxu0
      %v924 = vpop.f32.mrb[0].mxu0
      %v925 = vadd.f32 0.0, %v924
      %v926 = vpop.f32.mrb[0].mxu0
      %927 = vmatprep.mubr.bf16.mxu0 0
      %928 = vmatmul.mubr.bf16.gmra.mrb[0].mxu0 %v549
      %v929 = vpop.f32.mrb[0].mxu0
      %v930 = vadd.f32 0.0, %v929
      %v931 = vpop.f32.mrb[0].mxu0
      %v932 = vpop.f32.mrb[0].mxu0
      %v933 = vadd.f32 0.0, %v932
      %v934 = vpop.f32.mrb[0].mxu0
      %935 = vmatprep.mubr.bf16.mxu0 0
      %936 = vmatmul.mubr.bf16.gmra.mrb[0].mxu0 %v552
      %v937 = vpop.f32.mrb[0].mxu0
      %v938 = vadd.f32 0.0, %v937
      %v939 = vpop.f32.mrb[0].mxu0
      %v940 = vpop.f32.mrb[0].mxu0
      %v941 = vadd.f32 0.0, %v940
      %v942 = vpop.f32.mrb[0].mxu0
      %943 = vmatprep.mubr.bf16.mxu0 0
      %944 = vmatmul.mubr.bf16.gmra.mrb[0].mxu0 %v555
      %v945 = vpop.f32.mrb[0].mxu0
      %v946 = vadd.f32 0.0, %v945
      %v947 = vpop.f32.mrb[0].mxu0
      %v948 = vpop.f32.mrb[0].mxu0
      %v949 = vadd.f32 0.0, %v948
      %v950 = vpop.f32.mrb[0].mxu0
      %951 = vmatprep.mubr.bf16.mxu0 0
      %952 = vmatmul.mubr.bf16.gmra.mrb[0].mxu0 %v558
      %v953 = vpop.f32.mrb[0].mxu0
      %v954 = vadd.f32 0.0, %v953
      %v955 = vpop.f32.mrb[0].mxu0
      %v956 = vpop.f32.mrb[0].mxu0
      %v957 = vadd.f32 0.0, %v956
      %v958 = vpop.f32.mrb[0].mxu0
      %959 = vmatprep.mubr.bf16.mxu0 0
      %960 = vmatmul.mubr.bf16.gmra.mrb[0].mxu0 %v561
      %v961 = vpop.f32.mrb[0].mxu0
      %v962 = vadd.f32 0.0, %v961
      %v963 = vpop.f32.mrb[0].mxu0
      %v964 = vpop.f32.mrb[0].mxu0
      %v965 = vadd.f32 0.0, %v964
      %v966 = vpop.f32.mrb[0].mxu0
      %967 = vmatprep.mubr.bf16.mxu0 0
      %968 = vmatmul.mubr.bf16.gmra.mrb[0].mxu0 %v564
      %v969 = vpop.f32.mrb[0].mxu0
      %v970 = vadd.f32 0.0, %v969
      %v971 = vpop.f32.mrb[0].mxu0
      %v972 = vpop.f32.mrb[0].mxu0
      %v973 = vadd.f32 0.0, %v972
      %v974 = vpop.f32.mrb[0].mxu0
      %975 = vmatprep.mubr.bf16.mxu0 0
      %976 = vmatmul.mubr.bf16.gmra.mrb[0].mxu0 %v567
      %v977 = vpop.f32.mrb[0].mxu0
      %v978 = vadd.f32 0.0, %v977
      %v979 = vpop.f32.mrb[0].mxu0
      %v980 = vpop.f32.mrb[0].mxu0
      %v981 = vadd.f32 0.0, %v980
      %v982 = vpop.f32.mrb[0].mxu0
      %983 = vmatprep.mubr.bf16.mxu0 0
      %984 = vmatmul.mubr.bf16.gmra.mrb[0].mxu0 %v570
      %v985 = vpop.f32.mrb[0].mxu0
      %v986 = vadd.f32 0.0, %v985
      %v987 = vpop.f32.mrb[0].mxu0
      %v988 = vpop.f32.mrb[0].mxu0
      %v989 = vadd.f32 0.0, %v988
      %v990 = vpop.f32.mrb[0].mxu0
      %991 = vmatprep.mubr.bf16.mxu0 0
      %992 = vmatmul.mubr.bf16.gmra.mrb[0].mxu0 %v573
      %v993 = vpop.f32.mrb[0].mxu0
      %v994 = vadd.f32 0.0, %v993
      %v995 = vpop.f32.mrb[0].mxu0
      %v996 = vpop.f32.mrb[0].mxu0
      %v997 = vadd.f32 0.0, %v996
      %v998 = vpop.f32.mrb[0].mxu0
      %999 = vmatprep.mubr.bf16.mxu0 0
      %1000 = vmatmul.mubr.bf16.gmra.mrb[0].mxu0 %v576
      %v1001 = vpop.f32.mrb[0].mxu0
      %v1002 = vadd.f32 0.0, %v1001
      %v1003 = vpop.f32.mrb[0].mxu0
      %v1004 = vpop.f32.mrb[0].mxu0
      %v1005 = vadd.f32 0.0, %v1004
      %v1006 = vpop.f32.mrb[0].mxu0
      %1007 = vmatprep.mubr.bf16.mxu0 0
      %1008 = vmatmul.mubr.bf16.gmra.mrb[0].mxu0 %v579
      %v1009 = vpop.f32.mrb[0].mxu0
      %v1010 = vadd.f32 0.0, %v1009
      %v1011 = vpop.f32.mrb[0].mxu0
      %v1012 = vpop.f32.mrb[0].mxu0
      %v1013 = vadd.f32 0.0, %v1012
      %v1014 = vpop.f32.mrb[0].mxu0
      %1015 = vmatprep.mubr.bf16.mxu0 0
      %1016 = vmatmul.mubr.bf16.gmra.mrb[0].mxu0 %v582
      %v1017 = vpop.f32.mrb[0].mxu0
      %v1018 = vadd.f32 0.0, %v1017
      %v1019 = vpop.f32.mrb[0].mxu0
      %v1020 = vpop.f32.mrb[0].mxu0
      %v1021 = vadd.f32 0.0, %v1020
      %v1022 = vpop.f32.mrb[0].mxu0
      %1023 = vdwg.mxu0
      %v1024 = vld [vmem:[%s5] sm:$0x1]
      %v1026 = vlaneseq
      %v1027 = vshrl.u32 %v1026, 7
      %v1028 = vsub.s32 0, %v1027
      %v1029 = vrot.slane %v1024, %v1028
      %v1031 = vmul.f32 %v898, %v1029
      %v1032 = vmul.f32 %v901, %v1029
      %v1033 = vmul.f32 %v906, %v1029
      %v1034 = vmul.f32 %v909, %v1029
      %v1035 = vmul.f32 %v914, %v1029
      %v1036 = vmul.f32 %v917, %v1029
      %v1037 = vmul.f32 %v922, %v1029
      %v1038 = vmul.f32 %v925, %v1029
      %v1039 = vmul.f32 %v930, %v1029
      %v1040 = vmul.f32 %v933, %v1029
      %v1041 = vmul.f32 %v938, %v1029
      %v1042 = vmul.f32 %v941, %v1029
      %v1043 = vmul.f32 %v946, %v1029
      %v1044 = vmul.f32 %v949, %v1029
      %v1045 = vmul.f32 %v954, %v1029
      %v1046 = vmul.f32 %v957, %v1029
      %v1047 = vmul.f32 %v962, %v1029
      %v1048 = vmul.f32 %v965, %v1029
      %v1049 = vmul.f32 %v970, %v1029
      %v1050 = vmul.f32 %v973, %v1029
      %v1051 = vmul.f32 %v978, %v1029
      %v1052 = vmul.f32 %v981, %v1029
      %v1053 = vmul.f32 %v986, %v1029
      %v1054 = vmul.f32 %v989, %v1029
      %v1055 = vmul.f32 %v994, %v1029
      %v1056 = vmul.f32 %v997, %v1029
      %v1057 = vmul.f32 %v1002, %v1029
      %v1058 = vmul.f32 %v1005, %v1029
      %v1059 = vmul.f32 %v1010, %v1029
      %v1060 = vmul.f32 %v1013, %v1029
      %v1061 = vmul.f32 %v1018, %v1029
      %v1062 = vmul.f32 %v1021, %v1029
      %v1063 = vld [vmem:[%s6] sm:$0x1]
      %v1065 = vlaneseq
      %v1066 = vshrl.u32 %v1065, 7
      %v1067 = vsub.s32 0, %v1066
      %v1068 = vrot.slane %v1063, %v1067
      %v1070 = vadd.f32 %v1031, %v1068
      %v1071 = vadd.f32 %v1032, %v1068
      %v1072 = vadd.f32 %v1033, %v1068
      %v1073 = vadd.f32 %v1034, %v1068
      %v1074 = vadd.f32 %v1035, %v1068
      %v1075 = vadd.f32 %v1036, %v1068
      %v1076 = vadd.f32 %v1037, %v1068
      %v1077 = vadd.f32 %v1038, %v1068
      %v1078 = vadd.f32 %v1039, %v1068
      %v1079 = vadd.f32 %v1040, %v1068
      %v1080 = vadd.f32 %v1041, %v1068
      %v1081 = vadd.f32 %v1042, %v1068
      %v1082 = vadd.f32 %v1043, %v1068
      %v1083 = vadd.f32 %v1044, %v1068
      %v1084 = vadd.f32 %v1045, %v1068
      %v1085 = vadd.f32 %v1046, %v1068
      %v1086 = vadd.f32 %v1047, %v1068
      %v1087 = vadd.f32 %v1048, %v1068
      %v1088 = vadd.f32 %v1049, %v1068
      %v1089 = vadd.f32 %v1050, %v1068
      %v1090 = vadd.f32 %v1051, %v1068
      %v1091 = vadd.f32 %v1052, %v1068
      %v1092 = vadd.f32 %v1053, %v1068
      %v1093 = vadd.f32 %v1054, %v1068
      %v1094 = vadd.f32 %v1055, %v1068
      %v1095 = vadd.f32 %v1056, %v1068
      %v1096 = vadd.f32 %v1057, %v1068
      %v1097 = vadd.f32 %v1058, %v1068
      %v1098 = vadd.f32 %v1059, %v1068
      %v1099 = vadd.f32 %v1060, %v1068
      %v1100 = vadd.f32 %v1061, %v1068
      %v1101 = vadd.f32 %v1062, %v1068
      %v1102 = vmax.f32 %v1070, 0.0
      %v1103 = vmax.f32 %v1071, 0.0
      %v1104 = vmax.f32 %v1072, 0.0
      %v1105 = vmax.f32 %v1073, 0.0
      %v1106 = vmax.f32 %v1074, 0.0
      %v1107 = vmax.f32 %v1075, 0.0
      %v1108 = vmax.f32 %v1076, 0.0
      %v1109 = vmax.f32 %v1077, 0.0
      %v1110 = vmax.f32 %v1078, 0.0
      %v1111 = vmax.f32 %v1079, 0.0
      %v1112 = vmax.f32 %v1080, 0.0
      %v1113 = vmax.f32 %v1081, 0.0
      %v1114 = vmax.f32 %v1082, 0.0
      %v1115 = vmax.f32 %v1083, 0.0
      %v1116 = vmax.f32 %v1084, 0.0
      %v1117 = vmax.f32 %v1085, 0.0
      %v1118 = vmax.f32 %v1086, 0.0
      %v1119 = vmax.f32 %v1087, 0.0
      %v1120 = vmax.f32 %v1088, 0.0
      %v1121 = vmax.f32 %v1089, 0.0
      %v1122 = vmax.f32 %v1090, 0.0
      %v1123 = vmax.f32 %v1091, 0.0
      %v1124 = vmax.f32 %v1092, 0.0
      %v1125 = vmax.f32 %v1093, 0.0
      %v1126 = vmax.f32 %v1094, 0.0
      %v1127 = vmax.f32 %v1095, 0.0
      %v1128 = vmax.f32 %v1096, 0.0
      %v1129 = vmax.f32 %v1097, 0.0
      %v1130 = vmax.f32 %v1098, 0.0
      %v1131 = vmax.f32 %v1099, 0.0
      %v1132 = vmax.f32 %v1100, 0.0
      %v1133 = vmax.f32 %v1101, 0.0
      %v1134 = vpack.c.bf16 %v1103, %v1102
      %v1135 = vpack.c.bf16 %v1105, %v1104
      %v1136 = vpack.c.bf16 %v1107, %v1106
      %v1137 = vpack.c.bf16 %v1109, %v1108
      %v1138 = vpack.c.bf16 %v1111, %v1110
      %v1139 = vpack.c.bf16 %v1113, %v1112
      %v1140 = vpack.c.bf16 %v1115, %v1114
      %v1141 = vpack.c.bf16 %v1117, %v1116
      %v1142 = vpack.c.bf16 %v1119, %v1118
      %v1143 = vpack.c.bf16 %v1121, %v1120
      %v1144 = vpack.c.bf16 %v1123, %v1122
      %v1145 = vpack.c.bf16 %v1125, %v1124
      %v1146 = vpack.c.bf16 %v1127, %v1126
      %v1147 = vpack.c.bf16 %v1129, %v1128
      %v1148 = vpack.c.bf16 %v1131, %v1130
      %v1149 = vpack.c.bf16 %v1133, %v1132
      %v1166 = vunpack.c.l.b16 %v1134
      %v1167 = vunpack.c.h.b16 %v1134
      %v1168 = vunpack.c.l.b16 %v1135
      %v1169 = vunpack.c.h.b16 %v1135
      %v1170 = vunpack.c.l.b16 %v1136
      %v1171 = vunpack.c.h.b16 %v1136
      %v1172 = vunpack.c.l.b16 %v1137
      %v1173 = vunpack.c.h.b16 %v1137
      %v1174 = vunpack.c.l.b16 %v1138
      %v1175 = vunpack.c.h.b16 %v1138
      %v1176 = vunpack.c.l.b16 %v1139
      %v1177 = vunpack.c.h.b16 %v1139
      %v1178 = vunpack.c.l.b16 %v1140
      %v1179 = vunpack.c.h.b16 %v1140
      %v1180 = vunpack.c.l.b16 %v1141
      %v1181 = vunpack.c.h.b16 %v1141
      %v1182 = vunpack.c.l.b16 %v1142
      %v1183 = vunpack.c.h.b16 %v1142
      %v1184 = vunpack.c.l.b16 %v1143
      %v1185 = vunpack.c.h.b16 %v1143
      %v1186 = vunpack.c.l.b16 %v1144
      %v1187 = vunpack.c.h.b16 %v1144
      %v1188 = vunpack.c.l.b16 %v1145
      %v1189 = vunpack.c.h.b16 %v1145
      %v1190 = vunpack.c.l.b16 %v1146
      %v1191 = vunpack.c.h.b16 %v1146
      %v1192 = vunpack.c.l.b16 %v1147
      %v1193 = vunpack.c.h.b16 %v1147
      %v1194 = vunpack.c.l.b16 %v1148
      %v1195 = vunpack.c.h.b16 %v1148
      %v1196 = vunpack.c.l.b16 %v1149
      %v1197 = vunpack.c.h.b16 %v1149
      %v1198 = vpack.c.b16 %v1166, %v1166
      %v1199 = vpack.c.b16 %v1167, %v1167
      %v1200 = vpack.c.b16 %v1168, %v1168
      %v1201 = vpack.c.b16 %v1169, %v1169
      %v1202 = vpack.c.b16 %v1170, %v1170
      %v1203 = vpack.c.b16 %v1171, %v1171
      %v1204 = vpack.c.b16 %v1172, %v1172
      %v1205 = vpack.c.b16 %v1173, %v1173
      %v1206 = vpack.c.b16 %v1174, %v1174
      %v1207 = vpack.c.b16 %v1175, %v1175
      %v1208 = vpack.c.b16 %v1176, %v1176
      %v1209 = vpack.c.b16 %v1177, %v1177
      %v1210 = vpack.c.b16 %v1178, %v1178
      %v1211 = vpack.c.b16 %v1179, %v1179
      %v1212 = vpack.c.b16 %v1180, %v1180
      %v1213 = vpack.c.b16 %v1181, %v1181
      %v1214 = vpack.c.b16 %v1182, %v1182
      %v1215 = vpack.c.b16 %v1183, %v1183
      %v1216 = vpack.c.b16 %v1184, %v1184
      %v1217 = vpack.c.b16 %v1185, %v1185
      %v1218 = vpack.c.b16 %v1186, %v1186
      %v1219 = vpack.c.b16 %v1187, %v1187
      %v1220 = vpack.c.b16 %v1188, %v1188
      %v1221 = vpack.c.b16 %v1189, %v1189
      %v1222 = vpack.c.b16 %v1190, %v1190
      %v1223 = vpack.c.b16 %v1191, %v1191
      %v1224 = vpack.c.b16 %v1192, %v1192
      %v1225 = vpack.c.b16 %v1193, %v1193
      %v1226 = vpack.c.b16 %v1194, %v1194
      %v1227 = vpack.c.b16 %v1195, %v1195
      %v1228 = vpack.c.b16 %v1196, %v1196
      %v1229 = vpack.c.b16 %v1197, %v1197
      %1262 = vst [vmem:[%s409] sm:$0xf] %v1198
      %1263 = vst [vmem:[%s409 + $0x4] sm:$0xf] %v1199
      %1264 = vst [vmem:[%s409 + $0x8] sm:$0xf] %v1200
      %1265 = vst [vmem:[%s409 + $0xc] sm:$0xf] %v1201
      %1266 = vst [vmem:[%s409 + $0x10] sm:$0xf] %v1202
      %1267 = vst [vmem:[%s409 + $0x14] sm:$0xf] %v1203
      %1268 = vst [vmem:[%s409 + $0x18] sm:$0xf] %v1204
      %1269 = vst [vmem:[%s409 + $0x1c] sm:$0xf] %v1205
      %1270 = vst [vmem:[%s409 + $0x20] sm:$0xf] %v1206
      %1271 = vst [vmem:[%s409 + $0x24] sm:$0xf] %v1207
      %1272 = vst [vmem:[%s409 + $0x28] sm:$0xf] %v1208
      %1273 = vst [vmem:[%s409 + $0x2c] sm:$0xf] %v1209
      %1274 = vst [vmem:[%s409 + $0x30] sm:$0xf] %v1210
      %1275 = vst [vmem:[%s409 + $0x34] sm:$0xf] %v1211
      %1276 = vst [vmem:[%s409 + $0x38] sm:$0xf] %v1212
      %1277 = vst [vmem:[%s409 + $0x3c] sm:$0xf] %v1213
      %1278 = vst [vmem:[%s409 + $0x40] sm:$0xf] %v1214
      %1279 = vst [vmem:[%s409 + $0x44] sm:$0xf] %v1215
      %1280 = vst [vmem:[%s409 + $0x48] sm:$0xf] %v1216
      %1281 = vst [vmem:[%s409 + $0x4c] sm:$0xf] %v1217
      %1282 = vst [vmem:[%s409 + $0x50] sm:$0xf] %v1218
      %1283 = vst [vmem:[%s409 + $0x54] sm:$0xf] %v1219
      %1284 = vst [vmem:[%s409 + $0x58] sm:$0xf] %v1220
      %1285 = vst [vmem:[%s409 + $0x5c] sm:$0xf] %v1221
      %1286 = vst [vmem:[%s409 + $0x60] sm:$0xf] %v1222
      %1287 = vst [vmem:[%s409 + $0x64] sm:$0xf] %v1223
      %1288 = vst [vmem:[%s409 + $0x68] sm:$0xf] %v1224
      %1289 = vst [vmem:[%s409 + $0x6c] sm:$0xf] %v1225
      %1290 = vst [vmem:[%s409 + $0x70] sm:$0xf] %v1226
      %1291 = vst [vmem:[%s409 + $0x74] sm:$0xf] %v1227
      %1292 = vst [vmem:[%s409 + $0x78] sm:$0xf] %v1228
      %1293 = vst [vmem:[%s409 + $0x7c] sm:$0xf] %v1229
      %v1294 = vlaneseq
      %v1295 = vshrl.u32 %v1294, 7
      %v1296 = vadd.s32 %v1295, 8
      %v1297 = vadd.s32 %v1295, 16
      %v1298 = vadd.s32 %v1295, 24
      %v1299 = vadd.s32 %v1295, 32
      %v1300 = vadd.s32 %v1295, 40
      %v1301 = vadd.s32 %v1295, 48
      %v1302 = vadd.s32 %v1295, 56
      %v1303 = vadd.s32 %v1295, 64
      %v1304 = vadd.s32 %v1295, 72
      %v1305 = vadd.s32 %v1295, 80
      %v1306 = vadd.s32 %v1295, 88
      %v1307 = vadd.s32 %v1295, 96
      %v1308 = vadd.s32 %v1295, 104
      %v1309 = vadd.s32 %v1295, 112
      %v1310 = vadd.s32 %v1295, 120
      %v1311 = vadd.s32 %v1295, 128
      %v1312 = vadd.s32 %v1295, 136
      %v1313 = vadd.s32 %v1295, 144
      %v1314 = vadd.s32 %v1295, 152
      %v1315 = vadd.s32 %v1295, 160
      %v1316 = vadd.s32 %v1295, 168
      %v1317 = vadd.s32 %v1295, 176
      %v1318 = vadd.s32 %v1295, 184
      %v1319 = vadd.s32 %v1295, 192
      %v1320 = vadd.s32 %v1295, 200
      %v1321 = vadd.s32 %v1295, 208
      %v1322 = vadd.s32 %v1295, 216
      %v1323 = vadd.s32 %v1295, 224
      %v1324 = vadd.s32 %v1295, 232
      %v1325 = vadd.s32 %v1295, 240
      %v1326 = vadd.s32 %v1295, 248
      %vm1327 = vcmp.lt.s32.totalorder %v1295, 0
      %v1328 = vsub.s32 0, %v1295
      %v1329 = vsel %vm1327, %v1328, %v1295
      %v1330 = vshrl.u32 %v1329, 4
      %v1331 = vand.u32 %v1329, 15
      %v1332 = vsub.s32 0, %v1331
      %v1333 = vsel %vm1327, %v1332, %v1331
      %vm1334 = vcmp.lt.s32.totalorder %v1296, 0
      %v1335 = vsub.s32 0, %v1296
      %v1336 = vsel %vm1334, %v1335, %v1296
      %v1337 = vshrl.u32 %v1336, 4
      %v1338 = vand.u32 %v1336, 15
      %v1339 = vsub.s32 0, %v1338
      %v1340 = vsel %vm1334, %v1339, %v1338
      %vm1341 = vcmp.lt.s32.totalorder %v1297, 0
      %v1342 = vsub.s32 0, %v1297
      %v1343 = vsel %vm1341, %v1342, %v1297
      %v1344 = vshrl.u32 %v1343, 4
      %v1345 = vand.u32 %v1343, 15
      %v1346 = vsub.s32 0, %v1345
      %v1347 = vsel %vm1341, %v1346, %v1345
      %vm1348 = vcmp.lt.s32.totalorder %v1298, 0
      %v1349 = vsub.s32 0, %v1298
      %v1350 = vsel %vm1348, %v1349, %v1298
      %v1351 = vshrl.u32 %v1350, 4
      %v1352 = vand.u32 %v1350, 15
      %v1353 = vsub.s32 0, %v1352
      %v1354 = vsel %vm1348, %v1353, %v1352
      %vm1355 = vcmp.lt.s32.totalorder %v1299, 0
      %v1356 = vsub.s32 0, %v1299
      %v1357 = vsel %vm1355, %v1356, %v1299
      %v1358 = vshrl.u32 %v1357, 4
      %v1359 = vand.u32 %v1357, 15
      %v1360 = vsub.s32 0, %v1359
      %v1361 = vsel %vm1355, %v1360, %v1359
      %vm1362 = vcmp.lt.s32.totalorder %v1300, 0
      %v1363 = vsub.s32 0, %v1300
      %v1364 = vsel %vm1362, %v1363, %v1300
      %v1365 = vshrl.u32 %v1364, 4
      %v1366 = vand.u32 %v1364, 15
      %v1367 = vsub.s32 0, %v1366
      %v1368 = vsel %vm1362, %v1367, %v1366
      %vm1369 = vcmp.lt.s32.totalorder %v1301, 0
      %v1370 = vsub.s32 0, %v1301
      %v1371 = vsel %vm1369, %v1370, %v1301
      %v1372 = vshrl.u32 %v1371, 4
      %v1373 = vand.u32 %v1371, 15
      %v1374 = vsub.s32 0, %v1373
      %v1375 = vsel %vm1369, %v1374, %v1373
      %vm1376 = vcmp.lt.s32.totalorder %v1302, 0
      %v1377 = vsub.s32 0, %v1302
      %v1378 = vsel %vm1376, %v1377, %v1302
      %v1379 = vshrl.u32 %v1378, 4
      %v1380 = vand.u32 %v1378, 15
      %v1381 = vsub.s32 0, %v1380
      %v1382 = vsel %vm1376, %v1381, %v1380
      %vm1383 = vcmp.lt.s32.totalorder %v1303, 0
      %v1384 = vsub.s32 0, %v1303
      %v1385 = vsel %vm1383, %v1384, %v1303
      %v1386 = vshrl.u32 %v1385, 4
      %v1387 = vand.u32 %v1385, 15
      %v1388 = vsub.s32 0, %v1387
      %v1389 = vsel %vm1383, %v1388, %v1387
      %vm1390 = vcmp.lt.s32.totalorder %v1304, 0
      %v1391 = vsub.s32 0, %v1304
      %v1392 = vsel %vm1390, %v1391, %v1304
      %v1393 = vshrl.u32 %v1392, 4
      %v1394 = vand.u32 %v1392, 15
      %v1395 = vsub.s32 0, %v1394
      %v1396 = vsel %vm1390, %v1395, %v1394
      %vm1397 = vcmp.lt.s32.totalorder %v1305, 0
      %v1398 = vsub.s32 0, %v1305
      %v1399 = vsel %vm1397, %v1398, %v1305
      %v1400 = vshrl.u32 %v1399, 4
      %v1401 = vand.u32 %v1399, 15
      %v1402 = vsub.s32 0, %v1401
      %v1403 = vsel %vm1397, %v1402, %v1401
      %vm1404 = vcmp.lt.s32.totalorder %v1306, 0
      %v1405 = vsub.s32 0, %v1306
      %v1406 = vsel %vm1404, %v1405, %v1306
      %v1407 = vshrl.u32 %v1406, 4
      %v1408 = vand.u32 %v1406, 15
      %v1409 = vsub.s32 0, %v1408
      %v1410 = vsel %vm1404, %v1409, %v1408
      %vm1411 = vcmp.lt.s32.totalorder %v1307, 0
      %v1412 = vsub.s32 0, %v1307
      %v1413 = vsel %vm1411, %v1412, %v1307
      %v1414 = vshrl.u32 %v1413, 4
      %v1415 = vand.u32 %v1413, 15
      %v1416 = vsub.s32 0, %v1415
      %v1417 = vsel %vm1411, %v1416, %v1415
      %vm1418 = vcmp.lt.s32.totalorder %v1308, 0
      %v1419 = vsub.s32 0, %v1308
      %v1420 = vsel %vm1418, %v1419, %v1308
      %v1421 = vshrl.u32 %v1420, 4
      %v1422 = vand.u32 %v1420, 15
      %v1423 = vsub.s32 0, %v1422
      %v1424 = vsel %vm1418, %v1423, %v1422
      %vm1425 = vcmp.lt.s32.totalorder %v1309, 0
      %v1426 = vsub.s32 0, %v1309
      %v1427 = vsel %vm1425, %v1426, %v1309
      %v1428 = vshrl.u32 %v1427, 4
      %v1429 = vand.u32 %v1427, 15
      %v1430 = vsub.s32 0, %v1429
      %v1431 = vsel %vm1425, %v1430, %v1429
      %vm1432 = vcmp.lt.s32.totalorder %v1310, 0
      %v1433 = vsub.s32 0, %v1310
      %v1434 = vsel %vm1432, %v1433, %v1310
      %v1435 = vshrl.u32 %v1434, 4
      %v1436 = vand.u32 %v1434, 15
      %v1437 = vsub.s32 0, %v1436
      %v1438 = vsel %vm1432, %v1437, %v1436
      %vm1439 = vcmp.lt.s32.totalorder %v1311, 0
      %v1440 = vsub.s32 0, %v1311
      %v1441 = vsel %vm1439, %v1440, %v1311
      %v1442 = vshrl.u32 %v1441, 4
      %v1443 = vand.u32 %v1441, 15
      %v1444 = vsub.s32 0, %v1443
      %v1445 = vsel %vm1439, %v1444, %v1443
      %vm1446 = vcmp.lt.s32.totalorder %v1312, 0
      %v1447 = vsub.s32 0, %v1312
      %v1448 = vsel %vm1446, %v1447, %v1312
      %v1449 = vshrl.u32 %v1448, 4
      %v1450 = vand.u32 %v1448, 15
      %v1451 = vsub.s32 0, %v1450
      %v1452 = vsel %vm1446, %v1451, %v1450
      %vm1453 = vcmp.lt.s32.totalorder %v1313, 0
      %v1454 = vsub.s32 0, %v1313
      %v1455 = vsel %vm1453, %v1454, %v1313
      %v1456 = vshrl.u32 %v1455, 4
      %v1457 = vand.u32 %v1455, 15
      %v1458 = vsub.s32 0, %v1457
      %v1459 = vsel %vm1453, %v1458, %v1457
      %vm1460 = vcmp.lt.s32.totalorder %v1314, 0
      %v1461 = vsub.s32 0, %v1314
      %v1462 = vsel %vm1460, %v1461, %v1314
      %v1463 = vshrl.u32 %v1462, 4
      %v1464 = vand.u32 %v1462, 15
      %v1465 = vsub.s32 0, %v1464
      %v1466 = vsel %vm1460, %v1465, %v1464
      %vm1467 = vcmp.lt.s32.totalorder %v1315, 0
      %v1468 = vsub.s32 0, %v1315
      %v1469 = vsel %vm1467, %v1468, %v1315
      %v1470 = vshrl.u32 %v1469, 4
      %v1471 = vand.u32 %v1469, 15
      %v1472 = vsub.s32 0, %v1471
      %v1473 = vsel %vm1467, %v1472, %v1471
      %vm1474 = vcmp.lt.s32.totalorder %v1316, 0
      %v1475 = vsub.s32 0, %v1316
      %v1476 = vsel %vm1474, %v1475, %v1316
      %v1477 = vshrl.u32 %v1476, 4
      %v1478 = vand.u32 %v1476, 15
      %v1479 = vsub.s32 0, %v1478
      %v1480 = vsel %vm1474, %v1479, %v1478
      %vm1481 = vcmp.lt.s32.totalorder %v1317, 0
      %v1482 = vsub.s32 0, %v1317
      %v1483 = vsel %vm1481, %v1482, %v1317
      %v1484 = vshrl.u32 %v1483, 4
      %v1485 = vand.u32 %v1483, 15
      %v1486 = vsub.s32 0, %v1485
      %v1487 = vsel %vm1481, %v1486, %v1485
      %vm1488 = vcmp.lt.s32.totalorder %v1318, 0
      %v1489 = vsub.s32 0, %v1318
      %v1490 = vsel %vm1488, %v1489, %v1318
      %v1491 = vshrl.u32 %v1490, 4
      %v1492 = vand.u32 %v1490, 15
      %v1493 = vsub.s32 0, %v1492
      %v1494 = vsel %vm1488, %v1493, %v1492
      %vm1495 = vcmp.lt.s32.totalorder %v1319, 0
      %v1496 = vsub.s32 0, %v1319
      %v1497 = vsel %vm1495, %v1496, %v1319
      %v1498 = vshrl.u32 %v1497, 4
      %v1499 = vand.u32 %v1497, 15
      %v1500 = vsub.s32 0, %v1499
      %v1501 = vsel %vm1495, %v1500, %v1499
      %vm1502 = vcmp.lt.s32.totalorder %v1320, 0
      %v1503 = vsub.s32 0, %v1320
      %v1504 = vsel %vm1502, %v1503, %v1320
      %v1505 = vshrl.u32 %v1504, 4
      %v1506 = vand.u32 %v1504, 15
      %v1507 = vsub.s32 0, %v1506
      %v1508 = vsel %vm1502, %v1507, %v1506
      %vm1509 = vcmp.lt.s32.totalorder %v1321, 0
      %v1510 = vsub.s32 0, %v1321
      %v1511 = vsel %vm1509, %v1510, %v1321
      %v1512 = vshrl.u32 %v1511, 4
      %v1513 = vand.u32 %v1511, 15
      %v1514 = vsub.s32 0, %v1513
      %v1515 = vsel %vm1509, %v1514, %v1513
      %vm1516 = vcmp.lt.s32.totalorder %v1322, 0
      %v1517 = vsub.s32 0, %v1322
      %v1518 = vsel %vm1516, %v1517, %v1322
      %v1519 = vshrl.u32 %v1518, 4
      %v1520 = vand.u32 %v1518, 15
      %v1521 = vsub.s32 0, %v1520
      %v1522 = vsel %vm1516, %v1521, %v1520
      %vm1523 = vcmp.lt.s32.totalorder %v1323, 0
      %v1524 = vsub.s32 0, %v1323
      %v1525 = vsel %vm1523, %v1524, %v1323
      %v1526 = vshrl.u32 %v1525, 4
      %v1527 = vand.u32 %v1525, 15
      %v1528 = vsub.s32 0, %v1527
      %v1529 = vsel %vm1523, %v1528, %v1527
      %vm1530 = vcmp.lt.s32.totalorder %v1324, 0
      %v1531 = vsub.s32 0, %v1324
      %v1532 = vsel %vm1530, %v1531, %v1324
      %v1533 = vshrl.u32 %v1532, 4
      %v1534 = vand.u32 %v1532, 15
      %v1535 = vsub.s32 0, %v1534
      %v1536 = vsel %vm1530, %v1535, %v1534
      %vm1537 = vcmp.lt.s32.totalorder %v1325, 0
      %v1538 = vsub.s32 0, %v1325
      %v1539 = vsel %vm1537, %v1538, %v1325
      %v1540 = vshrl.u32 %v1539, 4
      %v1541 = vand.u32 %v1539, 15
      %v1542 = vsub.s32 0, %v1541
      %v1543 = vsel %vm1537, %v1542, %v1541
      %vm1544 = vcmp.lt.s32.totalorder %v1326, 0
      %v1545 = vsub.s32 0, %v1326
      %v1546 = vsel %vm1544, %v1545, %v1326
      %v1547 = vshrl.u32 %v1546, 4
      %v1548 = vand.u32 %v1546, 15
      %v1549 = vsub.s32 0, %v1548
      %v1550 = vsel %vm1544, %v1549, %v1548
      %vm1551 = vcmp.ne.s32.totalorder %v1333, 0
      %vm1552 = vcmp.ne.s32.totalorder %v1340, 0
      %vm1553 = vcmp.ne.s32.totalorder %v1347, 0
      %vm1554 = vcmp.ne.s32.totalorder %v1354, 0
      %vm1555 = vcmp.ne.s32.totalorder %v1361, 0
      %vm1556 = vcmp.ne.s32.totalorder %v1368, 0
      %vm1557 = vcmp.ne.s32.totalorder %v1375, 0
      %vm1558 = vcmp.ne.s32.totalorder %v1382, 0
      %vm1559 = vcmp.ne.s32.totalorder %v1389, 0
      %vm1560 = vcmp.ne.s32.totalorder %v1396, 0
      %vm1561 = vcmp.ne.s32.totalorder %v1403, 0
      %vm1562 = vcmp.ne.s32.totalorder %v1410, 0
      %vm1563 = vcmp.ne.s32.totalorder %v1417, 0
      %vm1564 = vcmp.ne.s32.totalorder %v1424, 0
      %vm1565 = vcmp.ne.s32.totalorder %v1431, 0
      %vm1566 = vcmp.ne.s32.totalorder %v1438, 0
      %vm1567 = vcmp.ne.s32.totalorder %v1445, 0
      %vm1568 = vcmp.ne.s32.totalorder %v1452, 0
      %vm1569 = vcmp.ne.s32.totalorder %v1459, 0
      %vm1570 = vcmp.ne.s32.totalorder %v1466, 0
      %vm1571 = vcmp.ne.s32.totalorder %v1473, 0
      %vm1572 = vcmp.ne.s32.totalorder %v1480, 0
      %vm1573 = vcmp.ne.s32.totalorder %v1487, 0
      %vm1574 = vcmp.ne.s32.totalorder %v1494, 0
      %vm1575 = vcmp.ne.s32.totalorder %v1501, 0
      %vm1576 = vcmp.ne.s32.totalorder %v1508, 0
      %vm1577 = vcmp.ne.s32.totalorder %v1515, 0
      %vm1578 = vcmp.ne.s32.totalorder %v1522, 0
      %vm1579 = vcmp.ne.s32.totalorder %v1529, 0
      %vm1580 = vcmp.ne.s32.totalorder %v1536, 0
      %vm1581 = vcmp.ne.s32.totalorder %v1543, 0
      %vm1582 = vcmp.ne.s32.totalorder %v1550, 0
      %vm1583 = vcmp.lt.s32.totalorder %v1333, 0
      %vm1584 = vcmp.lt.s32.totalorder %v1340, 0
      %vm1585 = vcmp.lt.s32.totalorder %v1347, 0
      %vm1586 = vcmp.lt.s32.totalorder %v1354, 0
      %vm1587 = vcmp.lt.s32.totalorder %v1361, 0
      %vm1588 = vcmp.lt.s32.totalorder %v1368, 0
      %vm1589 = vcmp.lt.s32.totalorder %v1375, 0
      %vm1590 = vcmp.lt.s32.totalorder %v1382, 0
      %vm1591 = vcmp.lt.s32.totalorder %v1389, 0
      %vm1592 = vcmp.lt.s32.totalorder %v1396, 0
      %vm1593 = vcmp.lt.s32.totalorder %v1403, 0
      %vm1594 = vcmp.lt.s32.totalorder %v1410, 0
      %vm1595 = vcmp.lt.s32.totalorder %v1417, 0
      %vm1596 = vcmp.lt.s32.totalorder %v1424, 0
      %vm1597 = vcmp.lt.s32.totalorder %v1431, 0
      %vm1598 = vcmp.lt.s32.totalorder %v1438, 0
      %vm1599 = vcmp.lt.s32.totalorder %v1445, 0
      %vm1600 = vcmp.lt.s32.totalorder %v1452, 0
      %vm1601 = vcmp.lt.s32.totalorder %v1459, 0
      %vm1602 = vcmp.lt.s32.totalorder %v1466, 0
      %vm1603 = vcmp.lt.s32.totalorder %v1473, 0
      %vm1604 = vcmp.lt.s32.totalorder %v1480, 0
      %vm1605 = vcmp.lt.s32.totalorder %v1487, 0
      %vm1606 = vcmp.lt.s32.totalorder %v1494, 0
      %vm1607 = vcmp.lt.s32.totalorder %v1501, 0
      %vm1608 = vcmp.lt.s32.totalorder %v1508, 0
      %vm1609 = vcmp.lt.s32.totalorder %v1515, 0
      %vm1610 = vcmp.lt.s32.totalorder %v1522, 0
      %vm1611 = vcmp.lt.s32.totalorder %v1529, 0
      %vm1612 = vcmp.lt.s32.totalorder %v1536, 0
      %vm1613 = vcmp.lt.s32.totalorder %v1543, 0
      %vm1614 = vcmp.lt.s32.totalorder %v1550, 0
      %vm1615 = vmand %vm1583, %vm1551
      %vm1616 = vmand %vm1584, %vm1552
      %vm1617 = vmand %vm1585, %vm1553
      %vm1618 = vmand %vm1586, %vm1554
      %vm1619 = vmand %vm1587, %vm1555
      %vm1620 = vmand %vm1588, %vm1556
      %vm1621 = vmand %vm1589, %vm1557
      %vm1622 = vmand %vm1590, %vm1558
      %vm1623 = vmand %vm1591, %vm1559
      %vm1624 = vmand %vm1592, %vm1560
      %vm1625 = vmand %vm1593, %vm1561
      %vm1626 = vmand %vm1594, %vm1562
      %vm1627 = vmand %vm1595, %vm1563
      %vm1628 = vmand %vm1596, %vm1564
      %vm1629 = vmand %vm1597, %vm1565
      %vm1630 = vmand %vm1598, %vm1566
      %vm1631 = vmand %vm1599, %vm1567
      %vm1632 = vmand %vm1600, %vm1568
      %vm1633 = vmand %vm1601, %vm1569
      %vm1634 = vmand %vm1602, %vm1570
      %vm1635 = vmand %vm1603, %vm1571
      %vm1636 = vmand %vm1604, %vm1572
      %vm1637 = vmand %vm1605, %vm1573
      %vm1638 = vmand %vm1606, %vm1574
      %vm1639 = vmand %vm1607, %vm1575
      %vm1640 = vmand %vm1608, %vm1576
      %vm1641 = vmand %vm1609, %vm1577
      %vm1642 = vmand %vm1610, %vm1578
      %vm1643 = vmand %vm1611, %vm1579
      %vm1644 = vmand %vm1612, %vm1580
      %vm1645 = vmand %vm1613, %vm1581
      %vm1646 = vmand %vm1614, %vm1582
      %v1647 = vadd.s32 %v1333, 16
      %v1648 = vadd.s32 %v1340, 16
      %v1649 = vadd.s32 %v1347, 16
      %v1650 = vadd.s32 %v1354, 16
      %v1651 = vadd.s32 %v1361, 16
      %v1652 = vadd.s32 %v1368, 16
      %v1653 = vadd.s32 %v1375, 16
      %v1654 = vadd.s32 %v1382, 16
      %v1655 = vadd.s32 %v1389, 16
      %v1656 = vadd.s32 %v1396, 16
      %v1657 = vadd.s32 %v1403, 16
      %v1658 = vadd.s32 %v1410, 16
      %v1659 = vadd.s32 %v1417, 16
      %v1660 = vadd.s32 %v1424, 16
      %v1661 = vadd.s32 %v1431, 16
      %v1662 = vadd.s32 %v1438, 16
      %v1663 = vadd.s32 %v1445, 16
      %v1664 = vadd.s32 %v1452, 16
      %v1665 = vadd.s32 %v1459, 16
      %v1666 = vadd.s32 %v1466, 16
      %v1667 = vadd.s32 %v1473, 16
      %v1668 = vadd.s32 %v1480, 16
      %v1669 = vadd.s32 %v1487, 16
      %v1670 = vadd.s32 %v1494, 16
      %v1671 = vadd.s32 %v1501, 16
      %v1672 = vadd.s32 %v1508, 16
      %v1673 = vadd.s32 %v1515, 16
      %v1674 = vadd.s32 %v1522, 16
      %v1675 = vadd.s32 %v1529, 16
      %v1676 = vadd.s32 %v1536, 16
      %v1677 = vadd.s32 %v1543, 16
      %v1678 = vadd.s32 %v1550, 16
      %v1679 = vsel %vm1615, %v1647, %v1333
      %v1680 = vsel %vm1616, %v1648, %v1340
      %v1681 = vsel %vm1617, %v1649, %v1347
      %v1682 = vsel %vm1618, %v1650, %v1354
      %v1683 = vsel %vm1619, %v1651, %v1361
      %v1684 = vsel %vm1620, %v1652, %v1368
      %v1685 = vsel %vm1621, %v1653, %v1375
      %v1686 = vsel %vm1622, %v1654, %v1382
      %v1687 = vsel %vm1623, %v1655, %v1389
      %v1688 = vsel %vm1624, %v1656, %v1396
      %v1689 = vsel %vm1625, %v1657, %v1403
      %v1690 = vsel %vm1626, %v1658, %v1410
      %v1691 = vsel %vm1627, %v1659, %v1417
      %v1692 = vsel %vm1628, %v1660, %v1424
      %v1693 = vsel %vm1629, %v1661, %v1431
      %v1694 = vsel %vm1630, %v1662, %v1438
      %v1695 = vsel %vm1631, %v1663, %v1445
      %v1696 = vsel %vm1632, %v1664, %v1452
      %v1697 = vsel %vm1633, %v1665, %v1459
      %v1698 = vsel %vm1634, %v1666, %v1466
      %v1699 = vsel %vm1635, %v1667, %v1473
      %v1700 = vsel %vm1636, %v1668, %v1480
      %v1701 = vsel %vm1637, %v1669, %v1487
      %v1702 = vsel %vm1638, %v1670, %v1494
      %v1703 = vsel %vm1639, %v1671, %v1501
      %v1704 = vsel %vm1640, %v1672, %v1508
      %v1705 = vsel %vm1641, %v1673, %v1515
      %v1706 = vsel %vm1642, %v1674, %v1522
      %v1707 = vsel %vm1643, %v1675, %v1529
      %v1708 = vsel %vm1644, %v1676, %v1536
      %v1709 = vsel %vm1645, %v1677, %v1543
      %v1710 = vsel %vm1646, %v1678, %v1550
      %v1711 = vadd.s32 %v1295, 4294967280
      %v1712 = vadd.s32 %v1296, 4294967280
      %v1713 = vadd.s32 %v1297, 4294967280
      %v1714 = vadd.s32 %v1298, 4294967280
      %v1715 = vadd.s32 %v1299, 4294967280
      %v1716 = vadd.s32 %v1300, 4294967280
      %v1717 = vadd.s32 %v1301, 4294967280
      %v1718 = vadd.s32 %v1302, 4294967280
      %v1719 = vadd.s32 %v1303, 4294967280
      %v1720 = vadd.s32 %v1304, 4294967280
      %v1721 = vadd.s32 %v1305, 4294967280
      %v1722 = vadd.s32 %v1306, 4294967280
      %v1723 = vadd.s32 %v1307, 4294967280
      %v1724 = vadd.s32 %v1308, 4294967280
      %v1725 = vadd.s32 %v1309, 4294967280
      %v1726 = vadd.s32 %v1310, 4294967280
      %v1727 = vadd.s32 %v1311, 4294967280
      %v1728 = vadd.s32 %v1312, 4294967280
      %v1729 = vadd.s32 %v1313, 4294967280
      %v1730 = vadd.s32 %v1314, 4294967280
      %v1731 = vadd.s32 %v1315, 4294967280
      %v1732 = vadd.s32 %v1316, 4294967280
      %v1733 = vadd.s32 %v1317, 4294967280
      %v1734 = vadd.s32 %v1318, 4294967280
      %v1735 = vadd.s32 %v1319, 4294967280
      %v1736 = vadd.s32 %v1320, 4294967280
      %v1737 = vadd.s32 %v1321, 4294967280
      %v1738 = vadd.s32 %v1322, 4294967280
      %v1739 = vadd.s32 %v1323, 4294967280
      %v1740 = vadd.s32 %v1324, 4294967280
      %v1741 = vadd.s32 %v1325, 4294967280
      %v1742 = vadd.s32 %v1326, 4294967280
      %vm1743 = vcmp.ge.s32.totalorder %v1711, 0
      %vm1744 = vcmp.ge.s32.totalorder %v1712, 0
      %vm1745 = vcmp.ge.s32.totalorder %v1713, 0
      %vm1746 = vcmp.ge.s32.totalorder %v1714, 0
      %vm1747 = vcmp.ge.s32.totalorder %v1715, 0
      %vm1748 = vcmp.ge.s32.totalorder %v1716, 0
      %vm1749 = vcmp.ge.s32.totalorder %v1717, 0
      %vm1750 = vcmp.ge.s32.totalorder %v1718, 0
      %vm1751 = vcmp.ge.s32.totalorder %v1719, 0
      %vm1752 = vcmp.ge.s32.totalorder %v1720, 0
      %vm1753 = vcmp.ge.s32.totalorder %v1721, 0
      %vm1754 = vcmp.ge.s32.totalorder %v1722, 0
      %vm1755 = vcmp.ge.s32.totalorder %v1723, 0
      %vm1756 = vcmp.ge.s32.totalorder %v1724, 0
      %vm1757 = vcmp.ge.s32.totalorder %v1725, 0
      %vm1758 = vcmp.ge.s32.totalorder %v1726, 0
      %vm1759 = vcmp.ge.s32.totalorder %v1727, 0
      %vm1760 = vcmp.ge.s32.totalorder %v1728, 0
      %vm1761 = vcmp.ge.s32.totalorder %v1729, 0
      %vm1762 = vcmp.ge.s32.totalorder %v1730, 0
      %vm1763 = vcmp.ge.s32.totalorder %v1731, 0
      %vm1764 = vcmp.ge.s32.totalorder %v1732, 0
      %vm1765 = vcmp.ge.s32.totalorder %v1733, 0
      %vm1766 = vcmp.ge.s32.totalorder %v1734, 0
      %vm1767 = vcmp.ge.s32.totalorder %v1735, 0
      %vm1768 = vcmp.ge.s32.totalorder %v1736, 0
      %vm1769 = vcmp.ge.s32.totalorder %v1737, 0
      %vm1770 = vcmp.ge.s32.totalorder %v1738, 0
      %vm1771 = vcmp.ge.s32.totalorder %v1739, 0
      %vm1772 = vcmp.ge.s32.totalorder %v1740, 0
      %vm1773 = vcmp.ge.s32.totalorder %v1741, 0
      %vm1774 = vcmp.ge.s32.totalorder %v1742, 0
      %vm1775 = vcmp.lt.s32.totalorder %v1711, 256
      %vm1776 = vcmp.lt.s32.totalorder %v1712, 256
      %vm1777 = vcmp.lt.s32.totalorder %v1713, 256
      %vm1778 = vcmp.lt.s32.totalorder %v1714, 256
      %vm1779 = vcmp.lt.s32.totalorder %v1715, 256
      %vm1780 = vcmp.lt.s32.totalorder %v1716, 256
      %vm1781 = vcmp.lt.s32.totalorder %v1717, 256
      %vm1782 = vcmp.lt.s32.totalorder %v1718, 256
      %vm1783 = vcmp.lt.s32.totalorder %v1719, 256
      %vm1784 = vcmp.lt.s32.totalorder %v1720, 256
      %vm1785 = vcmp.lt.s32.totalorder %v1721, 256
      %vm1786 = vcmp.lt.s32.totalorder %v1722, 256
      %vm1787 = vcmp.lt.s32.totalorder %v1723, 256
      %vm1788 = vcmp.lt.s32.totalorder %v1724, 256
      %vm1789 = vcmp.lt.s32.totalorder %v1725, 256
      %vm1790 = vcmp.lt.s32.totalorder %v1726, 256
      %vm1791 = vcmp.lt.s32.totalorder %v1727, 256
      %vm1792 = vcmp.lt.s32.totalorder %v1728, 256
      %vm1793 = vcmp.lt.s32.totalorder %v1729, 256
      %vm1794 = vcmp.lt.s32.totalorder %v1730, 256
      %vm1795 = vcmp.lt.s32.totalorder %v1731, 256
      %vm1796 = vcmp.lt.s32.totalorder %v1732, 256
      %vm1797 = vcmp.lt.s32.totalorder %v1733, 256
      %vm1798 = vcmp.lt.s32.totalorder %v1734, 256
      %vm1799 = vcmp.lt.s32.totalorder %v1735, 256
      %vm1800 = vcmp.lt.s32.totalorder %v1736, 256
      %vm1801 = vcmp.lt.s32.totalorder %v1737, 256
      %vm1802 = vcmp.lt.s32.totalorder %v1738, 256
      %vm1803 = vcmp.lt.s32.totalorder %v1739, 256
      %vm1804 = vcmp.lt.s32.totalorder %v1740, 256
      %vm1805 = vcmp.lt.s32.totalorder %v1741, 256
      %vm1806 = vcmp.lt.s32.totalorder %v1742, 256
      %vm1807 = vmand %vm1743, %vm1775
      %vm1808 = vmand %vm1744, %vm1776
      %vm1809 = vmand %vm1745, %vm1777
      %vm1810 = vmand %vm1746, %vm1778
      %vm1811 = vmand %vm1747, %vm1779
      %vm1812 = vmand %vm1748, %vm1780
      %vm1813 = vmand %vm1749, %vm1781
      %vm1814 = vmand %vm1750, %vm1782
      %vm1815 = vmand %vm1751, %vm1783
      %vm1816 = vmand %vm1752, %vm1784
      %vm1817 = vmand %vm1753, %vm1785
      %vm1818 = vmand %vm1754, %vm1786
      %vm1819 = vmand %vm1755, %vm1787
      %vm1820 = vmand %vm1756, %vm1788
      %vm1821 = vmand %vm1757, %vm1789
      %vm1822 = vmand %vm1758, %vm1790
      %vm1823 = vmand %vm1759, %vm1791
      %vm1824 = vmand %vm1760, %vm1792
      %vm1825 = vmand %vm1761, %vm1793
      %vm1826 = vmand %vm1762, %vm1794
      %vm1827 = vmand %vm1763, %vm1795
      %vm1828 = vmand %vm1764, %vm1796
      %vm1829 = vmand %vm1765, %vm1797
      %vm1830 = vmand %vm1766, %vm1798
      %vm1831 = vmand %vm1767, %vm1799
      %vm1832 = vmand %vm1768, %vm1800
      %vm1833 = vmand %vm1769, %vm1801
      %vm1834 = vmand %vm1770, %vm1802
      %vm1835 = vmand %vm1771, %vm1803
      %vm1836 = vmand %vm1772, %vm1804
      %vm1837 = vmand %vm1773, %vm1805
      %vm1838 = vmand %vm1774, %vm1806
      %v1839 = vadd.s32 %v1679, 4294967295
      %v1840 = vadd.s32 %v1680, 4294967295
      %v1841 = vadd.s32 %v1681, 4294967295
      %v1842 = vadd.s32 %v1682, 4294967295
      %v1843 = vadd.s32 %v1683, 4294967295
      %v1844 = vadd.s32 %v1684, 4294967295
      %v1845 = vadd.s32 %v1685, 4294967295
      %v1846 = vadd.s32 %v1686, 4294967295
      %v1847 = vadd.s32 %v1687, 4294967295
      %v1848 = vadd.s32 %v1688, 4294967295
      %v1849 = vadd.s32 %v1689, 4294967295
      %v1850 = vadd.s32 %v1690, 4294967295
      %v1851 = vadd.s32 %v1691, 4294967295
      %v1852 = vadd.s32 %v1692, 4294967295
      %v1853 = vadd.s32 %v1693, 4294967295
      %v1854 = vadd.s32 %v1694, 4294967295
      %v1855 = vadd.s32 %v1695, 4294967295
      %v1856 = vadd.s32 %v1696, 4294967295
      %v1857 = vadd.s32 %v1697, 4294967295
      %v1858 = vadd.s32 %v1698, 4294967295
      %v1859 = vadd.s32 %v1699, 4294967295
      %v1860 = vadd.s32 %v1700, 4294967295
      %v1861 = vadd.s32 %v1701, 4294967295
      %v1862 = vadd.s32 %v1702, 4294967295
      %v1863 = vadd.s32 %v1703, 4294967295
      %v1864 = vadd.s32 %v1704, 4294967295
      %v1865 = vadd.s32 %v1705, 4294967295
      %v1866 = vadd.s32 %v1706, 4294967295
      %v1867 = vadd.s32 %v1707, 4294967295
      %v1868 = vadd.s32 %v1708, 4294967295
      %v1869 = vadd.s32 %v1709, 4294967295
      %v1870 = vadd.s32 %v1710, 4294967295
      %vm1871 = vcmp.ge.s32.totalorder %v1839, 0
      %vm1872 = vcmp.ge.s32.totalorder %v1840, 0
      %vm1873 = vcmp.ge.s32.totalorder %v1841, 0
      %vm1874 = vcmp.ge.s32.totalorder %v1842, 0
      %vm1875 = vcmp.ge.s32.totalorder %v1843, 0
      %vm1876 = vcmp.ge.s32.totalorder %v1844, 0
      %vm1877 = vcmp.ge.s32.totalorder %v1845, 0
      %vm1878 = vcmp.ge.s32.totalorder %v1846, 0
      %vm1879 = vcmp.ge.s32.totalorder %v1847, 0
      %vm1880 = vcmp.ge.s32.totalorder %v1848, 0
      %vm1881 = vcmp.ge.s32.totalorder %v1849, 0
      %vm1882 = vcmp.ge.s32.totalorder %v1850, 0
      %vm1883 = vcmp.ge.s32.totalorder %v1851, 0
      %vm1884 = vcmp.ge.s32.totalorder %v1852, 0
      %vm1885 = vcmp.ge.s32.totalorder %v1853, 0
      %vm1886 = vcmp.ge.s32.totalorder %v1854, 0
      %vm1887 = vcmp.ge.s32.totalorder %v1855, 0
      %vm1888 = vcmp.ge.s32.totalorder %v1856, 0
      %vm1889 = vcmp.ge.s32.totalorder %v1857, 0
      %vm1890 = vcmp.ge.s32.totalorder %v1858, 0
      %vm1891 = vcmp.ge.s32.totalorder %v1859, 0
      %vm1892 = vcmp.ge.s32.totalorder %v1860, 0
      %vm1893 = vcmp.ge.s32.totalorder %v1861, 0
      %vm1894 = vcmp.ge.s32.totalorder %v1862, 0
      %vm1895 = vcmp.ge.s32.totalorder %v1863, 0
      %vm1896 = vcmp.ge.s32.totalorder %v1864, 0
      %vm1897 = vcmp.ge.s32.totalorder %v1865, 0
      %vm1898 = vcmp.ge.s32.totalorder %v1866, 0
      %vm1899 = vcmp.ge.s32.totalorder %v1867, 0
      %vm1900 = vcmp.ge.s32.totalorder %v1868, 0
      %vm1901 = vcmp.ge.s32.totalorder %v1869, 0
      %vm1902 = vcmp.ge.s32.totalorder %v1870, 0
      %vm1903 = vmand %vm1807, %vm1871
      %vm1904 = vmand %vm1808, %vm1872
      %vm1905 = vmand %vm1809, %vm1873
      %vm1906 = vmand %vm1810, %vm1874
      %vm1907 = vmand %vm1811, %vm1875
      %vm1908 = vmand %vm1812, %vm1876
      %vm1909 = vmand %vm1813, %vm1877
      %vm1910 = vmand %vm1814, %vm1878
      %vm1911 = vmand %vm1815, %vm1879
      %vm1912 = vmand %vm1816, %vm1880
      %vm1913 = vmand %vm1817, %vm1881
      %vm1914 = vmand %vm1818, %vm1882
      %vm1915 = vmand %vm1819, %vm1883
      %vm1916 = vmand %vm1820, %vm1884
      %vm1917 = vmand %vm1821, %vm1885
      %vm1918 = vmand %vm1822, %vm1886
      %vm1919 = vmand %vm1823, %vm1887
      %vm1920 = vmand %vm1824, %vm1888
      %vm1921 = vmand %vm1825, %vm1889
      %vm1922 = vmand %vm1826, %vm1890
      %vm1923 = vmand %vm1827, %vm1891
      %vm1924 = vmand %vm1828, %vm1892
      %vm1925 = vmand %vm1829, %vm1893
      %vm1926 = vmand %vm1830, %vm1894
      %vm1927 = vmand %vm1831, %vm1895
      %vm1928 = vmand %vm1832, %vm1896
      %vm1929 = vmand %vm1833, %vm1897
      %vm1930 = vmand %vm1834, %vm1898
      %vm1931 = vmand %vm1835, %vm1899
      %vm1932 = vmand %vm1836, %vm1900
      %vm1933 = vmand %vm1837, %vm1901
      %vm1934 = vmand %vm1838, %vm1902
      %vm1935 = vcmp.lt.s32.totalorder %v1839, 16
      %vm1936 = vcmp.lt.s32.totalorder %v1840, 16
      %vm1937 = vcmp.lt.s32.totalorder %v1841, 16
      %vm1938 = vcmp.lt.s32.totalorder %v1842, 16
      %vm1939 = vcmp.lt.s32.totalorder %v1843, 16
      %vm1940 = vcmp.lt.s32.totalorder %v1844, 16
      %vm1941 = vcmp.lt.s32.totalorder %v1845, 16
      %vm1942 = vcmp.lt.s32.totalorder %v1846, 16
      %vm1943 = vcmp.lt.s32.totalorder %v1847, 16
      %vm1944 = vcmp.lt.s32.totalorder %v1848, 16
      %vm1945 = vcmp.lt.s32.totalorder %v1849, 16
      %vm1946 = vcmp.lt.s32.totalorder %v1850, 16
      %vm1947 = vcmp.lt.s32.totalorder %v1851, 16
      %vm1948 = vcmp.lt.s32.totalorder %v1852, 16
      %vm1949 = vcmp.lt.s32.totalorder %v1853, 16
      %vm1950 = vcmp.lt.s32.totalorder %v1854, 16
      %vm1951 = vcmp.lt.s32.totalorder %v1855, 16
      %vm1952 = vcmp.lt.s32.totalorder %v1856, 16
      %vm1953 = vcmp.lt.s32.totalorder %v1857, 16
      %vm1954 = vcmp.lt.s32.totalorder %v1858, 16
      %vm1955 = vcmp.lt.s32.totalorder %v1859, 16
      %vm1956 = vcmp.lt.s32.totalorder %v1860, 16
      %vm1957 = vcmp.lt.s32.totalorder %v1861, 16
      %vm1958 = vcmp.lt.s32.totalorder %v1862, 16
      %vm1959 = vcmp.lt.s32.totalorder %v1863, 16
      %vm1960 = vcmp.lt.s32.totalorder %v1864, 16
      %vm1961 = vcmp.lt.s32.totalorder %v1865, 16
      %vm1962 = vcmp.lt.s32.totalorder %v1866, 16
      %vm1963 = vcmp.lt.s32.totalorder %v1867, 16
      %vm1964 = vcmp.lt.s32.totalorder %v1868, 16
      %vm1965 = vcmp.lt.s32.totalorder %v1869, 16
      %vm1966 = vcmp.lt.s32.totalorder %v1870, 16
      %vm1967 = vmand %vm1903, %vm1935
      %vm1968 = vmand %vm1904, %vm1936
      %vm1969 = vmand %vm1905, %vm1937
      %vm1970 = vmand %vm1906, %vm1938
      %vm1971 = vmand %vm1907, %vm1939
      %vm1972 = vmand %vm1908, %vm1940
      %vm1973 = vmand %vm1909, %vm1941
      %vm1974 = vmand %vm1910, %vm1942
      %vm1975 = vmand %vm1911, %vm1943
      %vm1976 = vmand %vm1912, %vm1944
      %vm1977 = vmand %vm1913, %vm1945
      %vm1978 = vmand %vm1914, %vm1946
      %vm1979 = vmand %vm1915, %vm1947
      %vm1980 = vmand %vm1916, %vm1948
      %vm1981 = vmand %vm1917, %vm1949
      %vm1982 = vmand %vm1918, %vm1950
      %vm1983 = vmand %vm1919, %vm1951
      %vm1984 = vmand %vm1920, %vm1952
      %vm1985 = vmand %vm1921, %vm1953
      %vm1986 = vmand %vm1922, %vm1954
      %vm1987 = vmand %vm1923, %vm1955
      %vm1988 = vmand %vm1924, %vm1956
      %vm1989 = vmand %vm1925, %vm1957
      %vm1990 = vmand %vm1926, %vm1958
      %vm1991 = vmand %vm1927, %vm1959
      %vm1992 = vmand %vm1928, %vm1960
      %vm1993 = vmand %vm1929, %vm1961
      %vm1994 = vmand %vm1930, %vm1962
      %vm1995 = vmand %vm1931, %vm1963
      %vm1996 = vmand %vm1932, %vm1964
      %vm1997 = vmand %vm1933, %vm1965
      %vm1998 = vmand %vm1934, %vm1966
      %vm2002 = vcmask 1040384
      %v2003 = vrot.slane %v856, 7
      %v2004 = vrot.slane %v857, 7
      %v2005 = vsel %vm2002, %v2003, %v2004
      %v2006 = vrot.slane %v858, 7
      %v2007 = vsel %vm2002, %v2004, %v2006
      %v2040 = vrot.slane %v827, 7
      %v2041 = vrot.slane %v828, 7
      %v2042 = vsel %vm2002, %v2040, %v2041
      %v2043 = vrot.slane %v829, 7
      %v2044 = vsel %vm2002, %v2041, %v2043
      %v2045 = vrot.slane %v830, 7
      %v2046 = vsel %vm2002, %v2043, %v2045
      %v2047 = vrot.slane %v831, 7
      %v2048 = vsel %vm2002, %v2045, %v2047
      %v2049 = vrot.slane %v832, 7
      %v2050 = vsel %vm2002, %v2047, %v2049
      %v2051 = vrot.slane %v833, 7
      %v2052 = vsel %vm2002, %v2049, %v2051
      %v2053 = vrot.slane %v834, 7
      %v2054 = vsel %vm2002, %v2051, %v2053
      %v2055 = vrot.slane %v835, 7
      %v2056 = vsel %vm2002, %v2053, %v2055
      %v2057 = vrot.slane %v836, 7
      %v2058 = vsel %vm2002, %v2055, %v2057
      %v2059 = vrot.slane %v837, 7
      %v2060 = vsel %vm2002, %v2057, %v2059
      %v2061 = vrot.slane %v838, 7
      %v2062 = vsel %vm2002, %v2059, %v2061
      %v2063 = vrot.slane %v839, 7
      %v2064 = vsel %vm2002, %v2061, %v2063
      %v2065 = vrot.slane %v840, 7
      %v2066 = vsel %vm2002, %v2063, %v2065
      %v2067 = vrot.slane %v841, 7
      %v2068 = vsel %vm2002, %v2065, %v2067
      %v2069 = vrot.slane %v842, 7
      %v2070 = vsel %vm2002, %v2067, %v2069
      %v2071 = vrot.slane %v843, 7
      %v2072 = vsel %vm2002, %v2069, %v2071
      %v2073 = vrot.slane %v844, 7
      %v2074 = vsel %vm2002, %v2071, %v2073
      %v2075 = vrot.slane %v845, 7
      %v2076 = vsel %vm2002, %v2073, %v2075
      %v2077 = vrot.slane %v846, 7
      %v2078 = vsel %vm2002, %v2075, %v2077
      %v2079 = vrot.slane %v847, 7
      %v2080 = vsel %vm2002, %v2077, %v2079
      %v2081 = vrot.slane %v848, 7
      %v2082 = vsel %vm2002, %v2079, %v2081
      %v2083 = vrot.slane %v849, 7
      %v2084 = vsel %vm2002, %v2081, %v2083
      %v2085 = vrot.slane %v850, 7
      %v2086 = vsel %vm2002, %v2083, %v2085
      %v2087 = vrot.slane %v851, 7
      %v2088 = vsel %vm2002, %v2085, %v2087
      %v2089 = vrot.slane %v852, 7
      %v2090 = vsel %vm2002, %v2087, %v2089
      %v2091 = vrot.slane %v853, 7
      %v2092 = vsel %vm2002, %v2089, %v2091
      %v2093 = vrot.slane %v854, 7
      %v2094 = vsel %vm2002, %v2091, %v2093
      %v2095 = vrot.slane %v855, 7
      %v2096 = vsel %vm2002, %v2093, %v2095
      %v2097 = vsel %vm2002, %v2095, %v2003
      %v2128 = vsel %vm2002, %v2006, %v2040
      %v2129 = vsel %vm1967, 1, 0
      %v2130 = vsel %vm1968, 1, 0
      %v2131 = vsel %vm1969, 1, 0
      %v2132 = vsel %vm1970, 1, 0
      %v2133 = vsel %vm1971, 1, 0
      %v2134 = vsel %vm1972, 1, 0
      %v2135 = vsel %vm1973, 1, 0
      %v2136 = vsel %vm1974, 1, 0
      %v2137 = vsel %vm1975, 1, 0
      %v2138 = vsel %vm1976, 1, 0
      %v2139 = vsel %vm1977, 1, 0
      %v2140 = vsel %vm1978, 1, 0
      %v2141 = vsel %vm1979, 1, 0
      %v2142 = vsel %vm1980, 1, 0
      %v2143 = vsel %vm1981, 1, 0
      %v2144 = vsel %vm1982, 1, 0
      %v2145 = vsel %vm1983, 1, 0
      %v2146 = vsel %vm1984, 1, 0
      %v2147 = vsel %vm1985, 1, 0
      %v2148 = vsel %vm1986, 1, 0
      %v2149 = vsel %vm1987, 1, 0
      %v2150 = vsel %vm1988, 1, 0
      %v2151 = vsel %vm1989, 1, 0
      %v2152 = vsel %vm1990, 1, 0
      %v2153 = vsel %vm1991, 1, 0
      %v2154 = vsel %vm1992, 1, 0
      %v2155 = vsel %vm1993, 1, 0
      %v2156 = vsel %vm1994, 1, 0
      %v2157 = vsel %vm1995, 1, 0
      %v2158 = vsel %vm1996, 1, 0
      %v2159 = vsel %vm1997, 1, 0
      %v2160 = vsel %vm1998, 1, 0
      %vm2161 = vcmp.eq.s32.totalorder %v2129, 1
      %vm2162 = vcmp.eq.s32.totalorder %v2130, 1
      %vm2163 = vcmp.eq.s32.totalorder %v2131, 1
      %vm2164 = vcmp.eq.s32.totalorder %v2132, 1
      %vm2165 = vcmp.eq.s32.totalorder %v2133, 1
      %vm2166 = vcmp.eq.s32.totalorder %v2134, 1
      %vm2167 = vcmp.eq.s32.totalorder %v2135, 1
      %vm2168 = vcmp.eq.s32.totalorder %v2136, 1
      %vm2169 = vcmp.eq.s32.totalorder %v2137, 1
      %vm2170 = vcmp.eq.s32.totalorder %v2138, 1
      %vm2171 = vcmp.eq.s32.totalorder %v2139, 1
      %vm2172 = vcmp.eq.s32.totalorder %v2140, 1
      %vm2173 = vcmp.eq.s32.totalorder %v2141, 1
      %vm2174 = vcmp.eq.s32.totalorder %v2142, 1
      %vm2175 = vcmp.eq.s32.totalorder %v2143, 1
      %vm2176 = vcmp.eq.s32.totalorder %v2144, 1
      %vm2177 = vcmp.eq.s32.totalorder %v2145, 1
      %vm2178 = vcmp.eq.s32.totalorder %v2146, 1
      %vm2179 = vcmp.eq.s32.totalorder %v2147, 1
      %vm2180 = vcmp.eq.s32.totalorder %v2148, 1
      %vm2181 = vcmp.eq.s32.totalorder %v2149, 1
      %vm2182 = vcmp.eq.s32.totalorder %v2150, 1
      %vm2183 = vcmp.eq.s32.totalorder %v2151, 1
      %vm2184 = vcmp.eq.s32.totalorder %v2152, 1
      %vm2185 = vcmp.eq.s32.totalorder %v2153, 1
      %vm2186 = vcmp.eq.s32.totalorder %v2154, 1
      %vm2187 = vcmp.eq.s32.totalorder %v2155, 1
      %vm2188 = vcmp.eq.s32.totalorder %v2156, 1
      %vm2189 = vcmp.eq.s32.totalorder %v2157, 1
      %vm2190 = vcmp.eq.s32.totalorder %v2158, 1
      %vm2191 = vcmp.eq.s32.totalorder %v2159, 1
      %vm2192 = vcmp.eq.s32.totalorder %v2160, 1
      %v2193 = vsel %vm2161, %v2005, 0.0
      %v2194 = vsel %vm2162, %v2007, 0.0
      %v2195 = vsel %vm2163, %v2128, 0.0
      %v2196 = vsel %vm2164, %v2042, 0.0
      %v2197 = vsel %vm2165, %v2044, 0.0
      %v2198 = vsel %vm2166, %v2046, 0.0
      %v2199 = vsel %vm2167, %v2048, 0.0
      %v2200 = vsel %vm2168, %v2050, 0.0
      %v2201 = vsel %vm2169, %v2052, 0.0
      %v2202 = vsel %vm2170, %v2054, 0.0
      %v2203 = vsel %vm2171, %v2056, 0.0
      %v2204 = vsel %vm2172, %v2058, 0.0
      %v2205 = vsel %vm2173, %v2060, 0.0
      %v2206 = vsel %vm2174, %v2062, 0.0
      %v2207 = vsel %vm2175, %v2064, 0.0
      %v2208 = vsel %vm2176, %v2066, 0.0
      %v2209 = vsel %vm2177, %v2068, 0.0
      %v2210 = vsel %vm2178, %v2070, 0.0
      %v2211 = vsel %vm2179, %v2072, 0.0
      %v2212 = vsel %vm2180, %v2074, 0.0
      %v2213 = vsel %vm2181, %v2076, 0.0
      %v2214 = vsel %vm2182, %v2078, 0.0
      %v2215 = vsel %vm2183, %v2080, 0.0
      %v2216 = vsel %vm2184, %v2082, 0.0
      %v2217 = vsel %vm2185, %v2084, 0.0
      %v2218 = vsel %vm2186, %v2086, 0.0
      %v2219 = vsel %vm2187, %v2088, 0.0
      %v2220 = vsel %vm2188, %v2090, 0.0
      %v2221 = vsel %vm2189, %v2092, 0.0
      %v2222 = vsel %vm2190, %v2094, 0.0
      %v2223 = vsel %vm2191, %v2096, 0.0
      %v2224 = vsel %vm2192, %v2097, 0.0
      %v2225 = vpack.c.bf16 %v2194, %v2193
      %v2226 = vpack.c.bf16 %v2196, %v2195
      %v2227 = vpack.c.bf16 %v2198, %v2197
      %v2228 = vpack.c.bf16 %v2200, %v2199
      %v2229 = vpack.c.bf16 %v2202, %v2201
      %v2230 = vpack.c.bf16 %v2204, %v2203
      %v2231 = vpack.c.bf16 %v2206, %v2205
      %v2232 = vpack.c.bf16 %v2208, %v2207
      %v2233 = vpack.c.bf16 %v2210, %v2209
      %v2234 = vpack.c.bf16 %v2212, %v2211
      %v2235 = vpack.c.bf16 %v2214, %v2213
      %v2236 = vpack.c.bf16 %v2216, %v2215
      %v2237 = vpack.c.bf16 %v2218, %v2217
      %v2238 = vpack.c.bf16 %v2220, %v2219
      %v2239 = vpack.c.bf16 %v2222, %v2221
      %v2240 = vpack.c.bf16 %v2224, %v2223
      %v2241 = vld [vmem:[%s7] sm:$0xf]
      %v2242 = vld [vmem:[%s7 + $0x4] sm:$0xf]
      %v2243 = vld [vmem:[%s7 + $0x8] sm:$0xf]
      %v2244 = vld [vmem:[%s7 + $0xc] sm:$0xf]
      %v2245 = vld [vmem:[%s7 + $0x10] sm:$0xf]
      %v2246 = vld [vmem:[%s7 + $0x14] sm:$0xf]
      %v2247 = vld [vmem:[%s7 + $0x18] sm:$0xf]
      %v2248 = vld [vmem:[%s7 + $0x1c] sm:$0xf]
      %v2249 = vld [vmem:[%s7 + $0x20] sm:$0xf]
      %v2250 = vld [vmem:[%s7 + $0x24] sm:$0xf]
      %v2251 = vld [vmem:[%s7 + $0x28] sm:$0xf]
      %v2252 = vld [vmem:[%s7 + $0x2c] sm:$0xf]
      %v2253 = vld [vmem:[%s7 + $0x30] sm:$0xf]
      %v2254 = vld [vmem:[%s7 + $0x34] sm:$0xf]
      %v2255 = vld [vmem:[%s7 + $0x38] sm:$0xf]
      %v2256 = vld [vmem:[%s7 + $0x3c] sm:$0xf]
      %vm2257 = vcmp.ge.s32.totalorder %v1679, 0
      %vm2258 = vcmp.ge.s32.totalorder %v1680, 0
      %vm2259 = vcmp.ge.s32.totalorder %v1681, 0
      %vm2260 = vcmp.ge.s32.totalorder %v1682, 0
      %vm2261 = vcmp.ge.s32.totalorder %v1683, 0
      %vm2262 = vcmp.ge.s32.totalorder %v1684, 0
      %vm2263 = vcmp.ge.s32.totalorder %v1685, 0
      %vm2264 = vcmp.ge.s32.totalorder %v1686, 0
      %vm2265 = vcmp.ge.s32.totalorder %v1687, 0
      %vm2266 = vcmp.ge.s32.totalorder %v1688, 0
      %vm2267 = vcmp.ge.s32.totalorder %v1689, 0
      %vm2268 = vcmp.ge.s32.totalorder %v1690, 0
      %vm2269 = vcmp.ge.s32.totalorder %v1691, 0
      %vm2270 = vcmp.ge.s32.totalorder %v1692, 0
      %vm2271 = vcmp.ge.s32.totalorder %v1693, 0
      %vm2272 = vcmp.ge.s32.totalorder %v1694, 0
      %vm2273 = vcmp.ge.s32.totalorder %v1695, 0
      %vm2274 = vcmp.ge.s32.totalorder %v1696, 0
      %vm2275 = vcmp.ge.s32.totalorder %v1697, 0
      %vm2276 = vcmp.ge.s32.totalorder %v1698, 0
      %vm2277 = vcmp.ge.s32.totalorder %v1699, 0
      %vm2278 = vcmp.ge.s32.totalorder %v1700, 0
      %vm2279 = vcmp.ge.s32.totalorder %v1701, 0
      %vm2280 = vcmp.ge.s32.totalorder %v1702, 0
      %vm2281 = vcmp.ge.s32.totalorder %v1703, 0
      %vm2282 = vcmp.ge.s32.totalorder %v1704, 0
      %vm2283 = vcmp.ge.s32.totalorder %v1705, 0
      %vm2284 = vcmp.ge.s32.totalorder %v1706, 0
      %vm2285 = vcmp.ge.s32.totalorder %v1707, 0
      %vm2286 = vcmp.ge.s32.totalorder %v1708, 0
      %vm2287 = vcmp.ge.s32.totalorder %v1709, 0
      %vm2288 = vcmp.ge.s32.totalorder %v1710, 0
      %vm2289 = vmand %vm1807, %vm2257
      %vm2290 = vmand %vm1808, %vm2258
      %vm2291 = vmand %vm1809, %vm2259
      %vm2292 = vmand %vm1810, %vm2260
      %vm2293 = vmand %vm1811, %vm2261
      %vm2294 = vmand %vm1812, %vm2262
      %vm2295 = vmand %vm1813, %vm2263
      %vm2296 = vmand %vm1814, %vm2264
      %vm2297 = vmand %vm1815, %vm2265
      %vm2298 = vmand %vm1816, %vm2266
      %vm2299 = vmand %vm1817, %vm2267
      %vm2300 = vmand %vm1818, %vm2268
      %vm2301 = vmand %vm1819, %vm2269
      %vm2302 = vmand %vm1820, %vm2270
      %vm2303 = vmand %vm1821, %vm2271
      %vm2304 = vmand %vm1822, %vm2272
      %vm2305 = vmand %vm1823, %vm2273
      %vm2306 = vmand %vm1824, %vm2274
      %vm2307 = vmand %vm1825, %vm2275
      %vm2308 = vmand %vm1826, %vm2276
      %vm2309 = vmand %vm1827, %vm2277
      %vm2310 = vmand %vm1828, %vm2278
      %vm2311 = vmand %vm1829, %vm2279
      %vm2312 = vmand %vm1830, %vm2280
      %vm2313 = vmand %vm1831, %vm2281
      %vm2314 = vmand %vm1832, %vm2282
      %vm2315 = vmand %vm1833, %vm2283
      %vm2316 = vmand %vm1834, %vm2284
      %vm2317 = vmand %vm1835, %vm2285
      %vm2318 = vmand %vm1836, %vm2286
      %vm2319 = vmand %vm1837, %vm2287
      %vm2320 = vmand %vm1838, %vm2288
      %vm2321 = vcmp.lt.s32.totalorder %v1679, 16
      %vm2322 = vcmp.lt.s32.totalorder %v1680, 16
      %vm2323 = vcmp.lt.s32.totalorder %v1681, 16
      %vm2324 = vcmp.lt.s32.totalorder %v1682, 16
      %vm2325 = vcmp.lt.s32.totalorder %v1683, 16
      %vm2326 = vcmp.lt.s32.totalorder %v1684, 16
      %vm2327 = vcmp.lt.s32.totalorder %v1685, 16
      %vm2328 = vcmp.lt.s32.totalorder %v1686, 16
      %vm2329 = vcmp.lt.s32.totalorder %v1687, 16
      %vm2330 = vcmp.lt.s32.totalorder %v1688, 16
      %vm2331 = vcmp.lt.s32.totalorder %v1689, 16
      %vm2332 = vcmp.lt.s32.totalorder %v1690, 16
      %vm2333 = vcmp.lt.s32.totalorder %v1691, 16
      %vm2334 = vcmp.lt.s32.totalorder %v1692, 16
      %vm2335 = vcmp.lt.s32.totalorder %v1693, 16
      %vm2336 = vcmp.lt.s32.totalorder %v1694, 16
      %vm2337 = vcmp.lt.s32.totalorder %v1695, 16
      %vm2338 = vcmp.lt.s32.totalorder %v1696, 16
      %vm2339 = vcmp.lt.s32.totalorder %v1697, 16
      %vm2340 = vcmp.lt.s32.totalorder %v1698, 16
      %vm2341 = vcmp.lt.s32.totalorder %v1699, 16
      %vm2342 = vcmp.lt.s32.totalorder %v1700, 16
      %vm2343 = vcmp.lt.s32.totalorder %v1701, 16
      %vm2344 = vcmp.lt.s32.totalorder %v1702, 16
      %vm2345 = vcmp.lt.s32.totalorder %v1703, 16
      %vm2346 = vcmp.lt.s32.totalorder %v1704, 16
      %vm2347 = vcmp.lt.s32.totalorder %v1705, 16
      %vm2348 = vcmp.lt.s32.totalorder %v1706, 16
      %vm2349 = vcmp.lt.s32.totalorder %v1707, 16
      %vm2350 = vcmp.lt.s32.totalorder %v1708, 16
      %vm2351 = vcmp.lt.s32.totalorder %v1709, 16
      %vm2352 = vcmp.lt.s32.totalorder %v1710, 16
      %vm2353 = vmand %vm2289, %vm2321
      %vm2354 = vmand %vm2290, %vm2322
      %vm2355 = vmand %vm2291, %vm2323
      %vm2356 = vmand %vm2292, %vm2324
      %vm2357 = vmand %vm2293, %vm2325
      %vm2358 = vmand %vm2294, %vm2326
      %vm2359 = vmand %vm2295, %vm2327
      %vm2360 = vmand %vm2296, %vm2328
      %vm2361 = vmand %vm2297, %vm2329
      %vm2362 = vmand %vm2298, %vm2330
      %vm2363 = vmand %vm2299, %vm2331
      %vm2364 = vmand %vm2300, %vm2332
      %vm2365 = vmand %vm2301, %vm2333
      %vm2366 = vmand %vm2302, %vm2334
      %vm2367 = vmand %vm2303, %vm2335
      %vm2368 = vmand %vm2304, %vm2336
      %vm2369 = vmand %vm2305, %vm2337
      %vm2370 = vmand %vm2306, %vm2338
      %vm2371 = vmand %vm2307, %vm2339
      %vm2372 = vmand %vm2308, %vm2340
      %vm2373 = vmand %vm2309, %vm2341
      %vm2374 = vmand %vm2310, %vm2342
      %vm2375 = vmand %vm2311, %vm2343
      %vm2376 = vmand %vm2312, %vm2344
      %vm2377 = vmand %vm2313, %vm2345
      %vm2378 = vmand %vm2314, %vm2346
      %vm2379 = vmand %vm2315, %vm2347
      %vm2380 = vmand %vm2316, %vm2348
      %vm2381 = vmand %vm2317, %vm2349
      %vm2382 = vmand %vm2318, %vm2350
      %vm2383 = vmand %vm2319, %vm2351
      %vm2384 = vmand %vm2320, %vm2352
      %v2385 = vsel %vm2353, 1, 0
      %v2386 = vsel %vm2354, 1, 0
      %v2387 = vsel %vm2355, 1, 0
      %v2388 = vsel %vm2356, 1, 0
      %v2389 = vsel %vm2357, 1, 0
      %v2390 = vsel %vm2358, 1, 0
      %v2391 = vsel %vm2359, 1, 0
      %v2392 = vsel %vm2360, 1, 0
      %v2393 = vsel %vm2361, 1, 0
      %v2394 = vsel %vm2362, 1, 0
      %v2395 = vsel %vm2363, 1, 0
      %v2396 = vsel %vm2364, 1, 0
      %v2397 = vsel %vm2365, 1, 0
      %v2398 = vsel %vm2366, 1, 0
      %v2399 = vsel %vm2367, 1, 0
      %v2400 = vsel %vm2368, 1, 0
      %v2401 = vsel %vm2369, 1, 0
      %v2402 = vsel %vm2370, 1, 0
      %v2403 = vsel %vm2371, 1, 0
      %v2404 = vsel %vm2372, 1, 0
      %v2405 = vsel %vm2373, 1, 0
      %v2406 = vsel %vm2374, 1, 0
      %v2407 = vsel %vm2375, 1, 0
      %v2408 = vsel %vm2376, 1, 0
      %v2409 = vsel %vm2377, 1, 0
      %v2410 = vsel %vm2378, 1, 0
      %v2411 = vsel %vm2379, 1, 0
      %v2412 = vsel %vm2380, 1, 0
      %v2413 = vsel %vm2381, 1, 0
      %v2414 = vsel %vm2382, 1, 0
      %v2415 = vsel %vm2383, 1, 0
      %v2416 = vsel %vm2384, 1, 0
      %vm2417 = vcmp.eq.s32.totalorder %v2385, 1
      %vm2418 = vcmp.eq.s32.totalorder %v2386, 1
      %vm2419 = vcmp.eq.s32.totalorder %v2387, 1
      %vm2420 = vcmp.eq.s32.totalorder %v2388, 1
      %vm2421 = vcmp.eq.s32.totalorder %v2389, 1
      %vm2422 = vcmp.eq.s32.totalorder %v2390, 1
      %vm2423 = vcmp.eq.s32.totalorder %v2391, 1
      %vm2424 = vcmp.eq.s32.totalorder %v2392, 1
      %vm2425 = vcmp.eq.s32.totalorder %v2393, 1
      %vm2426 = vcmp.eq.s32.totalorder %v2394, 1
      %vm2427 = vcmp.eq.s32.totalorder %v2395, 1
      %vm2428 = vcmp.eq.s32.totalorder %v2396, 1
      %vm2429 = vcmp.eq.s32.totalorder %v2397, 1
      %vm2430 = vcmp.eq.s32.totalorder %v2398, 1
      %vm2431 = vcmp.eq.s32.totalorder %v2399, 1
      %vm2432 = vcmp.eq.s32.totalorder %v2400, 1
      %vm2433 = vcmp.eq.s32.totalorder %v2401, 1
      %vm2434 = vcmp.eq.s32.totalorder %v2402, 1
      %vm2435 = vcmp.eq.s32.totalorder %v2403, 1
      %vm2436 = vcmp.eq.s32.totalorder %v2404, 1
      %vm2437 = vcmp.eq.s32.totalorder %v2405, 1
      %vm2438 = vcmp.eq.s32.totalorder %v2406, 1
      %vm2439 = vcmp.eq.s32.totalorder %v2407, 1
      %vm2440 = vcmp.eq.s32.totalorder %v2408, 1
      %vm2441 = vcmp.eq.s32.totalorder %v2409, 1
      %vm2442 = vcmp.eq.s32.totalorder %v2410, 1
      %vm2443 = vcmp.eq.s32.totalorder %v2411, 1
      %vm2444 = vcmp.eq.s32.totalorder %v2412, 1
      %vm2445 = vcmp.eq.s32.totalorder %v2413, 1
      %vm2446 = vcmp.eq.s32.totalorder %v2414, 1
      %vm2447 = vcmp.eq.s32.totalorder %v2415, 1
      %vm2448 = vcmp.eq.s32.totalorder %v2416, 1
      %v2449 = vsel %vm2417, %v857, 0.0
      %v2450 = vsel %vm2418, %v858, 0.0
      %v2451 = vsel %vm2419, %v827, 0.0
      %v2452 = vsel %vm2420, %v828, 0.0
      %v2453 = vsel %vm2421, %v829, 0.0
      %v2454 = vsel %vm2422, %v830, 0.0
      %v2455 = vsel %vm2423, %v831, 0.0
      %v2456 = vsel %vm2424, %v832, 0.0
      %v2457 = vsel %vm2425, %v833, 0.0
      %v2458 = vsel %vm2426, %v834, 0.0
      %v2459 = vsel %vm2427, %v835, 0.0
      %v2460 = vsel %vm2428, %v836, 0.0
      %v2461 = vsel %vm2429, %v837, 0.0
      %v2462 = vsel %vm2430, %v838, 0.0
      %v2463 = vsel %vm2431, %v839, 0.0
      %v2464 = vsel %vm2432, %v840, 0.0
      %v2465 = vsel %vm2433, %v841, 0.0
      %v2466 = vsel %vm2434, %v842, 0.0
      %v2467 = vsel %vm2435, %v843, 0.0
      %v2468 = vsel %vm2436, %v844, 0.0
      %v2469 = vsel %vm2437, %v845, 0.0
      %v2470 = vsel %vm2438, %v846, 0.0
      %v2471 = vsel %vm2439, %v847, 0.0
      %v2472 = vsel %vm2440, %v848, 0.0
      %v2473 = vsel %vm2441, %v849, 0.0
      %v2474 = vsel %vm2442, %v850, 0.0
      %v2475 = vsel %vm2443, %v851, 0.0
      %v2476 = vsel %vm2444, %v852, 0.0
      %v2477 = vsel %vm2445, %v853, 0.0
      %v2478 = vsel %vm2446, %v854, 0.0
      %v2479 = vsel %vm2447, %v855, 0.0
      %v2480 = vsel %vm2448, %v856, 0.0
      %v2481 = vpack.c.bf16 %v2450, %v2449
      %v2482 = vpack.c.bf16 %v2452, %v2451
      %v2483 = vpack.c.bf16 %v2454, %v2453
      %v2484 = vpack.c.bf16 %v2456, %v2455
      %v2485 = vpack.c.bf16 %v2458, %v2457
      %v2486 = vpack.c.bf16 %v2460, %v2459
      %v2487 = vpack.c.bf16 %v2462, %v2461
      %v2488 = vpack.c.bf16 %v2464, %v2463
      %v2489 = vpack.c.bf16 %v2466, %v2465
      %v2490 = vpack.c.bf16 %v2468, %v2467
      %v2491 = vpack.c.bf16 %v2470, %v2469
      %v2492 = vpack.c.bf16 %v2472, %v2471
      %v2493 = vpack.c.bf16 %v2474, %v2473
      %v2494 = vpack.c.bf16 %v2476, %v2475
      %v2495 = vpack.c.bf16 %v2478, %v2477
      %v2496 = vpack.c.bf16 %v2480, %v2479
      %s2497 = scalar_lea.vmem %s7, 64
      %v2498 = vld [vmem:[%s2497] sm:$0xf]
      %v2499 = vld [vmem:[%s2497 + $0x4] sm:$0xf]
      %v2500 = vld [vmem:[%s2497 + $0x8] sm:$0xf]
      %v2501 = vld [vmem:[%s2497 + $0xc] sm:$0xf]
      %v2502 = vld [vmem:[%s2497 + $0x10] sm:$0xf]
      %v2503 = vld [vmem:[%s2497 + $0x14] sm:$0xf]
      %v2504 = vld [vmem:[%s2497 + $0x18] sm:$0xf]
      %v2505 = vld [vmem:[%s2497 + $0x1c] sm:$0xf]
      %v2506 = vld [vmem:[%s2497 + $0x20] sm:$0xf]
      %v2507 = vld [vmem:[%s2497 + $0x24] sm:$0xf]
      %v2508 = vld [vmem:[%s2497 + $0x28] sm:$0xf]
      %v2509 = vld [vmem:[%s2497 + $0x2c] sm:$0xf]
      %v2510 = vld [vmem:[%s2497 + $0x30] sm:$0xf]
      %v2511 = vld [vmem:[%s2497 + $0x34] sm:$0xf]
      %v2512 = vld [vmem:[%s2497 + $0x38] sm:$0xf]
      %v2513 = vld [vmem:[%s2497 + $0x3c] sm:$0xf]
      %v2530 = vunpack.c.l.b16 %v2498
      %v2531 = vunpack.c.l.b16 %v2499
      %v2532 = vunpack.c.l.b16 %v2500
      %v2533 = vunpack.c.l.b16 %v2501
      %v2534 = vunpack.c.l.b16 %v2502
      %v2535 = vunpack.c.l.b16 %v2503
      %v2536 = vunpack.c.l.b16 %v2504
      %v2537 = vunpack.c.l.b16 %v2505
      %v2538 = vunpack.c.l.b16 %v2506
      %v2539 = vunpack.c.l.b16 %v2507
      %v2540 = vunpack.c.l.b16 %v2508
      %v2541 = vunpack.c.l.b16 %v2509
      %v2542 = vunpack.c.l.b16 %v2510
      %v2543 = vunpack.c.l.b16 %v2511
      %v2544 = vunpack.c.l.b16 %v2512
      %v2545 = vunpack.c.l.b16 %v2513
      %v2546 = vpack.c.b16 %v2531, %v2530
      %v2547 = vpack.c.b16 %v2533, %v2532
      %v2548 = vpack.c.b16 %v2535, %v2534
      %v2549 = vpack.c.b16 %v2537, %v2536
      %v2550 = vpack.c.b16 %v2539, %v2538
      %v2551 = vpack.c.b16 %v2541, %v2540
      %v2552 = vpack.c.b16 %v2543, %v2542
      %v2553 = vpack.c.b16 %v2545, %v2544
      %2562 = vmatprep.subr.bf16.mxu0 0
      %2563 = vmatpush1.bf16.msra.mxu0 %v2546
      %2564 = vmatprep.subr.bf16.mxu0 0
      %2565 = vmatpush1.bf16.msra.mxu0 %v2547
      %2566 = vmatprep.subr.bf16.mxu0 0
      %2567 = vmatpush1.bf16.msra.mxu0 %v2548
      %2568 = vmatprep.subr.bf16.mxu0 0
      %2569 = vmatpush1.bf16.msra.mxu0 %v2549
      %2570 = vmatprep.subr.bf16.mxu0 0
      %2571 = vmatpush1.bf16.msra.mxu0 %v2550
      %2572 = vmatprep.subr.bf16.mxu0 0
      %2573 = vmatpush1.bf16.msra.mxu0 %v2551
      %2574 = vmatprep.subr.bf16.mxu0 0
      %2575 = vmatpush1.bf16.msra.mxu0 %v2552
      %2576 = vmatprep.subr.bf16.mxu0 0
      %2577 = vmatpush1.bf16.msra.mxu0 %v2553
      %2578 = vmatprep.subr.bf16.mxu0 0
      %2579 = vmatpush1.bf16.msra.mxu0 0
      %2580 = vmatprep.subr.bf16.mxu0 0
      %2581 = vmatpush1.bf16.msra.mxu0 0
      %2582 = vmatprep.subr.bf16.mxu0 0
      %2583 = vmatpush1.bf16.msra.mxu0 0
      %2584 = vmatprep.subr.bf16.mxu0 0
      %2585 = vmatpush1.bf16.msra.mxu0 0
      %2586 = vmatprep.subr.bf16.mxu0 0
      %2587 = vmatpush1.bf16.msra.mxu0 0
      %2588 = vmatprep.subr.bf16.mxu0 0
      %2589 = vmatpush1.bf16.msra.mxu0 0
      %2590 = vmatprep.subr.bf16.mxu0 0
      %2591 = vmatpush1.bf16.msra.mxu0 0
      %2592 = vmatprep.subr.bf16.mxu0 0
      %2593 = vmatpush1.bf16.msra.mxu0 0
      %2594 = vmatprep.mubr.bf16.mxu0 0
      %2595 = vmatmul.mubr.bf16.gmra.mrb[0].mxu0 %v2481
      %v2596 = vpop.f32.mrb[0].mxu0
      %v2597 = vadd.f32 0.0, %v2596
      %v2598 = vpop.f32.mrb[0].mxu0
      %v2599 = vpop.f32.mrb[0].mxu0
      %v2600 = vadd.f32 0.0, %v2599
      %v2601 = vpop.f32.mrb[0].mxu0
      %2602 = vmatprep.mubr.bf16.mxu0 0
      %2603 = vmatmul.mubr.bf16.gmra.mrb[0].mxu0 %v2482
      %v2604 = vpop.f32.mrb[0].mxu0
      %v2605 = vadd.f32 0.0, %v2604
      %v2606 = vpop.f32.mrb[0].mxu0
      %v2607 = vpop.f32.mrb[0].mxu0
      %v2608 = vadd.f32 0.0, %v2607
      %v2609 = vpop.f32.mrb[0].mxu0
      %2610 = vmatprep.mubr.bf16.mxu0 0
      %2611 = vmatmul.mubr.bf16.gmra.mrb[0].mxu0 %v2483
      %v2612 = vpop.f32.mrb[0].mxu0
      %v2613 = vadd.f32 0.0, %v2612
      %v2614 = vpop.f32.mrb[0].mxu0
      %v2615 = vpop.f32.mrb[0].mxu0
      %v2616 = vadd.f32 0.0, %v2615
      %v2617 = vpop.f32.mrb[0].mxu0
      %2618 = vmatprep.mubr.bf16.mxu0 0
      %2619 = vmatmul.mubr.bf16.gmra.mrb[0].mxu0 %v2484
      %v2620 = vpop.f32.mrb[0].mxu0
      %v2621 = vadd.f32 0.0, %v2620
      %v2622 = vpop.f32.mrb[0].mxu0
      %v2623 = vpop.f32.mrb[0].mxu0
      %v2624 = vadd.f32 0.0, %v2623
      %v2625 = vpop.f32.mrb[0].mxu0
      %2626 = vmatprep.mubr.bf16.mxu0 0
      %2627 = vmatmul.mubr.bf16.gmra.mrb[0].mxu0 %v2485
      %v2628 = vpop.f32.mrb[0].mxu0
      %v2629 = vadd.f32 0.0, %v2628
      %v2630 = vpop.f32.mrb[0].mxu0
      %v2631 = vpop.f32.mrb[0].mxu0
      %v2632 = vadd.f32 0.0, %v2631
      %v2633 = vpop.f32.mrb[0].mxu0
      %2634 = vmatprep.mubr.bf16.mxu0 0
      %2635 = vmatmul.mubr.bf16.gmra.mrb[0].mxu0 %v2486
      %v2636 = vpop.f32.mrb[0].mxu0
      %v2637 = vadd.f32 0.0, %v2636
      %v2638 = vpop.f32.mrb[0].mxu0
      %v2639 = vpop.f32.mrb[0].mxu0
      %v2640 = vadd.f32 0.0, %v2639
      %v2641 = vpop.f32.mrb[0].mxu0
      %2642 = vmatprep.mubr.bf16.mxu0 0
      %2643 = vmatmul.mubr.bf16.gmra.mrb[0].mxu0 %v2487
      %v2644 = vpop.f32.mrb[0].mxu0
      %v2645 = vadd.f32 0.0, %v2644
      %v2646 = vpop.f32.mrb[0].mxu0
      %v2647 = vpop.f32.mrb[0].mxu0
      %v2648 = vadd.f32 0.0, %v2647
      %v2649 = vpop.f32.mrb[0].mxu0
      %2650 = vmatprep.mubr.bf16.mxu0 0
      %2651 = vmatmul.mubr.bf16.gmra.mrb[0].mxu0 %v2488
      %v2652 = vpop.f32.mrb[0].mxu0
      %v2653 = vadd.f32 0.0, %v2652
      %v2654 = vpop.f32.mrb[0].mxu0
      %v2655 = vpop.f32.mrb[0].mxu0
      %v2656 = vadd.f32 0.0, %v2655
      %v2657 = vpop.f32.mrb[0].mxu0
      %2658 = vmatprep.mubr.bf16.mxu0 0
      %2659 = vmatmul.mubr.bf16.gmra.mrb[0].mxu0 %v2489
      %v2660 = vpop.f32.mrb[0].mxu0
      %v2661 = vadd.f32 0.0, %v2660
      %v2662 = vpop.f32.mrb[0].mxu0
      %v2663 = vpop.f32.mrb[0].mxu0
      %v2664 = vadd.f32 0.0, %v2663
      %v2665 = vpop.f32.mrb[0].mxu0
      %2666 = vmatprep.mubr.bf16.mxu0 0
      %2667 = vmatmul.mubr.bf16.gmra.mrb[0].mxu0 %v2490
      %v2668 = vpop.f32.mrb[0].mxu0
      %v2669 = vadd.f32 0.0, %v2668
      %v2670 = vpop.f32.mrb[0].mxu0
      %v2671 = vpop.f32.mrb[0].mxu0
      %v2672 = vadd.f32 0.0, %v2671
      %v2673 = vpop.f32.mrb[0].mxu0
      %2674 = vmatprep.mubr.bf16.mxu0 0
      %2675 = vmatmul.mubr.bf16.gmra.mrb[0].mxu0 %v2491
      %v2676 = vpop.f32.mrb[0].mxu0
      %v2677 = vadd.f32 0.0, %v2676
      %v2678 = vpop.f32.mrb[0].mxu0
      %v2679 = vpop.f32.mrb[0].mxu0
      %v2680 = vadd.f32 0.0, %v2679
      %v2681 = vpop.f32.mrb[0].mxu0
      %2682 = vmatprep.mubr.bf16.mxu0 0
      %2683 = vmatmul.mubr.bf16.gmra.mrb[0].mxu0 %v2492
      %v2684 = vpop.f32.mrb[0].mxu0
      %v2685 = vadd.f32 0.0, %v2684
      %v2686 = vpop.f32.mrb[0].mxu0
      %v2687 = vpop.f32.mrb[0].mxu0
      %v2688 = vadd.f32 0.0, %v2687
      %v2689 = vpop.f32.mrb[0].mxu0
      %2690 = vmatprep.mubr.bf16.mxu0 0
      %2691 = vmatmul.mubr.bf16.gmra.mrb[0].mxu0 %v2493
      %v2692 = vpop.f32.mrb[0].mxu0
      %v2693 = vadd.f32 0.0, %v2692
      %v2694 = vpop.f32.mrb[0].mxu0
      %v2695 = vpop.f32.mrb[0].mxu0
      %v2696 = vadd.f32 0.0, %v2695
      %v2697 = vpop.f32.mrb[0].mxu0
      %2698 = vmatprep.mubr.bf16.mxu0 0
      %2699 = vmatmul.mubr.bf16.gmra.mrb[0].mxu0 %v2494
      %v2700 = vpop.f32.mrb[0].mxu0
      %v2701 = vadd.f32 0.0, %v2700
      %v2702 = vpop.f32.mrb[0].mxu0
      %v2703 = vpop.f32.mrb[0].mxu0
      %v2704 = vadd.f32 0.0, %v2703
      %v2705 = vpop.f32.mrb[0].mxu0
      %2706 = vmatprep.mubr.bf16.mxu0 0
      %2707 = vmatmul.mubr.bf16.gmra.mrb[0].mxu0 %v2495
      %v2708 = vpop.f32.mrb[0].mxu0
      %v2709 = vadd.f32 0.0, %v2708
      %v2710 = vpop.f32.mrb[0].mxu0
      %v2711 = vpop.f32.mrb[0].mxu0
      %v2712 = vadd.f32 0.0, %v2711
      %v2713 = vpop.f32.mrb[0].mxu0
      %2714 = vmatprep.mubr.bf16.mxu0 0
      %2715 = vmatmul.mubr.bf16.gmra.mrb[0].mxu0 %v2496
      %v2716 = vpop.f32.mrb[0].mxu0
      %v2717 = vadd.f32 0.0, %v2716
      %v2718 = vpop.f32.mrb[0].mxu0
      %v2719 = vpop.f32.mrb[0].mxu0
      %v2720 = vadd.f32 0.0, %v2719
      %v2721 = vpop.f32.mrb[0].mxu0
      %2722 = vdwg.mxu0
      %v2739 = vunpack.c.l.b16 %v2241
      %v2740 = vunpack.c.l.b16 %v2242
      %v2741 = vunpack.c.l.b16 %v2243
      %v2742 = vunpack.c.l.b16 %v2244
      %v2743 = vunpack.c.l.b16 %v2245
      %v2744 = vunpack.c.l.b16 %v2246
      %v2745 = vunpack.c.l.b16 %v2247
      %v2746 = vunpack.c.l.b16 %v2248
      %v2747 = vunpack.c.l.b16 %v2249
      %v2748 = vunpack.c.l.b16 %v2250
      %v2749 = vunpack.c.l.b16 %v2251
      %v2750 = vunpack.c.l.b16 %v2252
      %v2751 = vunpack.c.l.b16 %v2253
      %v2752 = vunpack.c.l.b16 %v2254
      %v2753 = vunpack.c.l.b16 %v2255
      %v2754 = vunpack.c.l.b16 %v2256
      %v2755 = vpack.c.b16 %v2740, %v2739
      %v2756 = vpack.c.b16 %v2742, %v2741
      %v2757 = vpack.c.b16 %v2744, %v2743
      %v2758 = vpack.c.b16 %v2746, %v2745
      %v2759 = vpack.c.b16 %v2748, %v2747
      %v2760 = vpack.c.b16 %v2750, %v2749
      %v2761 = vpack.c.b16 %v2752, %v2751
      %v2762 = vpack.c.b16 %v2754, %v2753
      %2771 = vmatprep.subr.bf16.mxu0 0
      %2772 = vmatpush1.bf16.msra.mxu0 %v2755
      %2773 = vmatprep.subr.bf16.mxu0 0
      %2774 = vmatpush1.bf16.msra.mxu0 %v2756
      %2775 = vmatprep.subr.bf16.mxu0 0
      %2776 = vmatpush1.bf16.msra.mxu0 %v2757
      %2777 = vmatprep.subr.bf16.mxu0 0
      %2778 = vmatpush1.bf16.msra.mxu0 %v2758
      %2779 = vmatprep.subr.bf16.mxu0 0
      %2780 = vmatpush1.bf16.msra.mxu0 %v2759
      %2781 = vmatprep.subr.bf16.mxu0 0
      %2782 = vmatpush1.bf16.msra.mxu0 %v2760
      %2783 = vmatprep.subr.bf16.mxu0 0
      %2784 = vmatpush1.bf16.msra.mxu0 %v2761
      %2785 = vmatprep.subr.bf16.mxu0 0
      %2786 = vmatpush1.bf16.msra.mxu0 %v2762
      %2787 = vmatprep.subr.bf16.mxu0 0
      %2788 = vmatpush1.bf16.msra.mxu0 0
      %2789 = vmatprep.subr.bf16.mxu0 0
      %2790 = vmatpush1.bf16.msra.mxu0 0
      %2791 = vmatprep.subr.bf16.mxu0 0
      %2792 = vmatpush1.bf16.msra.mxu0 0
      %2793 = vmatprep.subr.bf16.mxu0 0
      %2794 = vmatpush1.bf16.msra.mxu0 0
      %2795 = vmatprep.subr.bf16.mxu0 0
      %2796 = vmatpush1.bf16.msra.mxu0 0
      %2797 = vmatprep.subr.bf16.mxu0 0
      %2798 = vmatpush1.bf16.msra.mxu0 0
      %2799 = vmatprep.subr.bf16.mxu0 0
      %2800 = vmatpush1.bf16.msra.mxu0 0
      %2801 = vmatprep.subr.bf16.mxu0 0
      %2802 = vmatpush1.bf16.msra.mxu0 0
      %2803 = vmatprep.mubr.bf16.mxu0 0
      %2804 = vmatmul.mubr.bf16.gmra.mrb[0].mxu0 %v2225
      %v2805 = vpop.f32.mrb[0].mxu0
      %v2806 = vadd.f32 %v2597, %v2805
      %v2807 = vpop.f32.mrb[0].mxu0
      %v2808 = vpop.f32.mrb[0].mxu0
      %v2809 = vadd.f32 %v2600, %v2808
      %v2810 = vpop.f32.mrb[0].mxu0
      %2811 = vmatprep.mubr.bf16.mxu0 0
      %2812 = vmatmul.mubr.bf16.gmra.mrb[0].mxu0 %v2226
      %v2813 = vpop.f32.mrb[0].mxu0
      %v2814 = vadd.f32 %v2605, %v2813
      %v2815 = vpop.f32.mrb[0].mxu0
      %v2816 = vpop.f32.mrb[0].mxu0
      %v2817 = vadd.f32 %v2608, %v2816
      %v2818 = vpop.f32.mrb[0].mxu0
      %2819 = vmatprep.mubr.bf16.mxu0 0
      %2820 = vmatmul.mubr.bf16.gmra.mrb[0].mxu0 %v2227
      %v2821 = vpop.f32.mrb[0].mxu0
      %v2822 = vadd.f32 %v2613, %v2821
      %v2823 = vpop.f32.mrb[0].mxu0
      %v2824 = vpop.f32.mrb[0].mxu0
      %v2825 = vadd.f32 %v2616, %v2824
      %v2826 = vpop.f32.mrb[0].mxu0
      %2827 = vmatprep.mubr.bf16.mxu0 0
      %2828 = vmatmul.mubr.bf16.gmra.mrb[0].mxu0 %v2228
      %v2829 = vpop.f32.mrb[0].mxu0
      %v2830 = vadd.f32 %v2621, %v2829
      %v2831 = vpop.f32.mrb[0].mxu0
      %v2832 = vpop.f32.mrb[0].mxu0
      %v2833 = vadd.f32 %v2624, %v2832
      %v2834 = vpop.f32.mrb[0].mxu0
      %2835 = vmatprep.mubr.bf16.mxu0 0
      %2836 = vmatmul.mubr.bf16.gmra.mrb[0].mxu0 %v2229
      %v2837 = vpop.f32.mrb[0].mxu0
      %v2838 = vadd.f32 %v2629, %v2837
      %v2839 = vpop.f32.mrb[0].mxu0
      %v2840 = vpop.f32.mrb[0].mxu0
      %v2841 = vadd.f32 %v2632, %v2840
      %v2842 = vpop.f32.mrb[0].mxu0
      %2843 = vmatprep.mubr.bf16.mxu0 0
      %2844 = vmatmul.mubr.bf16.gmra.mrb[0].mxu0 %v2230
      %v2845 = vpop.f32.mrb[0].mxu0
      %v2846 = vadd.f32 %v2637, %v2845
      %v2847 = vpop.f32.mrb[0].mxu0
      %v2848 = vpop.f32.mrb[0].mxu0
      %v2849 = vadd.f32 %v2640, %v2848
      %v2850 = vpop.f32.mrb[0].mxu0
      %2851 = vmatprep.mubr.bf16.mxu0 0
      %2852 = vmatmul.mubr.bf16.gmra.mrb[0].mxu0 %v2231
      %v2853 = vpop.f32.mrb[0].mxu0
      %v2854 = vadd.f32 %v2645, %v2853
      %v2855 = vpop.f32.mrb[0].mxu0
      %v2856 = vpop.f32.mrb[0].mxu0
      %v2857 = vadd.f32 %v2648, %v2856
      %v2858 = vpop.f32.mrb[0].mxu0
      %2859 = vmatprep.mubr.bf16.mxu0 0
      %2860 = vmatmul.mubr.bf16.gmra.mrb[0].mxu0 %v2232
      %v2861 = vpop.f32.mrb[0].mxu0
      %v2862 = vadd.f32 %v2653, %v2861
      %v2863 = vpop.f32.mrb[0].mxu0
      %v2864 = vpop.f32.mrb[0].mxu0
      %v2865 = vadd.f32 %v2656, %v2864
      %v2866 = vpop.f32.mrb[0].mxu0
      %2867 = vmatprep.mubr.bf16.mxu0 0
      %2868 = vmatmul.mubr.bf16.gmra.mrb[0].mxu0 %v2233
      %v2869 = vpop.f32.mrb[0].mxu0
      %v2870 = vadd.f32 %v2661, %v2869
      %v2871 = vpop.f32.mrb[0].mxu0
      %v2872 = vpop.f32.mrb[0].mxu0
      %v2873 = vadd.f32 %v2664, %v2872
      %v2874 = vpop.f32.mrb[0].mxu0
      %2875 = vmatprep.mubr.bf16.mxu0 0
      %2876 = vmatmul.mubr.bf16.gmra.mrb[0].mxu0 %v2234
      %v2877 = vpop.f32.mrb[0].mxu0
      %v2878 = vadd.f32 %v2669, %v2877
      %v2879 = vpop.f32.mrb[0].mxu0
      %v2880 = vpop.f32.mrb[0].mxu0
      %v2881 = vadd.f32 %v2672, %v2880
      %v2882 = vpop.f32.mrb[0].mxu0
      %2883 = vmatprep.mubr.bf16.mxu0 0
      %2884 = vmatmul.mubr.bf16.gmra.mrb[0].mxu0 %v2235
      %v2885 = vpop.f32.mrb[0].mxu0
      %v2886 = vadd.f32 %v2677, %v2885
      %v2887 = vpop.f32.mrb[0].mxu0
      %v2888 = vpop.f32.mrb[0].mxu0
      %v2889 = vadd.f32 %v2680, %v2888
      %v2890 = vpop.f32.mrb[0].mxu0
      %2891 = vmatprep.mubr.bf16.mxu0 0
      %2892 = vmatmul.mubr.bf16.gmra.mrb[0].mxu0 %v2236
      %v2893 = vpop.f32.mrb[0].mxu0
      %v2894 = vadd.f32 %v2685, %v2893
      %v2895 = vpop.f32.mrb[0].mxu0
      %v2896 = vpop.f32.mrb[0].mxu0
      %v2897 = vadd.f32 %v2688, %v2896
      %v2898 = vpop.f32.mrb[0].mxu0
      %2899 = vmatprep.mubr.bf16.mxu0 0
      %2900 = vmatmul.mubr.bf16.gmra.mrb[0].mxu0 %v2237
      %v2901 = vpop.f32.mrb[0].mxu0
      %v2902 = vadd.f32 %v2693, %v2901
      %v2903 = vpop.f32.mrb[0].mxu0
      %v2904 = vpop.f32.mrb[0].mxu0
      %v2905 = vadd.f32 %v2696, %v2904
      %v2906 = vpop.f32.mrb[0].mxu0
      %2907 = vmatprep.mubr.bf16.mxu0 0
      %2908 = vmatmul.mubr.bf16.gmra.mrb[0].mxu0 %v2238
      %v2909 = vpop.f32.mrb[0].mxu0
      %v2910 = vadd.f32 %v2701, %v2909
      %v2911 = vpop.f32.mrb[0].mxu0
      %v2912 = vpop.f32.mrb[0].mxu0
      %v2913 = vadd.f32 %v2704, %v2912
      %v2914 = vpop.f32.mrb[0].mxu0
      %2915 = vmatprep.mubr.bf16.mxu0 0
      %2916 = vmatmul.mubr.bf16.gmra.mrb[0].mxu0 %v2239
      %v2917 = vpop.f32.mrb[0].mxu0
      %v2918 = vadd.f32 %v2709, %v2917
      %v2919 = vpop.f32.mrb[0].mxu0
      %v2920 = vpop.f32.mrb[0].mxu0
      %v2921 = vadd.f32 %v2712, %v2920
      %v2922 = vpop.f32.mrb[0].mxu0
      %2923 = vmatprep.mubr.bf16.mxu0 0
      %2924 = vmatmul.mubr.bf16.gmra.mrb[0].mxu0 %v2240
      %v2925 = vpop.f32.mrb[0].mxu0
      %v2926 = vadd.f32 %v2717, %v2925
      %v2927 = vpop.f32.mrb[0].mxu0
      %v2928 = vpop.f32.mrb[0].mxu0
      %v2929 = vadd.f32 %v2720, %v2928
      %v2930 = vpop.f32.mrb[0].mxu0
      %2931 = vdwg.mxu0
      %v2932 = vadd.s32 %v1679, 1
      %v2933 = vadd.s32 %v1680, 1
      %v2934 = vadd.s32 %v1681, 1
      %v2935 = vadd.s32 %v1682, 1
      %v2936 = vadd.s32 %v1683, 1
      %v2937 = vadd.s32 %v1684, 1
      %v2938 = vadd.s32 %v1685, 1
      %v2939 = vadd.s32 %v1686, 1
      %v2940 = vadd.s32 %v1687, 1
      %v2941 = vadd.s32 %v1688, 1
      %v2942 = vadd.s32 %v1689, 1
      %v2943 = vadd.s32 %v1690, 1
      %v2944 = vadd.s32 %v1691, 1
      %v2945 = vadd.s32 %v1692, 1
      %v2946 = vadd.s32 %v1693, 1
      %v2947 = vadd.s32 %v1694, 1
      %v2948 = vadd.s32 %v1695, 1
      %v2949 = vadd.s32 %v1696, 1
      %v2950 = vadd.s32 %v1697, 1
      %v2951 = vadd.s32 %v1698, 1
      %v2952 = vadd.s32 %v1699, 1
      %v2953 = vadd.s32 %v1700, 1
      %v2954 = vadd.s32 %v1701, 1
      %v2955 = vadd.s32 %v1702, 1
      %v2956 = vadd.s32 %v1703, 1
      %v2957 = vadd.s32 %v1704, 1
      %v2958 = vadd.s32 %v1705, 1
      %v2959 = vadd.s32 %v1706, 1
      %v2960 = vadd.s32 %v1707, 1
      %v2961 = vadd.s32 %v1708, 1
      %v2962 = vadd.s32 %v1709, 1
      %v2963 = vadd.s32 %v1710, 1
      %vm2964 = vcmp.ge.s32.totalorder %v2932, 0
      %vm2965 = vcmp.ge.s32.totalorder %v2933, 0
      %vm2966 = vcmp.ge.s32.totalorder %v2934, 0
      %vm2967 = vcmp.ge.s32.totalorder %v2935, 0
      %vm2968 = vcmp.ge.s32.totalorder %v2936, 0
      %vm2969 = vcmp.ge.s32.totalorder %v2937, 0
      %vm2970 = vcmp.ge.s32.totalorder %v2938, 0
      %vm2971 = vcmp.ge.s32.totalorder %v2939, 0
      %vm2972 = vcmp.ge.s32.totalorder %v2940, 0
      %vm2973 = vcmp.ge.s32.totalorder %v2941, 0
      %vm2974 = vcmp.ge.s32.totalorder %v2942, 0
      %vm2975 = vcmp.ge.s32.totalorder %v2943, 0
      %vm2976 = vcmp.ge.s32.totalorder %v2944, 0
      %vm2977 = vcmp.ge.s32.totalorder %v2945, 0
      %vm2978 = vcmp.ge.s32.totalorder %v2946, 0
      %vm2979 = vcmp.ge.s32.totalorder %v2947, 0
      %vm2980 = vcmp.ge.s32.totalorder %v2948, 0
      %vm2981 = vcmp.ge.s32.totalorder %v2949, 0
      %vm2982 = vcmp.ge.s32.totalorder %v2950, 0
      %vm2983 = vcmp.ge.s32.totalorder %v2951, 0
      %vm2984 = vcmp.ge.s32.totalorder %v2952, 0
      %vm2985 = vcmp.ge.s32.totalorder %v2953, 0
      %vm2986 = vcmp.ge.s32.totalorder %v2954, 0
      %vm2987 = vcmp.ge.s32.totalorder %v2955, 0
      %vm2988 = vcmp.ge.s32.totalorder %v2956, 0
      %vm2989 = vcmp.ge.s32.totalorder %v2957, 0
      %vm2990 = vcmp.ge.s32.totalorder %v2958, 0
      %vm2991 = vcmp.ge.s32.totalorder %v2959, 0
      %vm2992 = vcmp.ge.s32.totalorder %v2960, 0
      %vm2993 = vcmp.ge.s32.totalorder %v2961, 0
      %vm2994 = vcmp.ge.s32.totalorder %v2962, 0
      %vm2995 = vcmp.ge.s32.totalorder %v2963, 0
      %vm2996 = vmand %vm1807, %vm2964
      %vm2997 = vmand %vm1808, %vm2965
      %vm2998 = vmand %vm1809, %vm2966
      %vm2999 = vmand %vm1810, %vm2967
      %vm3000 = vmand %vm1811, %vm2968
      %vm3001 = vmand %vm1812, %vm2969
      %vm3002 = vmand %vm1813, %vm2970
      %vm3003 = vmand %vm1814, %vm2971
      %vm3004 = vmand %vm1815, %vm2972
      %vm3005 = vmand %vm1816, %vm2973
      %vm3006 = vmand %vm1817, %vm2974
      %vm3007 = vmand %vm1818, %vm2975
      %vm3008 = vmand %vm1819, %vm2976
      %vm3009 = vmand %vm1820, %vm2977
      %vm3010 = vmand %vm1821, %vm2978
      %vm3011 = vmand %vm1822, %vm2979
      %vm3012 = vmand %vm1823, %vm2980
      %vm3013 = vmand %vm1824, %vm2981
      %vm3014 = vmand %vm1825, %vm2982
      %vm3015 = vmand %vm1826, %vm2983
      %vm3016 = vmand %vm1827, %vm2984
      %vm3017 = vmand %vm1828, %vm2985
      %vm3018 = vmand %vm1829, %vm2986
      %vm3019 = vmand %vm1830, %vm2987
      %vm3020 = vmand %vm1831, %vm2988
      %vm3021 = vmand %vm1832, %vm2989
      %vm3022 = vmand %vm1833, %vm2990
      %vm3023 = vmand %vm1834, %vm2991
      %vm3024 = vmand %vm1835, %vm2992
      %vm3025 = vmand %vm1836, %vm2993
      %vm3026 = vmand %vm1837, %vm2994
      %vm3027 = vmand %vm1838, %vm2995
      %vm3028 = vcmp.lt.s32.totalorder %v2932, 16
      %vm3029 = vcmp.lt.s32.totalorder %v2933, 16
      %vm3030 = vcmp.lt.s32.totalorder %v2934, 16
      %vm3031 = vcmp.lt.s32.totalorder %v2935, 16
      %vm3032 = vcmp.lt.s32.totalorder %v2936, 16
      %vm3033 = vcmp.lt.s32.totalorder %v2937, 16
      %vm3034 = vcmp.lt.s32.totalorder %v2938, 16
      %vm3035 = vcmp.lt.s32.totalorder %v2939, 16
      %vm3036 = vcmp.lt.s32.totalorder %v2940, 16
      %vm3037 = vcmp.lt.s32.totalorder %v2941, 16
      %vm3038 = vcmp.lt.s32.totalorder %v2942, 16
      %vm3039 = vcmp.lt.s32.totalorder %v2943, 16
      %vm3040 = vcmp.lt.s32.totalorder %v2944, 16
      %vm3041 = vcmp.lt.s32.totalorder %v2945, 16
      %vm3042 = vcmp.lt.s32.totalorder %v2946, 16
      %vm3043 = vcmp.lt.s32.totalorder %v2947, 16
      %vm3044 = vcmp.lt.s32.totalorder %v2948, 16
      %vm3045 = vcmp.lt.s32.totalorder %v2949, 16
      %vm3046 = vcmp.lt.s32.totalorder %v2950, 16
      %vm3047 = vcmp.lt.s32.totalorder %v2951, 16
      %vm3048 = vcmp.lt.s32.totalorder %v2952, 16
      %vm3049 = vcmp.lt.s32.totalorder %v2953, 16
      %vm3050 = vcmp.lt.s32.totalorder %v2954, 16
      %vm3051 = vcmp.lt.s32.totalorder %v2955, 16
      %vm3052 = vcmp.lt.s32.totalorder %v2956, 16
      %vm3053 = vcmp.lt.s32.totalorder %v2957, 16
      %vm3054 = vcmp.lt.s32.totalorder %v2958, 16
      %vm3055 = vcmp.lt.s32.totalorder %v2959, 16
      %vm3056 = vcmp.lt.s32.totalorder %v2960, 16
      %vm3057 = vcmp.lt.s32.totalorder %v2961, 16
      %vm3058 = vcmp.lt.s32.totalorder %v2962, 16
      %vm3059 = vcmp.lt.s32.totalorder %v2963, 16
      %vm3060 = vmand %vm2996, %vm3028
      %vm3061 = vmand %vm2997, %vm3029
      %vm3062 = vmand %vm2998, %vm3030
      %vm3063 = vmand %vm2999, %vm3031
      %vm3064 = vmand %vm3000, %vm3032
      %vm3065 = vmand %vm3001, %vm3033
      %vm3066 = vmand %vm3002, %vm3034
      %vm3067 = vmand %vm3003, %vm3035
      %vm3068 = vmand %vm3004, %vm3036
      %vm3069 = vmand %vm3005, %vm3037
      %vm3070 = vmand %vm3006, %vm3038
      %vm3071 = vmand %vm3007, %vm3039
      %vm3072 = vmand %vm3008, %vm3040
      %vm3073 = vmand %vm3009, %vm3041
      %vm3074 = vmand %vm3010, %vm3042
      %vm3075 = vmand %vm3011, %vm3043
      %vm3076 = vmand %vm3012, %vm3044
      %vm3077 = vmand %vm3013, %vm3045
      %vm3078 = vmand %vm3014, %vm3046
      %vm3079 = vmand %vm3015, %vm3047
      %vm3080 = vmand %vm3016, %vm3048
      %vm3081 = vmand %vm3017, %vm3049
      %vm3082 = vmand %vm3018, %vm3050
      %vm3083 = vmand %vm3019, %vm3051
      %vm3084 = vmand %vm3020, %vm3052
      %vm3085 = vmand %vm3021, %vm3053
      %vm3086 = vmand %vm3022, %vm3054
      %vm3087 = vmand %vm3023, %vm3055
      %vm3088 = vmand %vm3024, %vm3056
      %vm3089 = vmand %vm3025, %vm3057
      %vm3090 = vmand %vm3026, %vm3058
      %vm3091 = vmand %vm3027, %vm3059
      %vm3092 = vcmask 1046528
      %v3093 = vrot.slane %v857, 1
      %v3094 = vrot.slane %v858, 1
      %v3095 = vsel %vm3092, %v3093, %v3094
      %v3098 = vrot.slane %v827, 1
      %v3099 = vrot.slane %v828, 1
      %v3100 = vsel %vm3092, %v3098, %v3099
      %v3101 = vrot.slane %v829, 1
      %v3102 = vsel %vm3092, %v3099, %v3101
      %v3103 = vrot.slane %v830, 1
      %v3104 = vsel %vm3092, %v3101, %v3103
      %v3105 = vrot.slane %v831, 1
      %v3106 = vsel %vm3092, %v3103, %v3105
      %v3107 = vrot.slane %v832, 1
      %v3108 = vsel %vm3092, %v3105, %v3107
      %v3109 = vrot.slane %v833, 1
      %v3110 = vsel %vm3092, %v3107, %v3109
      %v3111 = vrot.slane %v834, 1
      %v3112 = vsel %vm3092, %v3109, %v3111
      %v3113 = vrot.slane %v835, 1
      %v3114 = vsel %vm3092, %v3111, %v3113
      %v3115 = vrot.slane %v836, 1
      %v3116 = vsel %vm3092, %v3113, %v3115
      %v3117 = vrot.slane %v837, 1
      %v3118 = vsel %vm3092, %v3115, %v3117
      %v3119 = vrot.slane %v838, 1
      %v3120 = vsel %vm3092, %v3117, %v3119
      %v3121 = vrot.slane %v839, 1
      %v3122 = vsel %vm3092, %v3119, %v3121
      %v3123 = vrot.slane %v840, 1
      %v3124 = vsel %vm3092, %v3121, %v3123
      %v3125 = vrot.slane %v841, 1
      %v3126 = vsel %vm3092, %v3123, %v3125
      %v3127 = vrot.slane %v842, 1
      %v3128 = vsel %vm3092, %v3125, %v3127
      %v3129 = vrot.slane %v843, 1
      %v3130 = vsel %vm3092, %v3127, %v3129
      %v3131 = vrot.slane %v844, 1
      %v3132 = vsel %vm3092, %v3129, %v3131
      %v3133 = vrot.slane %v845, 1
      %v3134 = vsel %vm3092, %v3131, %v3133
      %v3135 = vrot.slane %v846, 1
      %v3136 = vsel %vm3092, %v3133, %v3135
      %v3137 = vrot.slane %v847, 1
      %v3138 = vsel %vm3092, %v3135, %v3137
      %v3139 = vrot.slane %v848, 1
      %v3140 = vsel %vm3092, %v3137, %v3139
      %v3141 = vrot.slane %v849, 1
      %v3142 = vsel %vm3092, %v3139, %v3141
      %v3143 = vrot.slane %v850, 1
      %v3144 = vsel %vm3092, %v3141, %v3143
      %v3145 = vrot.slane %v851, 1
      %v3146 = vsel %vm3092, %v3143, %v3145
      %v3147 = vrot.slane %v852, 1
      %v3148 = vsel %vm3092, %v3145, %v3147
      %v3149 = vrot.slane %v853, 1
      %v3150 = vsel %vm3092, %v3147, %v3149
      %v3151 = vrot.slane %v854, 1
      %v3152 = vsel %vm3092, %v3149, %v3151
      %v3153 = vrot.slane %v855, 1
      %v3154 = vsel %vm3092, %v3151, %v3153
      %v3155 = vrot.slane %v856, 1
      %v3156 = vsel %vm3092, %v3153, %v3155
      %v3157 = vsel %vm3092, %v3155, %v3093
      %v3189 = vsel %vm3092, %v3094, %v3098
      %v3190 = vsel %vm3060, 1, 0
      %v3191 = vsel %vm3061, 1, 0
      %v3192 = vsel %vm3062, 1, 0
      %v3193 = vsel %vm3063, 1, 0
      %v3194 = vsel %vm3064, 1, 0
      %v3195 = vsel %vm3065, 1, 0
      %v3196 = vsel %vm3066, 1, 0
      %v3197 = vsel %vm3067, 1, 0
      %v3198 = vsel %vm3068, 1, 0
      %v3199 = vsel %vm3069, 1, 0
      %v3200 = vsel %vm3070, 1, 0
      %v3201 = vsel %vm3071, 1, 0
      %v3202 = vsel %vm3072, 1, 0
      %v3203 = vsel %vm3073, 1, 0
      %v3204 = vsel %vm3074, 1, 0
      %v3205 = vsel %vm3075, 1, 0
      %v3206 = vsel %vm3076, 1, 0
      %v3207 = vsel %vm3077, 1, 0
      %v3208 = vsel %vm3078, 1, 0
      %v3209 = vsel %vm3079, 1, 0
      %v3210 = vsel %vm3080, 1, 0
      %v3211 = vsel %vm3081, 1, 0
      %v3212 = vsel %vm3082, 1, 0
      %v3213 = vsel %vm3083, 1, 0
      %v3214 = vsel %vm3084, 1, 0
      %v3215 = vsel %vm3085, 1, 0
      %v3216 = vsel %vm3086, 1, 0
      %v3217 = vsel %vm3087, 1, 0
      %v3218 = vsel %vm3088, 1, 0
      %v3219 = vsel %vm3089, 1, 0
      %v3220 = vsel %vm3090, 1, 0
      %v3221 = vsel %vm3091, 1, 0
      %vm3222 = vcmp.eq.s32.totalorder %v3190, 1
      %vm3223 = vcmp.eq.s32.totalorder %v3191, 1
      %vm3224 = vcmp.eq.s32.totalorder %v3192, 1
      %vm3225 = vcmp.eq.s32.totalorder %v3193, 1
      %vm3226 = vcmp.eq.s32.totalorder %v3194, 1
      %vm3227 = vcmp.eq.s32.totalorder %v3195, 1
      %vm3228 = vcmp.eq.s32.totalorder %v3196, 1
      %vm3229 = vcmp.eq.s32.totalorder %v3197, 1
      %vm3230 = vcmp.eq.s32.totalorder %v3198, 1
      %vm3231 = vcmp.eq.s32.totalorder %v3199, 1
      %vm3232 = vcmp.eq.s32.totalorder %v3200, 1
      %vm3233 = vcmp.eq.s32.totalorder %v3201, 1
      %vm3234 = vcmp.eq.s32.totalorder %v3202, 1
      %vm3235 = vcmp.eq.s32.totalorder %v3203, 1
      %vm3236 = vcmp.eq.s32.totalorder %v3204, 1
      %vm3237 = vcmp.eq.s32.totalorder %v3205, 1
      %vm3238 = vcmp.eq.s32.totalorder %v3206, 1
      %vm3239 = vcmp.eq.s32.totalorder %v3207, 1
      %vm3240 = vcmp.eq.s32.totalorder %v3208, 1
      %vm3241 = vcmp.eq.s32.totalorder %v3209, 1
      %vm3242 = vcmp.eq.s32.totalorder %v3210, 1
      %vm3243 = vcmp.eq.s32.totalorder %v3211, 1
      %vm3244 = vcmp.eq.s32.totalorder %v3212, 1
      %vm3245 = vcmp.eq.s32.totalorder %v3213, 1
      %vm3246 = vcmp.eq.s32.totalorder %v3214, 1
      %vm3247 = vcmp.eq.s32.totalorder %v3215, 1
      %vm3248 = vcmp.eq.s32.totalorder %v3216, 1
      %vm3249 = vcmp.eq.s32.totalorder %v3217, 1
      %vm3250 = vcmp.eq.s32.totalorder %v3218, 1
      %vm3251 = vcmp.eq.s32.totalorder %v3219, 1
      %vm3252 = vcmp.eq.s32.totalorder %v3220, 1
      %vm3253 = vcmp.eq.s32.totalorder %v3221, 1
      %v3254 = vsel %vm3222, %v3095, 0.0
      %v3255 = vsel %vm3223, %v3189, 0.0
      %v3256 = vsel %vm3224, %v3100, 0.0
      %v3257 = vsel %vm3225, %v3102, 0.0
      %v3258 = vsel %vm3226, %v3104, 0.0
      %v3259 = vsel %vm3227, %v3106, 0.0
      %v3260 = vsel %vm3228, %v3108, 0.0
      %v3261 = vsel %vm3229, %v3110, 0.0
      %v3262 = vsel %vm3230, %v3112, 0.0
      %v3263 = vsel %vm3231, %v3114, 0.0
      %v3264 = vsel %vm3232, %v3116, 0.0
      %v3265 = vsel %vm3233, %v3118, 0.0
      %v3266 = vsel %vm3234, %v3120, 0.0
      %v3267 = vsel %vm3235, %v3122, 0.0
      %v3268 = vsel %vm3236, %v3124, 0.0
      %v3269 = vsel %vm3237, %v3126, 0.0
      %v3270 = vsel %vm3238, %v3128, 0.0
      %v3271 = vsel %vm3239, %v3130, 0.0
      %v3272 = vsel %vm3240, %v3132, 0.0
      %v3273 = vsel %vm3241, %v3134, 0.0
      %v3274 = vsel %vm3242, %v3136, 0.0
      %v3275 = vsel %vm3243, %v3138, 0.0
      %v3276 = vsel %vm3244, %v3140, 0.0
      %v3277 = vsel %vm3245, %v3142, 0.0
      %v3278 = vsel %vm3246, %v3144, 0.0
      %v3279 = vsel %vm3247, %v3146, 0.0
      %v3280 = vsel %vm3248, %v3148, 0.0
      %v3281 = vsel %vm3249, %v3150, 0.0
      %v3282 = vsel %vm3250, %v3152, 0.0
      %v3283 = vsel %vm3251, %v3154, 0.0
      %v3284 = vsel %vm3252, %v3156, 0.0
      %v3285 = vsel %vm3253, %v3157, 0.0
      %v3286 = vpack.c.bf16 %v3255, %v3254
      %v3287 = vpack.c.bf16 %v3257, %v3256
      %v3288 = vpack.c.bf16 %v3259, %v3258
      %v3289 = vpack.c.bf16 %v3261, %v3260
      %v3290 = vpack.c.bf16 %v3263, %v3262
      %v3291 = vpack.c.bf16 %v3265, %v3264
      %v3292 = vpack.c.bf16 %v3267, %v3266
      %v3293 = vpack.c.bf16 %v3269, %v3268
      %v3294 = vpack.c.bf16 %v3271, %v3270
      %v3295 = vpack.c.bf16 %v3273, %v3272
      %v3296 = vpack.c.bf16 %v3275, %v3274
      %v3297 = vpack.c.bf16 %v3277, %v3276
      %v3298 = vpack.c.bf16 %v3279, %v3278
      %v3299 = vpack.c.bf16 %v3281, %v3280
      %v3300 = vpack.c.bf16 %v3283, %v3282
      %v3301 = vpack.c.bf16 %v3285, %v3284
      %s3302 = scalar_lea.vmem %s7, 128
      %v3303 = vld [vmem:[%s3302] sm:$0xf]
      %v3304 = vld [vmem:[%s3302 + $0x4] sm:$0xf]
      %v3305 = vld [vmem:[%s3302 + $0x8] sm:$0xf]
      %v3306 = vld [vmem:[%s3302 + $0xc] sm:$0xf]
      %v3307 = vld [vmem:[%s3302 + $0x10] sm:$0xf]
      %v3308 = vld [vmem:[%s3302 + $0x14] sm:$0xf]
      %v3309 = vld [vmem:[%s3302 + $0x18] sm:$0xf]
      %v3310 = vld [vmem:[%s3302 + $0x1c] sm:$0xf]
      %v3311 = vld [vmem:[%s3302 + $0x20] sm:$0xf]
      %v3312 = vld [vmem:[%s3302 + $0x24] sm:$0xf]
      %v3313 = vld [vmem:[%s3302 + $0x28] sm:$0xf]
      %v3314 = vld [vmem:[%s3302 + $0x2c] sm:$0xf]
      %v3315 = vld [vmem:[%s3302 + $0x30] sm:$0xf]
      %v3316 = vld [vmem:[%s3302 + $0x34] sm:$0xf]
      %v3317 = vld [vmem:[%s3302 + $0x38] sm:$0xf]
      %v3318 = vld [vmem:[%s3302 + $0x3c] sm:$0xf]
      %v3335 = vunpack.c.l.b16 %v3303
      %v3336 = vunpack.c.l.b16 %v3304
      %v3337 = vunpack.c.l.b16 %v3305
      %v3338 = vunpack.c.l.b16 %v3306
      %v3339 = vunpack.c.l.b16 %v3307
      %v3340 = vunpack.c.l.b16 %v3308
      %v3341 = vunpack.c.l.b16 %v3309
      %v3342 = vunpack.c.l.b16 %v3310
      %v3343 = vunpack.c.l.b16 %v3311
      %v3344 = vunpack.c.l.b16 %v3312
      %v3345 = vunpack.c.l.b16 %v3313
      %v3346 = vunpack.c.l.b16 %v3314
      %v3347 = vunpack.c.l.b16 %v3315
      %v3348 = vunpack.c.l.b16 %v3316
      %v3349 = vunpack.c.l.b16 %v3317
      %v3350 = vunpack.c.l.b16 %v3318
      %v3351 = vpack.c.b16 %v3336, %v3335
      %v3352 = vpack.c.b16 %v3338, %v3337
      %v3353 = vpack.c.b16 %v3340, %v3339
      %v3354 = vpack.c.b16 %v3342, %v3341
      %v3355 = vpack.c.b16 %v3344, %v3343
      %v3356 = vpack.c.b16 %v3346, %v3345
      %v3357 = vpack.c.b16 %v3348, %v3347
      %v3358 = vpack.c.b16 %v3350, %v3349
      %3367 = vmatprep.subr.bf16.mxu0 0
      %3368 = vmatpush1.bf16.msra.mxu0 %v3351
      %3369 = vmatprep.subr.bf16.mxu0 0
      %3370 = vmatpush1.bf16.msra.mxu0 %v3352
      %3371 = vmatprep.subr.bf16.mxu0 0
      %3372 = vmatpush1.bf16.msra.mxu0 %v3353
      %3373 = vmatprep.subr.bf16.mxu0 0
      %3374 = vmatpush1.bf16.msra.mxu0 %v3354
      %3375 = vmatprep.subr.bf16.mxu0 0
      %3376 = vmatpush1.bf16.msra.mxu0 %v3355
      %3377 = vmatprep.subr.bf16.mxu0 0
      %3378 = vmatpush1.bf16.msra.mxu0 %v3356
      %3379 = vmatprep.subr.bf16.mxu0 0
      %3380 = vmatpush1.bf16.msra.mxu0 %v3357
      %3381 = vmatprep.subr.bf16.mxu0 0
      %3382 = vmatpush1.bf16.msra.mxu0 %v3358
      %3383 = vmatprep.subr.bf16.mxu0 0
      %3384 = vmatpush1.bf16.msra.mxu0 0
      %3385 = vmatprep.subr.bf16.mxu0 0
      %3386 = vmatpush1.bf16.msra.mxu0 0
      %3387 = vmatprep.subr.bf16.mxu0 0
      %3388 = vmatpush1.bf16.msra.mxu0 0
      %3389 = vmatprep.subr.bf16.mxu0 0
      %3390 = vmatpush1.bf16.msra.mxu0 0
      %3391 = vmatprep.subr.bf16.mxu0 0
      %3392 = vmatpush1.bf16.msra.mxu0 0
      %3393 = vmatprep.subr.bf16.mxu0 0
      %3394 = vmatpush1.bf16.msra.mxu0 0
      %3395 = vmatprep.subr.bf16.mxu0 0
      %3396 = vmatpush1.bf16.msra.mxu0 0
      %3397 = vmatprep.subr.bf16.mxu0 0
      %3398 = vmatpush1.bf16.msra.mxu0 0
      %3399 = vmatprep.mubr.bf16.mxu0 0
      %3400 = vmatmul.mubr.bf16.gmra.mrb[0].mxu0 %v3286
      %v3401 = vpop.f32.mrb[0].mxu0
      %v3402 = vadd.f32 0.0, %v3401
      %v3403 = vpop.f32.mrb[0].mxu0
      %v3404 = vpop.f32.mrb[0].mxu0
      %v3405 = vadd.f32 0.0, %v3404
      %v3406 = vpop.f32.mrb[0].mxu0
      %3407 = vmatprep.mubr.bf16.mxu0 0
      %3408 = vmatmul.mubr.bf16.gmra.mrb[0].mxu0 %v3287
      %v3409 = vpop.f32.mrb[0].mxu0
      %v3410 = vadd.f32 0.0, %v3409
      %v3411 = vpop.f32.mrb[0].mxu0
      %v3412 = vpop.f32.mrb[0].mxu0
      %v3413 = vadd.f32 0.0, %v3412
      %v3414 = vpop.f32.mrb[0].mxu0
      %3415 = vmatprep.mubr.bf16.mxu0 0
      %3416 = vmatmul.mubr.bf16.gmra.mrb[0].mxu0 %v3288
      %v3417 = vpop.f32.mrb[0].mxu0
      %v3418 = vadd.f32 0.0, %v3417
      %v3419 = vpop.f32.mrb[0].mxu0
      %v3420 = vpop.f32.mrb[0].mxu0
      %v3421 = vadd.f32 0.0, %v3420
      %v3422 = vpop.f32.mrb[0].mxu0
      %3423 = vmatprep.mubr.bf16.mxu0 0
      %3424 = vmatmul.mubr.bf16.gmra.mrb[0].mxu0 %v3289
      %v3425 = vpop.f32.mrb[0].mxu0
      %v3426 = vadd.f32 0.0, %v3425
      %v3427 = vpop.f32.mrb[0].mxu0
      %v3428 = vpop.f32.mrb[0].mxu0
      %v3429 = vadd.f32 0.0, %v3428
      %v3430 = vpop.f32.mrb[0].mxu0
      %3431 = vmatprep.mubr.bf16.mxu0 0
      %3432 = vmatmul.mubr.bf16.gmra.mrb[0].mxu0 %v3290
      %v3433 = vpop.f32.mrb[0].mxu0
      %v3434 = vadd.f32 0.0, %v3433
      %v3435 = vpop.f32.mrb[0].mxu0
      %v3436 = vpop.f32.mrb[0].mxu0
      %v3437 = vadd.f32 0.0, %v3436
      %v3438 = vpop.f32.mrb[0].mxu0
      %3439 = vmatprep.mubr.bf16.mxu0 0
      %3440 = vmatmul.mubr.bf16.gmra.mrb[0].mxu0 %v3291
      %v3441 = vpop.f32.mrb[0].mxu0
      %v3442 = vadd.f32 0.0, %v3441
      %v3443 = vpop.f32.mrb[0].mxu0
      %v3444 = vpop.f32.mrb[0].mxu0
      %v3445 = vadd.f32 0.0, %v3444
      %v3446 = vpop.f32.mrb[0].mxu0
      %3447 = vmatprep.mubr.bf16.mxu0 0
      %3448 = vmatmul.mubr.bf16.gmra.mrb[0].mxu0 %v3292
      %v3449 = vpop.f32.mrb[0].mxu0
      %v3450 = vadd.f32 0.0, %v3449
      %v3451 = vpop.f32.mrb[0].mxu0
      %v3452 = vpop.f32.mrb[0].mxu0
      %v3453 = vadd.f32 0.0, %v3452
      %v3454 = vpop.f32.mrb[0].mxu0
      %3455 = vmatprep.mubr.bf16.mxu0 0
      %3456 = vmatmul.mubr.bf16.gmra.mrb[0].mxu0 %v3293
      %v3457 = vpop.f32.mrb[0].mxu0
      %v3458 = vadd.f32 0.0, %v3457
      %v3459 = vpop.f32.mrb[0].mxu0
      %v3460 = vpop.f32.mrb[0].mxu0
      %v3461 = vadd.f32 0.0, %v3460
      %v3462 = vpop.f32.mrb[0].mxu0
      %3463 = vmatprep.mubr.bf16.mxu0 0
      %3464 = vmatmul.mubr.bf16.gmra.mrb[0].mxu0 %v3294
      %v3465 = vpop.f32.mrb[0].mxu0
      %v3466 = vadd.f32 0.0, %v3465
      %v3467 = vpop.f32.mrb[0].mxu0
      %v3468 = vpop.f32.mrb[0].mxu0
      %v3469 = vadd.f32 0.0, %v3468
      %v3470 = vpop.f32.mrb[0].mxu0
      %3471 = vmatprep.mubr.bf16.mxu0 0
      %3472 = vmatmul.mubr.bf16.gmra.mrb[0].mxu0 %v3295
      %v3473 = vpop.f32.mrb[0].mxu0
      %v3474 = vadd.f32 0.0, %v3473
      %v3475 = vpop.f32.mrb[0].mxu0
      %v3476 = vpop.f32.mrb[0].mxu0
      %v3477 = vadd.f32 0.0, %v3476
      %v3478 = vpop.f32.mrb[0].mxu0
      %3479 = vmatprep.mubr.bf16.mxu0 0
      %3480 = vmatmul.mubr.bf16.gmra.mrb[0].mxu0 %v3296
      %v3481 = vpop.f32.mrb[0].mxu0
      %v3482 = vadd.f32 0.0, %v3481
      %v3483 = vpop.f32.mrb[0].mxu0
      %v3484 = vpop.f32.mrb[0].mxu0
      %v3485 = vadd.f32 0.0, %v3484
      %v3486 = vpop.f32.mrb[0].mxu0
      %3487 = vmatprep.mubr.bf16.mxu0 0
      %3488 = vmatmul.mubr.bf16.gmra.mrb[0].mxu0 %v3297
      %v3489 = vpop.f32.mrb[0].mxu0
      %v3490 = vadd.f32 0.0, %v3489
      %v3491 = vpop.f32.mrb[0].mxu0
      %v3492 = vpop.f32.mrb[0].mxu0
      %v3493 = vadd.f32 0.0, %v3492
      %v3494 = vpop.f32.mrb[0].mxu0
      %3495 = vmatprep.mubr.bf16.mxu0 0
      %3496 = vmatmul.mubr.bf16.gmra.mrb[0].mxu0 %v3298
      %v3497 = vpop.f32.mrb[0].mxu0
      %v3498 = vadd.f32 0.0, %v3497
      %v3499 = vpop.f32.mrb[0].mxu0
      %v3500 = vpop.f32.mrb[0].mxu0
      %v3501 = vadd.f32 0.0, %v3500
      %v3502 = vpop.f32.mrb[0].mxu0
      %3503 = vmatprep.mubr.bf16.mxu0 0
      %3504 = vmatmul.mubr.bf16.gmra.mrb[0].mxu0 %v3299
      %v3505 = vpop.f32.mrb[0].mxu0
      %v3506 = vadd.f32 0.0, %v3505
      %v3507 = vpop.f32.mrb[0].mxu0
      %v3508 = vpop.f32.mrb[0].mxu0
      %v3509 = vadd.f32 0.0, %v3508
      %v3510 = vpop.f32.mrb[0].mxu0
      %3511 = vmatprep.mubr.bf16.mxu0 0
      %3512 = vmatmul.mubr.bf16.gmra.mrb[0].mxu0 %v3300
      %v3513 = vpop.f32.mrb[0].mxu0
      %v3514 = vadd.f32 0.0, %v3513
      %v3515 = vpop.f32.mrb[0].mxu0
      %v3516 = vpop.f32.mrb[0].mxu0
      %v3517 = vadd.f32 0.0, %v3516
      %v3518 = vpop.f32.mrb[0].mxu0
      %3519 = vmatprep.mubr.bf16.mxu0 0
      %3520 = vmatmul.mubr.bf16.gmra.mrb[0].mxu0 %v3301
      %v3521 = vpop.f32.mrb[0].mxu0
      %v3522 = vadd.f32 0.0, %v3521
      %v3523 = vpop.f32.mrb[0].mxu0
      %v3524 = vpop.f32.mrb[0].mxu0
      %v3525 = vadd.f32 0.0, %v3524
      %v3526 = vpop.f32.mrb[0].mxu0
      %3527 = vdwg.mxu0
      %v3528 = vadd.f32 %v2806, %v3402
      %v3529 = vadd.f32 %v2809, %v3405
      %v3530 = vadd.f32 %v2814, %v3410
      %v3531 = vadd.f32 %v2817, %v3413
      %v3532 = vadd.f32 %v2822, %v3418
      %v3533 = vadd.f32 %v2825, %v3421
      %v3534 = vadd.f32 %v2830, %v3426
      %v3535 = vadd.f32 %v2833, %v3429
      %v3536 = vadd.f32 %v2838, %v3434
      %v3537 = vadd.f32 %v2841, %v3437
      %v3538 = vadd.f32 %v2846, %v3442
      %v3539 = vadd.f32 %v2849, %v3445
      %v3540 = vadd.f32 %v2854, %v3450
      %v3541 = vadd.f32 %v2857, %v3453
      %v3542 = vadd.f32 %v2862, %v3458
      %v3543 = vadd.f32 %v2865, %v3461
      %v3544 = vadd.f32 %v2870, %v3466
      %v3545 = vadd.f32 %v2873, %v3469
      %v3546 = vadd.f32 %v2878, %v3474
      %v3547 = vadd.f32 %v2881, %v3477
      %v3548 = vadd.f32 %v2886, %v3482
      %v3549 = vadd.f32 %v2889, %v3485
      %v3550 = vadd.f32 %v2894, %v3490
      %v3551 = vadd.f32 %v2897, %v3493
      %v3552 = vadd.f32 %v2902, %v3498
      %v3553 = vadd.f32 %v2905, %v3501
      %v3554 = vadd.f32 %v2910, %v3506
      %v3555 = vadd.f32 %v2913, %v3509
      %v3556 = vadd.f32 %v2918, %v3514
      %v3557 = vadd.f32 %v2921, %v3517
      %v3558 = vadd.f32 %v2926, %v3522
      %v3559 = vadd.f32 %v2929, %v3525
      %vm3560 = vcmp.ge.s32.totalorder %v1295, 0
      %vm3561 = vcmp.ge.s32.totalorder %v1296, 0
      %vm3562 = vcmp.ge.s32.totalorder %v1297, 0
      %vm3563 = vcmp.ge.s32.totalorder %v1298, 0
      %vm3564 = vcmp.ge.s32.totalorder %v1299, 0
      %vm3565 = vcmp.ge.s32.totalorder %v1300, 0
      %vm3566 = vcmp.ge.s32.totalorder %v1301, 0
      %vm3567 = vcmp.ge.s32.totalorder %v1302, 0
      %vm3568 = vcmp.ge.s32.totalorder %v1303, 0
      %vm3569 = vcmp.ge.s32.totalorder %v1304, 0
      %vm3570 = vcmp.ge.s32.totalorder %v1305, 0
      %vm3571 = vcmp.ge.s32.totalorder %v1306, 0
      %vm3572 = vcmp.ge.s32.totalorder %v1307, 0
      %vm3573 = vcmp.ge.s32.totalorder %v1308, 0
      %vm3574 = vcmp.ge.s32.totalorder %v1309, 0
      %vm3575 = vcmp.ge.s32.totalorder %v1310, 0
      %vm3576 = vcmp.ge.s32.totalorder %v1311, 0
      %vm3577 = vcmp.ge.s32.totalorder %v1312, 0
      %vm3578 = vcmp.ge.s32.totalorder %v1313, 0
      %vm3579 = vcmp.ge.s32.totalorder %v1314, 0
      %vm3580 = vcmp.ge.s32.totalorder %v1315, 0
      %vm3581 = vcmp.ge.s32.totalorder %v1316, 0
      %vm3582 = vcmp.ge.s32.totalorder %v1317, 0
      %vm3583 = vcmp.ge.s32.totalorder %v1318, 0
      %vm3584 = vcmp.ge.s32.totalorder %v1319, 0
      %vm3585 = vcmp.ge.s32.totalorder %v1320, 0
      %vm3586 = vcmp.ge.s32.totalorder %v1321, 0
      %vm3587 = vcmp.ge.s32.totalorder %v1322, 0
      %vm3588 = vcmp.ge.s32.totalorder %v1323, 0
      %vm3589 = vcmp.ge.s32.totalorder %v1324, 0
      %vm3590 = vcmp.ge.s32.totalorder %v1325, 0
      %vm3591 = vcmp.ge.s32.totalorder %v1326, 0
      %vm3592 = vcmp.lt.s32.totalorder %v1295, 256
      %vm3593 = vcmp.lt.s32.totalorder %v1296, 256
      %vm3594 = vcmp.lt.s32.totalorder %v1297, 256
      %vm3595 = vcmp.lt.s32.totalorder %v1298, 256
      %vm3596 = vcmp.lt.s32.totalorder %v1299, 256
      %vm3597 = vcmp.lt.s32.totalorder %v1300, 256
      %vm3598 = vcmp.lt.s32.totalorder %v1301, 256
      %vm3599 = vcmp.lt.s32.totalorder %v1302, 256
      %vm3600 = vcmp.lt.s32.totalorder %v1303, 256
      %vm3601 = vcmp.lt.s32.totalorder %v1304, 256
      %vm3602 = vcmp.lt.s32.totalorder %v1305, 256
      %vm3603 = vcmp.lt.s32.totalorder %v1306, 256
      %vm3604 = vcmp.lt.s32.totalorder %v1307, 256
      %vm3605 = vcmp.lt.s32.totalorder %v1308, 256
      %vm3606 = vcmp.lt.s32.totalorder %v1309, 256
      %vm3607 = vcmp.lt.s32.totalorder %v1310, 256
      %vm3608 = vcmp.lt.s32.totalorder %v1311, 256
      %vm3609 = vcmp.lt.s32.totalorder %v1312, 256
      %vm3610 = vcmp.lt.s32.totalorder %v1313, 256
      %vm3611 = vcmp.lt.s32.totalorder %v1314, 256
      %vm3612 = vcmp.lt.s32.totalorder %v1315, 256
      %vm3613 = vcmp.lt.s32.totalorder %v1316, 256
      %vm3614 = vcmp.lt.s32.totalorder %v1317, 256
      %vm3615 = vcmp.lt.s32.totalorder %v1318, 256
      %vm3616 = vcmp.lt.s32.totalorder %v1319, 256
      %vm3617 = vcmp.lt.s32.totalorder %v1320, 256
      %vm3618 = vcmp.lt.s32.totalorder %v1321, 256
      %vm3619 = vcmp.lt.s32.totalorder %v1322, 256
      %vm3620 = vcmp.lt.s32.totalorder %v1323, 256
      %vm3621 = vcmp.lt.s32.totalorder %v1324, 256
      %vm3622 = vcmp.lt.s32.totalorder %v1325, 256
      %vm3623 = vcmp.lt.s32.totalorder %v1326, 256
      %vm3624 = vmand %vm3560, %vm3592
      %vm3625 = vmand %vm3561, %vm3593
      %vm3626 = vmand %vm3562, %vm3594
      %vm3627 = vmand %vm3563, %vm3595
      %vm3628 = vmand %vm3564, %vm3596
      %vm3629 = vmand %vm3565, %vm3597
      %vm3630 = vmand %vm3566, %vm3598
      %vm3631 = vmand %vm3567, %vm3599
      %vm3632 = vmand %vm3568, %vm3600
      %vm3633 = vmand %vm3569, %vm3601
      %vm3634 = vmand %vm3570, %vm3602
      %vm3635 = vmand %vm3571, %vm3603
      %vm3636 = vmand %vm3572, %vm3604
      %vm3637 = vmand %vm3573, %vm3605
      %vm3638 = vmand %vm3574, %vm3606
      %vm3639 = vmand %vm3575, %vm3607
      %vm3640 = vmand %vm3576, %vm3608
      %vm3641 = vmand %vm3577, %vm3609
      %vm3642 = vmand %vm3578, %vm3610
      %vm3643 = vmand %vm3579, %vm3611
      %vm3644 = vmand %vm3580, %vm3612
      %vm3645 = vmand %vm3581, %vm3613
      %vm3646 = vmand %vm3582, %vm3614
      %vm3647 = vmand %vm3583, %vm3615
      %vm3648 = vmand %vm3584, %vm3616
      %vm3649 = vmand %vm3585, %vm3617
      %vm3650 = vmand %vm3586, %vm3618
      %vm3651 = vmand %vm3587, %vm3619
      %vm3652 = vmand %vm3588, %vm3620
      %vm3653 = vmand %vm3589, %vm3621
      %vm3654 = vmand %vm3590, %vm3622
      %vm3655 = vmand %vm3591, %vm3623
      %vm3656 = vmand %vm3624, %vm1871
      %vm3657 = vmand %vm3625, %vm1872
      %vm3658 = vmand %vm3626, %vm1873
      %vm3659 = vmand %vm3627, %vm1874
      %vm3660 = vmand %vm3628, %vm1875
      %vm3661 = vmand %vm3629, %vm1876
      %vm3662 = vmand %vm3630, %vm1877
      %vm3663 = vmand %vm3631, %vm1878
      %vm3664 = vmand %vm3632, %vm1879
      %vm3665 = vmand %vm3633, %vm1880
      %vm3666 = vmand %vm3634, %vm1881
      %vm3667 = vmand %vm3635, %vm1882
      %vm3668 = vmand %vm3636, %vm1883
      %vm3669 = vmand %vm3637, %vm1884
      %vm3670 = vmand %vm3638, %vm1885
      %vm3671 = vmand %vm3639, %vm1886
      %vm3672 = vmand %vm3640, %vm1887
      %vm3673 = vmand %vm3641, %vm1888
      %vm3674 = vmand %vm3642, %vm1889
      %vm3675 = vmand %vm3643, %vm1890
      %vm3676 = vmand %vm3644, %vm1891
      %vm3677 = vmand %vm3645, %vm1892
      %vm3678 = vmand %vm3646, %vm1893
      %vm3679 = vmand %vm3647, %vm1894
      %vm3680 = vmand %vm3648, %vm1895
      %vm3681 = vmand %vm3649, %vm1896
      %vm3682 = vmand %vm3650, %vm1897
      %vm3683 = vmand %vm3651, %vm1898
      %vm3684 = vmand %vm3652, %vm1899
      %vm3685 = vmand %vm3653, %vm1900
      %vm3686 = vmand %vm3654, %vm1901
      %vm3687 = vmand %vm3655, %vm1902
      %vm3688 = vmand %vm3656, %vm1935
      %vm3689 = vmand %vm3657, %vm1936
      %vm3690 = vmand %vm3658, %vm1937
      %vm3691 = vmand %vm3659, %vm1938
      %vm3692 = vmand %vm3660, %vm1939
      %vm3693 = vmand %vm3661, %vm1940
      %vm3694 = vmand %vm3662, %vm1941
      %vm3695 = vmand %vm3663, %vm1942
      %vm3696 = vmand %vm3664, %vm1943
      %vm3697 = vmand %vm3665, %vm1944
      %vm3698 = vmand %vm3666, %vm1945
      %vm3699 = vmand %vm3667, %vm1946
      %vm3700 = vmand %vm3668, %vm1947
      %vm3701 = vmand %vm3669, %vm1948
      %vm3702 = vmand %vm3670, %vm1949
      %vm3703 = vmand %vm3671, %vm1950
      %vm3704 = vmand %vm3672, %vm1951
      %vm3705 = vmand %vm3673, %vm1952
      %vm3706 = vmand %vm3674, %vm1953
      %vm3707 = vmand %vm3675, %vm1954
      %vm3708 = vmand %vm3676, %vm1955
      %vm3709 = vmand %vm3677, %vm1956
      %vm3710 = vmand %vm3678, %vm1957
      %vm3711 = vmand %vm3679, %vm1958
      %vm3712 = vmand %vm3680, %vm1959
      %vm3713 = vmand %vm3681, %vm1960
      %vm3714 = vmand %vm3682, %vm1961
      %vm3715 = vmand %vm3683, %vm1962
      %vm3716 = vmand %vm3684, %vm1963
      %vm3717 = vmand %vm3685, %vm1964
      %vm3718 = vmand %vm3686, %vm1965
      %vm3719 = vmand %vm3687, %vm1966
      %v3720 = vsel %vm3688, 1, 0
      %v3721 = vsel %vm3689, 1, 0
      %v3722 = vsel %vm3690, 1, 0
      %v3723 = vsel %vm3691, 1, 0
      %v3724 = vsel %vm3692, 1, 0
      %v3725 = vsel %vm3693, 1, 0
      %v3726 = vsel %vm3694, 1, 0
      %v3727 = vsel %vm3695, 1, 0
      %v3728 = vsel %vm3696, 1, 0
      %v3729 = vsel %vm3697, 1, 0
      %v3730 = vsel %vm3698, 1, 0
      %v3731 = vsel %vm3699, 1, 0
      %v3732 = vsel %vm3700, 1, 0
      %v3733 = vsel %vm3701, 1, 0
      %v3734 = vsel %vm3702, 1, 0
      %v3735 = vsel %vm3703, 1, 0
      %v3736 = vsel %vm3704, 1, 0
      %v3737 = vsel %vm3705, 1, 0
      %v3738 = vsel %vm3706, 1, 0
      %v3739 = vsel %vm3707, 1, 0
      %v3740 = vsel %vm3708, 1, 0
      %v3741 = vsel %vm3709, 1, 0
      %v3742 = vsel %vm3710, 1, 0
      %v3743 = vsel %vm3711, 1, 0
      %v3744 = vsel %vm3712, 1, 0
      %v3745 = vsel %vm3713, 1, 0
      %v3746 = vsel %vm3714, 1, 0
      %v3747 = vsel %vm3715, 1, 0
      %v3748 = vsel %vm3716, 1, 0
      %v3749 = vsel %vm3717, 1, 0
      %v3750 = vsel %vm3718, 1, 0
      %v3751 = vsel %vm3719, 1, 0
      %vm3752 = vcmp.eq.s32.totalorder %v3720, 1
      %vm3753 = vcmp.eq.s32.totalorder %v3721, 1
      %vm3754 = vcmp.eq.s32.totalorder %v3722, 1
      %vm3755 = vcmp.eq.s32.totalorder %v3723, 1
      %vm3756 = vcmp.eq.s32.totalorder %v3724, 1
      %vm3757 = vcmp.eq.s32.totalorder %v3725, 1
      %vm3758 = vcmp.eq.s32.totalorder %v3726, 1
      %vm3759 = vcmp.eq.s32.totalorder %v3727, 1
      %vm3760 = vcmp.eq.s32.totalorder %v3728, 1
      %vm3761 = vcmp.eq.s32.totalorder %v3729, 1
      %vm3762 = vcmp.eq.s32.totalorder %v3730, 1
      %vm3763 = vcmp.eq.s32.totalorder %v3731, 1
      %vm3764 = vcmp.eq.s32.totalorder %v3732, 1
      %vm3765 = vcmp.eq.s32.totalorder %v3733, 1
      %vm3766 = vcmp.eq.s32.totalorder %v3734, 1
      %vm3767 = vcmp.eq.s32.totalorder %v3735, 1
      %vm3768 = vcmp.eq.s32.totalorder %v3736, 1
      %vm3769 = vcmp.eq.s32.totalorder %v3737, 1
      %vm3770 = vcmp.eq.s32.totalorder %v3738, 1
      %vm3771 = vcmp.eq.s32.totalorder %v3739, 1
      %vm3772 = vcmp.eq.s32.totalorder %v3740, 1
      %vm3773 = vcmp.eq.s32.totalorder %v3741, 1
      %vm3774 = vcmp.eq.s32.totalorder %v3742, 1
      %vm3775 = vcmp.eq.s32.totalorder %v3743, 1
      %vm3776 = vcmp.eq.s32.totalorder %v3744, 1
      %vm3777 = vcmp.eq.s32.totalorder %v3745, 1
      %vm3778 = vcmp.eq.s32.totalorder %v3746, 1
      %vm3779 = vcmp.eq.s32.totalorder %v3747, 1
      %vm3780 = vcmp.eq.s32.totalorder %v3748, 1
      %vm3781 = vcmp.eq.s32.totalorder %v3749, 1
      %vm3782 = vcmp.eq.s32.totalorder %v3750, 1
      %vm3783 = vcmp.eq.s32.totalorder %v3751, 1
      %v3784 = vsel %vm3752, %v2128, 0.0
      %v3785 = vsel %vm3753, %v2042, 0.0
      %v3786 = vsel %vm3754, %v2044, 0.0
      %v3787 = vsel %vm3755, %v2046, 0.0
      %v3788 = vsel %vm3756, %v2048, 0.0
      %v3789 = vsel %vm3757, %v2050, 0.0
      %v3790 = vsel %vm3758, %v2052, 0.0
      %v3791 = vsel %vm3759, %v2054, 0.0
      %v3792 = vsel %vm3760, %v2056, 0.0
      %v3793 = vsel %vm3761, %v2058, 0.0
      %v3794 = vsel %vm3762, %v2060, 0.0
      %v3795 = vsel %vm3763, %v2062, 0.0
      %v3796 = vsel %vm3764, %v2064, 0.0
      %v3797 = vsel %vm3765, %v2066, 0.0
      %v3798 = vsel %vm3766, %v2068, 0.0
      %v3799 = vsel %vm3767, %v2070, 0.0
      %v3800 = vsel %vm3768, %v2072, 0.0
      %v3801 = vsel %vm3769, %v2074, 0.0
      %v3802 = vsel %vm3770, %v2076, 0.0
      %v3803 = vsel %vm3771, %v2078, 0.0
      %v3804 = vsel %vm3772, %v2080, 0.0
      %v3805 = vsel %vm3773, %v2082, 0.0
      %v3806 = vsel %vm3774, %v2084, 0.0
      %v3807 = vsel %vm3775, %v2086, 0.0
      %v3808 = vsel %vm3776, %v2088, 0.0
      %v3809 = vsel %vm3777, %v2090, 0.0
      %v3810 = vsel %vm3778, %v2092, 0.0
      %v3811 = vsel %vm3779, %v2094, 0.0
      %v3812 = vsel %vm3780, %v2096, 0.0
      %v3813 = vsel %vm3781, %v2097, 0.0
      %v3814 = vsel %vm3782, %v2005, 0.0
      %v3815 = vsel %vm3783, %v2007, 0.0
      %v3816 = vpack.c.bf16 %v3785, %v3784
      %v3817 = vpack.c.bf16 %v3787, %v3786
      %v3818 = vpack.c.bf16 %v3789, %v3788
      %v3819 = vpack.c.bf16 %v3791, %v3790
      %v3820 = vpack.c.bf16 %v3793, %v3792
      %v3821 = vpack.c.bf16 %v3795, %v3794
      %v3822 = vpack.c.bf16 %v3797, %v3796
      %v3823 = vpack.c.bf16 %v3799, %v3798
      %v3824 = vpack.c.bf16 %v3801, %v3800
      %v3825 = vpack.c.bf16 %v3803, %v3802
      %v3826 = vpack.c.bf16 %v3805, %v3804
      %v3827 = vpack.c.bf16 %v3807, %v3806
      %v3828 = vpack.c.bf16 %v3809, %v3808
      %v3829 = vpack.c.bf16 %v3811, %v3810
      %v3830 = vpack.c.bf16 %v3813, %v3812
      %v3831 = vpack.c.bf16 %v3815, %v3814
      %s3832 = scalar_lea.vmem %s7, 192
      %v3833 = vld [vmem:[%s3832] sm:$0xf]
      %v3834 = vld [vmem:[%s3832 + $0x4] sm:$0xf]
      %v3835 = vld [vmem:[%s3832 + $0x8] sm:$0xf]
      %v3836 = vld [vmem:[%s3832 + $0xc] sm:$0xf]
      %v3837 = vld [vmem:[%s3832 + $0x10] sm:$0xf]
      %v3838 = vld [vmem:[%s3832 + $0x14] sm:$0xf]
      %v3839 = vld [vmem:[%s3832 + $0x18] sm:$0xf]
      %v3840 = vld [vmem:[%s3832 + $0x1c] sm:$0xf]
      %v3841 = vld [vmem:[%s3832 + $0x20] sm:$0xf]
      %v3842 = vld [vmem:[%s3832 + $0x24] sm:$0xf]
      %v3843 = vld [vmem:[%s3832 + $0x28] sm:$0xf]
      %v3844 = vld [vmem:[%s3832 + $0x2c] sm:$0xf]
      %v3845 = vld [vmem:[%s3832 + $0x30] sm:$0xf]
      %v3846 = vld [vmem:[%s3832 + $0x34] sm:$0xf]
      %v3847 = vld [vmem:[%s3832 + $0x38] sm:$0xf]
      %v3848 = vld [vmem:[%s3832 + $0x3c] sm:$0xf]
      %v3865 = vunpack.c.l.b16 %v3833
      %v3866 = vunpack.c.l.b16 %v3834
      %v3867 = vunpack.c.l.b16 %v3835
      %v3868 = vunpack.c.l.b16 %v3836
      %v3869 = vunpack.c.l.b16 %v3837
      %v3870 = vunpack.c.l.b16 %v3838
      %v3871 = vunpack.c.l.b16 %v3839
      %v3872 = vunpack.c.l.b16 %v3840
      %v3873 = vunpack.c.l.b16 %v3841
      %v3874 = vunpack.c.l.b16 %v3842
      %v3875 = vunpack.c.l.b16 %v3843
      %v3876 = vunpack.c.l.b16 %v3844
      %v3877 = vunpack.c.l.b16 %v3845
      %v3878 = vunpack.c.l.b16 %v3846
      %v3879 = vunpack.c.l.b16 %v3847
      %v3880 = vunpack.c.l.b16 %v3848
      %v3881 = vpack.c.b16 %v3866, %v3865
      %v3882 = vpack.c.b16 %v3868, %v3867
      %v3883 = vpack.c.b16 %v3870, %v3869
      %v3884 = vpack.c.b16 %v3872, %v3871
      %v3885 = vpack.c.b16 %v3874, %v3873
      %v3886 = vpack.c.b16 %v3876, %v3875
      %v3887 = vpack.c.b16 %v3878, %v3877
      %v3888 = vpack.c.b16 %v3880, %v3879
      %3897 = vmatprep.subr.bf16.mxu0 0
      %3898 = vmatpush1.bf16.msra.mxu0 %v3881
      %3899 = vmatprep.subr.bf16.mxu0 0
      %3900 = vmatpush1.bf16.msra.mxu0 %v3882
      %3901 = vmatprep.subr.bf16.mxu0 0
      %3902 = vmatpush1.bf16.msra.mxu0 %v3883
      %3903 = vmatprep.subr.bf16.mxu0 0
      %3904 = vmatpush1.bf16.msra.mxu0 %v3884
      %3905 = vmatprep.subr.bf16.mxu0 0
      %3906 = vmatpush1.bf16.msra.mxu0 %v3885
      %3907 = vmatprep.subr.bf16.mxu0 0
      %3908 = vmatpush1.bf16.msra.mxu0 %v3886
      %3909 = vmatprep.subr.bf16.mxu0 0
      %3910 = vmatpush1.bf16.msra.mxu0 %v3887
      %3911 = vmatprep.subr.bf16.mxu0 0
      %3912 = vmatpush1.bf16.msra.mxu0 %v3888
      %3913 = vmatprep.subr.bf16.mxu0 0
      %3914 = vmatpush1.bf16.msra.mxu0 0
      %3915 = vmatprep.subr.bf16.mxu0 0
      %3916 = vmatpush1.bf16.msra.mxu0 0
      %3917 = vmatprep.subr.bf16.mxu0 0
      %3918 = vmatpush1.bf16.msra.mxu0 0
      %3919 = vmatprep.subr.bf16.mxu0 0
      %3920 = vmatpush1.bf16.msra.mxu0 0
      %3921 = vmatprep.subr.bf16.mxu0 0
      %3922 = vmatpush1.bf16.msra.mxu0 0
      %3923 = vmatprep.subr.bf16.mxu0 0
      %3924 = vmatpush1.bf16.msra.mxu0 0
      %3925 = vmatprep.subr.bf16.mxu0 0
      %3926 = vmatpush1.bf16.msra.mxu0 0
      %3927 = vmatprep.subr.bf16.mxu0 0
      %3928 = vmatpush1.bf16.msra.mxu0 0
      %3929 = vmatprep.mubr.bf16.mxu0 0
      %3930 = vmatmul.mubr.bf16.gmra.mrb[0].mxu0 %v3816
      %v3931 = vpop.f32.mrb[0].mxu0
      %v3932 = vadd.f32 0.0, %v3931
      %v3933 = vpop.f32.mrb[0].mxu0
      %v3934 = vpop.f32.mrb[0].mxu0
      %v3935 = vadd.f32 0.0, %v3934
      %v3936 = vpop.f32.mrb[0].mxu0
      %3937 = vmatprep.mubr.bf16.mxu0 0
      %3938 = vmatmul.mubr.bf16.gmra.mrb[0].mxu0 %v3817
      %v3939 = vpop.f32.mrb[0].mxu0
      %v3940 = vadd.f32 0.0, %v3939
      %v3941 = vpop.f32.mrb[0].mxu0
      %v3942 = vpop.f32.mrb[0].mxu0
      %v3943 = vadd.f32 0.0, %v3942
      %v3944 = vpop.f32.mrb[0].mxu0
      %3945 = vmatprep.mubr.bf16.mxu0 0
      %3946 = vmatmul.mubr.bf16.gmra.mrb[0].mxu0 %v3818
      %v3947 = vpop.f32.mrb[0].mxu0
      %v3948 = vadd.f32 0.0, %v3947
      %v3949 = vpop.f32.mrb[0].mxu0
      %v3950 = vpop.f32.mrb[0].mxu0
      %v3951 = vadd.f32 0.0, %v3950
      %v3952 = vpop.f32.mrb[0].mxu0
      %3953 = vmatprep.mubr.bf16.mxu0 0
      %3954 = vmatmul.mubr.bf16.gmra.mrb[0].mxu0 %v3819
      %v3955 = vpop.f32.mrb[0].mxu0
      %v3956 = vadd.f32 0.0, %v3955
      %v3957 = vpop.f32.mrb[0].mxu0
      %v3958 = vpop.f32.mrb[0].mxu0
      %v3959 = vadd.f32 0.0, %v3958
      %v3960 = vpop.f32.mrb[0].mxu0
      %3961 = vmatprep.mubr.bf16.mxu0 0
      %3962 = vmatmul.mubr.bf16.gmra.mrb[0].mxu0 %v3820
      %v3963 = vpop.f32.mrb[0].mxu0
      %v3964 = vadd.f32 0.0, %v3963
      %v3965 = vpop.f32.mrb[0].mxu0
      %v3966 = vpop.f32.mrb[0].mxu0
      %v3967 = vadd.f32 0.0, %v3966
      %v3968 = vpop.f32.mrb[0].mxu0
      %3969 = vmatprep.mubr.bf16.mxu0 0
      %3970 = vmatmul.mubr.bf16.gmra.mrb[0].mxu0 %v3821
      %v3971 = vpop.f32.mrb[0].mxu0
      %v3972 = vadd.f32 0.0, %v3971
      %v3973 = vpop.f32.mrb[0].mxu0
      %v3974 = vpop.f32.mrb[0].mxu0
      %v3975 = vadd.f32 0.0, %v3974
      %v3976 = vpop.f32.mrb[0].mxu0
      %3977 = vmatprep.mubr.bf16.mxu0 0
      %3978 = vmatmul.mubr.bf16.gmra.mrb[0].mxu0 %v3822
      %v3979 = vpop.f32.mrb[0].mxu0
      %v3980 = vadd.f32 0.0, %v3979
      %v3981 = vpop.f32.mrb[0].mxu0
      %v3982 = vpop.f32.mrb[0].mxu0
      %v3983 = vadd.f32 0.0, %v3982
      %v3984 = vpop.f32.mrb[0].mxu0
      %3985 = vmatprep.mubr.bf16.mxu0 0
      %3986 = vmatmul.mubr.bf16.gmra.mrb[0].mxu0 %v3823
      %v3987 = vpop.f32.mrb[0].mxu0
      %v3988 = vadd.f32 0.0, %v3987
      %v3989 = vpop.f32.mrb[0].mxu0
      %v3990 = vpop.f32.mrb[0].mxu0
      %v3991 = vadd.f32 0.0, %v3990
      %v3992 = vpop.f32.mrb[0].mxu0
      %3993 = vmatprep.mubr.bf16.mxu0 0
      %3994 = vmatmul.mubr.bf16.gmra.mrb[0].mxu0 %v3824
      %v3995 = vpop.f32.mrb[0].mxu0
      %v3996 = vadd.f32 0.0, %v3995
      %v3997 = vpop.f32.mrb[0].mxu0
      %v3998 = vpop.f32.mrb[0].mxu0
      %v3999 = vadd.f32 0.0, %v3998
      %v4000 = vpop.f32.mrb[0].mxu0
      %4001 = vmatprep.mubr.bf16.mxu0 0
      %4002 = vmatmul.mubr.bf16.gmra.mrb[0].mxu0 %v3825
      %v4003 = vpop.f32.mrb[0].mxu0
      %v4004 = vadd.f32 0.0, %v4003
      %v4005 = vpop.f32.mrb[0].mxu0
      %v4006 = vpop.f32.mrb[0].mxu0
      %v4007 = vadd.f32 0.0, %v4006
      %v4008 = vpop.f32.mrb[0].mxu0
      %4009 = vmatprep.mubr.bf16.mxu0 0
      %4010 = vmatmul.mubr.bf16.gmra.mrb[0].mxu0 %v3826
      %v4011 = vpop.f32.mrb[0].mxu0
      %v4012 = vadd.f32 0.0, %v4011
      %v4013 = vpop.f32.mrb[0].mxu0
      %v4014 = vpop.f32.mrb[0].mxu0
      %v4015 = vadd.f32 0.0, %v4014
      %v4016 = vpop.f32.mrb[0].mxu0
      %4017 = vmatprep.mubr.bf16.mxu0 0
      %4018 = vmatmul.mubr.bf16.gmra.mrb[0].mxu0 %v3827
      %v4019 = vpop.f32.mrb[0].mxu0
      %v4020 = vadd.f32 0.0, %v4019
      %v4021 = vpop.f32.mrb[0].mxu0
      %v4022 = vpop.f32.mrb[0].mxu0
      %v4023 = vadd.f32 0.0, %v4022
      %v4024 = vpop.f32.mrb[0].mxu0
      %4025 = vmatprep.mubr.bf16.mxu0 0
      %4026 = vmatmul.mubr.bf16.gmra.mrb[0].mxu0 %v3828
      %v4027 = vpop.f32.mrb[0].mxu0
      %v4028 = vadd.f32 0.0, %v4027
      %v4029 = vpop.f32.mrb[0].mxu0
      %v4030 = vpop.f32.mrb[0].mxu0
      %v4031 = vadd.f32 0.0, %v4030
      %v4032 = vpop.f32.mrb[0].mxu0
      %4033 = vmatprep.mubr.bf16.mxu0 0
      %4034 = vmatmul.mubr.bf16.gmra.mrb[0].mxu0 %v3829
      %v4035 = vpop.f32.mrb[0].mxu0
      %v4036 = vadd.f32 0.0, %v4035
      %v4037 = vpop.f32.mrb[0].mxu0
      %v4038 = vpop.f32.mrb[0].mxu0
      %v4039 = vadd.f32 0.0, %v4038
      %v4040 = vpop.f32.mrb[0].mxu0
      %4041 = vmatprep.mubr.bf16.mxu0 0
      %4042 = vmatmul.mubr.bf16.gmra.mrb[0].mxu0 %v3830
      %v4043 = vpop.f32.mrb[0].mxu0
      %v4044 = vadd.f32 0.0, %v4043
      %v4045 = vpop.f32.mrb[0].mxu0
      %v4046 = vpop.f32.mrb[0].mxu0
      %v4047 = vadd.f32 0.0, %v4046
      %v4048 = vpop.f32.mrb[0].mxu0
      %4049 = vmatprep.mubr.bf16.mxu0 0
      %4050 = vmatmul.mubr.bf16.gmra.mrb[0].mxu0 %v3831
      %v4051 = vpop.f32.mrb[0].mxu0
      %v4052 = vadd.f32 0.0, %v4051
      %v4053 = vpop.f32.mrb[0].mxu0
      %v4054 = vpop.f32.mrb[0].mxu0
      %v4055 = vadd.f32 0.0, %v4054
      %v4056 = vpop.f32.mrb[0].mxu0
      %4057 = vdwg.mxu0
      %v4058 = vadd.f32 %v3528, %v3932
      %v4059 = vadd.f32 %v3529, %v3935
      %v4060 = vadd.f32 %v3530, %v3940
      %v4061 = vadd.f32 %v3531, %v3943
      %v4062 = vadd.f32 %v3532, %v3948
      %v4063 = vadd.f32 %v3533, %v3951
      %v4064 = vadd.f32 %v3534, %v3956
      %v4065 = vadd.f32 %v3535, %v3959
      %v4066 = vadd.f32 %v3536, %v3964
      %v4067 = vadd.f32 %v3537, %v3967
      %v4068 = vadd.f32 %v3538, %v3972
      %v4069 = vadd.f32 %v3539, %v3975
      %v4070 = vadd.f32 %v3540, %v3980
      %v4071 = vadd.f32 %v3541, %v3983
      %v4072 = vadd.f32 %v3542, %v3988
      %v4073 = vadd.f32 %v3543, %v3991
      %v4074 = vadd.f32 %v3544, %v3996
      %v4075 = vadd.f32 %v3545, %v3999
      %v4076 = vadd.f32 %v3546, %v4004
      %v4077 = vadd.f32 %v3547, %v4007
      %v4078 = vadd.f32 %v3548, %v4012
      %v4079 = vadd.f32 %v3549, %v4015
      %v4080 = vadd.f32 %v3550, %v4020
      %v4081 = vadd.f32 %v3551, %v4023
      %v4082 = vadd.f32 %v3552, %v4028
      %v4083 = vadd.f32 %v3553, %v4031
      %v4084 = vadd.f32 %v3554, %v4036
      %v4085 = vadd.f32 %v3555, %v4039
      %v4086 = vadd.f32 %v3556, %v4044
      %v4087 = vadd.f32 %v3557, %v4047
      %v4088 = vadd.f32 %v3558, %v4052
      %v4089 = vadd.f32 %v3559, %v4055
      %vm4090 = vmand %vm3624, %vm2257
      %vm4091 = vmand %vm3625, %vm2258
      %vm4092 = vmand %vm3626, %vm2259
      %vm4093 = vmand %vm3627, %vm2260
      %vm4094 = vmand %vm3628, %vm2261
      %vm4095 = vmand %vm3629, %vm2262
      %vm4096 = vmand %vm3630, %vm2263
      %vm4097 = vmand %vm3631, %vm2264
      %vm4098 = vmand %vm3632, %vm2265
      %vm4099 = vmand %vm3633, %vm2266
      %vm4100 = vmand %vm3634, %vm2267
      %vm4101 = vmand %vm3635, %vm2268
      %vm4102 = vmand %vm3636, %vm2269
      %vm4103 = vmand %vm3637, %vm2270
      %vm4104 = vmand %vm3638, %vm2271
      %vm4105 = vmand %vm3639, %vm2272
      %vm4106 = vmand %vm3640, %vm2273
      %vm4107 = vmand %vm3641, %vm2274
      %vm4108 = vmand %vm3642, %vm2275
      %vm4109 = vmand %vm3643, %vm2276
      %vm4110 = vmand %vm3644, %vm2277
      %vm4111 = vmand %vm3645, %vm2278
      %vm4112 = vmand %vm3646, %vm2279
      %vm4113 = vmand %vm3647, %vm2280
      %vm4114 = vmand %vm3648, %vm2281
      %vm4115 = vmand %vm3649, %vm2282
      %vm4116 = vmand %vm3650, %vm2283
      %vm4117 = vmand %vm3651, %vm2284
      %vm4118 = vmand %vm3652, %vm2285
      %vm4119 = vmand %vm3653, %vm2286
      %vm4120 = vmand %vm3654, %vm2287
      %vm4121 = vmand %vm3655, %vm2288
      %vm4122 = vmand %vm4090, %vm2321
      %vm4123 = vmand %vm4091, %vm2322
      %vm4124 = vmand %vm4092, %vm2323
      %vm4125 = vmand %vm4093, %vm2324
      %vm4126 = vmand %vm4094, %vm2325
      %vm4127 = vmand %vm4095, %vm2326
      %vm4128 = vmand %vm4096, %vm2327
      %vm4129 = vmand %vm4097, %vm2328
      %vm4130 = vmand %vm4098, %vm2329
      %vm4131 = vmand %vm4099, %vm2330
      %vm4132 = vmand %vm4100, %vm2331
      %vm4133 = vmand %vm4101, %vm2332
      %vm4134 = vmand %vm4102, %vm2333
      %vm4135 = vmand %vm4103, %vm2334
      %vm4136 = vmand %vm4104, %vm2335
      %vm4137 = vmand %vm4105, %vm2336
      %vm4138 = vmand %vm4106, %vm2337
      %vm4139 = vmand %vm4107, %vm2338
      %vm4140 = vmand %vm4108, %vm2339
      %vm4141 = vmand %vm4109, %vm2340
      %vm4142 = vmand %vm4110, %vm2341
      %vm4143 = vmand %vm4111, %vm2342
      %vm4144 = vmand %vm4112, %vm2343
      %vm4145 = vmand %vm4113, %vm2344
      %vm4146 = vmand %vm4114, %vm2345
      %vm4147 = vmand %vm4115, %vm2346
      %vm4148 = vmand %vm4116, %vm2347
      %vm4149 = vmand %vm4117, %vm2348
      %vm4150 = vmand %vm4118, %vm2349
      %vm4151 = vmand %vm4119, %vm2350
      %vm4152 = vmand %vm4120, %vm2351
      %vm4153 = vmand %vm4121, %vm2352
      %v4154 = vsel %vm4122, 1, 0
      %v4155 = vsel %vm4123, 1, 0
      %v4156 = vsel %vm4124, 1, 0
      %v4157 = vsel %vm4125, 1, 0
      %v4158 = vsel %vm4126, 1, 0
      %v4159 = vsel %vm4127, 1, 0
      %v4160 = vsel %vm4128, 1, 0
      %v4161 = vsel %vm4129, 1, 0
      %v4162 = vsel %vm4130, 1, 0
      %v4163 = vsel %vm4131, 1, 0
      %v4164 = vsel %vm4132, 1, 0
      %v4165 = vsel %vm4133, 1, 0
      %v4166 = vsel %vm4134, 1, 0
      %v4167 = vsel %vm4135, 1, 0
      %v4168 = vsel %vm4136, 1, 0
      %v4169 = vsel %vm4137, 1, 0
      %v4170 = vsel %vm4138, 1, 0
      %v4171 = vsel %vm4139, 1, 0
      %v4172 = vsel %vm4140, 1, 0
      %v4173 = vsel %vm4141, 1, 0
      %v4174 = vsel %vm4142, 1, 0
      %v4175 = vsel %vm4143, 1, 0
      %v4176 = vsel %vm4144, 1, 0
      %v4177 = vsel %vm4145, 1, 0
      %v4178 = vsel %vm4146, 1, 0
      %v4179 = vsel %vm4147, 1, 0
      %v4180 = vsel %vm4148, 1, 0
      %v4181 = vsel %vm4149, 1, 0
      %v4182 = vsel %vm4150, 1, 0
      %v4183 = vsel %vm4151, 1, 0
      %v4184 = vsel %vm4152, 1, 0
      %v4185 = vsel %vm4153, 1, 0
      %vm4186 = vcmp.eq.s32.totalorder %v4154, 1
      %vm4187 = vcmp.eq.s32.totalorder %v4155, 1
      %vm4188 = vcmp.eq.s32.totalorder %v4156, 1
      %vm4189 = vcmp.eq.s32.totalorder %v4157, 1
      %vm4190 = vcmp.eq.s32.totalorder %v4158, 1
      %vm4191 = vcmp.eq.s32.totalorder %v4159, 1
      %vm4192 = vcmp.eq.s32.totalorder %v4160, 1
      %vm4193 = vcmp.eq.s32.totalorder %v4161, 1
      %vm4194 = vcmp.eq.s32.totalorder %v4162, 1
      %vm4195 = vcmp.eq.s32.totalorder %v4163, 1
      %vm4196 = vcmp.eq.s32.totalorder %v4164, 1
      %vm4197 = vcmp.eq.s32.totalorder %v4165, 1
      %vm4198 = vcmp.eq.s32.totalorder %v4166, 1
      %vm4199 = vcmp.eq.s32.totalorder %v4167, 1
      %vm4200 = vcmp.eq.s32.totalorder %v4168, 1
      %vm4201 = vcmp.eq.s32.totalorder %v4169, 1
      %vm4202 = vcmp.eq.s32.totalorder %v4170, 1
      %vm4203 = vcmp.eq.s32.totalorder %v4171, 1
      %vm4204 = vcmp.eq.s32.totalorder %v4172, 1
      %vm4205 = vcmp.eq.s32.totalorder %v4173, 1
      %vm4206 = vcmp.eq.s32.totalorder %v4174, 1
      %vm4207 = vcmp.eq.s32.totalorder %v4175, 1
      %vm4208 = vcmp.eq.s32.totalorder %v4176, 1
      %vm4209 = vcmp.eq.s32.totalorder %v4177, 1
      %vm4210 = vcmp.eq.s32.totalorder %v4178, 1
      %vm4211 = vcmp.eq.s32.totalorder %v4179, 1
      %vm4212 = vcmp.eq.s32.totalorder %v4180, 1
      %vm4213 = vcmp.eq.s32.totalorder %v4181, 1
      %vm4214 = vcmp.eq.s32.totalorder %v4182, 1
      %vm4215 = vcmp.eq.s32.totalorder %v4183, 1
      %vm4216 = vcmp.eq.s32.totalorder %v4184, 1
      %vm4217 = vcmp.eq.s32.totalorder %v4185, 1
      %v4218 = vsel %vm4186, %v827, 0.0
      %v4219 = vsel %vm4187, %v828, 0.0
      %v4220 = vsel %vm4188, %v829, 0.0
      %v4221 = vsel %vm4189, %v830, 0.0
      %v4222 = vsel %vm4190, %v831, 0.0
      %v4223 = vsel %vm4191, %v832, 0.0
      %v4224 = vsel %vm4192, %v833, 0.0
      %v4225 = vsel %vm4193, %v834, 0.0
      %v4226 = vsel %vm4194, %v835, 0.0
      %v4227 = vsel %vm4195, %v836, 0.0
      %v4228 = vsel %vm4196, %v837, 0.0
      %v4229 = vsel %vm4197, %v838, 0.0
      %v4230 = vsel %vm4198, %v839, 0.0
      %v4231 = vsel %vm4199, %v840, 0.0
      %v4232 = vsel %vm4200, %v841, 0.0
      %v4233 = vsel %vm4201, %v842, 0.0
      %v4234 = vsel %vm4202, %v843, 0.0
      %v4235 = vsel %vm4203, %v844, 0.0
      %v4236 = vsel %vm4204, %v845, 0.0
      %v4237 = vsel %vm4205, %v846, 0.0
      %v4238 = vsel %vm4206, %v847, 0.0
      %v4239 = vsel %vm4207, %v848, 0.0
      %v4240 = vsel %vm4208, %v849, 0.0
      %v4241 = vsel %vm4209, %v850, 0.0
      %v4242 = vsel %vm4210, %v851, 0.0
      %v4243 = vsel %vm4211, %v852, 0.0
      %v4244 = vsel %vm4212, %v853, 0.0
      %v4245 = vsel %vm4213, %v854, 0.0
      %v4246 = vsel %vm4214, %v855, 0.0
      %v4247 = vsel %vm4215, %v856, 0.0
      %v4248 = vsel %vm4216, %v857, 0.0
      %v4249 = vsel %vm4217, %v858, 0.0
      %v4250 = vpack.c.bf16 %v4219, %v4218
      %v4251 = vpack.c.bf16 %v4221, %v4220
      %v4252 = vpack.c.bf16 %v4223, %v4222
      %v4253 = vpack.c.bf16 %v4225, %v4224
      %v4254 = vpack.c.bf16 %v4227, %v4226
      %v4255 = vpack.c.bf16 %v4229, %v4228
      %v4256 = vpack.c.bf16 %v4231, %v4230
      %v4257 = vpack.c.bf16 %v4233, %v4232
      %v4258 = vpack.c.bf16 %v4235, %v4234
      %v4259 = vpack.c.bf16 %v4237, %v4236
      %v4260 = vpack.c.bf16 %v4239, %v4238
      %v4261 = vpack.c.bf16 %v4241, %v4240
      %v4262 = vpack.c.bf16 %v4243, %v4242
      %v4263 = vpack.c.bf16 %v4245, %v4244
      %v4264 = vpack.c.bf16 %v4247, %v4246
      %v4265 = vpack.c.bf16 %v4249, %v4248
      %s4266 = scalar_lea.vmem %s7, 256
      %v4267 = vld [vmem:[%s4266] sm:$0xf]
      %v4268 = vld [vmem:[%s4266 + $0x4] sm:$0xf]
      %v4269 = vld [vmem:[%s4266 + $0x8] sm:$0xf]
      %v4270 = vld [vmem:[%s4266 + $0xc] sm:$0xf]
      %v4271 = vld [vmem:[%s4266 + $0x10] sm:$0xf]
      %v4272 = vld [vmem:[%s4266 + $0x14] sm:$0xf]
      %v4273 = vld [vmem:[%s4266 + $0x18] sm:$0xf]
      %v4274 = vld [vmem:[%s4266 + $0x1c] sm:$0xf]
      %v4275 = vld [vmem:[%s4266 + $0x20] sm:$0xf]
      %v4276 = vld [vmem:[%s4266 + $0x24] sm:$0xf]
      %v4277 = vld [vmem:[%s4266 + $0x28] sm:$0xf]
      %v4278 = vld [vmem:[%s4266 + $0x2c] sm:$0xf]
      %v4279 = vld [vmem:[%s4266 + $0x30] sm:$0xf]
      %v4280 = vld [vmem:[%s4266 + $0x34] sm:$0xf]
      %v4281 = vld [vmem:[%s4266 + $0x38] sm:$0xf]
      %v4282 = vld [vmem:[%s4266 + $0x3c] sm:$0xf]
      %v4299 = vunpack.c.l.b16 %v4267
      %v4300 = vunpack.c.l.b16 %v4268
      %v4301 = vunpack.c.l.b16 %v4269
      %v4302 = vunpack.c.l.b16 %v4270
      %v4303 = vunpack.c.l.b16 %v4271
      %v4304 = vunpack.c.l.b16 %v4272
      %v4305 = vunpack.c.l.b16 %v4273
      %v4306 = vunpack.c.l.b16 %v4274
      %v4307 = vunpack.c.l.b16 %v4275
      %v4308 = vunpack.c.l.b16 %v4276
      %v4309 = vunpack.c.l.b16 %v4277
      %v4310 = vunpack.c.l.b16 %v4278
      %v4311 = vunpack.c.l.b16 %v4279
      %v4312 = vunpack.c.l.b16 %v4280
      %v4313 = vunpack.c.l.b16 %v4281
      %v4314 = vunpack.c.l.b16 %v4282
      %v4315 = vpack.c.b16 %v4300, %v4299
      %v4316 = vpack.c.b16 %v4302, %v4301
      %v4317 = vpack.c.b16 %v4304, %v4303
      %v4318 = vpack.c.b16 %v4306, %v4305
      %v4319 = vpack.c.b16 %v4308, %v4307
      %v4320 = vpack.c.b16 %v4310, %v4309
      %v4321 = vpack.c.b16 %v4312, %v4311
      %v4322 = vpack.c.b16 %v4314, %v4313
      %4331 = vmatprep.subr.bf16.mxu0 0
      %4332 = vmatpush1.bf16.msra.mxu0 %v4315
      %4333 = vmatprep.subr.bf16.mxu0 0
      %4334 = vmatpush1.bf16.msra.mxu0 %v4316
      %4335 = vmatprep.subr.bf16.mxu0 0
      %4336 = vmatpush1.bf16.msra.mxu0 %v4317
      %4337 = vmatprep.subr.bf16.mxu0 0
      %4338 = vmatpush1.bf16.msra.mxu0 %v4318
      %4339 = vmatprep.subr.bf16.mxu0 0
      %4340 = vmatpush1.bf16.msra.mxu0 %v4319
      %4341 = vmatprep.subr.bf16.mxu0 0
      %4342 = vmatpush1.bf16.msra.mxu0 %v4320
      %4343 = vmatprep.subr.bf16.mxu0 0
      %4344 = vmatpush1.bf16.msra.mxu0 %v4321
      %4345 = vmatprep.subr.bf16.mxu0 0
      %4346 = vmatpush1.bf16.msra.mxu0 %v4322
      %4347 = vmatprep.subr.bf16.mxu0 0
      %4348 = vmatpush1.bf16.msra.mxu0 0
      %4349 = vmatprep.subr.bf16.mxu0 0
      %4350 = vmatpush1.bf16.msra.mxu0 0
      %4351 = vmatprep.subr.bf16.mxu0 0
      %4352 = vmatpush1.bf16.msra.mxu0 0
      %4353 = vmatprep.subr.bf16.mxu0 0
      %4354 = vmatpush1.bf16.msra.mxu0 0
      %4355 = vmatprep.subr.bf16.mxu0 0
      %4356 = vmatpush1.bf16.msra.mxu0 0
      %4357 = vmatprep.subr.bf16.mxu0 0
      %4358 = vmatpush1.bf16.msra.mxu0 0
      %4359 = vmatprep.subr.bf16.mxu0 0
      %4360 = vmatpush1.bf16.msra.mxu0 0
      %4361 = vmatprep.subr.bf16.mxu0 0
      %4362 = vmatpush1.bf16.msra.mxu0 0
      %4363 = vmatprep.mubr.bf16.mxu0 0
      %4364 = vmatmul.mubr.bf16.gmra.mrb[0].mxu0 %v4250
      %v4365 = vpop.f32.mrb[0].mxu0
      %v4366 = vadd.f32 0.0, %v4365
      %v4367 = vpop.f32.mrb[0].mxu0
      %v4368 = vpop.f32.mrb[0].mxu0
      %v4369 = vadd.f32 0.0, %v4368
      %v4370 = vpop.f32.mrb[0].mxu0
      %4371 = vmatprep.mubr.bf16.mxu0 0
      %4372 = vmatmul.mubr.bf16.gmra.mrb[0].mxu0 %v4251
      %v4373 = vpop.f32.mrb[0].mxu0
      %v4374 = vadd.f32 0.0, %v4373
      %v4375 = vpop.f32.mrb[0].mxu0
      %v4376 = vpop.f32.mrb[0].mxu0
      %v4377 = vadd.f32 0.0, %v4376
      %v4378 = vpop.f32.mrb[0].mxu0
      %4379 = vmatprep.mubr.bf16.mxu0 0
      %4380 = vmatmul.mubr.bf16.gmra.mrb[0].mxu0 %v4252
      %v4381 = vpop.f32.mrb[0].mxu0
      %v4382 = vadd.f32 0.0, %v4381
      %v4383 = vpop.f32.mrb[0].mxu0
      %v4384 = vpop.f32.mrb[0].mxu0
      %v4385 = vadd.f32 0.0, %v4384
      %v4386 = vpop.f32.mrb[0].mxu0
      %4387 = vmatprep.mubr.bf16.mxu0 0
      %4388 = vmatmul.mubr.bf16.gmra.mrb[0].mxu0 %v4253
      %v4389 = vpop.f32.mrb[0].mxu0
      %v4390 = vadd.f32 0.0, %v4389
      %v4391 = vpop.f32.mrb[0].mxu0
      %v4392 = vpop.f32.mrb[0].mxu0
      %v4393 = vadd.f32 0.0, %v4392
      %v4394 = vpop.f32.mrb[0].mxu0
      %4395 = vmatprep.mubr.bf16.mxu0 0
      %4396 = vmatmul.mubr.bf16.gmra.mrb[0].mxu0 %v4254
      %v4397 = vpop.f32.mrb[0].mxu0
      %v4398 = vadd.f32 0.0, %v4397
      %v4399 = vpop.f32.mrb[0].mxu0
      %v4400 = vpop.f32.mrb[0].mxu0
      %v4401 = vadd.f32 0.0, %v4400
      %v4402 = vpop.f32.mrb[0].mxu0
      %4403 = vmatprep.mubr.bf16.mxu0 0
      %4404 = vmatmul.mubr.bf16.gmra.mrb[0].mxu0 %v4255
      %v4405 = vpop.f32.mrb[0].mxu0
      %v4406 = vadd.f32 0.0, %v4405
      %v4407 = vpop.f32.mrb[0].mxu0
      %v4408 = vpop.f32.mrb[0].mxu0
      %v4409 = vadd.f32 0.0, %v4408
      %v4410 = vpop.f32.mrb[0].mxu0
      %4411 = vmatprep.mubr.bf16.mxu0 0
      %4412 = vmatmul.mubr.bf16.gmra.mrb[0].mxu0 %v4256
      %v4413 = vpop.f32.mrb[0].mxu0
      %v4414 = vadd.f32 0.0, %v4413
      %v4415 = vpop.f32.mrb[0].mxu0
      %v4416 = vpop.f32.mrb[0].mxu0
      %v4417 = vadd.f32 0.0, %v4416
      %v4418 = vpop.f32.mrb[0].mxu0
      %4419 = vmatprep.mubr.bf16.mxu0 0
      %4420 = vmatmul.mubr.bf16.gmra.mrb[0].mxu0 %v4257
      %v4421 = vpop.f32.mrb[0].mxu0
      %v4422 = vadd.f32 0.0, %v4421
      %v4423 = vpop.f32.mrb[0].mxu0
      %v4424 = vpop.f32.mrb[0].mxu0
      %v4425 = vadd.f32 0.0, %v4424
      %v4426 = vpop.f32.mrb[0].mxu0
      %4427 = vmatprep.mubr.bf16.mxu0 0
      %4428 = vmatmul.mubr.bf16.gmra.mrb[0].mxu0 %v4258
      %v4429 = vpop.f32.mrb[0].mxu0
      %v4430 = vadd.f32 0.0, %v4429
      %v4431 = vpop.f32.mrb[0].mxu0
      %v4432 = vpop.f32.mrb[0].mxu0
      %v4433 = vadd.f32 0.0, %v4432
      %v4434 = vpop.f32.mrb[0].mxu0
      %4435 = vmatprep.mubr.bf16.mxu0 0
      %4436 = vmatmul.mubr.bf16.gmra.mrb[0].mxu0 %v4259
      %v4437 = vpop.f32.mrb[0].mxu0
      %v4438 = vadd.f32 0.0, %v4437
      %v4439 = vpop.f32.mrb[0].mxu0
      %v4440 = vpop.f32.mrb[0].mxu0
      %v4441 = vadd.f32 0.0, %v4440
      %v4442 = vpop.f32.mrb[0].mxu0
      %4443 = vmatprep.mubr.bf16.mxu0 0
      %4444 = vmatmul.mubr.bf16.gmra.mrb[0].mxu0 %v4260
      %v4445 = vpop.f32.mrb[0].mxu0
      %v4446 = vadd.f32 0.0, %v4445
      %v4447 = vpop.f32.mrb[0].mxu0
      %v4448 = vpop.f32.mrb[0].mxu0
      %v4449 = vadd.f32 0.0, %v4448
      %v4450 = vpop.f32.mrb[0].mxu0
      %4451 = vmatprep.mubr.bf16.mxu0 0
      %4452 = vmatmul.mubr.bf16.gmra.mrb[0].mxu0 %v4261
      %v4453 = vpop.f32.mrb[0].mxu0
      %v4454 = vadd.f32 0.0, %v4453
      %v4455 = vpop.f32.mrb[0].mxu0
      %v4456 = vpop.f32.mrb[0].mxu0
      %v4457 = vadd.f32 0.0, %v4456
      %v4458 = vpop.f32.mrb[0].mxu0
      %4459 = vmatprep.mubr.bf16.mxu0 0
      %4460 = vmatmul.mubr.bf16.gmra.mrb[0].mxu0 %v4262
      %v4461 = vpop.f32.mrb[0].mxu0
      %v4462 = vadd.f32 0.0, %v4461
      %v4463 = vpop.f32.mrb[0].mxu0
      %v4464 = vpop.f32.mrb[0].mxu0
      %v4465 = vadd.f32 0.0, %v4464
      %v4466 = vpop.f32.mrb[0].mxu0
      %4467 = vmatprep.mubr.bf16.mxu0 0
      %4468 = vmatmul.mubr.bf16.gmra.mrb[0].mxu0 %v4263
      %v4469 = vpop.f32.mrb[0].mxu0
      %v4470 = vadd.f32 0.0, %v4469
      %v4471 = vpop.f32.mrb[0].mxu0
      %v4472 = vpop.f32.mrb[0].mxu0
      %v4473 = vadd.f32 0.0, %v4472
      %v4474 = vpop.f32.mrb[0].mxu0
      %4475 = vmatprep.mubr.bf16.mxu0 0
      %4476 = vmatmul.mubr.bf16.gmra.mrb[0].mxu0 %v4264
      %v4477 = vpop.f32.mrb[0].mxu0
      %v4478 = vadd.f32 0.0, %v4477
      %v4479 = vpop.f32.mrb[0].mxu0
      %v4480 = vpop.f32.mrb[0].mxu0
      %v4481 = vadd.f32 0.0, %v4480
      %v4482 = vpop.f32.mrb[0].mxu0
      %4483 = vmatprep.mubr.bf16.mxu0 0
      %4484 = vmatmul.mubr.bf16.gmra.mrb[0].mxu0 %v4265
      %v4485 = vpop.f32.mrb[0].mxu0
      %v4486 = vadd.f32 0.0, %v4485
      %v4487 = vpop.f32.mrb[0].mxu0
      %v4488 = vpop.f32.mrb[0].mxu0
      %v4489 = vadd.f32 0.0, %v4488
      %v4490 = vpop.f32.mrb[0].mxu0
      %4491 = vdwg.mxu0
      %v4492 = vadd.f32 %v4058, %v4366
      %v4493 = vadd.f32 %v4059, %v4369
      %v4494 = vadd.f32 %v4060, %v4374
      %v4495 = vadd.f32 %v4061, %v4377
      %v4496 = vadd.f32 %v4062, %v4382
      %v4497 = vadd.f32 %v4063, %v4385
      %v4498 = vadd.f32 %v4064, %v4390
      %v4499 = vadd.f32 %v4065, %v4393
      %v4500 = vadd.f32 %v4066, %v4398
      %v4501 = vadd.f32 %v4067, %v4401
      %v4502 = vadd.f32 %v4068, %v4406
      %v4503 = vadd.f32 %v4069, %v4409
      %v4504 = vadd.f32 %v4070, %v4414
      %v4505 = vadd.f32 %v4071, %v4417
      %v4506 = vadd.f32 %v4072, %v4422
      %v4507 = vadd.f32 %v4073, %v4425
      %v4508 = vadd.f32 %v4074, %v4430
      %v4509 = vadd.f32 %v4075, %v4433
      %v4510 = vadd.f32 %v4076, %v4438
      %v4511 = vadd.f32 %v4077, %v4441
      %v4512 = vadd.f32 %v4078, %v4446
      %v4513 = vadd.f32 %v4079, %v4449
      %v4514 = vadd.f32 %v4080, %v4454
      %v4515 = vadd.f32 %v4081, %v4457
      %v4516 = vadd.f32 %v4082, %v4462
      %v4517 = vadd.f32 %v4083, %v4465
      %v4518 = vadd.f32 %v4084, %v4470
      %v4519 = vadd.f32 %v4085, %v4473
      %v4520 = vadd.f32 %v4086, %v4478
      %v4521 = vadd.f32 %v4087, %v4481
      %v4522 = vadd.f32 %v4088, %v4486
      %v4523 = vadd.f32 %v4089, %v4489
      %vm4524 = vmand %vm3624, %vm2964
      %vm4525 = vmand %vm3625, %vm2965
      %vm4526 = vmand %vm3626, %vm2966
      %vm4527 = vmand %vm3627, %vm2967
      %vm4528 = vmand %vm3628, %vm2968
      %vm4529 = vmand %vm3629, %vm2969
      %vm4530 = vmand %vm3630, %vm2970
      %vm4531 = vmand %vm3631, %vm2971
      %vm4532 = vmand %vm3632, %vm2972
      %vm4533 = vmand %vm3633, %vm2973
      %vm4534 = vmand %vm3634, %vm2974
      %vm4535 = vmand %vm3635, %vm2975
      %vm4536 = vmand %vm3636, %vm2976
      %vm4537 = vmand %vm3637, %vm2977
      %vm4538 = vmand %vm3638, %vm2978
      %vm4539 = vmand %vm3639, %vm2979
      %vm4540 = vmand %vm3640, %vm2980
      %vm4541 = vmand %vm3641, %vm2981
      %vm4542 = vmand %vm3642, %vm2982
      %vm4543 = vmand %vm3643, %vm2983
      %vm4544 = vmand %vm3644, %vm2984
      %vm4545 = vmand %vm3645, %vm2985
      %vm4546 = vmand %vm3646, %vm2986
      %vm4547 = vmand %vm3647, %vm2987
      %vm4548 = vmand %vm3648, %vm2988
      %vm4549 = vmand %vm3649, %vm2989
      %vm4550 = vmand %vm3650, %vm2990
      %vm4551 = vmand %vm3651, %vm2991
      %vm4552 = vmand %vm3652, %vm2992
      %vm4553 = vmand %vm3653, %vm2993
      %vm4554 = vmand %vm3654, %vm2994
      %vm4555 = vmand %vm3655, %vm2995
      %vm4556 = vmand %vm4524, %vm3028
      %vm4557 = vmand %vm4525, %vm3029
      %vm4558 = vmand %vm4526, %vm3030
      %vm4559 = vmand %vm4527, %vm3031
      %vm4560 = vmand %vm4528, %vm3032
      %vm4561 = vmand %vm4529, %vm3033
      %vm4562 = vmand %vm4530, %vm3034
      %vm4563 = vmand %vm4531, %vm3035
      %vm4564 = vmand %vm4532, %vm3036
      %vm4565 = vmand %vm4533, %vm3037
      %vm4566 = vmand %vm4534, %vm3038
      %vm4567 = vmand %vm4535, %vm3039
      %vm4568 = vmand %vm4536, %vm3040
      %vm4569 = vmand %vm4537, %vm3041
      %vm4570 = vmand %vm4538, %vm3042
      %vm4571 = vmand %vm4539, %vm3043
      %vm4572 = vmand %vm4540, %vm3044
      %vm4573 = vmand %vm4541, %vm3045
      %vm4574 = vmand %vm4542, %vm3046
      %vm4575 = vmand %vm4543, %vm3047
      %vm4576 = vmand %vm4544, %vm3048
      %vm4577 = vmand %vm4545, %vm3049
      %vm4578 = vmand %vm4546, %vm3050
      %vm4579 = vmand %vm4547, %vm3051
      %vm4580 = vmand %vm4548, %vm3052
      %vm4581 = vmand %vm4549, %vm3053
      %vm4582 = vmand %vm4550, %vm3054
      %vm4583 = vmand %vm4551, %vm3055
      %vm4584 = vmand %vm4552, %vm3056
      %vm4585 = vmand %vm4553, %vm3057
      %vm4586 = vmand %vm4554, %vm3058
      %vm4587 = vmand %vm4555, %vm3059
      %v4588 = vsel %vm4556, 1, 0
      %v4589 = vsel %vm4557, 1, 0
      %v4590 = vsel %vm4558, 1, 0
      %v4591 = vsel %vm4559, 1, 0
      %v4592 = vsel %vm4560, 1, 0
      %v4593 = vsel %vm4561, 1, 0
      %v4594 = vsel %vm4562, 1, 0
      %v4595 = vsel %vm4563, 1, 0
      %v4596 = vsel %vm4564, 1, 0
      %v4597 = vsel %vm4565, 1, 0
      %v4598 = vsel %vm4566, 1, 0
      %v4599 = vsel %vm4567, 1, 0
      %v4600 = vsel %vm4568, 1, 0
      %v4601 = vsel %vm4569, 1, 0
      %v4602 = vsel %vm4570, 1, 0
      %v4603 = vsel %vm4571, 1, 0
      %v4604 = vsel %vm4572, 1, 0
      %v4605 = vsel %vm4573, 1, 0
      %v4606 = vsel %vm4574, 1, 0
      %v4607 = vsel %vm4575, 1, 0
      %v4608 = vsel %vm4576, 1, 0
      %v4609 = vsel %vm4577, 1, 0
      %v4610 = vsel %vm4578, 1, 0
      %v4611 = vsel %vm4579, 1, 0
      %v4612 = vsel %vm4580, 1, 0
      %v4613 = vsel %vm4581, 1, 0
      %v4614 = vsel %vm4582, 1, 0
      %v4615 = vsel %vm4583, 1, 0
      %v4616 = vsel %vm4584, 1, 0
      %v4617 = vsel %vm4585, 1, 0
      %v4618 = vsel %vm4586, 1, 0
      %v4619 = vsel %vm4587, 1, 0
      %vm4620 = vcmp.eq.s32.totalorder %v4588, 1
      %vm4621 = vcmp.eq.s32.totalorder %v4589, 1
      %vm4622 = vcmp.eq.s32.totalorder %v4590, 1
      %vm4623 = vcmp.eq.s32.totalorder %v4591, 1
      %vm4624 = vcmp.eq.s32.totalorder %v4592, 1
      %vm4625 = vcmp.eq.s32.totalorder %v4593, 1
      %vm4626 = vcmp.eq.s32.totalorder %v4594, 1
      %vm4627 = vcmp.eq.s32.totalorder %v4595, 1
      %vm4628 = vcmp.eq.s32.totalorder %v4596, 1
      %vm4629 = vcmp.eq.s32.totalorder %v4597, 1
      %vm4630 = vcmp.eq.s32.totalorder %v4598, 1
      %vm4631 = vcmp.eq.s32.totalorder %v4599, 1
      %vm4632 = vcmp.eq.s32.totalorder %v4600, 1
      %vm4633 = vcmp.eq.s32.totalorder %v4601, 1
      %vm4634 = vcmp.eq.s32.totalorder %v4602, 1
      %vm4635 = vcmp.eq.s32.totalorder %v4603, 1
      %vm4636 = vcmp.eq.s32.totalorder %v4604, 1
      %vm4637 = vcmp.eq.s32.totalorder %v4605, 1
      %vm4638 = vcmp.eq.s32.totalorder %v4606, 1
      %vm4639 = vcmp.eq.s32.totalorder %v4607, 1
      %vm4640 = vcmp.eq.s32.totalorder %v4608, 1
      %vm4641 = vcmp.eq.s32.totalorder %v4609, 1
      %vm4642 = vcmp.eq.s32.totalorder %v4610, 1
      %vm4643 = vcmp.eq.s32.totalorder %v4611, 1
      %vm4644 = vcmp.eq.s32.totalorder %v4612, 1
      %vm4645 = vcmp.eq.s32.totalorder %v4613, 1
      %vm4646 = vcmp.eq.s32.totalorder %v4614, 1
      %vm4647 = vcmp.eq.s32.totalorder %v4615, 1
      %vm4648 = vcmp.eq.s32.totalorder %v4616, 1
      %vm4649 = vcmp.eq.s32.totalorder %v4617, 1
      %vm4650 = vcmp.eq.s32.totalorder %v4618, 1
      %vm4651 = vcmp.eq.s32.totalorder %v4619, 1
      %v4652 = vsel %vm4620, %v3100, 0.0
      %v4653 = vsel %vm4621, %v3102, 0.0
      %v4654 = vsel %vm4622, %v3104, 0.0
      %v4655 = vsel %vm4623, %v3106, 0.0
      %v4656 = vsel %vm4624, %v3108, 0.0
      %v4657 = vsel %vm4625, %v3110, 0.0
      %v4658 = vsel %vm4626, %v3112, 0.0
      %v4659 = vsel %vm4627, %v3114, 0.0
      %v4660 = vsel %vm4628, %v3116, 0.0
      %v4661 = vsel %vm4629, %v3118, 0.0
      %v4662 = vsel %vm4630, %v3120, 0.0
      %v4663 = vsel %vm4631, %v3122, 0.0
      %v4664 = vsel %vm4632, %v3124, 0.0
      %v4665 = vsel %vm4633, %v3126, 0.0
      %v4666 = vsel %vm4634, %v3128, 0.0
      %v4667 = vsel %vm4635, %v3130, 0.0
      %v4668 = vsel %vm4636, %v3132, 0.0
      %v4669 = vsel %vm4637, %v3134, 0.0
      %v4670 = vsel %vm4638, %v3136, 0.0
      %v4671 = vsel %vm4639, %v3138, 0.0
      %v4672 = vsel %vm4640, %v3140, 0.0
      %v4673 = vsel %vm4641, %v3142, 0.0
      %v4674 = vsel %vm4642, %v3144, 0.0
      %v4675 = vsel %vm4643, %v3146, 0.0
      %v4676 = vsel %vm4644, %v3148, 0.0
      %v4677 = vsel %vm4645, %v3150, 0.0
      %v4678 = vsel %vm4646, %v3152, 0.0
      %v4679 = vsel %vm4647, %v3154, 0.0
      %v4680 = vsel %vm4648, %v3156, 0.0
      %v4681 = vsel %vm4649, %v3157, 0.0
      %v4682 = vsel %vm4650, %v3095, 0.0
      %v4683 = vsel %vm4651, %v3189, 0.0
      %v4684 = vpack.c.bf16 %v4653, %v4652
      %v4685 = vpack.c.bf16 %v4655, %v4654
      %v4686 = vpack.c.bf16 %v4657, %v4656
      %v4687 = vpack.c.bf16 %v4659, %v4658
      %v4688 = vpack.c.bf16 %v4661, %v4660
      %v4689 = vpack.c.bf16 %v4663, %v4662
      %v4690 = vpack.c.bf16 %v4665, %v4664
      %v4691 = vpack.c.bf16 %v4667, %v4666
      %v4692 = vpack.c.bf16 %v4669, %v4668
      %v4693 = vpack.c.bf16 %v4671, %v4670
      %v4694 = vpack.c.bf16 %v4673, %v4672
      %v4695 = vpack.c.bf16 %v4675, %v4674
      %v4696 = vpack.c.bf16 %v4677, %v4676
      %v4697 = vpack.c.bf16 %v4679, %v4678
      %v4698 = vpack.c.bf16 %v4681, %v4680
      %v4699 = vpack.c.bf16 %v4683, %v4682
      %s4700 = scalar_lea.vmem %s7, 320
      %v4701 = vld [vmem:[%s4700] sm:$0xf]
      %v4702 = vld [vmem:[%s4700 + $0x4] sm:$0xf]
      %v4703 = vld [vmem:[%s4700 + $0x8] sm:$0xf]
      %v4704 = vld [vmem:[%s4700 + $0xc] sm:$0xf]
      %v4705 = vld [vmem:[%s4700 + $0x10] sm:$0xf]
      %v4706 = vld [vmem:[%s4700 + $0x14] sm:$0xf]
      %v4707 = vld [vmem:[%s4700 + $0x18] sm:$0xf]
      %v4708 = vld [vmem:[%s4700 + $0x1c] sm:$0xf]
      %v4709 = vld [vmem:[%s4700 + $0x20] sm:$0xf]
      %v4710 = vld [vmem:[%s4700 + $0x24] sm:$0xf]
      %v4711 = vld [vmem:[%s4700 + $0x28] sm:$0xf]
      %v4712 = vld [vmem:[%s4700 + $0x2c] sm:$0xf]
      %v4713 = vld [vmem:[%s4700 + $0x30] sm:$0xf]
      %v4714 = vld [vmem:[%s4700 + $0x34] sm:$0xf]
      %v4715 = vld [vmem:[%s4700 + $0x38] sm:$0xf]
      %v4716 = vld [vmem:[%s4700 + $0x3c] sm:$0xf]
      %v4733 = vunpack.c.l.b16 %v4701
      %v4734 = vunpack.c.l.b16 %v4702
      %v4735 = vunpack.c.l.b16 %v4703
      %v4736 = vunpack.c.l.b16 %v4704
      %v4737 = vunpack.c.l.b16 %v4705
      %v4738 = vunpack.c.l.b16 %v4706
      %v4739 = vunpack.c.l.b16 %v4707
      %v4740 = vunpack.c.l.b16 %v4708
      %v4741 = vunpack.c.l.b16 %v4709
      %v4742 = vunpack.c.l.b16 %v4710
      %v4743 = vunpack.c.l.b16 %v4711
      %v4744 = vunpack.c.l.b16 %v4712
      %v4745 = vunpack.c.l.b16 %v4713
      %v4746 = vunpack.c.l.b16 %v4714
      %v4747 = vunpack.c.l.b16 %v4715
      %v4748 = vunpack.c.l.b16 %v4716
      %v4749 = vpack.c.b16 %v4734, %v4733
      %v4750 = vpack.c.b16 %v4736, %v4735
      %v4751 = vpack.c.b16 %v4738, %v4737
      %v4752 = vpack.c.b16 %v4740, %v4739
      %v4753 = vpack.c.b16 %v4742, %v4741
      %v4754 = vpack.c.b16 %v4744, %v4743
      %v4755 = vpack.c.b16 %v4746, %v4745
      %v4756 = vpack.c.b16 %v4748, %v4747
      %4765 = vmatprep.subr.bf16.mxu0 0
      %4766 = vmatpush1.bf16.msra.mxu0 %v4749
      %4767 = vmatprep.subr.bf16.mxu0 0
      %4768 = vmatpush1.bf16.msra.mxu0 %v4750
      %4769 = vmatprep.subr.bf16.mxu0 0
      %4770 = vmatpush1.bf16.msra.mxu0 %v4751
      %4771 = vmatprep.subr.bf16.mxu0 0
      %4772 = vmatpush1.bf16.msra.mxu0 %v4752
      %4773 = vmatprep.subr.bf16.mxu0 0
      %4774 = vmatpush1.bf16.msra.mxu0 %v4753
      %4775 = vmatprep.subr.bf16.mxu0 0
      %4776 = vmatpush1.bf16.msra.mxu0 %v4754
      %4777 = vmatprep.subr.bf16.mxu0 0
      %4778 = vmatpush1.bf16.msra.mxu0 %v4755
      %4779 = vmatprep.subr.bf16.mxu0 0
      %4780 = vmatpush1.bf16.msra.mxu0 %v4756
      %4781 = vmatprep.subr.bf16.mxu0 0
      %4782 = vmatpush1.bf16.msra.mxu0 0
      %4783 = vmatprep.subr.bf16.mxu0 0
      %4784 = vmatpush1.bf16.msra.mxu0 0
      %4785 = vmatprep.subr.bf16.mxu0 0
      %4786 = vmatpush1.bf16.msra.mxu0 0
      %4787 = vmatprep.subr.bf16.mxu0 0
      %4788 = vmatpush1.bf16.msra.mxu0 0
      %4789 = vmatprep.subr.bf16.mxu0 0
      %4790 = vmatpush1.bf16.msra.mxu0 0
      %4791 = vmatprep.subr.bf16.mxu0 0
      %4792 = vmatpush1.bf16.msra.mxu0 0
      %4793 = vmatprep.subr.bf16.mxu0 0
      %4794 = vmatpush1.bf16.msra.mxu0 0
      %4795 = vmatprep.subr.bf16.mxu0 0
      %4796 = vmatpush1.bf16.msra.mxu0 0
      %4797 = vmatprep.mubr.bf16.mxu0 0
      %4798 = vmatmul.mubr.bf16.gmra.mrb[0].mxu0 %v4684
      %v4799 = vpop.f32.mrb[0].mxu0
      %v4800 = vadd.f32 0.0, %v4799
      %v4801 = vpop.f32.mrb[0].mxu0
      %v4802 = vpop.f32.mrb[0].mxu0
      %v4803 = vadd.f32 0.0, %v4802
      %v4804 = vpop.f32.mrb[0].mxu0
      %4805 = vmatprep.mubr.bf16.mxu0 0
      %4806 = vmatmul.mubr.bf16.gmra.mrb[0].mxu0 %v4685
      %v4807 = vpop.f32.mrb[0].mxu0
      %v4808 = vadd.f32 0.0, %v4807
      %v4809 = vpop.f32.mrb[0].mxu0
      %v4810 = vpop.f32.mrb[0].mxu0
      %v4811 = vadd.f32 0.0, %v4810
      %v4812 = vpop.f32.mrb[0].mxu0
      %4813 = vmatprep.mubr.bf16.mxu0 0
      %4814 = vmatmul.mubr.bf16.gmra.mrb[0].mxu0 %v4686
      %v4815 = vpop.f32.mrb[0].mxu0
      %v4816 = vadd.f32 0.0, %v4815
      %v4817 = vpop.f32.mrb[0].mxu0
      %v4818 = vpop.f32.mrb[0].mxu0
      %v4819 = vadd.f32 0.0, %v4818
      %v4820 = vpop.f32.mrb[0].mxu0
      %4821 = vmatprep.mubr.bf16.mxu0 0
      %4822 = vmatmul.mubr.bf16.gmra.mrb[0].mxu0 %v4687
      %v4823 = vpop.f32.mrb[0].mxu0
      %v4824 = vadd.f32 0.0, %v4823
      %v4825 = vpop.f32.mrb[0].mxu0
      %v4826 = vpop.f32.mrb[0].mxu0
      %v4827 = vadd.f32 0.0, %v4826
      %v4828 = vpop.f32.mrb[0].mxu0
      %4829 = vmatprep.mubr.bf16.mxu0 0
      %4830 = vmatmul.mubr.bf16.gmra.mrb[0].mxu0 %v4688
      %v4831 = vpop.f32.mrb[0].mxu0
      %v4832 = vadd.f32 0.0, %v4831
      %v4833 = vpop.f32.mrb[0].mxu0
      %v4834 = vpop.f32.mrb[0].mxu0
      %v4835 = vadd.f32 0.0, %v4834
      %v4836 = vpop.f32.mrb[0].mxu0
      %4837 = vmatprep.mubr.bf16.mxu0 0
      %4838 = vmatmul.mubr.bf16.gmra.mrb[0].mxu0 %v4689
      %v4839 = vpop.f32.mrb[0].mxu0
      %v4840 = vadd.f32 0.0, %v4839
      %v4841 = vpop.f32.mrb[0].mxu0
      %v4842 = vpop.f32.mrb[0].mxu0
      %v4843 = vadd.f32 0.0, %v4842
      %v4844 = vpop.f32.mrb[0].mxu0
      %4845 = vmatprep.mubr.bf16.mxu0 0
      %4846 = vmatmul.mubr.bf16.gmra.mrb[0].mxu0 %v4690
      %v4847 = vpop.f32.mrb[0].mxu0
      %v4848 = vadd.f32 0.0, %v4847
      %v4849 = vpop.f32.mrb[0].mxu0
      %v4850 = vpop.f32.mrb[0].mxu0
      %v4851 = vadd.f32 0.0, %v4850
      %v4852 = vpop.f32.mrb[0].mxu0
      %4853 = vmatprep.mubr.bf16.mxu0 0
      %4854 = vmatmul.mubr.bf16.gmra.mrb[0].mxu0 %v4691
      %v4855 = vpop.f32.mrb[0].mxu0
      %v4856 = vadd.f32 0.0, %v4855
      %v4857 = vpop.f32.mrb[0].mxu0
      %v4858 = vpop.f32.mrb[0].mxu0
      %v4859 = vadd.f32 0.0, %v4858
      %v4860 = vpop.f32.mrb[0].mxu0
      %4861 = vmatprep.mubr.bf16.mxu0 0
      %4862 = vmatmul.mubr.bf16.gmra.mrb[0].mxu0 %v4692
      %v4863 = vpop.f32.mrb[0].mxu0
      %v4864 = vadd.f32 0.0, %v4863
      %v4865 = vpop.f32.mrb[0].mxu0
      %v4866 = vpop.f32.mrb[0].mxu0
      %v4867 = vadd.f32 0.0, %v4866
      %v4868 = vpop.f32.mrb[0].mxu0
      %4869 = vmatprep.mubr.bf16.mxu0 0
      %4870 = vmatmul.mubr.bf16.gmra.mrb[0].mxu0 %v4693
      %v4871 = vpop.f32.mrb[0].mxu0
      %v4872 = vadd.f32 0.0, %v4871
      %v4873 = vpop.f32.mrb[0].mxu0
      %v4874 = vpop.f32.mrb[0].mxu0
      %v4875 = vadd.f32 0.0, %v4874
      %v4876 = vpop.f32.mrb[0].mxu0
      %4877 = vmatprep.mubr.bf16.mxu0 0
      %4878 = vmatmul.mubr.bf16.gmra.mrb[0].mxu0 %v4694
      %v4879 = vpop.f32.mrb[0].mxu0
      %v4880 = vadd.f32 0.0, %v4879
      %v4881 = vpop.f32.mrb[0].mxu0
      %v4882 = vpop.f32.mrb[0].mxu0
      %v4883 = vadd.f32 0.0, %v4882
      %v4884 = vpop.f32.mrb[0].mxu0
      %4885 = vmatprep.mubr.bf16.mxu0 0
      %4886 = vmatmul.mubr.bf16.gmra.mrb[0].mxu0 %v4695
      %v4887 = vpop.f32.mrb[0].mxu0
      %v4888 = vadd.f32 0.0, %v4887
      %v4889 = vpop.f32.mrb[0].mxu0
      %v4890 = vpop.f32.mrb[0].mxu0
      %v4891 = vadd.f32 0.0, %v4890
      %v4892 = vpop.f32.mrb[0].mxu0
      %4893 = vmatprep.mubr.bf16.mxu0 0
      %4894 = vmatmul.mubr.bf16.gmra.mrb[0].mxu0 %v4696
      %v4895 = vpop.f32.mrb[0].mxu0
      %v4896 = vadd.f32 0.0, %v4895
      %v4897 = vpop.f32.mrb[0].mxu0
      %v4898 = vpop.f32.mrb[0].mxu0
      %v4899 = vadd.f32 0.0, %v4898
      %v4900 = vpop.f32.mrb[0].mxu0
      %4901 = vmatprep.mubr.bf16.mxu0 0
      %4902 = vmatmul.mubr.bf16.gmra.mrb[0].mxu0 %v4697
      %v4903 = vpop.f32.mrb[0].mxu0
      %v4904 = vadd.f32 0.0, %v4903
      %v4905 = vpop.f32.mrb[0].mxu0
      %v4906 = vpop.f32.mrb[0].mxu0
      %v4907 = vadd.f32 0.0, %v4906
      %v4908 = vpop.f32.mrb[0].mxu0
      %4909 = vmatprep.mubr.bf16.mxu0 0
      %4910 = vmatmul.mubr.bf16.gmra.mrb[0].mxu0 %v4698
      %v4911 = vpop.f32.mrb[0].mxu0
      %v4912 = vadd.f32 0.0, %v4911
      %v4913 = vpop.f32.mrb[0].mxu0
      %v4914 = vpop.f32.mrb[0].mxu0
      %v4915 = vadd.f32 0.0, %v4914
      %v4916 = vpop.f32.mrb[0].mxu0
      %4917 = vmatprep.mubr.bf16.mxu0 0
      %4918 = vmatmul.mubr.bf16.gmra.mrb[0].mxu0 %v4699
      %v4919 = vpop.f32.mrb[0].mxu0
      %v4920 = vadd.f32 0.0, %v4919
      %v4921 = vpop.f32.mrb[0].mxu0
      %v4922 = vpop.f32.mrb[0].mxu0
      %v4923 = vadd.f32 0.0, %v4922
      %v4924 = vpop.f32.mrb[0].mxu0
      %4925 = vdwg.mxu0
      %v4926 = vadd.f32 %v4492, %v4800
      %v4927 = vadd.f32 %v4493, %v4803
      %v4928 = vadd.f32 %v4494, %v4808
      %v4929 = vadd.f32 %v4495, %v4811
      %v4930 = vadd.f32 %v4496, %v4816
      %v4931 = vadd.f32 %v4497, %v4819
      %v4932 = vadd.f32 %v4498, %v4824
      %v4933 = vadd.f32 %v4499, %v4827
      %v4934 = vadd.f32 %v4500, %v4832
      %v4935 = vadd.f32 %v4501, %v4835
      %v4936 = vadd.f32 %v4502, %v4840
      %v4937 = vadd.f32 %v4503, %v4843
      %v4938 = vadd.f32 %v4504, %v4848
      %v4939 = vadd.f32 %v4505, %v4851
      %v4940 = vadd.f32 %v4506, %v4856
      %v4941 = vadd.f32 %v4507, %v4859
      %v4942 = vadd.f32 %v4508, %v4864
      %v4943 = vadd.f32 %v4509, %v4867
      %v4944 = vadd.f32 %v4510, %v4872
      %v4945 = vadd.f32 %v4511, %v4875
      %v4946 = vadd.f32 %v4512, %v4880
      %v4947 = vadd.f32 %v4513, %v4883
      %v4948 = vadd.f32 %v4514, %v4888
      %v4949 = vadd.f32 %v4515, %v4891
      %v4950 = vadd.f32 %v4516, %v4896
      %v4951 = vadd.f32 %v4517, %v4899
      %v4952 = vadd.f32 %v4518, %v4904
      %v4953 = vadd.f32 %v4519, %v4907
      %v4954 = vadd.f32 %v4520, %v4912
      %v4955 = vadd.f32 %v4521, %v4915
      %v4956 = vadd.f32 %v4522, %v4920
      %v4957 = vadd.f32 %v4523, %v4923
      %v4958 = vadd.s32 %v1296, 16
      %v4959 = vadd.s32 %v1297, 16
      %v4960 = vadd.s32 %v1298, 16
      %v4961 = vadd.s32 %v1299, 16
      %v4962 = vadd.s32 %v1300, 16
      %v4963 = vadd.s32 %v1301, 16
      %v4964 = vadd.s32 %v1302, 16
      %v4965 = vadd.s32 %v1303, 16
      %v4966 = vadd.s32 %v1304, 16
      %v4967 = vadd.s32 %v1305, 16
      %v4968 = vadd.s32 %v1306, 16
      %v4969 = vadd.s32 %v1307, 16
      %v4970 = vadd.s32 %v1308, 16
      %v4971 = vadd.s32 %v1309, 16
      %v4972 = vadd.s32 %v1310, 16
      %v4973 = vadd.s32 %v1311, 16
      %v4974 = vadd.s32 %v1312, 16
      %v4975 = vadd.s32 %v1313, 16
      %v4976 = vadd.s32 %v1314, 16
      %v4977 = vadd.s32 %v1315, 16
      %v4978 = vadd.s32 %v1316, 16
      %v4979 = vadd.s32 %v1317, 16
      %v4980 = vadd.s32 %v1318, 16
      %v4981 = vadd.s32 %v1319, 16
      %v4982 = vadd.s32 %v1320, 16
      %v4983 = vadd.s32 %v1321, 16
      %v4984 = vadd.s32 %v1322, 16
      %v4985 = vadd.s32 %v1323, 16
      %v4986 = vadd.s32 %v1324, 16
      %v4987 = vadd.s32 %v1325, 16
      %v4988 = vadd.s32 %v1326, 16
      %vm4989 = vcmp.ge.s32.totalorder %v4958, 0
      %vm4990 = vcmp.ge.s32.totalorder %v4959, 0
      %vm4991 = vcmp.ge.s32.totalorder %v4960, 0
      %vm4992 = vcmp.ge.s32.totalorder %v4961, 0
      %vm4993 = vcmp.ge.s32.totalorder %v4962, 0
      %vm4994 = vcmp.ge.s32.totalorder %v4963, 0
      %vm4995 = vcmp.ge.s32.totalorder %v4964, 0
      %vm4996 = vcmp.ge.s32.totalorder %v4965, 0
      %vm4997 = vcmp.ge.s32.totalorder %v4966, 0
      %vm4998 = vcmp.ge.s32.totalorder %v4967, 0
      %vm4999 = vcmp.ge.s32.totalorder %v4968, 0
      %vm5000 = vcmp.ge.s32.totalorder %v4969, 0
      %vm5001 = vcmp.ge.s32.totalorder %v4970, 0
      %vm5002 = vcmp.ge.s32.totalorder %v4971, 0
      %vm5003 = vcmp.ge.s32.totalorder %v4972, 0
      %vm5004 = vcmp.ge.s32.totalorder %v4973, 0
      %vm5005 = vcmp.ge.s32.totalorder %v4974, 0
      %vm5006 = vcmp.ge.s32.totalorder %v4975, 0
      %vm5007 = vcmp.ge.s32.totalorder %v4976, 0
      %vm5008 = vcmp.ge.s32.totalorder %v4977, 0
      %vm5009 = vcmp.ge.s32.totalorder %v4978, 0
      %vm5010 = vcmp.ge.s32.totalorder %v4979, 0
      %vm5011 = vcmp.ge.s32.totalorder %v4980, 0
      %vm5012 = vcmp.ge.s32.totalorder %v4981, 0
      %vm5013 = vcmp.ge.s32.totalorder %v4982, 0
      %vm5014 = vcmp.ge.s32.totalorder %v4983, 0
      %vm5015 = vcmp.ge.s32.totalorder %v4984, 0
      %vm5016 = vcmp.ge.s32.totalorder %v4985, 0
      %vm5017 = vcmp.ge.s32.totalorder %v4986, 0
      %vm5018 = vcmp.ge.s32.totalorder %v4987, 0
      %vm5019 = vcmp.ge.s32.totalorder %v4988, 0
      %vm5020 = vcmp.lt.s32.totalorder %v4958, 256
      %vm5021 = vcmp.lt.s32.totalorder %v4959, 256
      %vm5022 = vcmp.lt.s32.totalorder %v4960, 256
      %vm5023 = vcmp.lt.s32.totalorder %v4961, 256
      %vm5024 = vcmp.lt.s32.totalorder %v4962, 256
      %vm5025 = vcmp.lt.s32.totalorder %v4963, 256
      %vm5026 = vcmp.lt.s32.totalorder %v4964, 256
      %vm5027 = vcmp.lt.s32.totalorder %v4965, 256
      %vm5028 = vcmp.lt.s32.totalorder %v4966, 256
      %vm5029 = vcmp.lt.s32.totalorder %v4967, 256
      %vm5030 = vcmp.lt.s32.totalorder %v4968, 256
      %vm5031 = vcmp.lt.s32.totalorder %v4969, 256
      %vm5032 = vcmp.lt.s32.totalorder %v4970, 256
      %vm5033 = vcmp.lt.s32.totalorder %v4971, 256
      %vm5034 = vcmp.lt.s32.totalorder %v4972, 256
      %vm5035 = vcmp.lt.s32.totalorder %v4973, 256
      %vm5036 = vcmp.lt.s32.totalorder %v4974, 256
      %vm5037 = vcmp.lt.s32.totalorder %v4975, 256
      %vm5038 = vcmp.lt.s32.totalorder %v4976, 256
      %vm5039 = vcmp.lt.s32.totalorder %v4977, 256
      %vm5040 = vcmp.lt.s32.totalorder %v4978, 256
      %vm5041 = vcmp.lt.s32.totalorder %v4979, 256
      %vm5042 = vcmp.lt.s32.totalorder %v4980, 256
      %vm5043 = vcmp.lt.s32.totalorder %v4981, 256
      %vm5044 = vcmp.lt.s32.totalorder %v4982, 256
      %vm5045 = vcmp.lt.s32.totalorder %v4983, 256
      %vm5046 = vcmp.lt.s32.totalorder %v4984, 256
      %vm5047 = vcmp.lt.s32.totalorder %v4985, 256
      %vm5048 = vcmp.lt.s32.totalorder %v4986, 256
      %vm5049 = vcmp.lt.s32.totalorder %v4987, 256
      %vm5050 = vcmp.lt.s32.totalorder %v4988, 256
      %vm5051 = vmand %vm4989, %vm5020
      %vm5052 = vmand %vm4990, %vm5021
      %vm5053 = vmand %vm4991, %vm5022
      %vm5054 = vmand %vm4992, %vm5023
      %vm5055 = vmand %vm4993, %vm5024
      %vm5056 = vmand %vm4994, %vm5025
      %vm5057 = vmand %vm4995, %vm5026
      %vm5058 = vmand %vm4996, %vm5027
      %vm5059 = vmand %vm4997, %vm5028
      %vm5060 = vmand %vm4998, %vm5029
      %vm5061 = vmand %vm4999, %vm5030
      %vm5062 = vmand %vm5000, %vm5031
      %vm5063 = vmand %vm5001, %vm5032
      %vm5064 = vmand %vm5002, %vm5033
      %vm5065 = vmand %vm5003, %vm5034
      %vm5066 = vmand %vm5004, %vm5035
      %vm5067 = vmand %vm5005, %vm5036
      %vm5068 = vmand %vm5006, %vm5037
      %vm5069 = vmand %vm5007, %vm5038
      %vm5070 = vmand %vm5008, %vm5039
      %vm5071 = vmand %vm5009, %vm5040
      %vm5072 = vmand %vm5010, %vm5041
      %vm5073 = vmand %vm5011, %vm5042
      %vm5074 = vmand %vm5012, %vm5043
      %vm5075 = vmand %vm5013, %vm5044
      %vm5076 = vmand %vm5014, %vm5045
      %vm5077 = vmand %vm5015, %vm5046
      %vm5078 = vmand %vm5016, %vm5047
      %vm5079 = vmand %vm5017, %vm5048
      %vm5080 = vmand %vm5018, %vm5049
      %vm5081 = vmand %vm5019, %vm5050
      %vm5082 = vmand %vm3626, %vm1871
      %vm5083 = vmand %vm5051, %vm1872
      %vm5084 = vmand %vm5052, %vm1873
      %vm5085 = vmand %vm5053, %vm1874
      %vm5086 = vmand %vm5054, %vm1875
      %vm5087 = vmand %vm5055, %vm1876
      %vm5088 = vmand %vm5056, %vm1877
      %vm5089 = vmand %vm5057, %vm1878
      %vm5090 = vmand %vm5058, %vm1879
      %vm5091 = vmand %vm5059, %vm1880
      %vm5092 = vmand %vm5060, %vm1881
      %vm5093 = vmand %vm5061, %vm1882
      %vm5094 = vmand %vm5062, %vm1883
      %vm5095 = vmand %vm5063, %vm1884
      %vm5096 = vmand %vm5064, %vm1885
      %vm5097 = vmand %vm5065, %vm1886
      %vm5098 = vmand %vm5066, %vm1887
      %vm5099 = vmand %vm5067, %vm1888
      %vm5100 = vmand %vm5068, %vm1889
      %vm5101 = vmand %vm5069, %vm1890
      %vm5102 = vmand %vm5070, %vm1891
      %vm5103 = vmand %vm5071, %vm1892
      %vm5104 = vmand %vm5072, %vm1893
      %vm5105 = vmand %vm5073, %vm1894
      %vm5106 = vmand %vm5074, %vm1895
      %vm5107 = vmand %vm5075, %vm1896
      %vm5108 = vmand %vm5076, %vm1897
      %vm5109 = vmand %vm5077, %vm1898
      %vm5110 = vmand %vm5078, %vm1899
      %vm5111 = vmand %vm5079, %vm1900
      %vm5112 = vmand %vm5080, %vm1901
      %vm5113 = vmand %vm5081, %vm1902
      %vm5114 = vmand %vm5082, %vm1935
      %vm5115 = vmand %vm5083, %vm1936
      %vm5116 = vmand %vm5084, %vm1937
      %vm5117 = vmand %vm5085, %vm1938
      %vm5118 = vmand %vm5086, %vm1939
      %vm5119 = vmand %vm5087, %vm1940
      %vm5120 = vmand %vm5088, %vm1941
      %vm5121 = vmand %vm5089, %vm1942
      %vm5122 = vmand %vm5090, %vm1943
      %vm5123 = vmand %vm5091, %vm1944
      %vm5124 = vmand %vm5092, %vm1945
      %vm5125 = vmand %vm5093, %vm1946
      %vm5126 = vmand %vm5094, %vm1947
      %vm5127 = vmand %vm5095, %vm1948
      %vm5128 = vmand %vm5096, %vm1949
      %vm5129 = vmand %vm5097, %vm1950
      %vm5130 = vmand %vm5098, %vm1951
      %vm5131 = vmand %vm5099, %vm1952
      %vm5132 = vmand %vm5100, %vm1953
      %vm5133 = vmand %vm5101, %vm1954
      %vm5134 = vmand %vm5102, %vm1955
      %vm5135 = vmand %vm5103, %vm1956
      %vm5136 = vmand %vm5104, %vm1957
      %vm5137 = vmand %vm5105, %vm1958
      %vm5138 = vmand %vm5106, %vm1959
      %vm5139 = vmand %vm5107, %vm1960
      %vm5140 = vmand %vm5108, %vm1961
      %vm5141 = vmand %vm5109, %vm1962
      %vm5142 = vmand %vm5110, %vm1963
      %vm5143 = vmand %vm5111, %vm1964
      %vm5144 = vmand %vm5112, %vm1965
      %vm5145 = vmand %vm5113, %vm1966
      %v5146 = vsel %vm5114, 1, 0
      %v5147 = vsel %vm5115, 1, 0
      %v5148 = vsel %vm5116, 1, 0
      %v5149 = vsel %vm5117, 1, 0
      %v5150 = vsel %vm5118, 1, 0
      %v5151 = vsel %vm5119, 1, 0
      %v5152 = vsel %vm5120, 1, 0
      %v5153 = vsel %vm5121, 1, 0
      %v5154 = vsel %vm5122, 1, 0
      %v5155 = vsel %vm5123, 1, 0
      %v5156 = vsel %vm5124, 1, 0
      %v5157 = vsel %vm5125, 1, 0
      %v5158 = vsel %vm5126, 1, 0
      %v5159 = vsel %vm5127, 1, 0
      %v5160 = vsel %vm5128, 1, 0
      %v5161 = vsel %vm5129, 1, 0
      %v5162 = vsel %vm5130, 1, 0
      %v5163 = vsel %vm5131, 1, 0
      %v5164 = vsel %vm5132, 1, 0
      %v5165 = vsel %vm5133, 1, 0
      %v5166 = vsel %vm5134, 1, 0
      %v5167 = vsel %vm5135, 1, 0
      %v5168 = vsel %vm5136, 1, 0
      %v5169 = vsel %vm5137, 1, 0
      %v5170 = vsel %vm5138, 1, 0
      %v5171 = vsel %vm5139, 1, 0
      %v5172 = vsel %vm5140, 1, 0
      %v5173 = vsel %vm5141, 1, 0
      %v5174 = vsel %vm5142, 1, 0
      %v5175 = vsel %vm5143, 1, 0
      %v5176 = vsel %vm5144, 1, 0
      %v5177 = vsel %vm5145, 1, 0
      %vm5178 = vcmp.eq.s32.totalorder %v5146, 1
      %vm5179 = vcmp.eq.s32.totalorder %v5147, 1
      %vm5180 = vcmp.eq.s32.totalorder %v5148, 1
      %vm5181 = vcmp.eq.s32.totalorder %v5149, 1
      %vm5182 = vcmp.eq.s32.totalorder %v5150, 1
      %vm5183 = vcmp.eq.s32.totalorder %v5151, 1
      %vm5184 = vcmp.eq.s32.totalorder %v5152, 1
      %vm5185 = vcmp.eq.s32.totalorder %v5153, 1
      %vm5186 = vcmp.eq.s32.totalorder %v5154, 1
      %vm5187 = vcmp.eq.s32.totalorder %v5155, 1
      %vm5188 = vcmp.eq.s32.totalorder %v5156, 1
      %vm5189 = vcmp.eq.s32.totalorder %v5157, 1
      %vm5190 = vcmp.eq.s32.totalorder %v5158, 1
      %vm5191 = vcmp.eq.s32.totalorder %v5159, 1
      %vm5192 = vcmp.eq.s32.totalorder %v5160, 1
      %vm5193 = vcmp.eq.s32.totalorder %v5161, 1
      %vm5194 = vcmp.eq.s32.totalorder %v5162, 1
      %vm5195 = vcmp.eq.s32.totalorder %v5163, 1
      %vm5196 = vcmp.eq.s32.totalorder %v5164, 1
      %vm5197 = vcmp.eq.s32.totalorder %v5165, 1
      %vm5198 = vcmp.eq.s32.totalorder %v5166, 1
      %vm5199 = vcmp.eq.s32.totalorder %v5167, 1
      %vm5200 = vcmp.eq.s32.totalorder %v5168, 1
      %vm5201 = vcmp.eq.s32.totalorder %v5169, 1
      %vm5202 = vcmp.eq.s32.totalorder %v5170, 1
      %vm5203 = vcmp.eq.s32.totalorder %v5171, 1
      %vm5204 = vcmp.eq.s32.totalorder %v5172, 1
      %vm5205 = vcmp.eq.s32.totalorder %v5173, 1
      %vm5206 = vcmp.eq.s32.totalorder %v5174, 1
      %vm5207 = vcmp.eq.s32.totalorder %v5175, 1
      %vm5208 = vcmp.eq.s32.totalorder %v5176, 1
      %vm5209 = vcmp.eq.s32.totalorder %v5177, 1
      %v5210 = vsel %vm5178, %v2044, 0.0
      %v5211 = vsel %vm5179, %v2046, 0.0
      %v5212 = vsel %vm5180, %v2048, 0.0
      %v5213 = vsel %vm5181, %v2050, 0.0
      %v5214 = vsel %vm5182, %v2052, 0.0
      %v5215 = vsel %vm5183, %v2054, 0.0
      %v5216 = vsel %vm5184, %v2056, 0.0
      %v5217 = vsel %vm5185, %v2058, 0.0
      %v5218 = vsel %vm5186, %v2060, 0.0
      %v5219 = vsel %vm5187, %v2062, 0.0
      %v5220 = vsel %vm5188, %v2064, 0.0
      %v5221 = vsel %vm5189, %v2066, 0.0
      %v5222 = vsel %vm5190, %v2068, 0.0
      %v5223 = vsel %vm5191, %v2070, 0.0
      %v5224 = vsel %vm5192, %v2072, 0.0
      %v5225 = vsel %vm5193, %v2074, 0.0
      %v5226 = vsel %vm5194, %v2076, 0.0
      %v5227 = vsel %vm5195, %v2078, 0.0
      %v5228 = vsel %vm5196, %v2080, 0.0
      %v5229 = vsel %vm5197, %v2082, 0.0
      %v5230 = vsel %vm5198, %v2084, 0.0
      %v5231 = vsel %vm5199, %v2086, 0.0
      %v5232 = vsel %vm5200, %v2088, 0.0
      %v5233 = vsel %vm5201, %v2090, 0.0
      %v5234 = vsel %vm5202, %v2092, 0.0
      %v5235 = vsel %vm5203, %v2094, 0.0
      %v5236 = vsel %vm5204, %v2096, 0.0
      %v5237 = vsel %vm5205, %v2097, 0.0
      %v5238 = vsel %vm5206, %v2005, 0.0
      %v5239 = vsel %vm5207, %v2007, 0.0
      %v5240 = vsel %vm5208, %v2128, 0.0
      %v5241 = vsel %vm5209, %v2042, 0.0
      %v5242 = vpack.c.bf16 %v5211, %v5210
      %v5243 = vpack.c.bf16 %v5213, %v5212
      %v5244 = vpack.c.bf16 %v5215, %v5214
      %v5245 = vpack.c.bf16 %v5217, %v5216
      %v5246 = vpack.c.bf16 %v5219, %v5218
      %v5247 = vpack.c.bf16 %v5221, %v5220
      %v5248 = vpack.c.bf16 %v5223, %v5222
      %v5249 = vpack.c.bf16 %v5225, %v5224
      %v5250 = vpack.c.bf16 %v5227, %v5226
      %v5251 = vpack.c.bf16 %v5229, %v5228
      %v5252 = vpack.c.bf16 %v5231, %v5230
      %v5253 = vpack.c.bf16 %v5233, %v5232
      %v5254 = vpack.c.bf16 %v5235, %v5234
      %v5255 = vpack.c.bf16 %v5237, %v5236
      %v5256 = vpack.c.bf16 %v5239, %v5238
      %v5257 = vpack.c.bf16 %v5241, %v5240
      %s5258 = scalar_lea.vmem %s7, 384
      %v5259 = vld [vmem:[%s5258] sm:$0xf]
      %v5260 = vld [vmem:[%s5258 + $0x4] sm:$0xf]
      %v5261 = vld [vmem:[%s5258 + $0x8] sm:$0xf]
      %v5262 = vld [vmem:[%s5258 + $0xc] sm:$0xf]
      %v5263 = vld [vmem:[%s5258 + $0x10] sm:$0xf]
      %v5264 = vld [vmem:[%s5258 + $0x14] sm:$0xf]
      %v5265 = vld [vmem:[%s5258 + $0x18] sm:$0xf]
      %v5266 = vld [vmem:[%s5258 + $0x1c] sm:$0xf]
      %v5267 = vld [vmem:[%s5258 + $0x20] sm:$0xf]
      %v5268 = vld [vmem:[%s5258 + $0x24] sm:$0xf]
      %v5269 = vld [vmem:[%s5258 + $0x28] sm:$0xf]
      %v5270 = vld [vmem:[%s5258 + $0x2c] sm:$0xf]
      %v5271 = vld [vmem:[%s5258 + $0x30] sm:$0xf]
      %v5272 = vld [vmem:[%s5258 + $0x34] sm:$0xf]
      %v5273 = vld [vmem:[%s5258 + $0x38] sm:$0xf]
      %v5274 = vld [vmem:[%s5258 + $0x3c] sm:$0xf]
      %v5291 = vunpack.c.l.b16 %v5259
      %v5292 = vunpack.c.l.b16 %v5260
      %v5293 = vunpack.c.l.b16 %v5261
      %v5294 = vunpack.c.l.b16 %v5262
      %v5295 = vunpack.c.l.b16 %v5263
      %v5296 = vunpack.c.l.b16 %v5264
      %v5297 = vunpack.c.l.b16 %v5265
      %v5298 = vunpack.c.l.b16 %v5266
      %v5299 = vunpack.c.l.b16 %v5267
      %v5300 = vunpack.c.l.b16 %v5268
      %v5301 = vunpack.c.l.b16 %v5269
      %v5302 = vunpack.c.l.b16 %v5270
      %v5303 = vunpack.c.l.b16 %v5271
      %v5304 = vunpack.c.l.b16 %v5272
      %v5305 = vunpack.c.l.b16 %v5273
      %v5306 = vunpack.c.l.b16 %v5274
      %v5307 = vpack.c.b16 %v5292, %v5291
      %v5308 = vpack.c.b16 %v5294, %v5293
      %v5309 = vpack.c.b16 %v5296, %v5295
      %v5310 = vpack.c.b16 %v5298, %v5297
      %v5311 = vpack.c.b16 %v5300, %v5299
      %v5312 = vpack.c.b16 %v5302, %v5301
      %v5313 = vpack.c.b16 %v5304, %v5303
      %v5314 = vpack.c.b16 %v5306, %v5305
      %5323 = vmatprep.subr.bf16.mxu0 0
      %5324 = vmatpush1.bf16.msra.mxu0 %v5307
      %5325 = vmatprep.subr.bf16.mxu0 0
      %5326 = vmatpush1.bf16.msra.mxu0 %v5308
      %5327 = vmatprep.subr.bf16.mxu0 0
      %5328 = vmatpush1.bf16.msra.mxu0 %v5309
      %5329 = vmatprep.subr.bf16.mxu0 0
      %5330 = vmatpush1.bf16.msra.mxu0 %v5310
      %5331 = vmatprep.subr.bf16.mxu0 0
      %5332 = vmatpush1.bf16.msra.mxu0 %v5311
      %5333 = vmatprep.subr.bf16.mxu0 0
      %5334 = vmatpush1.bf16.msra.mxu0 %v5312
      %5335 = vmatprep.subr.bf16.mxu0 0
      %5336 = vmatpush1.bf16.msra.mxu0 %v5313
      %5337 = vmatprep.subr.bf16.mxu0 0
      %5338 = vmatpush1.bf16.msra.mxu0 %v5314
      %5339 = vmatprep.subr.bf16.mxu0 0
      %5340 = vmatpush1.bf16.msra.mxu0 0
      %5341 = vmatprep.subr.bf16.mxu0 0
      %5342 = vmatpush1.bf16.msra.mxu0 0
      %5343 = vmatprep.subr.bf16.mxu0 0
      %5344 = vmatpush1.bf16.msra.mxu0 0
      %5345 = vmatprep.subr.bf16.mxu0 0
      %5346 = vmatpush1.bf16.msra.mxu0 0
      %5347 = vmatprep.subr.bf16.mxu0 0
      %5348 = vmatpush1.bf16.msra.mxu0 0
      %5349 = vmatprep.subr.bf16.mxu0 0
      %5350 = vmatpush1.bf16.msra.mxu0 0
      %5351 = vmatprep.subr.bf16.mxu0 0
      %5352 = vmatpush1.bf16.msra.mxu0 0
      %5353 = vmatprep.subr.bf16.mxu0 0
      %5354 = vmatpush1.bf16.msra.mxu0 0
      %5355 = vmatprep.mubr.bf16.mxu0 0
      %5356 = vmatmul.mubr.bf16.gmra.mrb[0].mxu0 %v5242
      %v5357 = vpop.f32.mrb[0].mxu0
      %v5358 = vadd.f32 0.0, %v5357
      %v5359 = vpop.f32.mrb[0].mxu0
      %v5360 = vpop.f32.mrb[0].mxu0
      %v5361 = vadd.f32 0.0, %v5360
      %v5362 = vpop.f32.mrb[0].mxu0
      %5363 = vmatprep.mubr.bf16.mxu0 0
      %5364 = vmatmul.mubr.bf16.gmra.mrb[0].mxu0 %v5243
      %v5365 = vpop.f32.mrb[0].mxu0
      %v5366 = vadd.f32 0.0, %v5365
      %v5367 = vpop.f32.mrb[0].mxu0
      %v5368 = vpop.f32.mrb[0].mxu0
      %v5369 = vadd.f32 0.0, %v5368
      %v5370 = vpop.f32.mrb[0].mxu0
      %5371 = vmatprep.mubr.bf16.mxu0 0
      %5372 = vmatmul.mubr.bf16.gmra.mrb[0].mxu0 %v5244
      %v5373 = vpop.f32.mrb[0].mxu0
      %v5374 = vadd.f32 0.0, %v5373
      %v5375 = vpop.f32.mrb[0].mxu0
      %v5376 = vpop.f32.mrb[0].mxu0
      %v5377 = vadd.f32 0.0, %v5376
      %v5378 = vpop.f32.mrb[0].mxu0
      %5379 = vmatprep.mubr.bf16.mxu0 0
      %5380 = vmatmul.mubr.bf16.gmra.mrb[0].mxu0 %v5245
      %v5381 = vpop.f32.mrb[0].mxu0
      %v5382 = vadd.f32 0.0, %v5381
      %v5383 = vpop.f32.mrb[0].mxu0
      %v5384 = vpop.f32.mrb[0].mxu0
      %v5385 = vadd.f32 0.0, %v5384
      %v5386 = vpop.f32.mrb[0].mxu0
      %5387 = vmatprep.mubr.bf16.mxu0 0
      %5388 = vmatmul.mubr.bf16.gmra.mrb[0].mxu0 %v5246
      %v5389 = vpop.f32.mrb[0].mxu0
      %v5390 = vadd.f32 0.0, %v5389
      %v5391 = vpop.f32.mrb[0].mxu0
      %v5392 = vpop.f32.mrb[0].mxu0
      %v5393 = vadd.f32 0.0, %v5392
      %v5394 = vpop.f32.mrb[0].mxu0
      %5395 = vmatprep.mubr.bf16.mxu0 0
      %5396 = vmatmul.mubr.bf16.gmra.mrb[0].mxu0 %v5247
      %v5397 = vpop.f32.mrb[0].mxu0
      %v5398 = vadd.f32 0.0, %v5397
      %v5399 = vpop.f32.mrb[0].mxu0
      %v5400 = vpop.f32.mrb[0].mxu0
      %v5401 = vadd.f32 0.0, %v5400
      %v5402 = vpop.f32.mrb[0].mxu0
      %5403 = vmatprep.mubr.bf16.mxu0 0
      %5404 = vmatmul.mubr.bf16.gmra.mrb[0].mxu0 %v5248
      %v5405 = vpop.f32.mrb[0].mxu0
      %v5406 = vadd.f32 0.0, %v5405
      %v5407 = vpop.f32.mrb[0].mxu0
      %v5408 = vpop.f32.mrb[0].mxu0
      %v5409 = vadd.f32 0.0, %v5408
      %v5410 = vpop.f32.mrb[0].mxu0
      %5411 = vmatprep.mubr.bf16.mxu0 0
      %5412 = vmatmul.mubr.bf16.gmra.mrb[0].mxu0 %v5249
      %v5413 = vpop.f32.mrb[0].mxu0
      %v5414 = vadd.f32 0.0, %v5413
      %v5415 = vpop.f32.mrb[0].mxu0
      %v5416 = vpop.f32.mrb[0].mxu0
      %v5417 = vadd.f32 0.0, %v5416
      %v5418 = vpop.f32.mrb[0].mxu0
      %5419 = vmatprep.mubr.bf16.mxu0 0
      %5420 = vmatmul.mubr.bf16.gmra.mrb[0].mxu0 %v5250
      %v5421 = vpop.f32.mrb[0].mxu0
      %v5422 = vadd.f32 0.0, %v5421
      %v5423 = vpop.f32.mrb[0].mxu0
      %v5424 = vpop.f32.mrb[0].mxu0
      %v5425 = vadd.f32 0.0, %v5424
      %v5426 = vpop.f32.mrb[0].mxu0
      %5427 = vmatprep.mubr.bf16.mxu0 0
      %5428 = vmatmul.mubr.bf16.gmra.mrb[0].mxu0 %v5251
      %v5429 = vpop.f32.mrb[0].mxu0
      %v5430 = vadd.f32 0.0, %v5429
      %v5431 = vpop.f32.mrb[0].mxu0
      %v5432 = vpop.f32.mrb[0].mxu0
      %v5433 = vadd.f32 0.0, %v5432
      %v5434 = vpop.f32.mrb[0].mxu0
      %5435 = vmatprep.mubr.bf16.mxu0 0
      %5436 = vmatmul.mubr.bf16.gmra.mrb[0].mxu0 %v5252
      %v5437 = vpop.f32.mrb[0].mxu0
      %v5438 = vadd.f32 0.0, %v5437
      %v5439 = vpop.f32.mrb[0].mxu0
      %v5440 = vpop.f32.mrb[0].mxu0
      %v5441 = vadd.f32 0.0, %v5440
      %v5442 = vpop.f32.mrb[0].mxu0
      %5443 = vmatprep.mubr.bf16.mxu0 0
      %5444 = vmatmul.mubr.bf16.gmra.mrb[0].mxu0 %v5253
      %v5445 = vpop.f32.mrb[0].mxu0
      %v5446 = vadd.f32 0.0, %v5445
      %v5447 = vpop.f32.mrb[0].mxu0
      %v5448 = vpop.f32.mrb[0].mxu0
      %v5449 = vadd.f32 0.0, %v5448
      %v5450 = vpop.f32.mrb[0].mxu0
      %5451 = vmatprep.mubr.bf16.mxu0 0
      %5452 = vmatmul.mubr.bf16.gmra.mrb[0].mxu0 %v5254
      %v5453 = vpop.f32.mrb[0].mxu0
      %v5454 = vadd.f32 0.0, %v5453
      %v5455 = vpop.f32.mrb[0].mxu0
      %v5456 = vpop.f32.mrb[0].mxu0
      %v5457 = vadd.f32 0.0, %v5456
      %v5458 = vpop.f32.mrb[0].mxu0
      %5459 = vmatprep.mubr.bf16.mxu0 0
      %5460 = vmatmul.mubr.bf16.gmra.mrb[0].mxu0 %v5255
      %v5461 = vpop.f32.mrb[0].mxu0
      %v5462 = vadd.f32 0.0, %v5461
      %v5463 = vpop.f32.mrb[0].mxu0
      %v5464 = vpop.f32.mrb[0].mxu0
      %v5465 = vadd.f32 0.0, %v5464
      %v5466 = vpop.f32.mrb[0].mxu0
      %5467 = vmatprep.mubr.bf16.mxu0 0
      %5468 = vmatmul.mubr.bf16.gmra.mrb[0].mxu0 %v5256
      %v5469 = vpop.f32.mrb[0].mxu0
      %v5470 = vadd.f32 0.0, %v5469
      %v5471 = vpop.f32.mrb[0].mxu0
      %v5472 = vpop.f32.mrb[0].mxu0
      %v5473 = vadd.f32 0.0, %v5472
      %v5474 = vpop.f32.mrb[0].mxu0
      %5475 = vmatprep.mubr.bf16.mxu0 0
      %5476 = vmatmul.mubr.bf16.gmra.mrb[0].mxu0 %v5257
      %v5477 = vpop.f32.mrb[0].mxu0
      %v5478 = vadd.f32 0.0, %v5477
      %v5479 = vpop.f32.mrb[0].mxu0
      %v5480 = vpop.f32.mrb[0].mxu0
      %v5481 = vadd.f32 0.0, %v5480
      %v5482 = vpop.f32.mrb[0].mxu0
      %5483 = vdwg.mxu0
      %v5484 = vadd.f32 %v4926, %v5358
      %v5485 = vadd.f32 %v4927, %v5361
      %v5486 = vadd.f32 %v4928, %v5366
      %v5487 = vadd.f32 %v4929, %v5369
      %v5488 = vadd.f32 %v4930, %v5374
      %v5489 = vadd.f32 %v4931, %v5377
      %v5490 = vadd.f32 %v4932, %v5382
      %v5491 = vadd.f32 %v4933, %v5385
      %v5492 = vadd.f32 %v4934, %v5390
      %v5493 = vadd.f32 %v4935, %v5393
      %v5494 = vadd.f32 %v4936, %v5398
      %v5495 = vadd.f32 %v4937, %v5401
      %v5496 = vadd.f32 %v4938, %v5406
      %v5497 = vadd.f32 %v4939, %v5409
      %v5498 = vadd.f32 %v4940, %v5414
      %v5499 = vadd.f32 %v4941, %v5417
      %v5500 = vadd.f32 %v4942, %v5422
      %v5501 = vadd.f32 %v4943, %v5425
      %v5502 = vadd.f32 %v4944, %v5430
      %v5503 = vadd.f32 %v4945, %v5433
      %v5504 = vadd.f32 %v4946, %v5438
      %v5505 = vadd.f32 %v4947, %v5441
      %v5506 = vadd.f32 %v4948, %v5446
      %v5507 = vadd.f32 %v4949, %v5449
      %v5508 = vadd.f32 %v4950, %v5454
      %v5509 = vadd.f32 %v4951, %v5457
      %v5510 = vadd.f32 %v4952, %v5462
      %v5511 = vadd.f32 %v4953, %v5465
      %v5512 = vadd.f32 %v4954, %v5470
      %v5513 = vadd.f32 %v4955, %v5473
      %v5514 = vadd.f32 %v4956, %v5478
      %v5515 = vadd.f32 %v4957, %v5481
      %vm5516 = vmand %vm3626, %vm2257
      %vm5517 = vmand %vm5051, %vm2258
      %vm5518 = vmand %vm5052, %vm2259
      %vm5519 = vmand %vm5053, %vm2260
      %vm5520 = vmand %vm5054, %vm2261
      %vm5521 = vmand %vm5055, %vm2262
      %vm5522 = vmand %vm5056, %vm2263
      %vm5523 = vmand %vm5057, %vm2264
      %vm5524 = vmand %vm5058, %vm2265
      %vm5525 = vmand %vm5059, %vm2266
      %vm5526 = vmand %vm5060, %vm2267
      %vm5527 = vmand %vm5061, %vm2268
      %vm5528 = vmand %vm5062, %vm2269
      %vm5529 = vmand %vm5063, %vm2270
      %vm5530 = vmand %vm5064, %vm2271
      %vm5531 = vmand %vm5065, %vm2272
      %vm5532 = vmand %vm5066, %vm2273
      %vm5533 = vmand %vm5067, %vm2274
      %vm5534 = vmand %vm5068, %vm2275
      %vm5535 = vmand %vm5069, %vm2276
      %vm5536 = vmand %vm5070, %vm2277
      %vm5537 = vmand %vm5071, %vm2278
      %vm5538 = vmand %vm5072, %vm2279
      %vm5539 = vmand %vm5073, %vm2280
      %vm5540 = vmand %vm5074, %vm2281
      %vm5541 = vmand %vm5075, %vm2282
      %vm5542 = vmand %vm5076, %vm2283
      %vm5543 = vmand %vm5077, %vm2284
      %vm5544 = vmand %vm5078, %vm2285
      %vm5545 = vmand %vm5079, %vm2286
      %vm5546 = vmand %vm5080, %vm2287
      %vm5547 = vmand %vm5081, %vm2288
      %vm5548 = vmand %vm5516, %vm2321
      %vm5549 = vmand %vm5517, %vm2322
      %vm5550 = vmand %vm5518, %vm2323
      %vm5551 = vmand %vm5519, %vm2324
      %vm5552 = vmand %vm5520, %vm2325
      %vm5553 = vmand %vm5521, %vm2326
      %vm5554 = vmand %vm5522, %vm2327
      %vm5555 = vmand %vm5523, %vm2328
      %vm5556 = vmand %vm5524, %vm2329
      %vm5557 = vmand %vm5525, %vm2330
      %vm5558 = vmand %vm5526, %vm2331
      %vm5559 = vmand %vm5527, %vm2332
      %vm5560 = vmand %vm5528, %vm2333
      %vm5561 = vmand %vm5529, %vm2334
      %vm5562 = vmand %vm5530, %vm2335
      %vm5563 = vmand %vm5531, %vm2336
      %vm5564 = vmand %vm5532, %vm2337
      %vm5565 = vmand %vm5533, %vm2338
      %vm5566 = vmand %vm5534, %vm2339
      %vm5567 = vmand %vm5535, %vm2340
      %vm5568 = vmand %vm5536, %vm2341
      %vm5569 = vmand %vm5537, %vm2342
      %vm5570 = vmand %vm5538, %vm2343
      %vm5571 = vmand %vm5539, %vm2344
      %vm5572 = vmand %vm5540, %vm2345
      %vm5573 = vmand %vm5541, %vm2346
      %vm5574 = vmand %vm5542, %vm2347
      %vm5575 = vmand %vm5543, %vm2348
      %vm5576 = vmand %vm5544, %vm2349
      %vm5577 = vmand %vm5545, %vm2350
      %vm5578 = vmand %vm5546, %vm2351
      %vm5579 = vmand %vm5547, %vm2352
      %v5580 = vsel %vm5548, 1, 0
      %v5581 = vsel %vm5549, 1, 0
      %v5582 = vsel %vm5550, 1, 0
      %v5583 = vsel %vm5551, 1, 0
      %v5584 = vsel %vm5552, 1, 0
      %v5585 = vsel %vm5553, 1, 0
      %v5586 = vsel %vm5554, 1, 0
      %v5587 = vsel %vm5555, 1, 0
      %v5588 = vsel %vm5556, 1, 0
      %v5589 = vsel %vm5557, 1, 0
      %v5590 = vsel %vm5558, 1, 0
      %v5591 = vsel %vm5559, 1, 0
      %v5592 = vsel %vm5560, 1, 0
      %v5593 = vsel %vm5561, 1, 0
      %v5594 = vsel %vm5562, 1, 0
      %v5595 = vsel %vm5563, 1, 0
      %v5596 = vsel %vm5564, 1, 0
      %v5597 = vsel %vm5565, 1, 0
      %v5598 = vsel %vm5566, 1, 0
      %v5599 = vsel %vm5567, 1, 0
      %v5600 = vsel %vm5568, 1, 0
      %v5601 = vsel %vm5569, 1, 0
      %v5602 = vsel %vm5570, 1, 0
      %v5603 = vsel %vm5571, 1, 0
      %v5604 = vsel %vm5572, 1, 0
      %v5605 = vsel %vm5573, 1, 0
      %v5606 = vsel %vm5574, 1, 0
      %v5607 = vsel %vm5575, 1, 0
      %v5608 = vsel %vm5576, 1, 0
      %v5609 = vsel %vm5577, 1, 0
      %v5610 = vsel %vm5578, 1, 0
      %v5611 = vsel %vm5579, 1, 0
      %vm5612 = vcmp.eq.s32.totalorder %v5580, 1
      %vm5613 = vcmp.eq.s32.totalorder %v5581, 1
      %vm5614 = vcmp.eq.s32.totalorder %v5582, 1
      %vm5615 = vcmp.eq.s32.totalorder %v5583, 1
      %vm5616 = vcmp.eq.s32.totalorder %v5584, 1
      %vm5617 = vcmp.eq.s32.totalorder %v5585, 1
      %vm5618 = vcmp.eq.s32.totalorder %v5586, 1
      %vm5619 = vcmp.eq.s32.totalorder %v5587, 1
      %vm5620 = vcmp.eq.s32.totalorder %v5588, 1
      %vm5621 = vcmp.eq.s32.totalorder %v5589, 1
      %vm5622 = vcmp.eq.s32.totalorder %v5590, 1
      %vm5623 = vcmp.eq.s32.totalorder %v5591, 1
      %vm5624 = vcmp.eq.s32.totalorder %v5592, 1
      %vm5625 = vcmp.eq.s32.totalorder %v5593, 1
      %vm5626 = vcmp.eq.s32.totalorder %v5594, 1
      %vm5627 = vcmp.eq.s32.totalorder %v5595, 1
      %vm5628 = vcmp.eq.s32.totalorder %v5596, 1
      %vm5629 = vcmp.eq.s32.totalorder %v5597, 1
      %vm5630 = vcmp.eq.s32.totalorder %v5598, 1
      %vm5631 = vcmp.eq.s32.totalorder %v5599, 1
      %vm5632 = vcmp.eq.s32.totalorder %v5600, 1
      %vm5633 = vcmp.eq.s32.totalorder %v5601, 1
      %vm5634 = vcmp.eq.s32.totalorder %v5602, 1
      %vm5635 = vcmp.eq.s32.totalorder %v5603, 1
      %vm5636 = vcmp.eq.s32.totalorder %v5604, 1
      %vm5637 = vcmp.eq.s32.totalorder %v5605, 1
      %vm5638 = vcmp.eq.s32.totalorder %v5606, 1
      %vm5639 = vcmp.eq.s32.totalorder %v5607, 1
      %vm5640 = vcmp.eq.s32.totalorder %v5608, 1
      %vm5641 = vcmp.eq.s32.totalorder %v5609, 1
      %vm5642 = vcmp.eq.s32.totalorder %v5610, 1
      %vm5643 = vcmp.eq.s32.totalorder %v5611, 1
      %v5644 = vsel %vm5612, %v829, 0.0
      %v5645 = vsel %vm5613, %v830, 0.0
      %v5646 = vsel %vm5614, %v831, 0.0
      %v5647 = vsel %vm5615, %v832, 0.0
      %v5648 = vsel %vm5616, %v833, 0.0
      %v5649 = vsel %vm5617, %v834, 0.0
      %v5650 = vsel %vm5618, %v835, 0.0
      %v5651 = vsel %vm5619, %v836, 0.0
      %v5652 = vsel %vm5620, %v837, 0.0
      %v5653 = vsel %vm5621, %v838, 0.0
      %v5654 = vsel %vm5622, %v839, 0.0
      %v5655 = vsel %vm5623, %v840, 0.0
      %v5656 = vsel %vm5624, %v841, 0.0
      %v5657 = vsel %vm5625, %v842, 0.0
      %v5658 = vsel %vm5626, %v843, 0.0
      %v5659 = vsel %vm5627, %v844, 0.0
      %v5660 = vsel %vm5628, %v845, 0.0
      %v5661 = vsel %vm5629, %v846, 0.0
      %v5662 = vsel %vm5630, %v847, 0.0
      %v5663 = vsel %vm5631, %v848, 0.0
      %v5664 = vsel %vm5632, %v849, 0.0
      %v5665 = vsel %vm5633, %v850, 0.0
      %v5666 = vsel %vm5634, %v851, 0.0
      %v5667 = vsel %vm5635, %v852, 0.0
      %v5668 = vsel %vm5636, %v853, 0.0
      %v5669 = vsel %vm5637, %v854, 0.0
      %v5670 = vsel %vm5638, %v855, 0.0
      %v5671 = vsel %vm5639, %v856, 0.0
      %v5672 = vsel %vm5640, %v857, 0.0
      %v5673 = vsel %vm5641, %v858, 0.0
      %v5674 = vsel %vm5642, %v827, 0.0
      %v5675 = vsel %vm5643, %v828, 0.0
      %v5676 = vpack.c.bf16 %v5645, %v5644
      %v5677 = vpack.c.bf16 %v5647, %v5646
      %v5678 = vpack.c.bf16 %v5649, %v5648
      %v5679 = vpack.c.bf16 %v5651, %v5650
      %v5680 = vpack.c.bf16 %v5653, %v5652
      %v5681 = vpack.c.bf16 %v5655, %v5654
      %v5682 = vpack.c.bf16 %v5657, %v5656
      %v5683 = vpack.c.bf16 %v5659, %v5658
      %v5684 = vpack.c.bf16 %v5661, %v5660
      %v5685 = vpack.c.bf16 %v5663, %v5662
      %v5686 = vpack.c.bf16 %v5665, %v5664
      %v5687 = vpack.c.bf16 %v5667, %v5666
      %v5688 = vpack.c.bf16 %v5669, %v5668
      %v5689 = vpack.c.bf16 %v5671, %v5670
      %v5690 = vpack.c.bf16 %v5673, %v5672
      %v5691 = vpack.c.bf16 %v5675, %v5674
      %s5692 = scalar_lea.vmem %s7, 448
      %v5693 = vld [vmem:[%s5692] sm:$0xf]
      %v5694 = vld [vmem:[%s5692 + $0x4] sm:$0xf]
      %v5695 = vld [vmem:[%s5692 + $0x8] sm:$0xf]
      %v5696 = vld [vmem:[%s5692 + $0xc] sm:$0xf]
      %v5697 = vld [vmem:[%s5692 + $0x10] sm:$0xf]
      %v5698 = vld [vmem:[%s5692 + $0x14] sm:$0xf]
      %v5699 = vld [vmem:[%s5692 + $0x18] sm:$0xf]
      %v5700 = vld [vmem:[%s5692 + $0x1c] sm:$0xf]
      %v5701 = vld [vmem:[%s5692 + $0x20] sm:$0xf]
      %v5702 = vld [vmem:[%s5692 + $0x24] sm:$0xf]
      %v5703 = vld [vmem:[%s5692 + $0x28] sm:$0xf]
      %v5704 = vld [vmem:[%s5692 + $0x2c] sm:$0xf]
      %v5705 = vld [vmem:[%s5692 + $0x30] sm:$0xf]
      %v5706 = vld [vmem:[%s5692 + $0x34] sm:$0xf]
      %v5707 = vld [vmem:[%s5692 + $0x38] sm:$0xf]
      %v5708 = vld [vmem:[%s5692 + $0x3c] sm:$0xf]
      %v5725 = vunpack.c.l.b16 %v5693
      %v5726 = vunpack.c.l.b16 %v5694
      %v5727 = vunpack.c.l.b16 %v5695
      %v5728 = vunpack.c.l.b16 %v5696
      %v5729 = vunpack.c.l.b16 %v5697
      %v5730 = vunpack.c.l.b16 %v5698
      %v5731 = vunpack.c.l.b16 %v5699
      %v5732 = vunpack.c.l.b16 %v5700
      %v5733 = vunpack.c.l.b16 %v5701
      %v5734 = vunpack.c.l.b16 %v5702
      %v5735 = vunpack.c.l.b16 %v5703
      %v5736 = vunpack.c.l.b16 %v5704
      %v5737 = vunpack.c.l.b16 %v5705
      %v5738 = vunpack.c.l.b16 %v5706
      %v5739 = vunpack.c.l.b16 %v5707
      %v5740 = vunpack.c.l.b16 %v5708
      %v5741 = vpack.c.b16 %v5726, %v5725
      %v5742 = vpack.c.b16 %v5728, %v5727
      %v5743 = vpack.c.b16 %v5730, %v5729
      %v5744 = vpack.c.b16 %v5732, %v5731
      %v5745 = vpack.c.b16 %v5734, %v5733
      %v5746 = vpack.c.b16 %v5736, %v5735
      %v5747 = vpack.c.b16 %v5738, %v5737
      %v5748 = vpack.c.b16 %v5740, %v5739
      %5757 = vmatprep.subr.bf16.mxu0 0
      %5758 = vmatpush1.bf16.msra.mxu0 %v5741
      %5759 = vmatprep.subr.bf16.mxu0 0
      %5760 = vmatpush1.bf16.msra.mxu0 %v5742
      %5761 = vmatprep.subr.bf16.mxu0 0
      %5762 = vmatpush1.bf16.msra.mxu0 %v5743
      %5763 = vmatprep.subr.bf16.mxu0 0
      %5764 = vmatpush1.bf16.msra.mxu0 %v5744
      %5765 = vmatprep.subr.bf16.mxu0 0
      %5766 = vmatpush1.bf16.msra.mxu0 %v5745
      %5767 = vmatprep.subr.bf16.mxu0 0
      %5768 = vmatpush1.bf16.msra.mxu0 %v5746
      %5769 = vmatprep.subr.bf16.mxu0 0
      %5770 = vmatpush1.bf16.msra.mxu0 %v5747
      %5771 = vmatprep.subr.bf16.mxu0 0
      %5772 = vmatpush1.bf16.msra.mxu0 %v5748
      %5773 = vmatprep.subr.bf16.mxu0 0
      %5774 = vmatpush1.bf16.msra.mxu0 0
      %5775 = vmatprep.subr.bf16.mxu0 0
      %5776 = vmatpush1.bf16.msra.mxu0 0
      %5777 = vmatprep.subr.bf16.mxu0 0
      %5778 = vmatpush1.bf16.msra.mxu0 0
      %5779 = vmatprep.subr.bf16.mxu0 0
      %5780 = vmatpush1.bf16.msra.mxu0 0
      %5781 = vmatprep.subr.bf16.mxu0 0
      %5782 = vmatpush1.bf16.msra.mxu0 0
      %5783 = vmatprep.subr.bf16.mxu0 0
      %5784 = vmatpush1.bf16.msra.mxu0 0
      %5785 = vmatprep.subr.bf16.mxu0 0
      %5786 = vmatpush1.bf16.msra.mxu0 0
      %5787 = vmatprep.subr.bf16.mxu0 0
      %5788 = vmatpush1.bf16.msra.mxu0 0
      %5789 = vmatprep.mubr.bf16.mxu0 0
      %5790 = vmatmul.mubr.bf16.gmra.mrb[0].mxu0 %v5676
      %v5791 = vpop.f32.mrb[0].mxu0
      %v5792 = vadd.f32 0.0, %v5791
      %v5793 = vpop.f32.mrb[0].mxu0
      %v5794 = vpop.f32.mrb[0].mxu0
      %v5795 = vadd.f32 0.0, %v5794
      %v5796 = vpop.f32.mrb[0].mxu0
      %5797 = vmatprep.mubr.bf16.mxu0 0
      %5798 = vmatmul.mubr.bf16.gmra.mrb[0].mxu0 %v5677
      %v5799 = vpop.f32.mrb[0].mxu0
      %v5800 = vadd.f32 0.0, %v5799
      %v5801 = vpop.f32.mrb[0].mxu0
      %v5802 = vpop.f32.mrb[0].mxu0
      %v5803 = vadd.f32 0.0, %v5802
      %v5804 = vpop.f32.mrb[0].mxu0
      %5805 = vmatprep.mubr.bf16.mxu0 0
      %5806 = vmatmul.mubr.bf16.gmra.mrb[0].mxu0 %v5678
      %v5807 = vpop.f32.mrb[0].mxu0
      %v5808 = vadd.f32 0.0, %v5807
      %v5809 = vpop.f32.mrb[0].mxu0
      %v5810 = vpop.f32.mrb[0].mxu0
      %v5811 = vadd.f32 0.0, %v5810
      %v5812 = vpop.f32.mrb[0].mxu0
      %5813 = vmatprep.mubr.bf16.mxu0 0
      %5814 = vmatmul.mubr.bf16.gmra.mrb[0].mxu0 %v5679
      %v5815 = vpop.f32.mrb[0].mxu0
      %v5816 = vadd.f32 0.0, %v5815
      %v5817 = vpop.f32.mrb[0].mxu0
      %v5818 = vpop.f32.mrb[0].mxu0
      %v5819 = vadd.f32 0.0, %v5818
      %v5820 = vpop.f32.mrb[0].mxu0
      %5821 = vmatprep.mubr.bf16.mxu0 0
      %5822 = vmatmul.mubr.bf16.gmra.mrb[0].mxu0 %v5680
      %v5823 = vpop.f32.mrb[0].mxu0
      %v5824 = vadd.f32 0.0, %v5823
      %v5825 = vpop.f32.mrb[0].mxu0
      %v5826 = vpop.f32.mrb[0].mxu0
      %v5827 = vadd.f32 0.0, %v5826
      %v5828 = vpop.f32.mrb[0].mxu0
      %5829 = vmatprep.mubr.bf16.mxu0 0
      %5830 = vmatmul.mubr.bf16.gmra.mrb[0].mxu0 %v5681
      %v5831 = vpop.f32.mrb[0].mxu0
      %v5832 = vadd.f32 0.0, %v5831
      %v5833 = vpop.f32.mrb[0].mxu0
      %v5834 = vpop.f32.mrb[0].mxu0
      %v5835 = vadd.f32 0.0, %v5834
      %v5836 = vpop.f32.mrb[0].mxu0
      %5837 = vmatprep.mubr.bf16.mxu0 0
      %5838 = vmatmul.mubr.bf16.gmra.mrb[0].mxu0 %v5682
      %v5839 = vpop.f32.mrb[0].mxu0
      %v5840 = vadd.f32 0.0, %v5839
      %v5841 = vpop.f32.mrb[0].mxu0
      %v5842 = vpop.f32.mrb[0].mxu0
      %v5843 = vadd.f32 0.0, %v5842
      %v5844 = vpop.f32.mrb[0].mxu0
      %5845 = vmatprep.mubr.bf16.mxu0 0
      %5846 = vmatmul.mubr.bf16.gmra.mrb[0].mxu0 %v5683
      %v5847 = vpop.f32.mrb[0].mxu0
      %v5848 = vadd.f32 0.0, %v5847
      %v5849 = vpop.f32.mrb[0].mxu0
      %v5850 = vpop.f32.mrb[0].mxu0
      %v5851 = vadd.f32 0.0, %v5850
      %v5852 = vpop.f32.mrb[0].mxu0
      %5853 = vmatprep.mubr.bf16.mxu0 0
      %5854 = vmatmul.mubr.bf16.gmra.mrb[0].mxu0 %v5684
      %v5855 = vpop.f32.mrb[0].mxu0
      %v5856 = vadd.f32 0.0, %v5855
      %v5857 = vpop.f32.mrb[0].mxu0
      %v5858 = vpop.f32.mrb[0].mxu0
      %v5859 = vadd.f32 0.0, %v5858
      %v5860 = vpop.f32.mrb[0].mxu0
      %5861 = vmatprep.mubr.bf16.mxu0 0
      %5862 = vmatmul.mubr.bf16.gmra.mrb[0].mxu0 %v5685
      %v5863 = vpop.f32.mrb[0].mxu0
      %v5864 = vadd.f32 0.0, %v5863
      %v5865 = vpop.f32.mrb[0].mxu0
      %v5866 = vpop.f32.mrb[0].mxu0
      %v5867 = vadd.f32 0.0, %v5866
      %v5868 = vpop.f32.mrb[0].mxu0
      %5869 = vmatprep.mubr.bf16.mxu0 0
      %5870 = vmatmul.mubr.bf16.gmra.mrb[0].mxu0 %v5686
      %v5871 = vpop.f32.mrb[0].mxu0
      %v5872 = vadd.f32 0.0, %v5871
      %v5873 = vpop.f32.mrb[0].mxu0
      %v5874 = vpop.f32.mrb[0].mxu0
      %v5875 = vadd.f32 0.0, %v5874
      %v5876 = vpop.f32.mrb[0].mxu0
      %5877 = vmatprep.mubr.bf16.mxu0 0
      %5878 = vmatmul.mubr.bf16.gmra.mrb[0].mxu0 %v5687
      %v5879 = vpop.f32.mrb[0].mxu0
      %v5880 = vadd.f32 0.0, %v5879
      %v5881 = vpop.f32.mrb[0].mxu0
      %v5882 = vpop.f32.mrb[0].mxu0
      %v5883 = vadd.f32 0.0, %v5882
      %v5884 = vpop.f32.mrb[0].mxu0
      %5885 = vmatprep.mubr.bf16.mxu0 0
      %5886 = vmatmul.mubr.bf16.gmra.mrb[0].mxu0 %v5688
      %v5887 = vpop.f32.mrb[0].mxu0
      %v5888 = vadd.f32 0.0, %v5887
      %v5889 = vpop.f32.mrb[0].mxu0
      %v5890 = vpop.f32.mrb[0].mxu0
      %v5891 = vadd.f32 0.0, %v5890
      %v5892 = vpop.f32.mrb[0].mxu0
      %5893 = vmatprep.mubr.bf16.mxu0 0
      %5894 = vmatmul.mubr.bf16.gmra.mrb[0].mxu0 %v5689
      %v5895 = vpop.f32.mrb[0].mxu0
      %v5896 = vadd.f32 0.0, %v5895
      %v5897 = vpop.f32.mrb[0].mxu0
      %v5898 = vpop.f32.mrb[0].mxu0
      %v5899 = vadd.f32 0.0, %v5898
      %v5900 = vpop.f32.mrb[0].mxu0
      %5901 = vmatprep.mubr.bf16.mxu0 0
      %5902 = vmatmul.mubr.bf16.gmra.mrb[0].mxu0 %v5690
      %v5903 = vpop.f32.mrb[0].mxu0
      %v5904 = vadd.f32 0.0, %v5903
      %v5905 = vpop.f32.mrb[0].mxu0
      %v5906 = vpop.f32.mrb[0].mxu0
      %v5907 = vadd.f32 0.0, %v5906
      %v5908 = vpop.f32.mrb[0].mxu0
      %5909 = vmatprep.mubr.bf16.mxu0 0
      %5910 = vmatmul.mubr.bf16.gmra.mrb[0].mxu0 %v5691
      %v5911 = vpop.f32.mrb[0].mxu0
      %v5912 = vadd.f32 0.0, %v5911
      %v5913 = vpop.f32.mrb[0].mxu0
      %v5914 = vpop.f32.mrb[0].mxu0
      %v5915 = vadd.f32 0.0, %v5914
      %v5916 = vpop.f32.mrb[0].mxu0
      %5917 = vdwg.mxu0
      %v5918 = vadd.f32 %v5484, %v5792
      %v5919 = vadd.f32 %v5485, %v5795
      %v5920 = vadd.f32 %v5486, %v5800
      %v5921 = vadd.f32 %v5487, %v5803
      %v5922 = vadd.f32 %v5488, %v5808
      %v5923 = vadd.f32 %v5489, %v5811
      %v5924 = vadd.f32 %v5490, %v5816
      %v5925 = vadd.f32 %v5491, %v5819
      %v5926 = vadd.f32 %v5492, %v5824
      %v5927 = vadd.f32 %v5493, %v5827
      %v5928 = vadd.f32 %v5494, %v5832
      %v5929 = vadd.f32 %v5495, %v5835
      %v5930 = vadd.f32 %v5496, %v5840
      %v5931 = vadd.f32 %v5497, %v5843
      %v5932 = vadd.f32 %v5498, %v5848
      %v5933 = vadd.f32 %v5499, %v5851
      %v5934 = vadd.f32 %v5500, %v5856
      %v5935 = vadd.f32 %v5501, %v5859
      %v5936 = vadd.f32 %v5502, %v5864
      %v5937 = vadd.f32 %v5503, %v5867
      %v5938 = vadd.f32 %v5504, %v5872
      %v5939 = vadd.f32 %v5505, %v5875
      %v5940 = vadd.f32 %v5506, %v5880
      %v5941 = vadd.f32 %v5507, %v5883
      %v5942 = vadd.f32 %v5508, %v5888
      %v5943 = vadd.f32 %v5509, %v5891
      %v5944 = vadd.f32 %v5510, %v5896
      %v5945 = vadd.f32 %v5511, %v5899
      %v5946 = vadd.f32 %v5512, %v5904
      %v5947 = vadd.f32 %v5513, %v5907
      %v5948 = vadd.f32 %v5514, %v5912
      %v5949 = vadd.f32 %v5515, %v5915
      %vm5950 = vmand %vm3626, %vm2964
      %vm5951 = vmand %vm5051, %vm2965
      %vm5952 = vmand %vm5052, %vm2966
      %vm5953 = vmand %vm5053, %vm2967
      %vm5954 = vmand %vm5054, %vm2968
      %vm5955 = vmand %vm5055, %vm2969
      %vm5956 = vmand %vm5056, %vm2970
      %vm5957 = vmand %vm5057, %vm2971
      %vm5958 = vmand %vm5058, %vm2972
      %vm5959 = vmand %vm5059, %vm2973
      %vm5960 = vmand %vm5060, %vm2974
      %vm5961 = vmand %vm5061, %vm2975
      %vm5962 = vmand %vm5062, %vm2976
      %vm5963 = vmand %vm5063, %vm2977
      %vm5964 = vmand %vm5064, %vm2978
      %vm5965 = vmand %vm5065, %vm2979
      %vm5966 = vmand %vm5066, %vm2980
      %vm5967 = vmand %vm5067, %vm2981
      %vm5968 = vmand %vm5068, %vm2982
      %vm5969 = vmand %vm5069, %vm2983
      %vm5970 = vmand %vm5070, %vm2984
      %vm5971 = vmand %vm5071, %vm2985
      %vm5972 = vmand %vm5072, %vm2986
      %vm5973 = vmand %vm5073, %vm2987
      %vm5974 = vmand %vm5074, %vm2988
      %vm5975 = vmand %vm5075, %vm2989
      %vm5976 = vmand %vm5076, %vm2990
      %vm5977 = vmand %vm5077, %vm2991
      %vm5978 = vmand %vm5078, %vm2992
      %vm5979 = vmand %vm5079, %vm2993
      %vm5980 = vmand %vm5080, %vm2994
      %vm5981 = vmand %vm5081, %vm2995
      %vm5982 = vmand %vm5950, %vm3028
      %vm5983 = vmand %vm5951, %vm3029
      %vm5984 = vmand %vm5952, %vm3030
      %vm5985 = vmand %vm5953, %vm3031
      %vm5986 = vmand %vm5954, %vm3032
      %vm5987 = vmand %vm5955, %vm3033
      %vm5988 = vmand %vm5956, %vm3034
      %vm5989 = vmand %vm5957, %vm3035
      %vm5990 = vmand %vm5958, %vm3036
      %vm5991 = vmand %vm5959, %vm3037
      %vm5992 = vmand %vm5960, %vm3038
      %vm5993 = vmand %vm5961, %vm3039
      %vm5994 = vmand %vm5962, %vm3040
      %vm5995 = vmand %vm5963, %vm3041
      %vm5996 = vmand %vm5964, %vm3042
      %vm5997 = vmand %vm5965, %vm3043
      %vm5998 = vmand %vm5966, %vm3044
      %vm5999 = vmand %vm5967, %vm3045
      %vm6000 = vmand %vm5968, %vm3046
      %vm6001 = vmand %vm5969, %vm3047
      %vm6002 = vmand %vm5970, %vm3048
      %vm6003 = vmand %vm5971, %vm3049
      %vm6004 = vmand %vm5972, %vm3050
      %vm6005 = vmand %vm5973, %vm3051
      %vm6006 = vmand %vm5974, %vm3052
      %vm6007 = vmand %vm5975, %vm3053
      %vm6008 = vmand %vm5976, %vm3054
      %vm6009 = vmand %vm5977, %vm3055
      %vm6010 = vmand %vm5978, %vm3056
      %vm6011 = vmand %vm5979, %vm3057
      %vm6012 = vmand %vm5980, %vm3058
      %vm6013 = vmand %vm5981, %vm3059
      %v6014 = vsel %vm5982, 1, 0
      %v6015 = vsel %vm5983, 1, 0
      %v6016 = vsel %vm5984, 1, 0
      %v6017 = vsel %vm5985, 1, 0
      %v6018 = vsel %vm5986, 1, 0
      %v6019 = vsel %vm5987, 1, 0
      %v6020 = vsel %vm5988, 1, 0
      %v6021 = vsel %vm5989, 1, 0
      %v6022 = vsel %vm5990, 1, 0
      %v6023 = vsel %vm5991, 1, 0
      %v6024 = vsel %vm5992, 1, 0
      %v6025 = vsel %vm5993, 1, 0
      %v6026 = vsel %vm5994, 1, 0
      %v6027 = vsel %vm5995, 1, 0
      %v6028 = vsel %vm5996, 1, 0
      %v6029 = vsel %vm5997, 1, 0
      %v6030 = vsel %vm5998, 1, 0
      %v6031 = vsel %vm5999, 1, 0
      %v6032 = vsel %vm6000, 1, 0
      %v6033 = vsel %vm6001, 1, 0
      %v6034 = vsel %vm6002, 1, 0
      %v6035 = vsel %vm6003, 1, 0
      %v6036 = vsel %vm6004, 1, 0
      %v6037 = vsel %vm6005, 1, 0
      %v6038 = vsel %vm6006, 1, 0
      %v6039 = vsel %vm6007, 1, 0
      %v6040 = vsel %vm6008, 1, 0
      %v6041 = vsel %vm6009, 1, 0
      %v6042 = vsel %vm6010, 1, 0
      %v6043 = vsel %vm6011, 1, 0
      %v6044 = vsel %vm6012, 1, 0
      %v6045 = vsel %vm6013, 1, 0
      %vm6046 = vcmp.eq.s32.totalorder %v6014, 1
      %vm6047 = vcmp.eq.s32.totalorder %v6015, 1
      %vm6048 = vcmp.eq.s32.totalorder %v6016, 1
      %vm6049 = vcmp.eq.s32.totalorder %v6017, 1
      %vm6050 = vcmp.eq.s32.totalorder %v6018, 1
      %vm6051 = vcmp.eq.s32.totalorder %v6019, 1
      %vm6052 = vcmp.eq.s32.totalorder %v6020, 1
      %vm6053 = vcmp.eq.s32.totalorder %v6021, 1
      %vm6054 = vcmp.eq.s32.totalorder %v6022, 1
      %vm6055 = vcmp.eq.s32.totalorder %v6023, 1
      %vm6056 = vcmp.eq.s32.totalorder %v6024, 1
      %vm6057 = vcmp.eq.s32.totalorder %v6025, 1
      %vm6058 = vcmp.eq.s32.totalorder %v6026, 1
      %vm6059 = vcmp.eq.s32.totalorder %v6027, 1
      %vm6060 = vcmp.eq.s32.totalorder %v6028, 1
      %vm6061 = vcmp.eq.s32.totalorder %v6029, 1
      %vm6062 = vcmp.eq.s32.totalorder %v6030, 1
      %vm6063 = vcmp.eq.s32.totalorder %v6031, 1
      %vm6064 = vcmp.eq.s32.totalorder %v6032, 1
      %vm6065 = vcmp.eq.s32.totalorder %v6033, 1
      %vm6066 = vcmp.eq.s32.totalorder %v6034, 1
      %vm6067 = vcmp.eq.s32.totalorder %v6035, 1
      %vm6068 = vcmp.eq.s32.totalorder %v6036, 1
      %vm6069 = vcmp.eq.s32.totalorder %v6037, 1
      %vm6070 = vcmp.eq.s32.totalorder %v6038, 1
      %vm6071 = vcmp.eq.s32.totalorder %v6039, 1
      %vm6072 = vcmp.eq.s32.totalorder %v6040, 1
      %vm6073 = vcmp.eq.s32.totalorder %v6041, 1
      %vm6074 = vcmp.eq.s32.totalorder %v6042, 1
      %vm6075 = vcmp.eq.s32.totalorder %v6043, 1
      %vm6076 = vcmp.eq.s32.totalorder %v6044, 1
      %vm6077 = vcmp.eq.s32.totalorder %v6045, 1
      %v6078 = vsel %vm6046, %v3104, 0.0
      %v6079 = vsel %vm6047, %v3106, 0.0
      %v6080 = vsel %vm6048, %v3108, 0.0
      %v6081 = vsel %vm6049, %v3110, 0.0
      %v6082 = vsel %vm6050, %v3112, 0.0
      %v6083 = vsel %vm6051, %v3114, 0.0
      %v6084 = vsel %vm6052, %v3116, 0.0
      %v6085 = vsel %vm6053, %v3118, 0.0
      %v6086 = vsel %vm6054, %v3120, 0.0
      %v6087 = vsel %vm6055, %v3122, 0.0
      %v6088 = vsel %vm6056, %v3124, 0.0
      %v6089 = vsel %vm6057, %v3126, 0.0
      %v6090 = vsel %vm6058, %v3128, 0.0
      %v6091 = vsel %vm6059, %v3130, 0.0
      %v6092 = vsel %vm6060, %v3132, 0.0
      %v6093 = vsel %vm6061, %v3134, 0.0
      %v6094 = vsel %vm6062, %v3136, 0.0
      %v6095 = vsel %vm6063, %v3138, 0.0
      %v6096 = vsel %vm6064, %v3140, 0.0
      %v6097 = vsel %vm6065, %v3142, 0.0
      %v6098 = vsel %vm6066, %v3144, 0.0
      %v6099 = vsel %vm6067, %v3146, 0.0
      %v6100 = vsel %vm6068, %v3148, 0.0
      %v6101 = vsel %vm6069, %v3150, 0.0
      %v6102 = vsel %vm6070, %v3152, 0.0
      %v6103 = vsel %vm6071, %v3154, 0.0
      %v6104 = vsel %vm6072, %v3156, 0.0
      %v6105 = vsel %vm6073, %v3157, 0.0
      %v6106 = vsel %vm6074, %v3095, 0.0
      %v6107 = vsel %vm6075, %v3189, 0.0
      %v6108 = vsel %vm6076, %v3100, 0.0
      %v6109 = vsel %vm6077, %v3102, 0.0
      %v6110 = vpack.c.bf16 %v6079, %v6078
      %v6111 = vpack.c.bf16 %v6081, %v6080
      %v6112 = vpack.c.bf16 %v6083, %v6082
      %v6113 = vpack.c.bf16 %v6085, %v6084
      %v6114 = vpack.c.bf16 %v6087, %v6086
      %v6115 = vpack.c.bf16 %v6089, %v6088
      %v6116 = vpack.c.bf16 %v6091, %v6090
      %v6117 = vpack.c.bf16 %v6093, %v6092
      %v6118 = vpack.c.bf16 %v6095, %v6094
      %v6119 = vpack.c.bf16 %v6097, %v6096
      %v6120 = vpack.c.bf16 %v6099, %v6098
      %v6121 = vpack.c.bf16 %v6101, %v6100
      %v6122 = vpack.c.bf16 %v6103, %v6102
      %v6123 = vpack.c.bf16 %v6105, %v6104
      %v6124 = vpack.c.bf16 %v6107, %v6106
      %v6125 = vpack.c.bf16 %v6109, %v6108
      %s6126 = scalar_lea.vmem %s7, 512
      %v6127 = vld [vmem:[%s6126] sm:$0xf]
      %v6128 = vld [vmem:[%s6126 + $0x4] sm:$0xf]
      %v6129 = vld [vmem:[%s6126 + $0x8] sm:$0xf]
      %v6130 = vld [vmem:[%s6126 + $0xc] sm:$0xf]
      %v6131 = vld [vmem:[%s6126 + $0x10] sm:$0xf]
      %v6132 = vld [vmem:[%s6126 + $0x14] sm:$0xf]
      %v6133 = vld [vmem:[%s6126 + $0x18] sm:$0xf]
      %v6134 = vld [vmem:[%s6126 + $0x1c] sm:$0xf]
      %v6135 = vld [vmem:[%s6126 + $0x20] sm:$0xf]
      %v6136 = vld [vmem:[%s6126 + $0x24] sm:$0xf]
      %v6137 = vld [vmem:[%s6126 + $0x28] sm:$0xf]
      %v6138 = vld [vmem:[%s6126 + $0x2c] sm:$0xf]
      %v6139 = vld [vmem:[%s6126 + $0x30] sm:$0xf]
      %v6140 = vld [vmem:[%s6126 + $0x34] sm:$0xf]
      %v6141 = vld [vmem:[%s6126 + $0x38] sm:$0xf]
      %v6142 = vld [vmem:[%s6126 + $0x3c] sm:$0xf]
      %v6159 = vunpack.c.l.b16 %v6127
      %v6160 = vunpack.c.l.b16 %v6128
      %v6161 = vunpack.c.l.b16 %v6129
      %v6162 = vunpack.c.l.b16 %v6130
      %v6163 = vunpack.c.l.b16 %v6131
      %v6164 = vunpack.c.l.b16 %v6132
      %v6165 = vunpack.c.l.b16 %v6133
      %v6166 = vunpack.c.l.b16 %v6134
      %v6167 = vunpack.c.l.b16 %v6135
      %v6168 = vunpack.c.l.b16 %v6136
      %v6169 = vunpack.c.l.b16 %v6137
      %v6170 = vunpack.c.l.b16 %v6138
      %v6171 = vunpack.c.l.b16 %v6139
      %v6172 = vunpack.c.l.b16 %v6140
      %v6173 = vunpack.c.l.b16 %v6141
      %v6174 = vunpack.c.l.b16 %v6142
      %v6175 = vpack.c.b16 %v6160, %v6159
      %v6176 = vpack.c.b16 %v6162, %v6161
      %v6177 = vpack.c.b16 %v6164, %v6163
      %v6178 = vpack.c.b16 %v6166, %v6165
      %v6179 = vpack.c.b16 %v6168, %v6167
      %v6180 = vpack.c.b16 %v6170, %v6169
      %v6181 = vpack.c.b16 %v6172, %v6171
      %v6182 = vpack.c.b16 %v6174, %v6173
      %6191 = vmatprep.subr.bf16.mxu0 0
      %6192 = vmatpush1.bf16.msra.mxu0 %v6175
      %6193 = vmatprep.subr.bf16.mxu0 0
      %6194 = vmatpush1.bf16.msra.mxu0 %v6176
      %6195 = vmatprep.subr.bf16.mxu0 0
      %6196 = vmatpush1.bf16.msra.mxu0 %v6177
      %6197 = vmatprep.subr.bf16.mxu0 0
      %6198 = vmatpush1.bf16.msra.mxu0 %v6178
      %6199 = vmatprep.subr.bf16.mxu0 0
      %6200 = vmatpush1.bf16.msra.mxu0 %v6179
      %6201 = vmatprep.subr.bf16.mxu0 0
      %6202 = vmatpush1.bf16.msra.mxu0 %v6180
      %6203 = vmatprep.subr.bf16.mxu0 0
      %6204 = vmatpush1.bf16.msra.mxu0 %v6181
      %6205 = vmatprep.subr.bf16.mxu0 0
      %6206 = vmatpush1.bf16.msra.mxu0 %v6182
      %6207 = vmatprep.subr.bf16.mxu0 0
      %6208 = vmatpush1.bf16.msra.mxu0 0
      %6209 = vmatprep.subr.bf16.mxu0 0
      %6210 = vmatpush1.bf16.msra.mxu0 0
      %6211 = vmatprep.subr.bf16.mxu0 0
      %6212 = vmatpush1.bf16.msra.mxu0 0
      %6213 = vmatprep.subr.bf16.mxu0 0
      %6214 = vmatpush1.bf16.msra.mxu0 0
      %6215 = vmatprep.subr.bf16.mxu0 0
      %6216 = vmatpush1.bf16.msra.mxu0 0
      %6217 = vmatprep.subr.bf16.mxu0 0
      %6218 = vmatpush1.bf16.msra.mxu0 0
      %6219 = vmatprep.subr.bf16.mxu0 0
      %6220 = vmatpush1.bf16.msra.mxu0 0
      %6221 = vmatprep.subr.bf16.mxu0 0
      %6222 = vmatpush1.bf16.msra.mxu0 0
      %6223 = vmatprep.mubr.bf16.mxu0 0
      %6224 = vmatmul.mubr.bf16.gmra.mrb[0].mxu0 %v6110
      %v6225 = vpop.f32.mrb[0].mxu0
      %v6226 = vadd.f32 0.0, %v6225
      %v6227 = vpop.f32.mrb[0].mxu0
      %v6228 = vpop.f32.mrb[0].mxu0
      %v6229 = vadd.f32 0.0, %v6228
      %v6230 = vpop.f32.mrb[0].mxu0
      %6231 = vmatprep.mubr.bf16.mxu0 0
      %6232 = vmatmul.mubr.bf16.gmra.mrb[0].mxu0 %v6111
      %v6233 = vpop.f32.mrb[0].mxu0
      %v6234 = vadd.f32 0.0, %v6233
      %v6235 = vpop.f32.mrb[0].mxu0
      %v6236 = vpop.f32.mrb[0].mxu0
      %v6237 = vadd.f32 0.0, %v6236
      %v6238 = vpop.f32.mrb[0].mxu0
      %6239 = vmatprep.mubr.bf16.mxu0 0
      %6240 = vmatmul.mubr.bf16.gmra.mrb[0].mxu0 %v6112
      %v6241 = vpop.f32.mrb[0].mxu0
      %v6242 = vadd.f32 0.0, %v6241
      %v6243 = vpop.f32.mrb[0].mxu0
      %v6244 = vpop.f32.mrb[0].mxu0
      %v6245 = vadd.f32 0.0, %v6244
      %v6246 = vpop.f32.mrb[0].mxu0
      %6247 = vmatprep.mubr.bf16.mxu0 0
      %6248 = vmatmul.mubr.bf16.gmra.mrb[0].mxu0 %v6113
      %v6249 = vpop.f32.mrb[0].mxu0
      %v6250 = vadd.f32 0.0, %v6249
      %v6251 = vpop.f32.mrb[0].mxu0
      %v6252 = vpop.f32.mrb[0].mxu0
      %v6253 = vadd.f32 0.0, %v6252
      %v6254 = vpop.f32.mrb[0].mxu0
      %6255 = vmatprep.mubr.bf16.mxu0 0
      %6256 = vmatmul.mubr.bf16.gmra.mrb[0].mxu0 %v6114
      %v6257 = vpop.f32.mrb[0].mxu0
      %v6258 = vadd.f32 0.0, %v6257
      %v6259 = vpop.f32.mrb[0].mxu0
      %v6260 = vpop.f32.mrb[0].mxu0
      %v6261 = vadd.f32 0.0, %v6260
      %v6262 = vpop.f32.mrb[0].mxu0
      %6263 = vmatprep.mubr.bf16.mxu0 0
      %6264 = vmatmul.mubr.bf16.gmra.mrb[0].mxu0 %v6115
      %v6265 = vpop.f32.mrb[0].mxu0
      %v6266 = vadd.f32 0.0, %v6265
      %v6267 = vpop.f32.mrb[0].mxu0
      %v6268 = vpop.f32.mrb[0].mxu0
      %v6269 = vadd.f32 0.0, %v6268
      %v6270 = vpop.f32.mrb[0].mxu0
      %6271 = vmatprep.mubr.bf16.mxu0 0
      %6272 = vmatmul.mubr.bf16.gmra.mrb[0].mxu0 %v6116
      %v6273 = vpop.f32.mrb[0].mxu0
      %v6274 = vadd.f32 0.0, %v6273
      %v6275 = vpop.f32.mrb[0].mxu0
      %v6276 = vpop.f32.mrb[0].mxu0
      %v6277 = vadd.f32 0.0, %v6276
      %v6278 = vpop.f32.mrb[0].mxu0
      %6279 = vmatprep.mubr.bf16.mxu0 0
      %6280 = vmatmul.mubr.bf16.gmra.mrb[0].mxu0 %v6117
      %v6281 = vpop.f32.mrb[0].mxu0
      %v6282 = vadd.f32 0.0, %v6281
      %v6283 = vpop.f32.mrb[0].mxu0
      %v6284 = vpop.f32.mrb[0].mxu0
      %v6285 = vadd.f32 0.0, %v6284
      %v6286 = vpop.f32.mrb[0].mxu0
      %6287 = vmatprep.mubr.bf16.mxu0 0
      %6288 = vmatmul.mubr.bf16.gmra.mrb[0].mxu0 %v6118
      %v6289 = vpop.f32.mrb[0].mxu0
      %v6290 = vadd.f32 0.0, %v6289
      %v6291 = vpop.f32.mrb[0].mxu0
      %v6292 = vpop.f32.mrb[0].mxu0
      %v6293 = vadd.f32 0.0, %v6292
      %v6294 = vpop.f32.mrb[0].mxu0
      %6295 = vmatprep.mubr.bf16.mxu0 0
      %6296 = vmatmul.mubr.bf16.gmra.mrb[0].mxu0 %v6119
      %v6297 = vpop.f32.mrb[0].mxu0
      %v6298 = vadd.f32 0.0, %v6297
      %v6299 = vpop.f32.mrb[0].mxu0
      %v6300 = vpop.f32.mrb[0].mxu0
      %v6301 = vadd.f32 0.0, %v6300
      %v6302 = vpop.f32.mrb[0].mxu0
      %6303 = vmatprep.mubr.bf16.mxu0 0
      %6304 = vmatmul.mubr.bf16.gmra.mrb[0].mxu0 %v6120
      %v6305 = vpop.f32.mrb[0].mxu0
      %v6306 = vadd.f32 0.0, %v6305
      %v6307 = vpop.f32.mrb[0].mxu0
      %v6308 = vpop.f32.mrb[0].mxu0
      %v6309 = vadd.f32 0.0, %v6308
      %v6310 = vpop.f32.mrb[0].mxu0
      %6311 = vmatprep.mubr.bf16.mxu0 0
      %6312 = vmatmul.mubr.bf16.gmra.mrb[0].mxu0 %v6121
      %v6313 = vpop.f32.mrb[0].mxu0
      %v6314 = vadd.f32 0.0, %v6313
      %v6315 = vpop.f32.mrb[0].mxu0
      %v6316 = vpop.f32.mrb[0].mxu0
      %v6317 = vadd.f32 0.0, %v6316
      %v6318 = vpop.f32.mrb[0].mxu0
      %6319 = vmatprep.mubr.bf16.mxu0 0
      %6320 = vmatmul.mubr.bf16.gmra.mrb[0].mxu0 %v6122
      %v6321 = vpop.f32.mrb[0].mxu0
      %v6322 = vadd.f32 0.0, %v6321
      %v6323 = vpop.f32.mrb[0].mxu0
      %v6324 = vpop.f32.mrb[0].mxu0
      %v6325 = vadd.f32 0.0, %v6324
      %v6326 = vpop.f32.mrb[0].mxu0
      %6327 = vmatprep.mubr.bf16.mxu0 0
      %6328 = vmatmul.mubr.bf16.gmra.mrb[0].mxu0 %v6123
      %v6329 = vpop.f32.mrb[0].mxu0
      %v6330 = vadd.f32 0.0, %v6329
      %v6331 = vpop.f32.mrb[0].mxu0
      %v6332 = vpop.f32.mrb[0].mxu0
      %v6333 = vadd.f32 0.0, %v6332
      %v6334 = vpop.f32.mrb[0].mxu0
      %6335 = vmatprep.mubr.bf16.mxu0 0
      %6336 = vmatmul.mubr.bf16.gmra.mrb[0].mxu0 %v6124
      %v6337 = vpop.f32.mrb[0].mxu0
      %v6338 = vadd.f32 0.0, %v6337
      %v6339 = vpop.f32.mrb[0].mxu0
      %v6340 = vpop.f32.mrb[0].mxu0
      %v6341 = vadd.f32 0.0, %v6340
      %v6342 = vpop.f32.mrb[0].mxu0
      %6343 = vmatprep.mubr.bf16.mxu0 0
      %6344 = vmatmul.mubr.bf16.gmra.mrb[0].mxu0 %v6125
      %v6345 = vpop.f32.mrb[0].mxu0
      %v6346 = vadd.f32 0.0, %v6345
      %v6347 = vpop.f32.mrb[0].mxu0
      %v6348 = vpop.f32.mrb[0].mxu0
      %v6349 = vadd.f32 0.0, %v6348
      %v6350 = vpop.f32.mrb[0].mxu0
      %6351 = vdwg.mxu0
      %v6352 = vadd.f32 %v5918, %v6226
      %v6353 = vadd.f32 %v5919, %v6229
      %v6354 = vadd.f32 %v5920, %v6234
      %v6355 = vadd.f32 %v5921, %v6237
      %v6356 = vadd.f32 %v5922, %v6242
      %v6357 = vadd.f32 %v5923, %v6245
      %v6358 = vadd.f32 %v5924, %v6250
      %v6359 = vadd.f32 %v5925, %v6253
      %v6360 = vadd.f32 %v5926, %v6258
      %v6361 = vadd.f32 %v5927, %v6261
      %v6362 = vadd.f32 %v5928, %v6266
      %v6363 = vadd.f32 %v5929, %v6269
      %v6364 = vadd.f32 %v5930, %v6274
      %v6365 = vadd.f32 %v5931, %v6277
      %v6366 = vadd.f32 %v5932, %v6282
      %v6367 = vadd.f32 %v5933, %v6285
      %v6368 = vadd.f32 %v5934, %v6290
      %v6369 = vadd.f32 %v5935, %v6293
      %v6370 = vadd.f32 %v5936, %v6298
      %v6371 = vadd.f32 %v5937, %v6301
      %v6372 = vadd.f32 %v5938, %v6306
      %v6373 = vadd.f32 %v5939, %v6309
      %v6374 = vadd.f32 %v5940, %v6314
      %v6375 = vadd.f32 %v5941, %v6317
      %v6376 = vadd.f32 %v5942, %v6322
      %v6377 = vadd.f32 %v5943, %v6325
      %v6378 = vadd.f32 %v5944, %v6330
      %v6379 = vadd.f32 %v5945, %v6333
      %v6380 = vadd.f32 %v5946, %v6338
      %v6381 = vadd.f32 %v5947, %v6341
      %v6382 = vadd.f32 %v5948, %v6346
      %v6383 = vadd.f32 %v5949, %v6349
      %v6384 = vpack.c.bf16 %v6353, %v6352
      %v6385 = vpack.c.bf16 %v6355, %v6354
      %v6386 = vpack.c.bf16 %v6357, %v6356
      %v6387 = vpack.c.bf16 %v6359, %v6358
      %v6388 = vpack.c.bf16 %v6361, %v6360
      %v6389 = vpack.c.bf16 %v6363, %v6362
      %v6390 = vpack.c.bf16 %v6365, %v6364
      %v6391 = vpack.c.bf16 %v6367, %v6366
      %v6392 = vpack.c.bf16 %v6369, %v6368
      %v6393 = vpack.c.bf16 %v6371, %v6370
      %v6394 = vpack.c.bf16 %v6373, %v6372
      %v6395 = vpack.c.bf16 %v6375, %v6374
      %v6396 = vpack.c.bf16 %v6377, %v6376
      %v6397 = vpack.c.bf16 %v6379, %v6378
      %v6398 = vpack.c.bf16 %v6381, %v6380
      %v6399 = vpack.c.bf16 %v6383, %v6382
      %v6416 = vunpack.c.l.b16 %v6384
      %v6417 = vunpack.c.h.b16 %v6384
      %v6418 = vunpack.c.l.b16 %v6385
      %v6419 = vunpack.c.h.b16 %v6385
      %v6420 = vunpack.c.l.b16 %v6386
      %v6421 = vunpack.c.h.b16 %v6386
      %v6422 = vunpack.c.l.b16 %v6387
      %v6423 = vunpack.c.h.b16 %v6387
      %v6424 = vunpack.c.l.b16 %v6388
      %v6425 = vunpack.c.h.b16 %v6388
      %v6426 = vunpack.c.l.b16 %v6389
      %v6427 = vunpack.c.h.b16 %v6389
      %v6428 = vunpack.c.l.b16 %v6390
      %v6429 = vunpack.c.h.b16 %v6390
      %v6430 = vunpack.c.l.b16 %v6391
      %v6431 = vunpack.c.h.b16 %v6391
      %v6432 = vunpack.c.l.b16 %v6392
      %v6433 = vunpack.c.h.b16 %v6392
      %v6434 = vunpack.c.l.b16 %v6393
      %v6435 = vunpack.c.h.b16 %v6393
      %v6436 = vunpack.c.l.b16 %v6394
      %v6437 = vunpack.c.h.b16 %v6394
      %v6438 = vunpack.c.l.b16 %v6395
      %v6439 = vunpack.c.h.b16 %v6395
      %v6440 = vunpack.c.l.b16 %v6396
      %v6441 = vunpack.c.h.b16 %v6396
      %v6442 = vunpack.c.l.b16 %v6397
      %v6443 = vunpack.c.h.b16 %v6397
      %v6444 = vunpack.c.l.b16 %v6398
      %v6445 = vunpack.c.h.b16 %v6398
      %v6446 = vunpack.c.l.b16 %v6399
      %v6447 = vunpack.c.h.b16 %v6399
      %v6448 = vpack.c.b16 %v6416, %v6416
      %v6449 = vpack.c.b16 %v6417, %v6417
      %v6450 = vpack.c.b16 %v6418, %v6418
      %v6451 = vpack.c.b16 %v6419, %v6419
      %v6452 = vpack.c.b16 %v6420, %v6420
      %v6453 = vpack.c.b16 %v6421, %v6421
      %v6454 = vpack.c.b16 %v6422, %v6422
      %v6455 = vpack.c.b16 %v6423, %v6423
      %v6456 = vpack.c.b16 %v6424, %v6424
      %v6457 = vpack.c.b16 %v6425, %v6425
      %v6458 = vpack.c.b16 %v6426, %v6426
      %v6459 = vpack.c.b16 %v6427, %v6427
      %v6460 = vpack.c.b16 %v6428, %v6428
      %v6461 = vpack.c.b16 %v6429, %v6429
      %v6462 = vpack.c.b16 %v6430, %v6430
      %v6463 = vpack.c.b16 %v6431, %v6431
      %v6464 = vpack.c.b16 %v6432, %v6432
      %v6465 = vpack.c.b16 %v6433, %v6433
      %v6466 = vpack.c.b16 %v6434, %v6434
      %v6467 = vpack.c.b16 %v6435, %v6435
      %v6468 = vpack.c.b16 %v6436, %v6436
      %v6469 = vpack.c.b16 %v6437, %v6437
      %v6470 = vpack.c.b16 %v6438, %v6438
      %v6471 = vpack.c.b16 %v6439, %v6439
      %v6472 = vpack.c.b16 %v6440, %v6440
      %v6473 = vpack.c.b16 %v6441, %v6441
      %v6474 = vpack.c.b16 %v6442, %v6442
      %v6475 = vpack.c.b16 %v6443, %v6443
      %v6476 = vpack.c.b16 %v6444, %v6444
      %v6477 = vpack.c.b16 %v6445, %v6445
      %v6478 = vpack.c.b16 %v6446, %v6446
      %v6479 = vpack.c.b16 %v6447, %v6447
      %6512 = vst [vmem:[%s401] sm:$0xf] %v6448
      %6513 = vst [vmem:[%s401 + $0x4] sm:$0xf] %v6449
      %6514 = vst [vmem:[%s401 + $0x8] sm:$0xf] %v6450
      %6515 = vst [vmem:[%s401 + $0xc] sm:$0xf] %v6451
      %6516 = vst [vmem:[%s401 + $0x10] sm:$0xf] %v6452
      %6517 = vst [vmem:[%s401 + $0x14] sm:$0xf] %v6453
      %6518 = vst [vmem:[%s401 + $0x18] sm:$0xf] %v6454
      %6519 = vst [vmem:[%s401 + $0x1c] sm:$0xf] %v6455
      %6520 = vst [vmem:[%s401 + $0x20] sm:$0xf] %v6456
      %6521 = vst [vmem:[%s401 + $0x24] sm:$0xf] %v6457
      %6522 = vst [vmem:[%s401 + $0x28] sm:$0xf] %v6458
      %6523 = vst [vmem:[%s401 + $0x2c] sm:$0xf] %v6459
      %6524 = vst [vmem:[%s401 + $0x30] sm:$0xf] %v6460
      %6525 = vst [vmem:[%s401 + $0x34] sm:$0xf] %v6461
      %6526 = vst [vmem:[%s401 + $0x38] sm:$0xf] %v6462
      %6527 = vst [vmem:[%s401 + $0x3c] sm:$0xf] %v6463
      %6528 = vst [vmem:[%s401 + $0x40] sm:$0xf] %v6464
      %6529 = vst [vmem:[%s401 + $0x44] sm:$0xf] %v6465
      %6530 = vst [vmem:[%s401 + $0x48] sm:$0xf] %v6466
      %6531 = vst [vmem:[%s401 + $0x4c] sm:$0xf] %v6467
      %6532 = vst [vmem:[%s401 + $0x50] sm:$0xf] %v6468
      %6533 = vst [vmem:[%s401 + $0x54] sm:$0xf] %v6469
      %6534 = vst [vmem:[%s401 + $0x58] sm:$0xf] %v6470
      %6535 = vst [vmem:[%s401 + $0x5c] sm:$0xf] %v6471
      %6536 = vst [vmem:[%s401 + $0x60] sm:$0xf] %v6472
      %6537 = vst [vmem:[%s401 + $0x64] sm:$0xf] %v6473
      %6538 = vst [vmem:[%s401 + $0x68] sm:$0xf] %v6474
      %6539 = vst [vmem:[%s401 + $0x6c] sm:$0xf] %v6475
      %6540 = vst [vmem:[%s401 + $0x70] sm:$0xf] %v6476
      %6541 = vst [vmem:[%s401 + $0x74] sm:$0xf] %v6477
      %6542 = vst [vmem:[%s401 + $0x78] sm:$0xf] %v6478
      %6543 = vst [vmem:[%s401 + $0x7c] sm:$0xf] %v6479
      %v6544 = vld [vmem:[%s415] sm:$0x3]
      %v6545 = vadd.f32 %v6352, %v6353
      %v6546 = vadd.f32 %v6545, %v6354
      %v6547 = vadd.f32 %v6546, %v6355
      %v6548 = vadd.f32 %v6547, %v6356
      %v6549 = vadd.f32 %v6548, %v6357
      %v6550 = vadd.f32 %v6549, %v6358
      %v6551 = vadd.f32 %v6550, %v6359
      %v6552 = vadd.f32 %v6551, %v6360
      %v6553 = vadd.f32 %v6552, %v6361
      %v6554 = vadd.f32 %v6553, %v6362
      %v6555 = vadd.f32 %v6554, %v6363
      %v6556 = vadd.f32 %v6555, %v6364
      %v6557 = vadd.f32 %v6556, %v6365
      %v6558 = vadd.f32 %v6557, %v6366
      %v6559 = vadd.f32 %v6558, %v6367
      %v6560 = vadd.f32 %v6559, %v6368
      %v6561 = vadd.f32 %v6560, %v6369
      %v6562 = vadd.f32 %v6561, %v6370
      %v6563 = vadd.f32 %v6562, %v6371
      %v6564 = vadd.f32 %v6563, %v6372
      %v6565 = vadd.f32 %v6564, %v6373
      %v6566 = vadd.f32 %v6565, %v6374
      %v6567 = vadd.f32 %v6566, %v6375
      %v6568 = vadd.f32 %v6567, %v6376
      %v6569 = vadd.f32 %v6568, %v6377
      %v6570 = vadd.f32 %v6569, %v6378
      %v6571 = vadd.f32 %v6570, %v6379
      %v6572 = vadd.f32 %v6571, %v6380
      %v6573 = vadd.f32 %v6572, %v6381
      %v6574 = vadd.f32 %v6573, %v6382
      %v6575 = vadd.f32 %v6574, %v6383
      %v6576 = vrot.slane %v6575, 4
      %v6577 = vadd.f32 %v6575, %v6576
      %v6578 = vrot.slane %v6577, 2
      %v6579 = vadd.f32 %v6577, %v6578
      %v6580 = vrot.slane %v6579, 1
      %v6581 = vadd.f32 %v6579, %v6580
      %v6582 = vmul.f32 %v6352, %v6352
      %v6583 = vmul.f32 %v6353, %v6353
      %v6584 = vmul.f32 %v6354, %v6354
      %v6585 = vmul.f32 %v6355, %v6355
      %v6586 = vmul.f32 %v6356, %v6356
      %v6587 = vmul.f32 %v6357, %v6357
      %v6588 = vmul.f32 %v6358, %v6358
      %v6589 = vmul.f32 %v6359, %v6359
      %v6590 = vmul.f32 %v6360, %v6360
      %v6591 = vmul.f32 %v6361, %v6361
      %v6592 = vmul.f32 %v6362, %v6362
      %v6593 = vmul.f32 %v6363, %v6363
      %v6594 = vmul.f32 %v6364, %v6364
      %v6595 = vmul.f32 %v6365, %v6365
      %v6596 = vmul.f32 %v6366, %v6366
      %v6597 = vmul.f32 %v6367, %v6367
      %v6598 = vmul.f32 %v6368, %v6368
      %v6599 = vmul.f32 %v6369, %v6369
      %v6600 = vmul.f32 %v6370, %v6370
      %v6601 = vmul.f32 %v6371, %v6371
      %v6602 = vmul.f32 %v6372, %v6372
      %v6603 = vmul.f32 %v6373, %v6373
      %v6604 = vmul.f32 %v6374, %v6374
      %v6605 = vmul.f32 %v6375, %v6375
      %v6606 = vmul.f32 %v6376, %v6376
      %v6607 = vmul.f32 %v6377, %v6377
      %v6608 = vmul.f32 %v6378, %v6378
      %v6609 = vmul.f32 %v6379, %v6379
      %v6610 = vmul.f32 %v6380, %v6380
      %v6611 = vmul.f32 %v6381, %v6381
      %v6612 = vmul.f32 %v6382, %v6382
      %v6613 = vmul.f32 %v6383, %v6383
      %v6614 = vadd.f32 %v6582, %v6583
      %v6615 = vadd.f32 %v6614, %v6584
      %v6616 = vadd.f32 %v6615, %v6585
      %v6617 = vadd.f32 %v6616, %v6586
      %v6618 = vadd.f32 %v6617, %v6587
      %v6619 = vadd.f32 %v6618, %v6588
      %v6620 = vadd.f32 %v6619, %v6589
      %v6621 = vadd.f32 %v6620, %v6590
      %v6622 = vadd.f32 %v6621, %v6591
      %v6623 = vadd.f32 %v6622, %v6592
      %v6624 = vadd.f32 %v6623, %v6593
      %v6625 = vadd.f32 %v6624, %v6594
      %v6626 = vadd.f32 %v6625, %v6595
      %v6627 = vadd.f32 %v6626, %v6596
      %v6628 = vadd.f32 %v6627, %v6597
      %v6629 = vadd.f32 %v6628, %v6598
      %v6630 = vadd.f32 %v6629, %v6599
      %v6631 = vadd.f32 %v6630, %v6600
      %v6632 = vadd.f32 %v6631, %v6601
      %v6633 = vadd.f32 %v6632, %v6602
      %v6634 = vadd.f32 %v6633, %v6603
      %v6635 = vadd.f32 %v6634, %v6604
      %v6636 = vadd.f32 %v6635, %v6605
      %v6637 = vadd.f32 %v6636, %v6606
      %v6638 = vadd.f32 %v6637, %v6607
      %v6639 = vadd.f32 %v6638, %v6608
      %v6640 = vadd.f32 %v6639, %v6609
      %v6641 = vadd.f32 %v6640, %v6610
      %v6642 = vadd.f32 %v6641, %v6611
      %v6643 = vadd.f32 %v6642, %v6612
      %v6644 = vadd.f32 %v6643, %v6613
      %v6645 = vrot.slane %v6644, 4
      %v6646 = vadd.f32 %v6644, %v6645
      %v6647 = vrot.slane %v6646, 2
      %v6648 = vadd.f32 %v6646, %v6647
      %v6649 = vrot.slane %v6648, 1
      %v6650 = vadd.f32 %v6648, %v6649
      %v6651 = vsel %vm2002, %v6581, %v6650
      %v6652 = vadd.f32 %v6544, %v6651
      %6653 = vst [vmem:[%s415] sm:$0x3] %v6652
      %s6654 = sadd.s32 %s26, %s27
      %s6655 = smul.u32 32, %s6654
      %p6656 = scmp.lt.s32.totalorder %s6655, 63
      %s6657 = scalar_select %p6656, %s6655, 63
      %s6658 = smul.addr %s6657, 4
      %s6659 = scalar_lea.vmem %s8, %s6658
      %s6660 = sadd.s32 %s26, %s27
      %s6661 = smul.u32 32, %s6660
      %p6662 = scmp.lt.s32.totalorder %s6661, 63
      %s6663 = scalar_select %p6662, %s6661, 63
      %s6664 = smul.addr %s6663, 4
      %s6665 = scalar_lea.vmem %s9, %s6664
      %p6666 = scmp.lt.s32.totalorder %s26, 1
      %s6667 = scalar_select %p6666, %s26, 1
      %s6668 = smul.addr %s6667, 2
      %s6669 = scalar_lea.vmem %s10, %s6668
      // Predicated region
      $region57: #{resnet_bottleneck_block.5} parent=51 // pred_check
        %p6670 = pneg %p229
      $region58: #{resnet_bottleneck_block.5} parent=51 // pred_check_branch
        %6672 = sbr.rel (%p6670) target = $region60
      $region59: #{resnet_bottleneck_block.5} parent=51 // pred_region
        %s6673 = sadd.s32 %s26, %s27
        %s6674 = smul.u32 32, %s6673
      $region60: #{resnet_bottleneck_block.5} parent=51 // pred_fallthru
        _
      // Predicated region
      $region61: #{resnet_bottleneck_block.5} parent=51 // pred_check
        %p6675 = pneg %p257
      $region62: #{resnet_bottleneck_block.5} parent=51 // pred_check_branch
        %6677 = sbr.rel (%p6675) target = $region64
      $region63: #{resnet_bottleneck_block.5} parent=51 // pred_region
        %s6678 = sadd.s32 %s26, %s27
        %s6679 = smul.u32 32, %s6678
      $region64: #{resnet_bottleneck_block.5} parent=51 // pred_fallthru
        _
      // Predicated region
      $region65: #{resnet_bottleneck_block.5} parent=51 // pred_check
        %p6680 = pneg %p283
      $region66: #{resnet_bottleneck_block.5} parent=51 // pred_check_branch
        %6682 = sbr.rel (%p6680) target = $region68
      $region67: #{resnet_bottleneck_block.5} parent=51 // pred_region
        _
      $region68: #{resnet_bottleneck_block.5} parent=51 // pred_fallthru
        _
    $region52: #{resnet_bottleneck_block.5} parent=5 // pred_fallthru
      _
    %p6683 = scmp.le.s32.totalorder 2, %s17
    // Predicated region
    $region69: #{resnet_bottleneck_block.5} parent=5 // pred_check
      %p6684 = pneg %p6683
    $region70: #{resnet_bottleneck_block.5} parent=5 // pred_check_branch
      %6686 = sbr.rel (%p6684) target = $region72
    $region71: #{resnet_bottleneck_block.5} parent=5 // pred_region
      %s6687 = ssub.s32 %s17, 2
      // Predicated region
      $region73: #{resnet_bottleneck_block.5} parent=71 // pred_check
        %p6688 = pneg %p235
      $region74: #{resnet_bottleneck_block.5} parent=71 // pred_check_branch
        %6690 = sbr.rel (%p6688) target = $region76
      $region75: #{resnet_bottleneck_block.5} parent=71 // pred_region
        %s6691 = sadd.s32 %s28, %s29
        %s6692 = smul.u32 32, %s6691
        %p6693 = scmp.lt.s32.totalorder %s6692, 63
        %s6694 = scalar_select %p6693, %s6692, 63
        %s6695 = smul.addr %s6694, 4
        %s6696 = scalar_lea.vmem %s8, %s6695
      $region76: #{resnet_bottleneck_block.5} parent=71 // pred_fallthru
        _
      // Predicated region
      $region77: #{resnet_bottleneck_block.5} parent=71 // pred_check
        %p6697 = pneg %p263
      $region78: #{resnet_bottleneck_block.5} parent=71 // pred_check_branch
        %6699 = sbr.rel (%p6697) target = $region80
      $region79: #{resnet_bottleneck_block.5} parent=71 // pred_region
        %s6700 = sadd.s32 %s28, %s29
        %s6701 = smul.u32 32, %s6700
        %p6702 = scmp.lt.s32.totalorder %s6701, 63
        %s6703 = scalar_select %p6702, %s6701, 63
        %s6704 = smul.addr %s6703, 4
        %s6705 = scalar_lea.vmem %s9, %s6704
      $region80: #{resnet_bottleneck_block.5} parent=71 // pred_fallthru
        _
      // Predicated region
      $region81: #{resnet_bottleneck_block.5} parent=71 // pred_check
        %p6706 = pneg %p289
      $region82: #{resnet_bottleneck_block.5} parent=71 // pred_check_branch
        %6708 = sbr.rel (%p6706) target = $region84
      $region83: #{resnet_bottleneck_block.5} parent=71 // pred_region
        %p6709 = scmp.lt.s32.totalorder %s28, 1
        %s6710 = scalar_select %p6709, %s28, 1
        %s6711 = smul.addr %s6710, 2
        %s6712 = scalar_lea.vmem %s10, %s6711
      $region84: #{resnet_bottleneck_block.5} parent=71 // pred_fallthru
        _
    $region72: #{resnet_bottleneck_block.5} parent=5 // pred_fallthru
      _
  $region6: #{resnet_bottleneck_block.5} parent=0 // loop_footer
    %s21 = sadd.s32 1, %s17
  $region7: #{resnet_bottleneck_block.5} parent=0 // loop_footer_branch
    %16 = sbr.rel target = $region3
  $region8: #{resnet_bottleneck_block.5} parent=0 // loop_exit
    _

</llo_original>
